<compile_context>
chip_gen: v7x
topology: tpu7x:2x2x1
jax: 0.10.0
libtpu: 0.0.40
codegen_flags: <defaults>
</compile_context>

<pallas_src>
import numpy as np
import jax
import jax.numpy as jnp
from jax import lax
from jax.experimental import pallas as pl
from jax.experimental.pallas import tpu as pltpu

# ---------------- config (small shapes consistent with the module) -----------
KMER_LEN = 9                      # T
SIGNAL_LEN = 16
HIDDEN = 32                       # hidden_size
HIDDEN_SEQ = HIDDEN // 2          # 16
HIDDEN_SIGNAL = HIDDEN - HIDDEN_SEQ
NUM_COMBINE_LAYERS = 2
NUM_PRE_LAYERS = 2
NUM_CLASSES = 2
VOCAB_SIZE = 16
EMBEDDING_SIZE = 4
SIGNAL_FEATURE_NUM = 3            # using_signal_len=True
BATCH = 2
BP = 8                            # sublane-padded batch
T = KMER_LEN

XCOLS = 32                        # activation slab: [kmer|means|stds|slens|signals|pad]
GW = 256                          # fused gate width (both stacks)
UH = 64                           # fused carry width (both stacks)

# fused gate slot order (i, f, o, g); PyTorch row-chunk order is (i, f, g, o)
SLOT = (0, 1, 3, 2)

# weight slab row offsets (all multiples of 16 => bf16 sublane-tile aligned)
ROW_EMB = 0        # (16,256) embedding @ W_emb (folded layer-0 emb projection)
ROW_WIH0B = 16     # (32,256) branch layer-0 wih over the activation slab cols
ROW_WHH0B = 48     # (64,256)
ROW_WIH1B = 112    # (64,256)
ROW_WHH1B = 176    # (64,256)
ROW_WIH0C = 240    # (32,256)
ROW_WHH0C = 272    # (64,256)
ROW_WIH1C = 336    # (64,256)
ROW_WHH1C = 400    # (64,256)
ROW_FCB = 464      # (64,256)  cols 0:32 used (fused fc_seq | fc_signal)
ROW_FC1 = 528      # (64,256)  cols 0:32 used
ROW_FC2 = 592      # (32,256)  cols 0:2  used
W_ROWS = 624

# misc slab (f32, 24 x 256)
MROW_HC_BR = 0     # rows 0:8   [h0_l0 | c0_l0 | h0_l1 | c0_l1] of branch stack
MROW_HC_CB = 8     # rows 8:16  same for combine stack
MROW_BIAS = 16     # rows 16:20 LSTM layer biases: branch0, branch1, comb0, comb1
MROW_HEADB = 20    # row 20     [fcb_b(32) | fc1_b(32) | fc2_b(2)]
M_ROWS = 24

assert NUM_PRE_LAYERS == NUM_COMBINE_LAYERS
assert HIDDEN_SEQ == HIDDEN_SIGNAL


def _bf16r(x):
    """Round to bf16-representable values (kept f32)."""
    return x.astype(jnp.bfloat16).astype(jnp.float32)


# ---------------- fused bidirectional LSTM layer (inside the kernel) ---------
def _run_layer(gates_x, whh_b, h0, c0, out_scr):
    """gates_x: (T*BP, GW) f32, hoisted input projection + bias, true time order.
    whh_b: (UH, GW) bf16, block-diagonal per unit, units ordered [fwd.. | bwd..].
    Writes the true time-ordered layer output into out_scr (if given).
    Returns the final-step carry h (= [h_fwd(T-1) | h_bwd(input t=0)])."""
    fwd = (lax.broadcasted_iota(jnp.int32, (1, GW), 1) % UH) < (UH // 2)
    h, c = h0, c0
    HF = UH // 2
    for s in range(T):                       # unrolled: T = 9, static
        a, b = s * BP, (T - 1 - s) * BP
        # forward units read input time s, backward units read time T-1-s
        gx = jnp.where(fwd, gates_x[a:a + BP, :], gates_x[b:b + BP, :])
        g = gx + jnp.dot(h.astype(jnp.bfloat16), whh_b,
                         preferred_element_type=jnp.float32)
        sg = jax.nn.sigmoid(g[:, :3 * UH])   # one EUP slab: i | f | o
        gg = jnp.tanh(g[:, 3 * UH:])         # one EUP slab: g
        c = sg[:, UH:2 * UH] * c + sg[:, :UH] * gg
        h = sg[:, 2 * UH:3 * UH] * jnp.tanh(c)
        if out_scr is not None:
            out_scr[a:a + BP, 0:HF] = h[:, :HF]     # forward half -> time s
            out_scr[b:b + BP, HF:UH] = h[:, HF:]    # backward half -> time T-1-s
    return h


# ---------------- the single fused kernel ------------------------------------
def fused_model_kernel(x_ref, w_ref, m_ref, out_ref, scr_a, scr_b):
    x = x_ref[...]                                      # (T*BP, XCOLS) f32
    x_b = x.astype(jnp.bfloat16)
    km = x[:, 0:1].astype(jnp.int32)
    onehot = jnp.where(
        km == lax.broadcasted_iota(jnp.int32, (T * BP, VOCAB_SIZE), 1),
        1.0, 0.0).astype(jnp.bfloat16)

    def wslab(r, n):
        return w_ref[r:r + n, :]

    def bias(i):
        return m_ref[MROW_BIAS + i:MROW_BIAS + i + 1, :]

    def h0c0(base, l):
        h0 = m_ref[base:base + BP, 2 * l * UH:(2 * l + 1) * UH]
        c0 = m_ref[base:base + BP, (2 * l + 1) * UH:(2 * l + 2) * UH]
        return h0, c0

    # ---- branch stack: seq + signal fused (4 units x H=16, 256-wide gates) --
    gx = (jnp.dot(onehot, wslab(ROW_EMB, VOCAB_SIZE),
                  preferred_element_type=jnp.float32)
          + jnp.dot(x_b, wslab(ROW_WIH0B, XCOLS),
                    preferred_element_type=jnp.float32)
          + bias(0))
    h0, c0 = h0c0(MROW_HC_BR, 0)
    _run_layer(gx, wslab(ROW_WHH0B, UH), h0, c0, scr_a)

    gx = (jnp.dot(scr_a[...].astype(jnp.bfloat16), wslab(ROW_WIH1B, UH),
                  preferred_element_type=jnp.float32) + bias(1))
    h0, c0 = h0c0(MROW_HC_BR, 1)
    _run_layer(gx, wslab(ROW_WHH1B, UH), h0, c0, scr_b)

    # ---- fc_seq / fc_signal fused (block diagonal) + ReLU --------------------
    comb_in = jnp.maximum(
        jnp.dot(scr_b[...].astype(jnp.bfloat16),
                w_ref[ROW_FCB:ROW_FCB + 64, 0:2 * HIDDEN_SEQ],
                preferred_element_type=jnp.float32)
        + m_ref[MROW_HEADB:MROW_HEADB + 1, 0:2 * HIDDEN_SEQ], 0.0)   # (T*BP, 32)

    # ---- combine stack (2 units x H=32, 256-wide gates) ----------------------
    gx = (jnp.dot(comb_in.astype(jnp.bfloat16), wslab(ROW_WIH0C, 2 * HIDDEN_SEQ),
                  preferred_element_type=jnp.float32) + bias(2))
    h0, c0 = h0c0(MROW_HC_CB, 0)
    _run_layer(gx, wslab(ROW_WHH0C, UH), h0, c0, scr_a)

    gx = (jnp.dot(scr_a[...].astype(jnp.bfloat16), wslab(ROW_WIH1C, UH),
                  preferred_element_type=jnp.float32) + bias(3))
    h0, c0 = h0c0(MROW_HC_CB, 1)
    h_last = _run_layer(gx, wslab(ROW_WHH1C, UH), h0, c0, None)
    # h_last == cat(out[:, -1, :H], out[:, 0, H:], dim=1) in [fwd|bwd] layout

    # ---- head: fc1 -> relu -> fc2 -> relu -> softmax (exact reciprocal) ------
    h1 = jnp.maximum(
        jnp.dot(h_last.astype(jnp.bfloat16), w_ref[ROW_FC1:ROW_FC1 + 64, 0:HIDDEN],
                preferred_element_type=jnp.float32)
        + m_ref[MROW_HEADB:MROW_HEADB + 1, 32:32 + HIDDEN], 0.0)
    z = jnp.maximum(
        jnp.dot(h1.astype(jnp.bfloat16),
                w_ref[ROW_FC2:ROW_FC2 + HIDDEN, 0:NUM_CLASSES],
                preferred_element_type=jnp.float32)
        + m_ref[MROW_HEADB:MROW_HEADB + 1, 64:64 + NUM_CLASSES], 0.0)
    z = z - jnp.max(z, axis=1, keepdims=True)
    e = jnp.exp(z)
    out_ref[...] = e / jnp.sum(e, axis=1, keepdims=True)


# ---------------- raw (PyTorch-layout) parameter construction ----------------
def _normal(key, shape, scale=0.1):
    # bf16-representable values so the in-kernel bf16 operand cast is exact.
    return _bf16r(scale * jax.random.normal(key, shape))


def make_raw_lstm(key, input_size, hidden, num_layers):
    layers = []
    for l in range(num_layers):
        din = input_size if l == 0 else 2 * hidden
        dirs = []
        for _ in range(2):  # forward, backward
            key, k1, k2, k3, k4 = jax.random.split(key, 5)
            dirs.append(dict(
                wih=_normal(k1, (4 * hidden, din)),
                whh=_normal(k2, (4 * hidden, hidden)),
                b=_normal(k3, (4 * hidden,)) + _normal(k4, (4 * hidden,)),
            ))
        layers.append(dirs)
    return key, layers


def make_raw_linear(key, din, dout):
    key, k1, k2 = jax.random.split(key, 3)
    return key, _normal(k1, (dout, din)), _normal(k2, (dout,))


def make_params(key):
    p = {}
    key, ke = jax.random.split(key)
    p['embedding'] = _normal(ke, (VOCAB_SIZE, EMBEDDING_SIZE))
    key, p['lstm_seq'] = make_raw_lstm(key, EMBEDDING_SIZE + SIGNAL_FEATURE_NUM,
                                       HIDDEN_SEQ, NUM_COMBINE_LAYERS)
    key, p['fc_seq_w'], p['fc_seq_b'] = make_raw_linear(key, 2 * HIDDEN_SEQ, HIDDEN_SEQ)
    key, p['lstm_signal'] = make_raw_lstm(key, SIGNAL_LEN, HIDDEN_SIGNAL, NUM_PRE_LAYERS)
    key, p['fc_signal_w'], p['fc_signal_b'] = make_raw_linear(
        key, 2 * HIDDEN_SIGNAL, HIDDEN_SIGNAL)
    key, p['lstm_combine'] = make_raw_lstm(key, HIDDEN_SEQ + HIDDEN_SIGNAL,
                                           HIDDEN, NUM_COMBINE_LAYERS)
    key, p['fc1_w'], p['fc1_b'] = make_raw_linear(key, 2 * HIDDEN, HIDDEN)
    key, p['fc2_w'], p['fc2_b'] = make_raw_linear(key, HIDDEN, NUM_CLASSES)
    return key, p


def make_hidden_states(key, batch):
    # TODO(synk): PyTorch draws these from torch.randn on every call.
    h0c0 = {}
    for name, hidden, layers in (('seq', HIDDEN_SEQ, NUM_COMBINE_LAYERS),
                                 ('signal', HIDDEN_SIGNAL, NUM_PRE_LAYERS),
                                 ('combine', HIDDEN, NUM_COMBINE_LAYERS)):
        key, kh, kc = jax.random.split(key, 3)
        h0 = _bf16r(jax.random.normal(kh, (layers * 2, batch, hidden)))
        c0 = _bf16r(jax.random.normal(kc, (layers * 2, batch, hidden)))
        h0c0[name] = (h0, c0)
    return key, h0c0


# ---------------- host-side packing into the 2 parameter slabs ---------------
def _np(x):
    return np.asarray(x, dtype=np.float32)


def pack_operands(raw, h0c0_):
    """Pack all weights into one (W_ROWS,256) bf16 slab and all biases/h0/c0/
    head params into one (M_ROWS,256) f32 slab, in the fused layout:
      * gate columns gate-major in slot order (i,f,o,g); within a gate the
        units are [forward units | backward units], H-wide each;
      * whh block-diagonal per unit; wih rows follow the producing layout."""
    w = np.zeros((W_ROWS, GW), np.float32)
    m = np.zeros((M_ROWS, GW), np.float32)
    w_emb = np.zeros((EMBEDDING_SIZE, GW), np.float32)

    def put_dir(p, u, H, wih_map, whh_row0, bias_row):
        wih = _np(p['wih']); whh = _np(p['whh']); b = _np(p['b'])
        for k in range(4):
            cs = SLOT[k] * UH + u * H
            for dst, dr0, sc0, n in wih_map:
                dst[dr0:dr0 + n, cs:cs + H] = wih[k * H:(k + 1) * H, sc0:sc0 + n].T
            w[whh_row0 + u * H:whh_row0 + (u + 1) * H, cs:cs + H] = \
                whh[k * H:(k + 1) * H, :].T
            m[bias_row, cs:cs + H] = b[k * H:(k + 1) * H]

    H = HIDDEN_SEQ
    # branch stack, units: 0=seq-fwd, 1=sig-fwd, 2=seq-bwd, 3=sig-bwd
    for d in range(2):
        put_dir(raw['lstm_seq'][0][d], u=(0 if d == 0 else 2), H=H,
                wih_map=[(w_emb, 0, 0, EMBEDDING_SIZE),
                         (w, ROW_WIH0B + 1, EMBEDDING_SIZE, SIGNAL_FEATURE_NUM)],
                whh_row0=ROW_WHH0B, bias_row=MROW_BIAS + 0)
        put_dir(raw['lstm_signal'][0][d], u=(1 if d == 0 else 3), H=H,
                wih_map=[(w, ROW_WIH0B + 1 + SIGNAL_FEATURE_NUM, 0, SIGNAL_LEN)],
                whh_row0=ROW_WHH0B, bias_row=MROW_BIAS + 0)
    for d in range(2):
        put_dir(raw['lstm_seq'][1][d], u=(0 if d == 0 else 2), H=H,
                wih_map=[(w, ROW_WIH1B + 0, 0, H), (w, ROW_WIH1B + 2 * H, H, H)],
                whh_row0=ROW_WHH1B, bias_row=MROW_BIAS + 1)
        put_dir(raw['lstm_signal'][1][d], u=(1 if d == 0 else 3), H=H,
                wih_map=[(w, ROW_WIH1B + H, 0, H), (w, ROW_WIH1B + 3 * H, H, H)],
                whh_row0=ROW_WHH1B, bias_row=MROW_BIAS + 1)
    # combine stack, units: 0=fwd, 1=bwd
    for d in range(2):
        put_dir(raw['lstm_combine'][0][d], u=d, H=HIDDEN,
                wih_map=[(w, ROW_WIH0C, 0, 2 * HIDDEN_SEQ)],
                whh_row0=ROW_WHH0C, bias_row=MROW_BIAS + 2)
        put_dir(raw['lstm_combine'][1][d], u=d, H=HIDDEN,
                wih_map=[(w, ROW_WIH1C, 0, 2 * HIDDEN)],
                whh_row0=ROW_WHH1C, bias_row=MROW_BIAS + 3)

    # folded embedding projection (VOCAB, 256)
    w[ROW_EMB:ROW_EMB + VOCAB_SIZE, :] = _np(raw['embedding']) @ w_emb

    # fused fc_seq / fc_signal: branch-output rows -> [seq_fc(16) | sig_fc(16)]
    fs_w = _np(raw['fc_seq_w']).T        # (32,16), rows [seq_f | seq_b]
    fg_w = _np(raw['fc_signal_w']).T     # (32,16), rows [sig_f | sig_b]
    w[ROW_FCB + 0:ROW_FCB + 16, 0:16] = fs_w[0:16]
    w[ROW_FCB + 32:ROW_FCB + 48, 0:16] = fs_w[16:32]
    w[ROW_FCB + 16:ROW_FCB + 32, 16:32] = fg_w[0:16]
    w[ROW_FCB + 48:ROW_FCB + 64, 16:32] = fg_w[16:32]
    m[MROW_HEADB, 0:16] = _np(raw['fc_seq_b'])
    m[MROW_HEADB, 16:32] = _np(raw['fc_signal_b'])

    # head
    w[ROW_FC1:ROW_FC1 + 2 * HIDDEN, 0:HIDDEN] = _np(raw['fc1_w']).T
    w[ROW_FC2:ROW_FC2 + HIDDEN, 0:NUM_CLASSES] = _np(raw['fc2_w']).T
    m[MROW_HEADB, 32:32 + HIDDEN] = _np(raw['fc1_b'])
    m[MROW_HEADB, 64:64 + NUM_CLASSES] = _np(raw['fc2_b'])

    # h0 / c0 (batch rows padded 2 -> 8 with zeros)
    h0_seq, c0_seq = h0c0_['seq']
    h0_sig, c0_sig = h0c0_['signal']
    for l in range(NUM_COMBINE_LAYERS):
        for u, (hh, cc, d) in enumerate([(h0_seq, c0_seq, 0), (h0_sig, c0_sig, 0),
                                         (h0_seq, c0_seq, 1), (h0_sig, c0_sig, 1)]):
            cs = u * HIDDEN_SEQ
            m[MROW_HC_BR:MROW_HC_BR + BATCH,
              2 * l * UH + cs:2 * l * UH + cs + HIDDEN_SEQ] = _np(hh[2 * l + d])
            m[MROW_HC_BR:MROW_HC_BR + BATCH,
              (2 * l + 1) * UH + cs:(2 * l + 1) * UH + cs + HIDDEN_SEQ] = _np(cc[2 * l + d])
    h0_cb, c0_cb = h0c0_['combine']
    for l in range(NUM_COMBINE_LAYERS):
        for u in range(2):   # direction == unit
            cs = u * HIDDEN
            m[MROW_HC_CB:MROW_HC_CB + BATCH,
              2 * l * UH + cs:2 * l * UH + cs + HIDDEN] = _np(h0_cb[2 * l + u])
            m[MROW_HC_CB:MROW_HC_CB + BATCH,
              (2 * l + 1) * UH + cs:(2 * l + 1) * UH + cs + HIDDEN] = _np(c0_cb[2 * l + u])

    return jnp.asarray(w).astype(jnp.bfloat16), jnp.asarray(m)


# ---------------- forward wrapper: ONE gridless pallas_call -------------------
def model_forward(w_slab, m_slab, data):
    kmer, means, stds, signal_lens, signals = data
    B = kmer.shape[0]

    def pad_b(a):  # pad batch 2 -> 8 (one sublane group)
        return jnp.zeros((BP,) + a.shape[1:], a.dtype).at[:B].set(a)

    feat = jnp.stack([pad_b(kmer).astype(jnp.float32), pad_b(means),
                      pad_b(stds), pad_b(signal_lens)], axis=-1)        # (BP,T,4)
    x = jnp.concatenate(
        [feat, pad_b(signals),
         jnp.zeros((BP, T, XCOLS - 4 - SIGNAL_LEN), jnp.float32)], axis=-1)
    x_tm = jnp.transpose(x, (1, 0, 2)).reshape(T * BP, XCOLS)           # time-major

    vmem = pl.BlockSpec(memory_space=pltpu.MemorySpace.VMEM)
    # TODO(synk): for real serving batches, add a ("parallel",) batch grid to
    # use both v7x TensorCores; at B=2 a gridless single program is optimal.
    out = pl.pallas_call(
        fused_model_kernel,
        out_shape=jax.ShapeDtypeStruct((BP, NUM_CLASSES), jnp.float32),
        in_specs=[vmem, vmem, vmem],
        out_specs=vmem,
        scratch_shapes=[pltpu.VMEM((T * BP, UH), jnp.float32),
                        pltpu.VMEM((T * BP, UH), jnp.float32)],
    )(x_tm, w_slab, m_slab)
    return out[:B]


# ---------------- pure-JAX reference (PyTorch semantics, f32) -----------------
def _dot(a, b):
    return jnp.dot(a, b, precision=lax.Precision.HIGHEST)


def ref_bilstm(x, raw_layers, h0, c0):
    B, Tn, _ = x.shape
    out = x
    for l, dirs in enumerate(raw_layers):
        outs = []
        for d, p in enumerate(dirs):
            H = p['whh'].shape[1]
            h, c = h0[2 * l + d], c0[2 * l + d]
            hs = []
            order = range(Tn) if d == 0 else range(Tn - 1, -1, -1)
            for t in order:
                g = _dot(out[:, t, :], p['wih'].T) + _dot(h, p['whh'].T) + p['b']
                i = jax.nn.sigmoid(g[:, :H])
                f = jax.nn.sigmoid(g[:, H:2 * H])
                gg = jnp.tanh(g[:, 2 * H:3 * H])
                o = jax.nn.sigmoid(g[:, 3 * H:])
                c = f * c + i * gg
                h = o * jnp.tanh(c)
                hs.append(h)
            if d == 1:
                hs = hs[::-1]
            outs.append(jnp.stack(hs, axis=1))
        out = jnp.concatenate(outs, axis=2)
    return out


def ref_forward(raw, data, h0c0):
    kmer, means, stds, slens, signals = data
    emb = jnp.take(raw['embedding'], kmer.astype(jnp.int32), axis=0)
    x_seq = jnp.concatenate([emb, means[..., None], stds[..., None],
                             slens[..., None]], axis=2).astype(jnp.float32)
    out_seq = ref_bilstm(x_seq, raw['lstm_seq'], *h0c0['seq'])
    out_seq = jax.nn.relu(_dot(out_seq, raw['fc_seq_w'].T) + raw['fc_seq_b'])
    out_sig = ref_bilstm(signals.astype(jnp.float32), raw['lstm_signal'],
                         *h0c0['signal'])
    out_sig = jax.nn.relu(_dot(out_sig, raw['fc_signal_w'].T) + raw['fc_signal_b'])
    out = jnp.concatenate([out_seq, out_sig], axis=2)
    out = ref_bilstm(out, raw['lstm_combine'], *h0c0['combine'])
    out = jnp.concatenate([out[:, -1, :HIDDEN], out[:, 0, HIDDEN:]], axis=1)
    h1 = jax.nn.relu(_dot(out, raw['fc1_w'].T) + raw['fc1_b'])
    z = jax.nn.relu(_dot(h1, raw['fc2_w'].T) + raw['fc2_b'])
    return jax.nn.softmax(z, axis=1)


# ---------------- main --------------------------------------------------------
if __name__ == "__main__":
    key = jax.random.PRNGKey(0)
    key, raw = make_params(key)
    key, h0c0 = make_hidden_states(key, BATCH)
    w_slab, m_slab = pack_operands(raw, h0c0)

    key, k1, k2, k3, k4, k5 = jax.random.split(key, 6)
    kmer = jax.random.randint(k1, (BATCH, KMER_LEN), 0, VOCAB_SIZE, dtype=jnp.int32)
    means = _bf16r(jax.random.normal(k2, (BATCH, KMER_LEN), dtype=jnp.float32))
    stds = _bf16r(jax.random.uniform(k3, (BATCH, KMER_LEN), dtype=jnp.float32))
    signal_lens = _bf16r(jax.random.uniform(k4, (BATCH, KMER_LEN)) * 10.0)
    signals = _bf16r(jax.random.normal(k5, (BATCH, KMER_LEN, SIGNAL_LEN),
                                       dtype=jnp.float32))
    data = (kmer, means, stds, signal_lens, signals)

    out = jax.block_until_ready(jax.jit(model_forward)(w_slab, m_slab, data))
    ref = jax.block_until_ready(jax.jit(ref_forward)(raw, data, h0c0))

    assert out.shape == (BATCH, NUM_CLASSES)
    assert bool(jnp.all(jnp.isfinite(out)))
    # exact softmax: rows sum to 1
    assert bool(jnp.allclose(jnp.sum(out, axis=1), 1.0, atol=1e-4))
    # fused bf16-operand Pallas kernel vs. f32 PyTorch-semantics reference
    # (weights/inputs/h0/c0 are bf16-representable, so the only rounding source
    #  is the per-step carry cast -> expected drift ~1e-3 on the output).
    assert bool(jnp.allclose(out, ref, atol=1e-2, rtol=1e-2))
    print("KERNEL_OK")
</pallas_src>

<mosaic_0001>
module attributes {stable_mosaic.version = 11 : i64} {
  func.func @fused_model_kernel(%arg0: memref<72x32xf32, #tpu.memory_space<vmem>>, %arg1: memref<624x256xbf16, #tpu.memory_space<vmem>>, %arg2: memref<24x256xf32, #tpu.memory_space<vmem>>, %arg3: memref<8x2xf32, #tpu.memory_space<vmem>>, %arg4: memref<72x64xf32, #tpu.memory_space<vmem>>, %arg5: memref<72x64xf32, #tpu.memory_space<vmem>>) attributes {dimension_semantics = [], scalar_prefetch = 0 : i64, scratch_operands = 2 : i64, tpu.core_type = #tpu.core_type<tc>} {
    %c0 = arith.constant 0 : index
    %c0_0 = arith.constant 0 : index
    %0 = vector.load %arg0[%c0, %c0_0] : memref<72x32xf32, #tpu.memory_space<vmem>>, vector<72x32xf32>
    %1 = arith.truncf %0 : vector<72x32xf32> to vector<72x32xbf16>
    %2 = vector.extract_strided_slice %0 {offsets = [0, 0], sizes = [72, 1], strides = [1, 1]} : vector<72x32xf32> to vector<72x1xf32>
    %3 = arith.fptosi %2 : vector<72x1xf32> to vector<72x1xi32>
    %4 = tpu.iota {dimensions = array<i32: 1>} : vector<72x16xi32>
    %5 = vector.broadcast %3 : vector<72x1xi32> to vector<72x16xi32>
    %6 = arith.cmpi eq, %5, %4 : vector<72x16xi32>
    %cst = arith.constant 1.000000e+00 : f32
    %cst_1 = arith.constant 0.000000e+00 : f32
    %7 = vector.broadcast %cst : f32 to vector<72x16xf32>
    %8 = vector.broadcast %cst_1 : f32 to vector<72x16xf32>
    %9 = arith.select %6, %7, %8 : vector<72x16xi1>, vector<72x16xf32>
    %10 = arith.truncf %9 : vector<72x16xf32> to vector<72x16xbf16>
    %c0_2 = arith.constant 0 : index
    %c0_3 = arith.constant 0 : index
    %11 = vector.load %arg1[%c0_2, %c0_3] : memref<624x256xbf16, #tpu.memory_space<vmem>>, vector<16x256xbf16>
    %cst_4 = arith.constant dense<0.000000e+00> : vector<72x256xf32>
    %12 = tpu.matmul %10, %11, %cst_4 {dimension_numbers = #tpu.dot_dimension_numbers<[1], [0], [0], [1], [0, 0, 1, 1], [], []>} : vector<72x16xbf16>, vector<16x256xbf16>, vector<72x256xf32> -> vector<72x256xf32>
    %c16 = arith.constant 16 : index
    %c0_5 = arith.constant 0 : index
    %13 = vector.load %arg1[%c16, %c0_5] : memref<624x256xbf16, #tpu.memory_space<vmem>>, vector<32x256xbf16>
    %cst_6 = arith.constant dense<0.000000e+00> : vector<72x256xf32>
    %14 = tpu.matmul %1, %13, %cst_6 {dimension_numbers = #tpu.dot_dimension_numbers<[1], [0], [0], [1], [0, 0, 1, 1], [], []>} : vector<72x32xbf16>, vector<32x256xbf16>, vector<72x256xf32> -> vector<72x256xf32>
    %15 = arith.addf %12, %14 : vector<72x256xf32>
    %c16_7 = arith.constant 16 : index
    %c0_8 = arith.constant 0 : index
    %16 = vector.load %arg2[%c16_7, %c0_8] : memref<24x256xf32, #tpu.memory_space<vmem>>, vector<1x256xf32>
    %17 = vector.broadcast %16 : vector<1x256xf32> to vector<72x256xf32>
    %18 = arith.addf %15, %17 : vector<72x256xf32>
    %c0_9 = arith.constant 0 : index
    %c0_10 = arith.constant 0 : index
    %19 = vector.load %arg2[%c0_9, %c0_10] : memref<24x256xf32, #tpu.memory_space<vmem>>, vector<8x64xf32>
    %c0_11 = arith.constant 0 : index
    %c64 = arith.constant 64 : index
    %20 = vector.load %arg2[%c0_11, %c64] : memref<24x256xf32, #tpu.memory_space<vmem>>, vector<8x64xf32>
    %c48 = arith.constant 48 : index
    %c0_12 = arith.constant 0 : index
    %21 = vector.load %arg1[%c48, %c0_12] : memref<624x256xbf16, #tpu.memory_space<vmem>>, vector<64x256xbf16>
    %22 = tpu.iota {dimensions = array<i32: 1>} : vector<1x256xi32>
    %c64_i32 = arith.constant 64 : i32
    %c0_i32 = arith.constant 0 : i32
    %23 = arith.cmpi eq, %c64_i32, %c0_i32 : i32
    %c1_i32 = arith.constant 1 : i32
    %24 = arith.select %23, %c1_i32, %c64_i32 : i32
    %25 = vector.broadcast %24 : i32 to vector<1x256xi32>
    %26 = arith.remsi %22, %25 : vector<1x256xi32>
    %c0_i32_13 = arith.constant 0 : i32
    %27 = vector.broadcast %c0_i32_13 : i32 to vector<1x256xi32>
    %28 = arith.cmpi ne, %26, %27 : vector<1x256xi32>
    %c0_i32_14 = arith.constant 0 : i32
    %29 = vector.broadcast %c0_i32_14 : i32 to vector<1x256xi32>
    %30 = arith.cmpi slt, %26, %29 : vector<1x256xi32>
    %c0_i32_15 = arith.constant 0 : i32
    %31 = arith.cmpi slt, %24, %c0_i32_15 : i32
    %32 = vector.broadcast %31 : i1 to vector<1x256xi1>
    %33 = vector.broadcast %32 : vector<1x256xi1> to vector<1x256xi1>
    %34 = arith.xori %30, %33 : vector<1x256xi1>
    %35 = arith.andi %34, %28 : vector<1x256xi1>
    %36 = vector.broadcast %24 : i32 to vector<1x256xi32>
    %37 = arith.addi %26, %36 : vector<1x256xi32>
    %38 = arith.select %35, %37, %26 : vector<1x256xi1>, vector<1x256xi32>
    %c32_i32 = arith.constant 32 : i32
    %39 = vector.broadcast %c32_i32 : i32 to vector<1x256xi32>
    %40 = arith.cmpi slt, %38, %39 : vector<1x256xi32>
    %41 = vector.extract_strided_slice %18 {offsets = [0, 0], sizes = [8, 256], strides = [1, 1]} : vector<72x256xf32> to vector<8x256xf32>
    %42 = vector.extract_strided_slice %18 {offsets = [64, 0], sizes = [8, 256], strides = [1, 1]} : vector<72x256xf32> to vector<8x256xf32>
    %43 = vector.shape_cast %40 : vector<1x256xi1> to vector<1x256xi1>
    %44 = vector.broadcast %43 : vector<1x256xi1> to vector<8x256xi1>
    %45 = arith.select %44, %41, %42 : vector<8x256xi1>, vector<8x256xf32>
    %46 = arith.truncf %19 : vector<8x64xf32> to vector<8x64xbf16>
    %cst_16 = arith.constant dense<0.000000e+00> : vector<8x256xf32>
    %47 = tpu.matmul %46, %21, %cst_16 {dimension_numbers = #tpu.dot_dimension_numbers<[1], [0], [0], [1], [0, 0, 1, 1], [], []>} : vector<8x64xbf16>, vector<64x256xbf16>, vector<8x256xf32> -> vector<8x256xf32>
    %48 = arith.addf %45, %47 : vector<8x256xf32>
    %49 = vector.extract_strided_slice %48 {offsets = [0, 0], sizes = [8, 192], strides = [1, 1]} : vector<8x256xf32> to vector<8x192xf32>
    %50 = arith.negf %49 : vector<8x192xf32>
    %51 = math.exp %50 : vector<8x192xf32>
    %cst_17 = arith.constant 1.000000e+00 : f32
    %52 = vector.broadcast %cst_17 : f32 to vector<8x192xf32>
    %53 = arith.addf %52, %51 : vector<8x192xf32>
    %54 = arith.divf %52, %53 : vector<8x192xf32>
    %55 = vector.extract_strided_slice %48 {offsets = [0, 192], sizes = [8, 64], strides = [1, 1]} : vector<8x256xf32> to vector<8x64xf32>
    %56 = math.tanh %55 : vector<8x64xf32>
    %57 = vector.extract_strided_slice %54 {offsets = [0, 64], sizes = [8, 64], strides = [1, 1]} : vector<8x192xf32> to vector<8x64xf32>
    %58 = arith.mulf %57, %20 : vector<8x64xf32>
    %59 = vector.extract_strided_slice %54 {offsets = [0, 0], sizes = [8, 64], strides = [1, 1]} : vector<8x192xf32> to vector<8x64xf32>
    %60 = arith.mulf %59, %56 : vector<8x64xf32>
    %61 = arith.addf %58, %60 : vector<8x64xf32>
    %62 = vector.extract_strided_slice %54 {offsets = [0, 128], sizes = [8, 64], strides = [1, 1]} : vector<8x192xf32> to vector<8x64xf32>
    %63 = math.tanh %61 : vector<8x64xf32>
    %64 = arith.mulf %62, %63 : vector<8x64xf32>
    %65 = vector.extract_strided_slice %64 {offsets = [0, 0], sizes = [8, 32], strides = [1, 1]} : vector<8x64xf32> to vector<8x32xf32>
    %c0_18 = arith.constant 0 : index
    %c0_19 = arith.constant 0 : index
    %66 = vector.load %arg4[%c0_18, %c0_19] : memref<72x64xf32, #tpu.memory_space<vmem>>, vector<8x32xf32>
    tpu.vector_store %arg4[%c0_18, %c0_19], %65 {strides = array<i32>} : memref<72x64xf32, #tpu.memory_space<vmem>>, vector<8x32xf32>,
    %67 = vector.extract_strided_slice %64 {offsets = [0, 32], sizes = [8, 32], strides = [1, 1]} : vector<8x64xf32> to vector<8x32xf32>
    %c64_20 = arith.constant 64 : index
    %c32 = arith.constant 32 : index
    %68 = vector.load %arg4[%c64_20, %c32] : memref<72x64xf32, #tpu.memory_space<vmem>>, vector<8x32xf32>
    tpu.vector_store %arg4[%c64_20, %c32], %67 {strides = array<i32>} : memref<72x64xf32, #tpu.memory_space<vmem>>, vector<8x32xf32>,
    %69 = vector.extract_strided_slice %18 {offsets = [8, 0], sizes = [8, 256], strides = [1, 1]} : vector<72x256xf32> to vector<8x256xf32>
    %70 = vector.extract_strided_slice %18 {offsets = [56, 0], sizes = [8, 256], strides = [1, 1]} : vector<72x256xf32> to vector<8x256xf32>
    %71 = vector.shape_cast %40 : vector<1x256xi1> to vector<1x256xi1>
    %72 = vector.broadcast %71 : vector<1x256xi1> to vector<8x256xi1>
    %73 = arith.select %72, %69, %70 : vector<8x256xi1>, vector<8x256xf32>
    %74 = arith.truncf %64 : vector<8x64xf32> to vector<8x64xbf16>
    %cst_21 = arith.constant dense<0.000000e+00> : vector<8x256xf32>
    %75 = tpu.matmul %74, %21, %cst_21 {dimension_numbers = #tpu.dot_dimension_numbers<[1], [0], [0], [1], [0, 0, 1, 1], [], []>} : vector<8x64xbf16>, vector<64x256xbf16>, vector<8x256xf32> -> vector<8x256xf32>
    %76 = arith.addf %73, %75 : vector<8x256xf32>
    %77 = vector.extract_strided_slice %76 {offsets = [0, 0], sizes = [8, 192], strides = [1, 1]} : vector<8x256xf32> to vector<8x192xf32>
    %78 = arith.negf %77 : vector<8x192xf32>
    %79 = math.exp %78 : vector<8x192xf32>
    %cst_22 = arith.constant 1.000000e+00 : f32
    %80 = vector.broadcast %cst_22 : f32 to vector<8x192xf32>
    %81 = arith.addf %80, %79 : vector<8x192xf32>
    %82 = arith.divf %80, %81 : vector<8x192xf32>
    %83 = vector.extract_strided_slice %76 {offsets = [0, 192], sizes = [8, 64], strides = [1, 1]} : vector<8x256xf32> to vector<8x64xf32>
    %84 = math.tanh %83 : vector<8x64xf32>
    %85 = vector.extract_strided_slice %82 {offsets = [0, 64], sizes = [8, 64], strides = [1, 1]} : vector<8x192xf32> to vector<8x64xf32>
    %86 = arith.mulf %85, %61 : vector<8x64xf32>
    %87 = vector.extract_strided_slice %82 {offsets = [0, 0], sizes = [8, 64], strides = [1, 1]} : vector<8x192xf32> to vector<8x64xf32>
    %88 = arith.mulf %87, %84 : vector<8x64xf32>
    %89 = arith.addf %86, %88 : vector<8x64xf32>
    %90 = vector.extract_strided_slice %82 {offsets = [0, 128], sizes = [8, 64], strides = [1, 1]} : vector<8x192xf32> to vector<8x64xf32>
    %91 = math.tanh %89 : vector<8x64xf32>
    %92 = arith.mulf %90, %91 : vector<8x64xf32>
    %93 = vector.extract_strided_slice %92 {offsets = [0, 0], sizes = [8, 32], strides = [1, 1]} : vector<8x64xf32> to vector<8x32xf32>
    %c8 = arith.constant 8 : index
    %c0_23 = arith.constant 0 : index
    %94 = vector.load %arg4[%c8, %c0_23] : memref<72x64xf32, #tpu.memory_space<vmem>>, vector<8x32xf32>
    tpu.vector_store %arg4[%c8, %c0_23], %93 {strides = array<i32>} : memref<72x64xf32, #tpu.memory_space<vmem>>, vector<8x32xf32>,
    %95 = vector.extract_strided_slice %92 {offsets = [0, 32], sizes = [8, 32], strides = [1, 1]} : vector<8x64xf32> to vector<8x32xf32>
    %c56 = arith.constant 56 : index
    %c32_24 = arith.constant 32 : index
    %96 = vector.load %arg4[%c56, %c32_24] : memref<72x64xf32, #tpu.memory_space<vmem>>, vector<8x32xf32>
    tpu.vector_store %arg4[%c56, %c32_24], %95 {strides = array<i32>} : memref<72x64xf32, #tpu.memory_space<vmem>>, vector<8x32xf32>,
    %97 = vector.extract_strided_slice %18 {offsets = [16, 0], sizes = [8, 256], strides = [1, 1]} : vector<72x256xf32> to vector<8x256xf32>
    %98 = vector.extract_strided_slice %18 {offsets = [48, 0], sizes = [8, 256], strides = [1, 1]} : vector<72x256xf32> to vector<8x256xf32>
    %99 = vector.shape_cast %40 : vector<1x256xi1> to vector<1x256xi1>
    %100 = vector.broadcast %99 : vector<1x256xi1> to vector<8x256xi1>
    %101 = arith.select %100, %97, %98 : vector<8x256xi1>, vector<8x256xf32>
    %102 = arith.truncf %92 : vector<8x64xf32> to vector<8x64xbf16>
    %cst_25 = arith.constant dense<0.000000e+00> : vector<8x256xf32>
    %103 = tpu.matmul %102, %21, %cst_25 {dimension_numbers = #tpu.dot_dimension_numbers<[1], [0], [0], [1], [0, 0, 1, 1], [], []>} : vector<8x64xbf16>, vector<64x256xbf16>, vector<8x256xf32> -> vector<8x256xf32>
    %104 = arith.addf %101, %103 : vector<8x256xf32>
    %105 = vector.extract_strided_slice %104 {offsets = [0, 0], sizes = [8, 192], strides = [1, 1]} : vector<8x256xf32> to vector<8x192xf32>
    %106 = arith.negf %105 : vector<8x192xf32>
    %107 = math.exp %106 : vector<8x192xf32>
    %cst_26 = arith.constant 1.000000e+00 : f32
    %108 = vector.broadcast %cst_26 : f32 to vector<8x192xf32>
    %109 = arith.addf %108, %107 : vector<8x192xf32>
    %110 = arith.divf %108, %109 : vector<8x192xf32>
    %111 = vector.extract_strided_slice %104 {offsets = [0, 192], sizes = [8, 64], strides = [1, 1]} : vector<8x256xf32> to vector<8x64xf32>
    %112 = math.tanh %111 : vector<8x64xf32>
    %113 = vector.extract_strided_slice %110 {offsets = [0, 64], sizes = [8, 64], strides = [1, 1]} : vector<8x192xf32> to vector<8x64xf32>
    %114 = arith.mulf %113, %89 : vector<8x64xf32>
    %115 = vector.extract_strided_slice %110 {offsets = [0, 0], sizes = [8, 64], strides = [1, 1]} : vector<8x192xf32> to vector<8x64xf32>
    %116 = arith.mulf %115, %112 : vector<8x64xf32>
    %117 = arith.addf %114, %116 : vector<8x64xf32>
    %118 = vector.extract_strided_slice %110 {offsets = [0, 128], sizes = [8, 64], strides = [1, 1]} : vector<8x192xf32> to vector<8x64xf32>
    %119 = math.tanh %117 : vector<8x64xf32>
    %120 = arith.mulf %118, %119 : vector<8x64xf32>
    %121 = vector.extract_strided_slice %120 {offsets = [0, 0], sizes = [8, 32], strides = [1, 1]} : vector<8x64xf32> to vector<8x32xf32>
    %c16_27 = arith.constant 16 : index
    %c0_28 = arith.constant 0 : index
    %122 = vector.load %arg4[%c16_27, %c0_28] : memref<72x64xf32, #tpu.memory_space<vmem>>, vector<8x32xf32>
    tpu.vector_store %arg4[%c16_27, %c0_28], %121 {strides = array<i32>} : memref<72x64xf32, #tpu.memory_space<vmem>>, vector<8x32xf32>,
    %123 = vector.extract_strided_slice %120 {offsets = [0, 32], sizes = [8, 32], strides = [1, 1]} : vector<8x64xf32> to vector<8x32xf32>
    %c48_29 = arith.constant 48 : index
    %c32_30 = arith.constant 32 : index
    %124 = vector.load %arg4[%c48_29, %c32_30] : memref<72x64xf32, #tpu.memory_space<vmem>>, vector<8x32xf32>
    tpu.vector_store %arg4[%c48_29, %c32_30], %123 {strides = array<i32>} : memref<72x64xf32, #tpu.memory_space<vmem>>, vector<8x32xf32>,
    %125 = vector.extract_strided_slice %18 {offsets = [24, 0], sizes = [8, 256], strides = [1, 1]} : vector<72x256xf32> to vector<8x256xf32>
    %126 = vector.extract_strided_slice %18 {offsets = [40, 0], sizes = [8, 256], strides = [1, 1]} : vector<72x256xf32> to vector<8x256xf32>
    %127 = vector.shape_cast %40 : vector<1x256xi1> to vector<1x256xi1>
    %128 = vector.broadcast %127 : vector<1x256xi1> to vector<8x256xi1>
    %129 = arith.select %128, %125, %126 : vector<8x256xi1>, vector<8x256xf32>
    %130 = arith.truncf %120 : vector<8x64xf32> to vector<8x64xbf16>
    %cst_31 = arith.constant dense<0.000000e+00> : vector<8x256xf32>
    %131 = tpu.matmul %130, %21, %cst_31 {dimension_numbers = #tpu.dot_dimension_numbers<[1], [0], [0], [1], [0, 0, 1, 1], [], []>} : vector<8x64xbf16>, vector<64x256xbf16>, vector<8x256xf32> -> vector<8x256xf32>
    %132 = arith.addf %129, %131 : vector<8x256xf32>
    %133 = vector.extract_strided_slice %132 {offsets = [0, 0], sizes = [8, 192], strides = [1, 1]} : vector<8x256xf32> to vector<8x192xf32>
    %134 = arith.negf %133 : vector<8x192xf32>
    %135 = math.exp %134 : vector<8x192xf32>
    %cst_32 = arith.constant 1.000000e+00 : f32
    %136 = vector.broadcast %cst_32 : f32 to vector<8x192xf32>
    %137 = arith.addf %136, %135 : vector<8x192xf32>
    %138 = arith.divf %136, %137 : vector<8x192xf32>
    %139 = vector.extract_strided_slice %132 {offsets = [0, 192], sizes = [8, 64], strides = [1, 1]} : vector<8x256xf32> to vector<8x64xf32>
    %140 = math.tanh %139 : vector<8x64xf32>
    %141 = vector.extract_strided_slice %138 {offsets = [0, 64], sizes = [8, 64], strides = [1, 1]} : vector<8x192xf32> to vector<8x64xf32>
    %142 = arith.mulf %141, %117 : vector<8x64xf32>
    %143 = vector.extract_strided_slice %138 {offsets = [0, 0], sizes = [8, 64], strides = [1, 1]} : vector<8x192xf32> to vector<8x64xf32>
    %144 = arith.mulf %143, %140 : vector<8x64xf32>
    %145 = arith.addf %142, %144 : vector<8x64xf32>
    %146 = vector.extract_strided_slice %138 {offsets = [0, 128], sizes = [8, 64], strides = [1, 1]} : vector<8x192xf32> to vector<8x64xf32>
    %147 = math.tanh %145 : vector<8x64xf32>
    %148 = arith.mulf %146, %147 : vector<8x64xf32>
    %149 = vector.extract_strided_slice %148 {offsets = [0, 0], sizes = [8, 32], strides = [1, 1]} : vector<8x64xf32> to vector<8x32xf32>
    %c24 = arith.constant 24 : index
    %c0_33 = arith.constant 0 : index
    %150 = vector.load %arg4[%c24, %c0_33] : memref<72x64xf32, #tpu.memory_space<vmem>>, vector<8x32xf32>
    tpu.vector_store %arg4[%c24, %c0_33], %149 {strides = array<i32>} : memref<72x64xf32, #tpu.memory_space<vmem>>, vector<8x32xf32>,
    %151 = vector.extract_strided_slice %148 {offsets = [0, 32], sizes = [8, 32], strides = [1, 1]} : vector<8x64xf32> to vector<8x32xf32>
    %c40 = arith.constant 40 : index
    %c32_34 = arith.constant 32 : index
    %152 = vector.load %arg4[%c40, %c32_34] : memref<72x64xf32, #tpu.memory_space<vmem>>, vector<8x32xf32>
    tpu.vector_store %arg4[%c40, %c32_34], %151 {strides = array<i32>} : memref<72x64xf32, #tpu.memory_space<vmem>>, vector<8x32xf32>,
    %153 = vector.extract_strided_slice %18 {offsets = [32, 0], sizes = [8, 256], strides = [1, 1]} : vector<72x256xf32> to vector<8x256xf32>
    %154 = vector.extract_strided_slice %18 {offsets = [32, 0], sizes = [8, 256], strides = [1, 1]} : vector<72x256xf32> to vector<8x256xf32>
    %155 = vector.shape_cast %40 : vector<1x256xi1> to vector<1x256xi1>
    %156 = vector.broadcast %155 : vector<1x256xi1> to vector<8x256xi1>
    %157 = arith.select %156, %153, %154 : vector<8x256xi1>, vector<8x256xf32>
    %158 = arith.truncf %148 : vector<8x64xf32> to vector<8x64xbf16>
    %cst_35 = arith.constant dense<0.000000e+00> : vector<8x256xf32>
    %159 = tpu.matmul %158, %21, %cst_35 {dimension_numbers = #tpu.dot_dimension_numbers<[1], [0], [0], [1], [0, 0, 1, 1], [], []>} : vector<8x64xbf16>, vector<64x256xbf16>, vector<8x256xf32> -> vector<8x256xf32>
    %160 = arith.addf %157, %159 : vector<8x256xf32>
    %161 = vector.extract_strided_slice %160 {offsets = [0, 0], sizes = [8, 192], strides = [1, 1]} : vector<8x256xf32> to vector<8x192xf32>
    %162 = arith.negf %161 : vector<8x192xf32>
    %163 = math.exp %162 : vector<8x192xf32>
    %cst_36 = arith.constant 1.000000e+00 : f32
    %164 = vector.broadcast %cst_36 : f32 to vector<8x192xf32>
    %165 = arith.addf %164, %163 : vector<8x192xf32>
    %166 = arith.divf %164, %165 : vector<8x192xf32>
    %167 = vector.extract_strided_slice %160 {offsets = [0, 192], sizes = [8, 64], strides = [1, 1]} : vector<8x256xf32> to vector<8x64xf32>
    %168 = math.tanh %167 : vector<8x64xf32>
    %169 = vector.extract_strided_slice %166 {offsets = [0, 64], sizes = [8, 64], strides = [1, 1]} : vector<8x192xf32> to vector<8x64xf32>
    %170 = arith.mulf %169, %145 : vector<8x64xf32>
    %171 = vector.extract_strided_slice %166 {offsets = [0, 0], sizes = [8, 64], strides = [1, 1]} : vector<8x192xf32> to vector<8x64xf32>
    %172 = arith.mulf %171, %168 : vector<8x64xf32>
    %173 = arith.addf %170, %172 : vector<8x64xf32>
    %174 = vector.extract_strided_slice %166 {offsets = [0, 128], sizes = [8, 64], strides = [1, 1]} : vector<8x192xf32> to vector<8x64xf32>
    %175 = math.tanh %173 : vector<8x64xf32>
    %176 = arith.mulf %174, %175 : vector<8x64xf32>
    %177 = vector.extract_strided_slice %176 {offsets = [0, 0], sizes = [8, 32], strides = [1, 1]} : vector<8x64xf32> to vector<8x32xf32>
    %c32_37 = arith.constant 32 : index
    %c0_38 = arith.constant 0 : index
    %178 = vector.load %arg4[%c32_37, %c0_38] : memref<72x64xf32, #tpu.memory_space<vmem>>, vector<8x32xf32>
    tpu.vector_store %arg4[%c32_37, %c0_38], %177 {strides = array<i32>} : memref<72x64xf32, #tpu.memory_space<vmem>>, vector<8x32xf32>,
    %179 = vector.extract_strided_slice %176 {offsets = [0, 32], sizes = [8, 32], strides = [1, 1]} : vector<8x64xf32> to vector<8x32xf32>
    %c32_39 = arith.constant 32 : index
    %c32_40 = arith.constant 32 : index
    %180 = vector.load %arg4[%c32_39, %c32_40] : memref<72x64xf32, #tpu.memory_space<vmem>>, vector<8x32xf32>
    tpu.vector_store %arg4[%c32_39, %c32_40], %179 {strides = array<i32>} : memref<72x64xf32, #tpu.memory_space<vmem>>, vector<8x32xf32>,
    %181 = vector.extract_strided_slice %18 {offsets = [40, 0], sizes = [8, 256], strides = [1, 1]} : vector<72x256xf32> to vector<8x256xf32>
    %182 = vector.extract_strided_slice %18 {offsets = [24, 0], sizes = [8, 256], strides = [1, 1]} : vector<72x256xf32> to vector<8x256xf32>
    %183 = vector.shape_cast %40 : vector<1x256xi1> to vector<1x256xi1>
    %184 = vector.broadcast %183 : vector<1x256xi1> to vector<8x256xi1>
    %185 = arith.select %184, %181, %182 : vector<8x256xi1>, vector<8x256xf32>
    %186 = arith.truncf %176 : vector<8x64xf32> to vector<8x64xbf16>
    %cst_41 = arith.constant dense<0.000000e+00> : vector<8x256xf32>
    %187 = tpu.matmul %186, %21, %cst_41 {dimension_numbers = #tpu.dot_dimension_numbers<[1], [0], [0], [1], [0, 0, 1, 1], [], []>} : vector<8x64xbf16>, vector<64x256xbf16>, vector<8x256xf32> -> vector<8x256xf32>
    %188 = arith.addf %185, %187 : vector<8x256xf32>
    %189 = vector.extract_strided_slice %188 {offsets = [0, 0], sizes = [8, 192], strides = [1, 1]} : vector<8x256xf32> to vector<8x192xf32>
    %190 = arith.negf %189 : vector<8x192xf32>
    %191 = math.exp %190 : vector<8x192xf32>
    %cst_42 = arith.constant 1.000000e+00 : f32
    %192 = vector.broadcast %cst_42 : f32 to vector<8x192xf32>
    %193 = arith.addf %192, %191 : vector<8x192xf32>
    %194 = arith.divf %192, %193 : vector<8x192xf32>
    %195 = vector.extract_strided_slice %188 {offsets = [0, 192], sizes = [8, 64], strides = [1, 1]} : vector<8x256xf32> to vector<8x64xf32>
    %196 = math.tanh %195 : vector<8x64xf32>
    %197 = vector.extract_strided_slice %194 {offsets = [0, 64], sizes = [8, 64], strides = [1, 1]} : vector<8x192xf32> to vector<8x64xf32>
    %198 = arith.mulf %197, %173 : vector<8x64xf32>
    %199 = vector.extract_strided_slice %194 {offsets = [0, 0], sizes = [8, 64], strides = [1, 1]} : vector<8x192xf32> to vector<8x64xf32>
    %200 = arith.mulf %199, %196 : vector<8x64xf32>
    %201 = arith.addf %198, %200 : vector<8x64xf32>
    %202 = vector.extract_strided_slice %194 {offsets = [0, 128], sizes = [8, 64], strides = [1, 1]} : vector<8x192xf32> to vector<8x64xf32>
    %203 = math.tanh %201 : vector<8x64xf32>
    %204 = arith.mulf %202, %203 : vector<8x64xf32>
    %205 = vector.extract_strided_slice %204 {offsets = [0, 0], sizes = [8, 32], strides = [1, 1]} : vector<8x64xf32> to vector<8x32xf32>
    %c40_43 = arith.constant 40 : index
    %c0_44 = arith.constant 0 : index
    %206 = vector.load %arg4[%c40_43, %c0_44] : memref<72x64xf32, #tpu.memory_space<vmem>>, vector<8x32xf32>
    tpu.vector_store %arg4[%c40_43, %c0_44], %205 {strides = array<i32>} : memref<72x64xf32, #tpu.memory_space<vmem>>, vector<8x32xf32>,
    %207 = vector.extract_strided_slice %204 {offsets = [0, 32], sizes = [8, 32], strides = [1, 1]} : vector<8x64xf32> to vector<8x32xf32>
    %c24_45 = arith.constant 24 : index
    %c32_46 = arith.constant 32 : index
    %208 = vector.load %arg4[%c24_45, %c32_46] : memref<72x64xf32, #tpu.memory_space<vmem>>, vector<8x32xf32>
    tpu.vector_store %arg4[%c24_45, %c32_46], %207 {strides = array<i32>} : memref<72x64xf32, #tpu.memory_space<vmem>>, vector<8x32xf32>,
    %209 = vector.extract_strided_slice %18 {offsets = [48, 0], sizes = [8, 256], strides = [1, 1]} : vector<72x256xf32> to vector<8x256xf32>
    %210 = vector.extract_strided_slice %18 {offsets = [16, 0], sizes = [8, 256], strides = [1, 1]} : vector<72x256xf32> to vector<8x256xf32>
    %211 = vector.shape_cast %40 : vector<1x256xi1> to vector<1x256xi1>
    %212 = vector.broadcast %211 : vector<1x256xi1> to vector<8x256xi1>
    %213 = arith.select %212, %209, %210 : vector<8x256xi1>, vector<8x256xf32>
    %214 = arith.truncf %204 : vector<8x64xf32> to vector<8x64xbf16>
    %cst_47 = arith.constant dense<0.000000e+00> : vector<8x256xf32>
    %215 = tpu.matmul %214, %21, %cst_47 {dimension_numbers = #tpu.dot_dimension_numbers<[1], [0], [0], [1], [0, 0, 1, 1], [], []>} : vector<8x64xbf16>, vector<64x256xbf16>, vector<8x256xf32> -> vector<8x256xf32>
    %216 = arith.addf %213, %215 : vector<8x256xf32>
    %217 = vector.extract_strided_slice %216 {offsets = [0, 0], sizes = [8, 192], strides = [1, 1]} : vector<8x256xf32> to vector<8x192xf32>
    %218 = arith.negf %217 : vector<8x192xf32>
    %219 = math.exp %218 : vector<8x192xf32>
    %cst_48 = arith.constant 1.000000e+00 : f32
    %220 = vector.broadcast %cst_48 : f32 to vector<8x192xf32>
    %221 = arith.addf %220, %219 : vector<8x192xf32>
    %222 = arith.divf %220, %221 : vector<8x192xf32>
    %223 = vector.extract_strided_slice %216 {offsets = [0, 192], sizes = [8, 64], strides = [1, 1]} : vector<8x256xf32> to vector<8x64xf32>
    %224 = math.tanh %223 : vector<8x64xf32>
    %225 = vector.extract_strided_slice %222 {offsets = [0, 64], sizes = [8, 64], strides = [1, 1]} : vector<8x192xf32> to vector<8x64xf32>
    %226 = arith.mulf %225, %201 : vector<8x64xf32>
    %227 = vector.extract_strided_slice %222 {offsets = [0, 0], sizes = [8, 64], strides = [1, 1]} : vector<8x192xf32> to vector<8x64xf32>
    %228 = arith.mulf %227, %224 : vector<8x64xf32>
    %229 = arith.addf %226, %228 : vector<8x64xf32>
    %230 = vector.extract_strided_slice %222 {offsets = [0, 128], sizes = [8, 64], strides = [1, 1]} : vector<8x192xf32> to vector<8x64xf32>
    %231 = math.tanh %229 : vector<8x64xf32>
    %232 = arith.mulf %230, %231 : vector<8x64xf32>
    %233 = vector.extract_strided_slice %232 {offsets = [0, 0], sizes = [8, 32], strides = [1, 1]} : vector<8x64xf32> to vector<8x32xf32>
    %c48_49 = arith.constant 48 : index
    %c0_50 = arith.constant 0 : index
    %234 = vector.load %arg4[%c48_49, %c0_50] : memref<72x64xf32, #tpu.memory_space<vmem>>, vector<8x32xf32>
    tpu.vector_store %arg4[%c48_49, %c0_50], %233 {strides = array<i32>} : memref<72x64xf32, #tpu.memory_space<vmem>>, vector<8x32xf32>,
    %235 = vector.extract_strided_slice %232 {offsets = [0, 32], sizes = [8, 32], strides = [1, 1]} : vector<8x64xf32> to vector<8x32xf32>
    %c16_51 = arith.constant 16 : index
    %c32_52 = arith.constant 32 : index
    %236 = vector.load %arg4[%c16_51, %c32_52] : memref<72x64xf32, #tpu.memory_space<vmem>>, vector<8x32xf32>
    tpu.vector_store %arg4[%c16_51, %c32_52], %235 {strides = array<i32>} : memref<72x64xf32, #tpu.memory_space<vmem>>, vector<8x32xf32>,
    %237 = vector.extract_strided_slice %18 {offsets = [56, 0], sizes = [8, 256], strides = [1, 1]} : vector<72x256xf32> to vector<8x256xf32>
    %238 = vector.extract_strided_slice %18 {offsets = [8, 0], sizes = [8, 256], strides = [1, 1]} : vector<72x256xf32> to vector<8x256xf32>
    %239 = vector.shape_cast %40 : vector<1x256xi1> to vector<1x256xi1>
    %240 = vector.broadcast %239 : vector<1x256xi1> to vector<8x256xi1>
    %241 = arith.select %240, %237, %238 : vector<8x256xi1>, vector<8x256xf32>
    %242 = arith.truncf %232 : vector<8x64xf32> to vector<8x64xbf16>
    %cst_53 = arith.constant dense<0.000000e+00> : vector<8x256xf32>
    %243 = tpu.matmul %242, %21, %cst_53 {dimension_numbers = #tpu.dot_dimension_numbers<[1], [0], [0], [1], [0, 0, 1, 1], [], []>} : vector<8x64xbf16>, vector<64x256xbf16>, vector<8x256xf32> -> vector<8x256xf32>
    %244 = arith.addf %241, %243 : vector<8x256xf32>
    %245 = vector.extract_strided_slice %244 {offsets = [0, 0], sizes = [8, 192], strides = [1, 1]} : vector<8x256xf32> to vector<8x192xf32>
    %246 = arith.negf %245 : vector<8x192xf32>
    %247 = math.exp %246 : vector<8x192xf32>
    %cst_54 = arith.constant 1.000000e+00 : f32
    %248 = vector.broadcast %cst_54 : f32 to vector<8x192xf32>
    %249 = arith.addf %248, %247 : vector<8x192xf32>
    %250 = arith.divf %248, %249 : vector<8x192xf32>
    %251 = vector.extract_strided_slice %244 {offsets = [0, 192], sizes = [8, 64], strides = [1, 1]} : vector<8x256xf32> to vector<8x64xf32>
    %252 = math.tanh %251 : vector<8x64xf32>
    %253 = vector.extract_strided_slice %250 {offsets = [0, 64], sizes = [8, 64], strides = [1, 1]} : vector<8x192xf32> to vector<8x64xf32>
    %254 = arith.mulf %253, %229 : vector<8x64xf32>
    %255 = vector.extract_strided_slice %250 {offsets = [0, 0], sizes = [8, 64], strides = [1, 1]} : vector<8x192xf32> to vector<8x64xf32>
    %256 = arith.mulf %255, %252 : vector<8x64xf32>
    %257 = arith.addf %254, %256 : vector<8x64xf32>
    %258 = vector.extract_strided_slice %250 {offsets = [0, 128], sizes = [8, 64], strides = [1, 1]} : vector<8x192xf32> to vector<8x64xf32>
    %259 = math.tanh %257 : vector<8x64xf32>
    %260 = arith.mulf %258, %259 : vector<8x64xf32>
    %261 = vector.extract_strided_slice %260 {offsets = [0, 0], sizes = [8, 32], strides = [1, 1]} : vector<8x64xf32> to vector<8x32xf32>
    %c56_55 = arith.constant 56 : index
    %c0_56 = arith.constant 0 : index
    %262 = vector.load %arg4[%c56_55, %c0_56] : memref<72x64xf32, #tpu.memory_space<vmem>>, vector<8x32xf32>
    tpu.vector_store %arg4[%c56_55, %c0_56], %261 {strides = array<i32>} : memref<72x64xf32, #tpu.memory_space<vmem>>, vector<8x32xf32>,
    %263 = vector.extract_strided_slice %260 {offsets = [0, 32], sizes = [8, 32], strides = [1, 1]} : vector<8x64xf32> to vector<8x32xf32>
    %c8_57 = arith.constant 8 : index
    %c32_58 = arith.constant 32 : index
    %264 = vector.load %arg4[%c8_57, %c32_58] : memref<72x64xf32, #tpu.memory_space<vmem>>, vector<8x32xf32>
    tpu.vector_store %arg4[%c8_57, %c32_58], %263 {strides = array<i32>} : memref<72x64xf32, #tpu.memory_space<vmem>>, vector<8x32xf32>,
    %265 = vector.extract_strided_slice %18 {offsets = [64, 0], sizes = [8, 256], strides = [1, 1]} : vector<72x256xf32> to vector<8x256xf32>
    %266 = vector.extract_strided_slice %18 {offsets = [0, 0], sizes = [8, 256], strides = [1, 1]} : vector<72x256xf32> to vector<8x256xf32>
    %267 = vector.shape_cast %40 : vector<1x256xi1> to vector<1x256xi1>
    %268 = vector.broadcast %267 : vector<1x256xi1> to vector<8x256xi1>
    %269 = arith.select %268, %265, %266 : vector<8x256xi1>, vector<8x256xf32>
    %270 = arith.truncf %260 : vector<8x64xf32> to vector<8x64xbf16>
    %cst_59 = arith.constant dense<0.000000e+00> : vector<8x256xf32>
    %271 = tpu.matmul %270, %21, %cst_59 {dimension_numbers = #tpu.dot_dimension_numbers<[1], [0], [0], [1], [0, 0, 1, 1], [], []>} : vector<8x64xbf16>, vector<64x256xbf16>, vector<8x256xf32> -> vector<8x256xf32>
    %272 = arith.addf %269, %271 : vector<8x256xf32>
    %273 = vector.extract_strided_slice %272 {offsets = [0, 0], sizes = [8, 192], strides = [1, 1]} : vector<8x256xf32> to vector<8x192xf32>
    %274 = arith.negf %273 : vector<8x192xf32>
    %275 = math.exp %274 : vector<8x192xf32>
    %cst_60 = arith.constant 1.000000e+00 : f32
    %276 = vector.broadcast %cst_60 : f32 to vector<8x192xf32>
    %277 = arith.addf %276, %275 : vector<8x192xf32>
    %278 = arith.divf %276, %277 : vector<8x192xf32>
    %279 = vector.extract_strided_slice %272 {offsets = [0, 192], sizes = [8, 64], strides = [1, 1]} : vector<8x256xf32> to vector<8x64xf32>
    %280 = math.tanh %279 : vector<8x64xf32>
    %281 = vector.extract_strided_slice %278 {offsets = [0, 64], sizes = [8, 64], strides = [1, 1]} : vector<8x192xf32> to vector<8x64xf32>
    %282 = arith.mulf %281, %257 : vector<8x64xf32>
    %283 = vector.extract_strided_slice %278 {offsets = [0, 0], sizes = [8, 64], strides = [1, 1]} : vector<8x192xf32> to vector<8x64xf32>
    %284 = arith.mulf %283, %280 : vector<8x64xf32>
    %285 = arith.addf %282, %284 : vector<8x64xf32>
    %286 = vector.extract_strided_slice %278 {offsets = [0, 128], sizes = [8, 64], strides = [1, 1]} : vector<8x192xf32> to vector<8x64xf32>
    %287 = math.tanh %285 : vector<8x64xf32>
    %288 = arith.mulf %286, %287 : vector<8x64xf32>
    %289 = vector.extract_strided_slice %288 {offsets = [0, 0], sizes = [8, 32], strides = [1, 1]} : vector<8x64xf32> to vector<8x32xf32>
    %c64_61 = arith.constant 64 : index
    %c0_62 = arith.constant 0 : index
    %290 = vector.load %arg4[%c64_61, %c0_62] : memref<72x64xf32, #tpu.memory_space<vmem>>, vector<8x32xf32>
    tpu.vector_store %arg4[%c64_61, %c0_62], %289 {strides = array<i32>} : memref<72x64xf32, #tpu.memory_space<vmem>>, vector<8x32xf32>,
    %291 = vector.extract_strided_slice %288 {offsets = [0, 32], sizes = [8, 32], strides = [1, 1]} : vector<8x64xf32> to vector<8x32xf32>
    %c0_63 = arith.constant 0 : index
    %c32_64 = arith.constant 32 : index
    %292 = vector.load %arg4[%c0_63, %c32_64] : memref<72x64xf32, #tpu.memory_space<vmem>>, vector<8x32xf32>
    tpu.vector_store %arg4[%c0_63, %c32_64], %291 {strides = array<i32>} : memref<72x64xf32, #tpu.memory_space<vmem>>, vector<8x32xf32>,
    %c0_65 = arith.constant 0 : index
    %c0_66 = arith.constant 0 : index
    %293 = vector.load %arg4[%c0_65, %c0_66] : memref<72x64xf32, #tpu.memory_space<vmem>>, vector<72x64xf32>
    %294 = arith.truncf %293 : vector<72x64xf32> to vector<72x64xbf16>
    %c112 = arith.constant 112 : index
    %c0_67 = arith.constant 0 : index
    %295 = vector.load %arg1[%c112, %c0_67] : memref<624x256xbf16, #tpu.memory_space<vmem>>, vector<64x256xbf16>
    %cst_68 = arith.constant dense<0.000000e+00> : vector<72x256xf32>
    %296 = tpu.matmul %294, %295, %cst_68 {dimension_numbers = #tpu.dot_dimension_numbers<[1], [0], [0], [1], [0, 0, 1, 1], [], []>} : vector<72x64xbf16>, vector<64x256xbf16>, vector<72x256xf32> -> vector<72x256xf32>
    %c17 = arith.constant 17 : index
    %c0_69 = arith.constant 0 : index
    %297 = vector.load %arg2[%c17, %c0_69] : memref<24x256xf32, #tpu.memory_space<vmem>>, vector<1x256xf32>
    %298 = vector.broadcast %297 : vector<1x256xf32> to vector<72x256xf32>
    %299 = arith.addf %296, %298 : vector<72x256xf32>
    %c0_70 = arith.constant 0 : index
    %c128 = arith.constant 128 : index
    %300 = vector.load %arg2[%c0_70, %c128] : memref<24x256xf32, #tpu.memory_space<vmem>>, vector<8x64xf32>
    %c0_71 = arith.constant 0 : index
    %c192 = arith.constant 192 : index
    %301 = vector.load %arg2[%c0_71, %c192] : memref<24x256xf32, #tpu.memory_space<vmem>>, vector<8x64xf32>
    %c176 = arith.constant 176 : index
    %c0_72 = arith.constant 0 : index
    %302 = vector.load %arg1[%c176, %c0_72] : memref<624x256xbf16, #tpu.memory_space<vmem>>, vector<64x256xbf16>
    %303 = tpu.iota {dimensions = array<i32: 1>} : vector<1x256xi32>
    %c64_i32_73 = arith.constant 64 : i32
    %c0_i32_74 = arith.constant 0 : i32
    %304 = arith.cmpi eq, %c64_i32_73, %c0_i32_74 : i32
    %c1_i32_75 = arith.constant 1 : i32
    %305 = arith.select %304, %c1_i32_75, %c64_i32_73 : i32
    %306 = vector.broadcast %305 : i32 to vector<1x256xi32>
    %307 = arith.remsi %303, %306 : vector<1x256xi32>
    %c0_i32_76 = arith.constant 0 : i32
    %308 = vector.broadcast %c0_i32_76 : i32 to vector<1x256xi32>
    %309 = arith.cmpi ne, %307, %308 : vector<1x256xi32>
    %c0_i32_77 = arith.constant 0 : i32
    %310 = vector.broadcast %c0_i32_77 : i32 to vector<1x256xi32>
    %311 = arith.cmpi slt, %307, %310 : vector<1x256xi32>
    %c0_i32_78 = arith.constant 0 : i32
    %312 = arith.cmpi slt, %305, %c0_i32_78 : i32
    %313 = vector.broadcast %312 : i1 to vector<1x256xi1>
    %314 = vector.broadcast %313 : vector<1x256xi1> to vector<1x256xi1>
    %315 = arith.xori %311, %314 : vector<1x256xi1>
    %316 = arith.andi %315, %309 : vector<1x256xi1>
    %317 = vector.broadcast %305 : i32 to vector<1x256xi32>
    %318 = arith.addi %307, %317 : vector<1x256xi32>
    %319 = arith.select %316, %318, %307 : vector<1x256xi1>, vector<1x256xi32>
    %c32_i32_79 = arith.constant 32 : i32
    %320 = vector.broadcast %c32_i32_79 : i32 to vector<1x256xi32>
    %321 = arith.cmpi slt, %319, %320 : vector<1x256xi32>
    %322 = vector.extract_strided_slice %299 {offsets = [0, 0], sizes = [8, 256], strides = [1, 1]} : vector<72x256xf32> to vector<8x256xf32>
    %323 = vector.extract_strided_slice %299 {offsets = [64, 0], sizes = [8, 256], strides = [1, 1]} : vector<72x256xf32> to vector<8x256xf32>
    %324 = vector.shape_cast %321 : vector<1x256xi1> to vector<1x256xi1>
    %325 = vector.broadcast %324 : vector<1x256xi1> to vector<8x256xi1>
    %326 = arith.select %325, %322, %323 : vector<8x256xi1>, vector<8x256xf32>
    %327 = arith.truncf %300 : vector<8x64xf32> to vector<8x64xbf16>
    %cst_80 = arith.constant dense<0.000000e+00> : vector<8x256xf32>
    %328 = tpu.matmul %327, %302, %cst_80 {dimension_numbers = #tpu.dot_dimension_numbers<[1], [0], [0], [1], [0, 0, 1, 1], [], []>} : vector<8x64xbf16>, vector<64x256xbf16>, vector<8x256xf32> -> vector<8x256xf32>
    %329 = arith.addf %326, %328 : vector<8x256xf32>
    %330 = vector.extract_strided_slice %329 {offsets = [0, 0], sizes = [8, 192], strides = [1, 1]} : vector<8x256xf32> to vector<8x192xf32>
    %331 = arith.negf %330 : vector<8x192xf32>
    %332 = math.exp %331 : vector<8x192xf32>
    %cst_81 = arith.constant 1.000000e+00 : f32
    %333 = vector.broadcast %cst_81 : f32 to vector<8x192xf32>
    %334 = arith.addf %333, %332 : vector<8x192xf32>
    %335 = arith.divf %333, %334 : vector<8x192xf32>
    %336 = vector.extract_strided_slice %329 {offsets = [0, 192], sizes = [8, 64], strides = [1, 1]} : vector<8x256xf32> to vector<8x64xf32>
    %337 = math.tanh %336 : vector<8x64xf32>
    %338 = vector.extract_strided_slice %335 {offsets = [0, 64], sizes = [8, 64], strides = [1, 1]} : vector<8x192xf32> to vector<8x64xf32>
    %339 = arith.mulf %338, %301 : vector<8x64xf32>
    %340 = vector.extract_strided_slice %335 {offsets = [0, 0], sizes = [8, 64], strides = [1, 1]} : vector<8x192xf32> to vector<8x64xf32>
    %341 = arith.mulf %340, %337 : vector<8x64xf32>
    %342 = arith.addf %339, %341 : vector<8x64xf32>
    %343 = vector.extract_strided_slice %335 {offsets = [0, 128], sizes = [8, 64], strides = [1, 1]} : vector<8x192xf32> to vector<8x64xf32>
    %344 = math.tanh %342 : vector<8x64xf32>
    %345 = arith.mulf %343, %344 : vector<8x64xf32>
    %346 = vector.extract_strided_slice %345 {offsets = [0, 0], sizes = [8, 32], strides = [1, 1]} : vector<8x64xf32> to vector<8x32xf32>
    %c0_82 = arith.constant 0 : index
    %c0_83 = arith.constant 0 : index
    %347 = vector.load %arg5[%c0_82, %c0_83] : memref<72x64xf32, #tpu.memory_space<vmem>>, vector<8x32xf32>
    tpu.vector_store %arg5[%c0_82, %c0_83], %346 {strides = array<i32>} : memref<72x64xf32, #tpu.memory_space<vmem>>, vector<8x32xf32>,
    %348 = vector.extract_strided_slice %345 {offsets = [0, 32], sizes = [8, 32], strides = [1, 1]} : vector<8x64xf32> to vector<8x32xf32>
    %c64_84 = arith.constant 64 : index
    %c32_85 = arith.constant 32 : index
    %349 = vector.load %arg5[%c64_84, %c32_85] : memref<72x64xf32, #tpu.memory_space<vmem>>, vector<8x32xf32>
    tpu.vector_store %arg5[%c64_84, %c32_85], %348 {strides = array<i32>} : memref<72x64xf32, #tpu.memory_space<vmem>>, vector<8x32xf32>,
    %350 = vector.extract_strided_slice %299 {offsets = [8, 0], sizes = [8, 256], strides = [1, 1]} : vector<72x256xf32> to vector<8x256xf32>
    %351 = vector.extract_strided_slice %299 {offsets = [56, 0], sizes = [8, 256], strides = [1, 1]} : vector<72x256xf32> to vector<8x256xf32>
    %352 = vector.shape_cast %321 : vector<1x256xi1> to vector<1x256xi1>
    %353 = vector.broadcast %352 : vector<1x256xi1> to vector<8x256xi1>
    %354 = arith.select %353, %350, %351 : vector<8x256xi1>, vector<8x256xf32>
    %355 = arith.truncf %345 : vector<8x64xf32> to vector<8x64xbf16>
    %cst_86 = arith.constant dense<0.000000e+00> : vector<8x256xf32>
    %356 = tpu.matmul %355, %302, %cst_86 {dimension_numbers = #tpu.dot_dimension_numbers<[1], [0], [0], [1], [0, 0, 1, 1], [], []>} : vector<8x64xbf16>, vector<64x256xbf16>, vector<8x256xf32> -> vector<8x256xf32>
    %357 = arith.addf %354, %356 : vector<8x256xf32>
    %358 = vector.extract_strided_slice %357 {offsets = [0, 0], sizes = [8, 192], strides = [1, 1]} : vector<8x256xf32> to vector<8x192xf32>
    %359 = arith.negf %358 : vector<8x192xf32>
    %360 = math.exp %359 : vector<8x192xf32>
    %cst_87 = arith.constant 1.000000e+00 : f32
    %361 = vector.broadcast %cst_87 : f32 to vector<8x192xf32>
    %362 = arith.addf %361, %360 : vector<8x192xf32>
    %363 = arith.divf %361, %362 : vector<8x192xf32>
    %364 = vector.extract_strided_slice %357 {offsets = [0, 192], sizes = [8, 64], strides = [1, 1]} : vector<8x256xf32> to vector<8x64xf32>
    %365 = math.tanh %364 : vector<8x64xf32>
    %366 = vector.extract_strided_slice %363 {offsets = [0, 64], sizes = [8, 64], strides = [1, 1]} : vector<8x192xf32> to vector<8x64xf32>
    %367 = arith.mulf %366, %342 : vector<8x64xf32>
    %368 = vector.extract_strided_slice %363 {offsets = [0, 0], sizes = [8, 64], strides = [1, 1]} : vector<8x192xf32> to vector<8x64xf32>
    %369 = arith.mulf %368, %365 : vector<8x64xf32>
    %370 = arith.addf %367, %369 : vector<8x64xf32>
    %371 = vector.extract_strided_slice %363 {offsets = [0, 128], sizes = [8, 64], strides = [1, 1]} : vector<8x192xf32> to vector<8x64xf32>
    %372 = math.tanh %370 : vector<8x64xf32>
    %373 = arith.mulf %371, %372 : vector<8x64xf32>
    %374 = vector.extract_strided_slice %373 {offsets = [0, 0], sizes = [8, 32], strides = [1, 1]} : vector<8x64xf32> to vector<8x32xf32>
    %c8_88 = arith.constant 8 : index
    %c0_89 = arith.constant 0 : index
    %375 = vector.load %arg5[%c8_88, %c0_89] : memref<72x64xf32, #tpu.memory_space<vmem>>, vector<8x32xf32>
    tpu.vector_store %arg5[%c8_88, %c0_89], %374 {strides = array<i32>} : memref<72x64xf32, #tpu.memory_space<vmem>>, vector<8x32xf32>,
    %376 = vector.extract_strided_slice %373 {offsets = [0, 32], sizes = [8, 32], strides = [1, 1]} : vector<8x64xf32> to vector<8x32xf32>
    %c56_90 = arith.constant 56 : index
    %c32_91 = arith.constant 32 : index
    %377 = vector.load %arg5[%c56_90, %c32_91] : memref<72x64xf32, #tpu.memory_space<vmem>>, vector<8x32xf32>
    tpu.vector_store %arg5[%c56_90, %c32_91], %376 {strides = array<i32>} : memref<72x64xf32, #tpu.memory_space<vmem>>, vector<8x32xf32>,
    %378 = vector.extract_strided_slice %299 {offsets = [16, 0], sizes = [8, 256], strides = [1, 1]} : vector<72x256xf32> to vector<8x256xf32>
    %379 = vector.extract_strided_slice %299 {offsets = [48, 0], sizes = [8, 256], strides = [1, 1]} : vector<72x256xf32> to vector<8x256xf32>
    %380 = vector.shape_cast %321 : vector<1x256xi1> to vector<1x256xi1>
    %381 = vector.broadcast %380 : vector<1x256xi1> to vector<8x256xi1>
    %382 = arith.select %381, %378, %379 : vector<8x256xi1>, vector<8x256xf32>
    %383 = arith.truncf %373 : vector<8x64xf32> to vector<8x64xbf16>
    %cst_92 = arith.constant dense<0.000000e+00> : vector<8x256xf32>
    %384 = tpu.matmul %383, %302, %cst_92 {dimension_numbers = #tpu.dot_dimension_numbers<[1], [0], [0], [1], [0, 0, 1, 1], [], []>} : vector<8x64xbf16>, vector<64x256xbf16>, vector<8x256xf32> -> vector<8x256xf32>
    %385 = arith.addf %382, %384 : vector<8x256xf32>
    %386 = vector.extract_strided_slice %385 {offsets = [0, 0], sizes = [8, 192], strides = [1, 1]} : vector<8x256xf32> to vector<8x192xf32>
    %387 = arith.negf %386 : vector<8x192xf32>
    %388 = math.exp %387 : vector<8x192xf32>
    %cst_93 = arith.constant 1.000000e+00 : f32
    %389 = vector.broadcast %cst_93 : f32 to vector<8x192xf32>
    %390 = arith.addf %389, %388 : vector<8x192xf32>
    %391 = arith.divf %389, %390 : vector<8x192xf32>
    %392 = vector.extract_strided_slice %385 {offsets = [0, 192], sizes = [8, 64], strides = [1, 1]} : vector<8x256xf32> to vector<8x64xf32>
    %393 = math.tanh %392 : vector<8x64xf32>
    %394 = vector.extract_strided_slice %391 {offsets = [0, 64], sizes = [8, 64], strides = [1, 1]} : vector<8x192xf32> to vector<8x64xf32>
    %395 = arith.mulf %394, %370 : vector<8x64xf32>
    %396 = vector.extract_strided_slice %391 {offsets = [0, 0], sizes = [8, 64], strides = [1, 1]} : vector<8x192xf32> to vector<8x64xf32>
    %397 = arith.mulf %396, %393 : vector<8x64xf32>
    %398 = arith.addf %395, %397 : vector<8x64xf32>
    %399 = vector.extract_strided_slice %391 {offsets = [0, 128], sizes = [8, 64], strides = [1, 1]} : vector<8x192xf32> to vector<8x64xf32>
    %400 = math.tanh %398 : vector<8x64xf32>
    %401 = arith.mulf %399, %400 : vector<8x64xf32>
    %402 = vector.extract_strided_slice %401 {offsets = [0, 0], sizes = [8, 32], strides = [1, 1]} : vector<8x64xf32> to vector<8x32xf32>
    %c16_94 = arith.constant 16 : index
    %c0_95 = arith.constant 0 : index
    %403 = vector.load %arg5[%c16_94, %c0_95] : memref<72x64xf32, #tpu.memory_space<vmem>>, vector<8x32xf32>
    tpu.vector_store %arg5[%c16_94, %c0_95], %402 {strides = array<i32>} : memref<72x64xf32, #tpu.memory_space<vmem>>, vector<8x32xf32>,
    %404 = vector.extract_strided_slice %401 {offsets = [0, 32], sizes = [8, 32], strides = [1, 1]} : vector<8x64xf32> to vector<8x32xf32>
    %c48_96 = arith.constant 48 : index
    %c32_97 = arith.constant 32 : index
    %405 = vector.load %arg5[%c48_96, %c32_97] : memref<72x64xf32, #tpu.memory_space<vmem>>, vector<8x32xf32>
    tpu.vector_store %arg5[%c48_96, %c32_97], %404 {strides = array<i32>} : memref<72x64xf32, #tpu.memory_space<vmem>>, vector<8x32xf32>,
    %406 = vector.extract_strided_slice %299 {offsets = [24, 0], sizes = [8, 256], strides = [1, 1]} : vector<72x256xf32> to vector<8x256xf32>
    %407 = vector.extract_strided_slice %299 {offsets = [40, 0], sizes = [8, 256], strides = [1, 1]} : vector<72x256xf32> to vector<8x256xf32>
    %408 = vector.shape_cast %321 : vector<1x256xi1> to vector<1x256xi1>
    %409 = vector.broadcast %408 : vector<1x256xi1> to vector<8x256xi1>
    %410 = arith.select %409, %406, %407 : vector<8x256xi1>, vector<8x256xf32>
    %411 = arith.truncf %401 : vector<8x64xf32> to vector<8x64xbf16>
    %cst_98 = arith.constant dense<0.000000e+00> : vector<8x256xf32>
    %412 = tpu.matmul %411, %302, %cst_98 {dimension_numbers = #tpu.dot_dimension_numbers<[1], [0], [0], [1], [0, 0, 1, 1], [], []>} : vector<8x64xbf16>, vector<64x256xbf16>, vector<8x256xf32> -> vector<8x256xf32>
    %413 = arith.addf %410, %412 : vector<8x256xf32>
    %414 = vector.extract_strided_slice %413 {offsets = [0, 0], sizes = [8, 192], strides = [1, 1]} : vector<8x256xf32> to vector<8x192xf32>
    %415 = arith.negf %414 : vector<8x192xf32>
    %416 = math.exp %415 : vector<8x192xf32>
    %cst_99 = arith.constant 1.000000e+00 : f32
    %417 = vector.broadcast %cst_99 : f32 to vector<8x192xf32>
    %418 = arith.addf %417, %416 : vector<8x192xf32>
    %419 = arith.divf %417, %418 : vector<8x192xf32>
    %420 = vector.extract_strided_slice %413 {offsets = [0, 192], sizes = [8, 64], strides = [1, 1]} : vector<8x256xf32> to vector<8x64xf32>
    %421 = math.tanh %420 : vector<8x64xf32>
    %422 = vector.extract_strided_slice %419 {offsets = [0, 64], sizes = [8, 64], strides = [1, 1]} : vector<8x192xf32> to vector<8x64xf32>
    %423 = arith.mulf %422, %398 : vector<8x64xf32>
    %424 = vector.extract_strided_slice %419 {offsets = [0, 0], sizes = [8, 64], strides = [1, 1]} : vector<8x192xf32> to vector<8x64xf32>
    %425 = arith.mulf %424, %421 : vector<8x64xf32>
    %426 = arith.addf %423, %425 : vector<8x64xf32>
    %427 = vector.extract_strided_slice %419 {offsets = [0, 128], sizes = [8, 64], strides = [1, 1]} : vector<8x192xf32> to vector<8x64xf32>
    %428 = math.tanh %426 : vector<8x64xf32>
    %429 = arith.mulf %427, %428 : vector<8x64xf32>
    %430 = vector.extract_strided_slice %429 {offsets = [0, 0], sizes = [8, 32], strides = [1, 1]} : vector<8x64xf32> to vector<8x32xf32>
    %c24_100 = arith.constant 24 : index
    %c0_101 = arith.constant 0 : index
    %431 = vector.load %arg5[%c24_100, %c0_101] : memref<72x64xf32, #tpu.memory_space<vmem>>, vector<8x32xf32>
    tpu.vector_store %arg5[%c24_100, %c0_101], %430 {strides = array<i32>} : memref<72x64xf32, #tpu.memory_space<vmem>>, vector<8x32xf32>,
    %432 = vector.extract_strided_slice %429 {offsets = [0, 32], sizes = [8, 32], strides = [1, 1]} : vector<8x64xf32> to vector<8x32xf32>
    %c40_102 = arith.constant 40 : index
    %c32_103 = arith.constant 32 : index
    %433 = vector.load %arg5[%c40_102, %c32_103] : memref<72x64xf32, #tpu.memory_space<vmem>>, vector<8x32xf32>
    tpu.vector_store %arg5[%c40_102, %c32_103], %432 {strides = array<i32>} : memref<72x64xf32, #tpu.memory_space<vmem>>, vector<8x32xf32>,
    %434 = vector.extract_strided_slice %299 {offsets = [32, 0], sizes = [8, 256], strides = [1, 1]} : vector<72x256xf32> to vector<8x256xf32>
    %435 = vector.extract_strided_slice %299 {offsets = [32, 0], sizes = [8, 256], strides = [1, 1]} : vector<72x256xf32> to vector<8x256xf32>
    %436 = vector.shape_cast %321 : vector<1x256xi1> to vector<1x256xi1>
    %437 = vector.broadcast %436 : vector<1x256xi1> to vector<8x256xi1>
    %438 = arith.select %437, %434, %435 : vector<8x256xi1>, vector<8x256xf32>
    %439 = arith.truncf %429 : vector<8x64xf32> to vector<8x64xbf16>
    %cst_104 = arith.constant dense<0.000000e+00> : vector<8x256xf32>
    %440 = tpu.matmul %439, %302, %cst_104 {dimension_numbers = #tpu.dot_dimension_numbers<[1], [0], [0], [1], [0, 0, 1, 1], [], []>} : vector<8x64xbf16>, vector<64x256xbf16>, vector<8x256xf32> -> vector<8x256xf32>
    %441 = arith.addf %438, %440 : vector<8x256xf32>
    %442 = vector.extract_strided_slice %441 {offsets = [0, 0], sizes = [8, 192], strides = [1, 1]} : vector<8x256xf32> to vector<8x192xf32>
    %443 = arith.negf %442 : vector<8x192xf32>
    %444 = math.exp %443 : vector<8x192xf32>
    %cst_105 = arith.constant 1.000000e+00 : f32
    %445 = vector.broadcast %cst_105 : f32 to vector<8x192xf32>
    %446 = arith.addf %445, %444 : vector<8x192xf32>
    %447 = arith.divf %445, %446 : vector<8x192xf32>
    %448 = vector.extract_strided_slice %441 {offsets = [0, 192], sizes = [8, 64], strides = [1, 1]} : vector<8x256xf32> to vector<8x64xf32>
    %449 = math.tanh %448 : vector<8x64xf32>
    %450 = vector.extract_strided_slice %447 {offsets = [0, 64], sizes = [8, 64], strides = [1, 1]} : vector<8x192xf32> to vector<8x64xf32>
    %451 = arith.mulf %450, %426 : vector<8x64xf32>
    %452 = vector.extract_strided_slice %447 {offsets = [0, 0], sizes = [8, 64], strides = [1, 1]} : vector<8x192xf32> to vector<8x64xf32>
    %453 = arith.mulf %452, %449 : vector<8x64xf32>
    %454 = arith.addf %451, %453 : vector<8x64xf32>
    %455 = vector.extract_strided_slice %447 {offsets = [0, 128], sizes = [8, 64], strides = [1, 1]} : vector<8x192xf32> to vector<8x64xf32>
    %456 = math.tanh %454 : vector<8x64xf32>
    %457 = arith.mulf %455, %456 : vector<8x64xf32>
    %458 = vector.extract_strided_slice %457 {offsets = [0, 0], sizes = [8, 32], strides = [1, 1]} : vector<8x64xf32> to vector<8x32xf32>
    %c32_106 = arith.constant 32 : index
    %c0_107 = arith.constant 0 : index
    %459 = vector.load %arg5[%c32_106, %c0_107] : memref<72x64xf32, #tpu.memory_space<vmem>>, vector<8x32xf32>
    tpu.vector_store %arg5[%c32_106, %c0_107], %458 {strides = array<i32>} : memref<72x64xf32, #tpu.memory_space<vmem>>, vector<8x32xf32>,
    %460 = vector.extract_strided_slice %457 {offsets = [0, 32], sizes = [8, 32], strides = [1, 1]} : vector<8x64xf32> to vector<8x32xf32>
    %c32_108 = arith.constant 32 : index
    %c32_109 = arith.constant 32 : index
    %461 = vector.load %arg5[%c32_108, %c32_109] : memref<72x64xf32, #tpu.memory_space<vmem>>, vector<8x32xf32>
    tpu.vector_store %arg5[%c32_108, %c32_109], %460 {strides = array<i32>} : memref<72x64xf32, #tpu.memory_space<vmem>>, vector<8x32xf32>,
    %462 = vector.extract_strided_slice %299 {offsets = [40, 0], sizes = [8, 256], strides = [1, 1]} : vector<72x256xf32> to vector<8x256xf32>
    %463 = vector.extract_strided_slice %299 {offsets = [24, 0], sizes = [8, 256], strides = [1, 1]} : vector<72x256xf32> to vector<8x256xf32>
    %464 = vector.shape_cast %321 : vector<1x256xi1> to vector<1x256xi1>
    %465 = vector.broadcast %464 : vector<1x256xi1> to vector<8x256xi1>
    %466 = arith.select %465, %462, %463 : vector<8x256xi1>, vector<8x256xf32>
    %467 = arith.truncf %457 : vector<8x64xf32> to vector<8x64xbf16>
    %cst_110 = arith.constant dense<0.000000e+00> : vector<8x256xf32>
    %468 = tpu.matmul %467, %302, %cst_110 {dimension_numbers = #tpu.dot_dimension_numbers<[1], [0], [0], [1], [0, 0, 1, 1], [], []>} : vector<8x64xbf16>, vector<64x256xbf16>, vector<8x256xf32> -> vector<8x256xf32>
    %469 = arith.addf %466, %468 : vector<8x256xf32>
    %470 = vector.extract_strided_slice %469 {offsets = [0, 0], sizes = [8, 192], strides = [1, 1]} : vector<8x256xf32> to vector<8x192xf32>
    %471 = arith.negf %470 : vector<8x192xf32>
    %472 = math.exp %471 : vector<8x192xf32>
    %cst_111 = arith.constant 1.000000e+00 : f32
    %473 = vector.broadcast %cst_111 : f32 to vector<8x192xf32>
    %474 = arith.addf %473, %472 : vector<8x192xf32>
    %475 = arith.divf %473, %474 : vector<8x192xf32>
    %476 = vector.extract_strided_slice %469 {offsets = [0, 192], sizes = [8, 64], strides = [1, 1]} : vector<8x256xf32> to vector<8x64xf32>
    %477 = math.tanh %476 : vector<8x64xf32>
    %478 = vector.extract_strided_slice %475 {offsets = [0, 64], sizes = [8, 64], strides = [1, 1]} : vector<8x192xf32> to vector<8x64xf32>
    %479 = arith.mulf %478, %454 : vector<8x64xf32>
    %480 = vector.extract_strided_slice %475 {offsets = [0, 0], sizes = [8, 64], strides = [1, 1]} : vector<8x192xf32> to vector<8x64xf32>
    %481 = arith.mulf %480, %477 : vector<8x64xf32>
    %482 = arith.addf %479, %481 : vector<8x64xf32>
    %483 = vector.extract_strided_slice %475 {offsets = [0, 128], sizes = [8, 64], strides = [1, 1]} : vector<8x192xf32> to vector<8x64xf32>
    %484 = math.tanh %482 : vector<8x64xf32>
    %485 = arith.mulf %483, %484 : vector<8x64xf32>
    %486 = vector.extract_strided_slice %485 {offsets = [0, 0], sizes = [8, 32], strides = [1, 1]} : vector<8x64xf32> to vector<8x32xf32>
    %c40_112 = arith.constant 40 : index
    %c0_113 = arith.constant 0 : index
    %487 = vector.load %arg5[%c40_112, %c0_113] : memref<72x64xf32, #tpu.memory_space<vmem>>, vector<8x32xf32>
    tpu.vector_store %arg5[%c40_112, %c0_113], %486 {strides = array<i32>} : memref<72x64xf32, #tpu.memory_space<vmem>>, vector<8x32xf32>,
    %488 = vector.extract_strided_slice %485 {offsets = [0, 32], sizes = [8, 32], strides = [1, 1]} : vector<8x64xf32> to vector<8x32xf32>
    %c24_114 = arith.constant 24 : index
    %c32_115 = arith.constant 32 : index
    %489 = vector.load %arg5[%c24_114, %c32_115] : memref<72x64xf32, #tpu.memory_space<vmem>>, vector<8x32xf32>
    tpu.vector_store %arg5[%c24_114, %c32_115], %488 {strides = array<i32>} : memref<72x64xf32, #tpu.memory_space<vmem>>, vector<8x32xf32>,
    %490 = vector.extract_strided_slice %299 {offsets = [48, 0], sizes = [8, 256], strides = [1, 1]} : vector<72x256xf32> to vector<8x256xf32>
    %491 = vector.extract_strided_slice %299 {offsets = [16, 0], sizes = [8, 256], strides = [1, 1]} : vector<72x256xf32> to vector<8x256xf32>
    %492 = vector.shape_cast %321 : vector<1x256xi1> to vector<1x256xi1>
    %493 = vector.broadcast %492 : vector<1x256xi1> to vector<8x256xi1>
    %494 = arith.select %493, %490, %491 : vector<8x256xi1>, vector<8x256xf32>
    %495 = arith.truncf %485 : vector<8x64xf32> to vector<8x64xbf16>
    %cst_116 = arith.constant dense<0.000000e+00> : vector<8x256xf32>
    %496 = tpu.matmul %495, %302, %cst_116 {dimension_numbers = #tpu.dot_dimension_numbers<[1], [0], [0], [1], [0, 0, 1, 1], [], []>} : vector<8x64xbf16>, vector<64x256xbf16>, vector<8x256xf32> -> vector<8x256xf32>
    %497 = arith.addf %494, %496 : vector<8x256xf32>
    %498 = vector.extract_strided_slice %497 {offsets = [0, 0], sizes = [8, 192], strides = [1, 1]} : vector<8x256xf32> to vector<8x192xf32>
    %499 = arith.negf %498 : vector<8x192xf32>
    %500 = math.exp %499 : vector<8x192xf32>
    %cst_117 = arith.constant 1.000000e+00 : f32
    %501 = vector.broadcast %cst_117 : f32 to vector<8x192xf32>
    %502 = arith.addf %501, %500 : vector<8x192xf32>
    %503 = arith.divf %501, %502 : vector<8x192xf32>
    %504 = vector.extract_strided_slice %497 {offsets = [0, 192], sizes = [8, 64], strides = [1, 1]} : vector<8x256xf32> to vector<8x64xf32>
    %505 = math.tanh %504 : vector<8x64xf32>
    %506 = vector.extract_strided_slice %503 {offsets = [0, 64], sizes = [8, 64], strides = [1, 1]} : vector<8x192xf32> to vector<8x64xf32>
    %507 = arith.mulf %506, %482 : vector<8x64xf32>
    %508 = vector.extract_strided_slice %503 {offsets = [0, 0], sizes = [8, 64], strides = [1, 1]} : vector<8x192xf32> to vector<8x64xf32>
    %509 = arith.mulf %508, %505 : vector<8x64xf32>
    %510 = arith.addf %507, %509 : vector<8x64xf32>
    %511 = vector.extract_strided_slice %503 {offsets = [0, 128], sizes = [8, 64], strides = [1, 1]} : vector<8x192xf32> to vector<8x64xf32>
    %512 = math.tanh %510 : vector<8x64xf32>
    %513 = arith.mulf %511, %512 : vector<8x64xf32>
    %514 = vector.extract_strided_slice %513 {offsets = [0, 0], sizes = [8, 32], strides = [1, 1]} : vector<8x64xf32> to vector<8x32xf32>
    %c48_118 = arith.constant 48 : index
    %c0_119 = arith.constant 0 : index
    %515 = vector.load %arg5[%c48_118, %c0_119] : memref<72x64xf32, #tpu.memory_space<vmem>>, vector<8x32xf32>
    tpu.vector_store %arg5[%c48_118, %c0_119], %514 {strides = array<i32>} : memref<72x64xf32, #tpu.memory_space<vmem>>, vector<8x32xf32>,
    %516 = vector.extract_strided_slice %513 {offsets = [0, 32], sizes = [8, 32], strides = [1, 1]} : vector<8x64xf32> to vector<8x32xf32>
    %c16_120 = arith.constant 16 : index
    %c32_121 = arith.constant 32 : index
    %517 = vector.load %arg5[%c16_120, %c32_121] : memref<72x64xf32, #tpu.memory_space<vmem>>, vector<8x32xf32>
    tpu.vector_store %arg5[%c16_120, %c32_121], %516 {strides = array<i32>} : memref<72x64xf32, #tpu.memory_space<vmem>>, vector<8x32xf32>,
    %518 = vector.extract_strided_slice %299 {offsets = [56, 0], sizes = [8, 256], strides = [1, 1]} : vector<72x256xf32> to vector<8x256xf32>
    %519 = vector.extract_strided_slice %299 {offsets = [8, 0], sizes = [8, 256], strides = [1, 1]} : vector<72x256xf32> to vector<8x256xf32>
    %520 = vector.shape_cast %321 : vector<1x256xi1> to vector<1x256xi1>
    %521 = vector.broadcast %520 : vector<1x256xi1> to vector<8x256xi1>
    %522 = arith.select %521, %518, %519 : vector<8x256xi1>, vector<8x256xf32>
    %523 = arith.truncf %513 : vector<8x64xf32> to vector<8x64xbf16>
    %cst_122 = arith.constant dense<0.000000e+00> : vector<8x256xf32>
    %524 = tpu.matmul %523, %302, %cst_122 {dimension_numbers = #tpu.dot_dimension_numbers<[1], [0], [0], [1], [0, 0, 1, 1], [], []>} : vector<8x64xbf16>, vector<64x256xbf16>, vector<8x256xf32> -> vector<8x256xf32>
    %525 = arith.addf %522, %524 : vector<8x256xf32>
    %526 = vector.extract_strided_slice %525 {offsets = [0, 0], sizes = [8, 192], strides = [1, 1]} : vector<8x256xf32> to vector<8x192xf32>
    %527 = arith.negf %526 : vector<8x192xf32>
    %528 = math.exp %527 : vector<8x192xf32>
    %cst_123 = arith.constant 1.000000e+00 : f32
    %529 = vector.broadcast %cst_123 : f32 to vector<8x192xf32>
    %530 = arith.addf %529, %528 : vector<8x192xf32>
    %531 = arith.divf %529, %530 : vector<8x192xf32>
    %532 = vector.extract_strided_slice %525 {offsets = [0, 192], sizes = [8, 64], strides = [1, 1]} : vector<8x256xf32> to vector<8x64xf32>
    %533 = math.tanh %532 : vector<8x64xf32>
    %534 = vector.extract_strided_slice %531 {offsets = [0, 64], sizes = [8, 64], strides = [1, 1]} : vector<8x192xf32> to vector<8x64xf32>
    %535 = arith.mulf %534, %510 : vector<8x64xf32>
    %536 = vector.extract_strided_slice %531 {offsets = [0, 0], sizes = [8, 64], strides = [1, 1]} : vector<8x192xf32> to vector<8x64xf32>
    %537 = arith.mulf %536, %533 : vector<8x64xf32>
    %538 = arith.addf %535, %537 : vector<8x64xf32>
    %539 = vector.extract_strided_slice %531 {offsets = [0, 128], sizes = [8, 64], strides = [1, 1]} : vector<8x192xf32> to vector<8x64xf32>
    %540 = math.tanh %538 : vector<8x64xf32>
    %541 = arith.mulf %539, %540 : vector<8x64xf32>
    %542 = vector.extract_strided_slice %541 {offsets = [0, 0], sizes = [8, 32], strides = [1, 1]} : vector<8x64xf32> to vector<8x32xf32>
    %c56_124 = arith.constant 56 : index
    %c0_125 = arith.constant 0 : index
    %543 = vector.load %arg5[%c56_124, %c0_125] : memref<72x64xf32, #tpu.memory_space<vmem>>, vector<8x32xf32>
    tpu.vector_store %arg5[%c56_124, %c0_125], %542 {strides = array<i32>} : memref<72x64xf32, #tpu.memory_space<vmem>>, vector<8x32xf32>,
    %544 = vector.extract_strided_slice %541 {offsets = [0, 32], sizes = [8, 32], strides = [1, 1]} : vector<8x64xf32> to vector<8x32xf32>
    %c8_126 = arith.constant 8 : index
    %c32_127 = arith.constant 32 : index
    %545 = vector.load %arg5[%c8_126, %c32_127] : memref<72x64xf32, #tpu.memory_space<vmem>>, vector<8x32xf32>
    tpu.vector_store %arg5[%c8_126, %c32_127], %544 {strides = array<i32>} : memref<72x64xf32, #tpu.memory_space<vmem>>, vector<8x32xf32>,
    %546 = vector.extract_strided_slice %299 {offsets = [64, 0], sizes = [8, 256], strides = [1, 1]} : vector<72x256xf32> to vector<8x256xf32>
    %547 = vector.extract_strided_slice %299 {offsets = [0, 0], sizes = [8, 256], strides = [1, 1]} : vector<72x256xf32> to vector<8x256xf32>
    %548 = vector.shape_cast %321 : vector<1x256xi1> to vector<1x256xi1>
    %549 = vector.broadcast %548 : vector<1x256xi1> to vector<8x256xi1>
    %550 = arith.select %549, %546, %547 : vector<8x256xi1>, vector<8x256xf32>
    %551 = arith.truncf %541 : vector<8x64xf32> to vector<8x64xbf16>
    %cst_128 = arith.constant dense<0.000000e+00> : vector<8x256xf32>
    %552 = tpu.matmul %551, %302, %cst_128 {dimension_numbers = #tpu.dot_dimension_numbers<[1], [0], [0], [1], [0, 0, 1, 1], [], []>} : vector<8x64xbf16>, vector<64x256xbf16>, vector<8x256xf32> -> vector<8x256xf32>
    %553 = arith.addf %550, %552 : vector<8x256xf32>
    %554 = vector.extract_strided_slice %553 {offsets = [0, 0], sizes = [8, 192], strides = [1, 1]} : vector<8x256xf32> to vector<8x192xf32>
    %555 = arith.negf %554 : vector<8x192xf32>
    %556 = math.exp %555 : vector<8x192xf32>
    %cst_129 = arith.constant 1.000000e+00 : f32
    %557 = vector.broadcast %cst_129 : f32 to vector<8x192xf32>
    %558 = arith.addf %557, %556 : vector<8x192xf32>
    %559 = arith.divf %557, %558 : vector<8x192xf32>
    %560 = vector.extract_strided_slice %553 {offsets = [0, 192], sizes = [8, 64], strides = [1, 1]} : vector<8x256xf32> to vector<8x64xf32>
    %561 = math.tanh %560 : vector<8x64xf32>
    %562 = vector.extract_strided_slice %559 {offsets = [0, 64], sizes = [8, 64], strides = [1, 1]} : vector<8x192xf32> to vector<8x64xf32>
    %563 = arith.mulf %562, %538 : vector<8x64xf32>
    %564 = vector.extract_strided_slice %559 {offsets = [0, 0], sizes = [8, 64], strides = [1, 1]} : vector<8x192xf32> to vector<8x64xf32>
    %565 = arith.mulf %564, %561 : vector<8x64xf32>
    %566 = arith.addf %563, %565 : vector<8x64xf32>
    %567 = vector.extract_strided_slice %559 {offsets = [0, 128], sizes = [8, 64], strides = [1, 1]} : vector<8x192xf32> to vector<8x64xf32>
    %568 = math.tanh %566 : vector<8x64xf32>
    %569 = arith.mulf %567, %568 : vector<8x64xf32>
    %570 = vector.extract_strided_slice %569 {offsets = [0, 0], sizes = [8, 32], strides = [1, 1]} : vector<8x64xf32> to vector<8x32xf32>
    %c64_130 = arith.constant 64 : index
    %c0_131 = arith.constant 0 : index
    %571 = vector.load %arg5[%c64_130, %c0_131] : memref<72x64xf32, #tpu.memory_space<vmem>>, vector<8x32xf32>
    tpu.vector_store %arg5[%c64_130, %c0_131], %570 {strides = array<i32>} : memref<72x64xf32, #tpu.memory_space<vmem>>, vector<8x32xf32>,
    %572 = vector.extract_strided_slice %569 {offsets = [0, 32], sizes = [8, 32], strides = [1, 1]} : vector<8x64xf32> to vector<8x32xf32>
    %c0_132 = arith.constant 0 : index
    %c32_133 = arith.constant 32 : index
    %573 = vector.load %arg5[%c0_132, %c32_133] : memref<72x64xf32, #tpu.memory_space<vmem>>, vector<8x32xf32>
    tpu.vector_store %arg5[%c0_132, %c32_133], %572 {strides = array<i32>} : memref<72x64xf32, #tpu.memory_space<vmem>>, vector<8x32xf32>,
    %c0_134 = arith.constant 0 : index
    %c0_135 = arith.constant 0 : index
    %574 = vector.load %arg5[%c0_134, %c0_135] : memref<72x64xf32, #tpu.memory_space<vmem>>, vector<72x64xf32>
    %575 = arith.truncf %574 : vector<72x64xf32> to vector<72x64xbf16>
    %c464 = arith.constant 464 : index
    %c0_136 = arith.constant 0 : index
    %576 = vector.load %arg1[%c464, %c0_136] : memref<624x256xbf16, #tpu.memory_space<vmem>>, vector<64x32xbf16>
    %cst_137 = arith.constant dense<0.000000e+00> : vector<72x32xf32>
    %577 = tpu.matmul %575, %576, %cst_137 {dimension_numbers = #tpu.dot_dimension_numbers<[1], [0], [0], [1], [0, 0, 1, 1], [], []>} : vector<72x64xbf16>, vector<64x32xbf16>, vector<72x32xf32> -> vector<72x32xf32>
    %c20 = arith.constant 20 : index
    %c0_138 = arith.constant 0 : index
    %578 = vector.load %arg2[%c20, %c0_138] : memref<24x256xf32, #tpu.memory_space<vmem>>, vector<1x32xf32>
    %579 = vector.broadcast %578 : vector<1x32xf32> to vector<72x32xf32>
    %580 = arith.addf %577, %579 : vector<72x32xf32>
    %cst_139 = arith.constant 0.000000e+00 : f32
    %581 = vector.broadcast %cst_139 : f32 to vector<72x32xf32>
    %582 = arith.maximumf %580, %581 : vector<72x32xf32>
    %583 = arith.truncf %582 : vector<72x32xf32> to vector<72x32xbf16>
    %c240 = arith.constant 240 : index
    %c0_140 = arith.constant 0 : index
    %584 = vector.load %arg1[%c240, %c0_140] : memref<624x256xbf16, #tpu.memory_space<vmem>>, vector<32x256xbf16>
    %cst_141 = arith.constant dense<0.000000e+00> : vector<72x256xf32>
    %585 = tpu.matmul %583, %584, %cst_141 {dimension_numbers = #tpu.dot_dimension_numbers<[1], [0], [0], [1], [0, 0, 1, 1], [], []>} : vector<72x32xbf16>, vector<32x256xbf16>, vector<72x256xf32> -> vector<72x256xf32>
    %c18 = arith.constant 18 : index
    %c0_142 = arith.constant 0 : index
    %586 = vector.load %arg2[%c18, %c0_142] : memref<24x256xf32, #tpu.memory_space<vmem>>, vector<1x256xf32>
    %587 = vector.broadcast %586 : vector<1x256xf32> to vector<72x256xf32>
    %588 = arith.addf %585, %587 : vector<72x256xf32>
    %c8_143 = arith.constant 8 : index
    %c0_144 = arith.constant 0 : index
    %589 = vector.load %arg2[%c8_143, %c0_144] : memref<24x256xf32, #tpu.memory_space<vmem>>, vector<8x64xf32>
    %c8_145 = arith.constant 8 : index
    %c64_146 = arith.constant 64 : index
    %590 = vector.load %arg2[%c8_145, %c64_146] : memref<24x256xf32, #tpu.memory_space<vmem>>, vector<8x64xf32>
    %c272 = arith.constant 272 : index
    %c0_147 = arith.constant 0 : index
    %591 = vector.load %arg1[%c272, %c0_147] : memref<624x256xbf16, #tpu.memory_space<vmem>>, vector<64x256xbf16>
    %592 = tpu.iota {dimensions = array<i32: 1>} : vector<1x256xi32>
    %c64_i32_148 = arith.constant 64 : i32
    %c0_i32_149 = arith.constant 0 : i32
    %593 = arith.cmpi eq, %c64_i32_148, %c0_i32_149 : i32
    %c1_i32_150 = arith.constant 1 : i32
    %594 = arith.select %593, %c1_i32_150, %c64_i32_148 : i32
    %595 = vector.broadcast %594 : i32 to vector<1x256xi32>
    %596 = arith.remsi %592, %595 : vector<1x256xi32>
    %c0_i32_151 = arith.constant 0 : i32
    %597 = vector.broadcast %c0_i32_151 : i32 to vector<1x256xi32>
    %598 = arith.cmpi ne, %596, %597 : vector<1x256xi32>
    %c0_i32_152 = arith.constant 0 : i32
    %599 = vector.broadcast %c0_i32_152 : i32 to vector<1x256xi32>
    %600 = arith.cmpi slt, %596, %599 : vector<1x256xi32>
    %c0_i32_153 = arith.constant 0 : i32
    %601 = arith.cmpi slt, %594, %c0_i32_153 : i32
    %602 = vector.broadcast %601 : i1 to vector<1x256xi1>
    %603 = vector.broadcast %602 : vector<1x256xi1> to vector<1x256xi1>
    %604 = arith.xori %600, %603 : vector<1x256xi1>
    %605 = arith.andi %604, %598 : vector<1x256xi1>
    %606 = vector.broadcast %594 : i32 to vector<1x256xi32>
    %607 = arith.addi %596, %606 : vector<1x256xi32>
    %608 = arith.select %605, %607, %596 : vector<1x256xi1>, vector<1x256xi32>
    %c32_i32_154 = arith.constant 32 : i32
    %609 = vector.broadcast %c32_i32_154 : i32 to vector<1x256xi32>
    %610 = arith.cmpi slt, %608, %609 : vector<1x256xi32>
    %611 = vector.extract_strided_slice %588 {offsets = [0, 0], sizes = [8, 256], strides = [1, 1]} : vector<72x256xf32> to vector<8x256xf32>
    %612 = vector.extract_strided_slice %588 {offsets = [64, 0], sizes = [8, 256], strides = [1, 1]} : vector<72x256xf32> to vector<8x256xf32>
    %613 = vector.shape_cast %610 : vector<1x256xi1> to vector<1x256xi1>
    %614 = vector.broadcast %613 : vector<1x256xi1> to vector<8x256xi1>
    %615 = arith.select %614, %611, %612 : vector<8x256xi1>, vector<8x256xf32>
    %616 = arith.truncf %589 : vector<8x64xf32> to vector<8x64xbf16>
    %cst_155 = arith.constant dense<0.000000e+00> : vector<8x256xf32>
    %617 = tpu.matmul %616, %591, %cst_155 {dimension_numbers = #tpu.dot_dimension_numbers<[1], [0], [0], [1], [0, 0, 1, 1], [], []>} : vector<8x64xbf16>, vector<64x256xbf16>, vector<8x256xf32> -> vector<8x256xf32>
    %618 = arith.addf %615, %617 : vector<8x256xf32>
    %619 = vector.extract_strided_slice %618 {offsets = [0, 0], sizes = [8, 192], strides = [1, 1]} : vector<8x256xf32> to vector<8x192xf32>
    %620 = arith.negf %619 : vector<8x192xf32>
    %621 = math.exp %620 : vector<8x192xf32>
    %cst_156 = arith.constant 1.000000e+00 : f32
    %622 = vector.broadcast %cst_156 : f32 to vector<8x192xf32>
    %623 = arith.addf %622, %621 : vector<8x192xf32>
    %624 = arith.divf %622, %623 : vector<8x192xf32>
    %625 = vector.extract_strided_slice %618 {offsets = [0, 192], sizes = [8, 64], strides = [1, 1]} : vector<8x256xf32> to vector<8x64xf32>
    %626 = math.tanh %625 : vector<8x64xf32>
    %627 = vector.extract_strided_slice %624 {offsets = [0, 64], sizes = [8, 64], strides = [1, 1]} : vector<8x192xf32> to vector<8x64xf32>
    %628 = arith.mulf %627, %590 : vector<8x64xf32>
    %629 = vector.extract_strided_slice %624 {offsets = [0, 0], sizes = [8, 64], strides = [1, 1]} : vector<8x192xf32> to vector<8x64xf32>
    %630 = arith.mulf %629, %626 : vector<8x64xf32>
    %631 = arith.addf %628, %630 : vector<8x64xf32>
    %632 = vector.extract_strided_slice %624 {offsets = [0, 128], sizes = [8, 64], strides = [1, 1]} : vector<8x192xf32> to vector<8x64xf32>
    %633 = math.tanh %631 : vector<8x64xf32>
    %634 = arith.mulf %632, %633 : vector<8x64xf32>
    %635 = vector.extract_strided_slice %634 {offsets = [0, 0], sizes = [8, 32], strides = [1, 1]} : vector<8x64xf32> to vector<8x32xf32>
    %c0_157 = arith.constant 0 : index
    %c0_158 = arith.constant 0 : index
    %636 = vector.load %arg4[%c0_157, %c0_158] : memref<72x64xf32, #tpu.memory_space<vmem>>, vector<8x32xf32>
    tpu.vector_store %arg4[%c0_157, %c0_158], %635 {strides = array<i32>} : memref<72x64xf32, #tpu.memory_space<vmem>>, vector<8x32xf32>,
    %637 = vector.extract_strided_slice %634 {offsets = [0, 32], sizes = [8, 32], strides = [1, 1]} : vector<8x64xf32> to vector<8x32xf32>
    %c64_159 = arith.constant 64 : index
    %c32_160 = arith.constant 32 : index
    %638 = vector.load %arg4[%c64_159, %c32_160] : memref<72x64xf32, #tpu.memory_space<vmem>>, vector<8x32xf32>
    tpu.vector_store %arg4[%c64_159, %c32_160], %637 {strides = array<i32>} : memref<72x64xf32, #tpu.memory_space<vmem>>, vector<8x32xf32>,
    %639 = vector.extract_strided_slice %588 {offsets = [8, 0], sizes = [8, 256], strides = [1, 1]} : vector<72x256xf32> to vector<8x256xf32>
    %640 = vector.extract_strided_slice %588 {offsets = [56, 0], sizes = [8, 256], strides = [1, 1]} : vector<72x256xf32> to vector<8x256xf32>
    %641 = vector.shape_cast %610 : vector<1x256xi1> to vector<1x256xi1>
    %642 = vector.broadcast %641 : vector<1x256xi1> to vector<8x256xi1>
    %643 = arith.select %642, %639, %640 : vector<8x256xi1>, vector<8x256xf32>
    %644 = arith.truncf %634 : vector<8x64xf32> to vector<8x64xbf16>
    %cst_161 = arith.constant dense<0.000000e+00> : vector<8x256xf32>
    %645 = tpu.matmul %644, %591, %cst_161 {dimension_numbers = #tpu.dot_dimension_numbers<[1], [0], [0], [1], [0, 0, 1, 1], [], []>} : vector<8x64xbf16>, vector<64x256xbf16>, vector<8x256xf32> -> vector<8x256xf32>
    %646 = arith.addf %643, %645 : vector<8x256xf32>
    %647 = vector.extract_strided_slice %646 {offsets = [0, 0], sizes = [8, 192], strides = [1, 1]} : vector<8x256xf32> to vector<8x192xf32>
    %648 = arith.negf %647 : vector<8x192xf32>
    %649 = math.exp %648 : vector<8x192xf32>
    %cst_162 = arith.constant 1.000000e+00 : f32
    %650 = vector.broadcast %cst_162 : f32 to vector<8x192xf32>
    %651 = arith.addf %650, %649 : vector<8x192xf32>
    %652 = arith.divf %650, %651 : vector<8x192xf32>
    %653 = vector.extract_strided_slice %646 {offsets = [0, 192], sizes = [8, 64], strides = [1, 1]} : vector<8x256xf32> to vector<8x64xf32>
    %654 = math.tanh %653 : vector<8x64xf32>
    %655 = vector.extract_strided_slice %652 {offsets = [0, 64], sizes = [8, 64], strides = [1, 1]} : vector<8x192xf32> to vector<8x64xf32>
    %656 = arith.mulf %655, %631 : vector<8x64xf32>
    %657 = vector.extract_strided_slice %652 {offsets = [0, 0], sizes = [8, 64], strides = [1, 1]} : vector<8x192xf32> to vector<8x64xf32>
    %658 = arith.mulf %657, %654 : vector<8x64xf32>
    %659 = arith.addf %656, %658 : vector<8x64xf32>
    %660 = vector.extract_strided_slice %652 {offsets = [0, 128], sizes = [8, 64], strides = [1, 1]} : vector<8x192xf32> to vector<8x64xf32>
    %661 = math.tanh %659 : vector<8x64xf32>
    %662 = arith.mulf %660, %661 : vector<8x64xf32>
    %663 = vector.extract_strided_slice %662 {offsets = [0, 0], sizes = [8, 32], strides = [1, 1]} : vector<8x64xf32> to vector<8x32xf32>
    %c8_163 = arith.constant 8 : index
    %c0_164 = arith.constant 0 : index
    %664 = vector.load %arg4[%c8_163, %c0_164] : memref<72x64xf32, #tpu.memory_space<vmem>>, vector<8x32xf32>
    tpu.vector_store %arg4[%c8_163, %c0_164], %663 {strides = array<i32>} : memref<72x64xf32, #tpu.memory_space<vmem>>, vector<8x32xf32>,
    %665 = vector.extract_strided_slice %662 {offsets = [0, 32], sizes = [8, 32], strides = [1, 1]} : vector<8x64xf32> to vector<8x32xf32>
    %c56_165 = arith.constant 56 : index
    %c32_166 = arith.constant 32 : index
    %666 = vector.load %arg4[%c56_165, %c32_166] : memref<72x64xf32, #tpu.memory_space<vmem>>, vector<8x32xf32>
    tpu.vector_store %arg4[%c56_165, %c32_166], %665 {strides = array<i32>} : memref<72x64xf32, #tpu.memory_space<vmem>>, vector<8x32xf32>,
    %667 = vector.extract_strided_slice %588 {offsets = [16, 0], sizes = [8, 256], strides = [1, 1]} : vector<72x256xf32> to vector<8x256xf32>
    %668 = vector.extract_strided_slice %588 {offsets = [48, 0], sizes = [8, 256], strides = [1, 1]} : vector<72x256xf32> to vector<8x256xf32>
    %669 = vector.shape_cast %610 : vector<1x256xi1> to vector<1x256xi1>
    %670 = vector.broadcast %669 : vector<1x256xi1> to vector<8x256xi1>
    %671 = arith.select %670, %667, %668 : vector<8x256xi1>, vector<8x256xf32>
    %672 = arith.truncf %662 : vector<8x64xf32> to vector<8x64xbf16>
    %cst_167 = arith.constant dense<0.000000e+00> : vector<8x256xf32>
    %673 = tpu.matmul %672, %591, %cst_167 {dimension_numbers = #tpu.dot_dimension_numbers<[1], [0], [0], [1], [0, 0, 1, 1], [], []>} : vector<8x64xbf16>, vector<64x256xbf16>, vector<8x256xf32> -> vector<8x256xf32>
    %674 = arith.addf %671, %673 : vector<8x256xf32>
    %675 = vector.extract_strided_slice %674 {offsets = [0, 0], sizes = [8, 192], strides = [1, 1]} : vector<8x256xf32> to vector<8x192xf32>
    %676 = arith.negf %675 : vector<8x192xf32>
    %677 = math.exp %676 : vector<8x192xf32>
    %cst_168 = arith.constant 1.000000e+00 : f32
    %678 = vector.broadcast %cst_168 : f32 to vector<8x192xf32>
    %679 = arith.addf %678, %677 : vector<8x192xf32>
    %680 = arith.divf %678, %679 : vector<8x192xf32>
    %681 = vector.extract_strided_slice %674 {offsets = [0, 192], sizes = [8, 64], strides = [1, 1]} : vector<8x256xf32> to vector<8x64xf32>
    %682 = math.tanh %681 : vector<8x64xf32>
    %683 = vector.extract_strided_slice %680 {offsets = [0, 64], sizes = [8, 64], strides = [1, 1]} : vector<8x192xf32> to vector<8x64xf32>
    %684 = arith.mulf %683, %659 : vector<8x64xf32>
    %685 = vector.extract_strided_slice %680 {offsets = [0, 0], sizes = [8, 64], strides = [1, 1]} : vector<8x192xf32> to vector<8x64xf32>
    %686 = arith.mulf %685, %682 : vector<8x64xf32>
    %687 = arith.addf %684, %686 : vector<8x64xf32>
    %688 = vector.extract_strided_slice %680 {offsets = [0, 128], sizes = [8, 64], strides = [1, 1]} : vector<8x192xf32> to vector<8x64xf32>
    %689 = math.tanh %687 : vector<8x64xf32>
    %690 = arith.mulf %688, %689 : vector<8x64xf32>
    %691 = vector.extract_strided_slice %690 {offsets = [0, 0], sizes = [8, 32], strides = [1, 1]} : vector<8x64xf32> to vector<8x32xf32>
    %c16_169 = arith.constant 16 : index
    %c0_170 = arith.constant 0 : index
    %692 = vector.load %arg4[%c16_169, %c0_170] : memref<72x64xf32, #tpu.memory_space<vmem>>, vector<8x32xf32>
    tpu.vector_store %arg4[%c16_169, %c0_170], %691 {strides = array<i32>} : memref<72x64xf32, #tpu.memory_space<vmem>>, vector<8x32xf32>,
    %693 = vector.extract_strided_slice %690 {offsets = [0, 32], sizes = [8, 32], strides = [1, 1]} : vector<8x64xf32> to vector<8x32xf32>
    %c48_171 = arith.constant 48 : index
    %c32_172 = arith.constant 32 : index
    %694 = vector.load %arg4[%c48_171, %c32_172] : memref<72x64xf32, #tpu.memory_space<vmem>>, vector<8x32xf32>
    tpu.vector_store %arg4[%c48_171, %c32_172], %693 {strides = array<i32>} : memref<72x64xf32, #tpu.memory_space<vmem>>, vector<8x32xf32>,
    %695 = vector.extract_strided_slice %588 {offsets = [24, 0], sizes = [8, 256], strides = [1, 1]} : vector<72x256xf32> to vector<8x256xf32>
    %696 = vector.extract_strided_slice %588 {offsets = [40, 0], sizes = [8, 256], strides = [1, 1]} : vector<72x256xf32> to vector<8x256xf32>
    %697 = vector.shape_cast %610 : vector<1x256xi1> to vector<1x256xi1>
    %698 = vector.broadcast %697 : vector<1x256xi1> to vector<8x256xi1>
    %699 = arith.select %698, %695, %696 : vector<8x256xi1>, vector<8x256xf32>
    %700 = arith.truncf %690 : vector<8x64xf32> to vector<8x64xbf16>
    %cst_173 = arith.constant dense<0.000000e+00> : vector<8x256xf32>
    %701 = tpu.matmul %700, %591, %cst_173 {dimension_numbers = #tpu.dot_dimension_numbers<[1], [0], [0], [1], [0, 0, 1, 1], [], []>} : vector<8x64xbf16>, vector<64x256xbf16>, vector<8x256xf32> -> vector<8x256xf32>
    %702 = arith.addf %699, %701 : vector<8x256xf32>
    %703 = vector.extract_strided_slice %702 {offsets = [0, 0], sizes = [8, 192], strides = [1, 1]} : vector<8x256xf32> to vector<8x192xf32>
    %704 = arith.negf %703 : vector<8x192xf32>
    %705 = math.exp %704 : vector<8x192xf32>
    %cst_174 = arith.constant 1.000000e+00 : f32
    %706 = vector.broadcast %cst_174 : f32 to vector<8x192xf32>
    %707 = arith.addf %706, %705 : vector<8x192xf32>
    %708 = arith.divf %706, %707 : vector<8x192xf32>
    %709 = vector.extract_strided_slice %702 {offsets = [0, 192], sizes = [8, 64], strides = [1, 1]} : vector<8x256xf32> to vector<8x64xf32>
    %710 = math.tanh %709 : vector<8x64xf32>
    %711 = vector.extract_strided_slice %708 {offsets = [0, 64], sizes = [8, 64], strides = [1, 1]} : vector<8x192xf32> to vector<8x64xf32>
    %712 = arith.mulf %711, %687 : vector<8x64xf32>
    %713 = vector.extract_strided_slice %708 {offsets = [0, 0], sizes = [8, 64], strides = [1, 1]} : vector<8x192xf32> to vector<8x64xf32>
    %714 = arith.mulf %713, %710 : vector<8x64xf32>
    %715 = arith.addf %712, %714 : vector<8x64xf32>
    %716 = vector.extract_strided_slice %708 {offsets = [0, 128], sizes = [8, 64], strides = [1, 1]} : vector<8x192xf32> to vector<8x64xf32>
    %717 = math.tanh %715 : vector<8x64xf32>
    %718 = arith.mulf %716, %717 : vector<8x64xf32>
    %719 = vector.extract_strided_slice %718 {offsets = [0, 0], sizes = [8, 32], strides = [1, 1]} : vector<8x64xf32> to vector<8x32xf32>
    %c24_175 = arith.constant 24 : index
    %c0_176 = arith.constant 0 : index
    %720 = vector.load %arg4[%c24_175, %c0_176] : memref<72x64xf32, #tpu.memory_space<vmem>>, vector<8x32xf32>
    tpu.vector_store %arg4[%c24_175, %c0_176], %719 {strides = array<i32>} : memref<72x64xf32, #tpu.memory_space<vmem>>, vector<8x32xf32>,
    %721 = vector.extract_strided_slice %718 {offsets = [0, 32], sizes = [8, 32], strides = [1, 1]} : vector<8x64xf32> to vector<8x32xf32>
    %c40_177 = arith.constant 40 : index
    %c32_178 = arith.constant 32 : index
    %722 = vector.load %arg4[%c40_177, %c32_178] : memref<72x64xf32, #tpu.memory_space<vmem>>, vector<8x32xf32>
    tpu.vector_store %arg4[%c40_177, %c32_178], %721 {strides = array<i32>} : memref<72x64xf32, #tpu.memory_space<vmem>>, vector<8x32xf32>,
    %723 = vector.extract_strided_slice %588 {offsets = [32, 0], sizes = [8, 256], strides = [1, 1]} : vector<72x256xf32> to vector<8x256xf32>
    %724 = vector.extract_strided_slice %588 {offsets = [32, 0], sizes = [8, 256], strides = [1, 1]} : vector<72x256xf32> to vector<8x256xf32>
    %725 = vector.shape_cast %610 : vector<1x256xi1> to vector<1x256xi1>
    %726 = vector.broadcast %725 : vector<1x256xi1> to vector<8x256xi1>
    %727 = arith.select %726, %723, %724 : vector<8x256xi1>, vector<8x256xf32>
    %728 = arith.truncf %718 : vector<8x64xf32> to vector<8x64xbf16>
    %cst_179 = arith.constant dense<0.000000e+00> : vector<8x256xf32>
    %729 = tpu.matmul %728, %591, %cst_179 {dimension_numbers = #tpu.dot_dimension_numbers<[1], [0], [0], [1], [0, 0, 1, 1], [], []>} : vector<8x64xbf16>, vector<64x256xbf16>, vector<8x256xf32> -> vector<8x256xf32>
    %730 = arith.addf %727, %729 : vector<8x256xf32>
    %731 = vector.extract_strided_slice %730 {offsets = [0, 0], sizes = [8, 192], strides = [1, 1]} : vector<8x256xf32> to vector<8x192xf32>
    %732 = arith.negf %731 : vector<8x192xf32>
    %733 = math.exp %732 : vector<8x192xf32>
    %cst_180 = arith.constant 1.000000e+00 : f32
    %734 = vector.broadcast %cst_180 : f32 to vector<8x192xf32>
    %735 = arith.addf %734, %733 : vector<8x192xf32>
    %736 = arith.divf %734, %735 : vector<8x192xf32>
    %737 = vector.extract_strided_slice %730 {offsets = [0, 192], sizes = [8, 64], strides = [1, 1]} : vector<8x256xf32> to vector<8x64xf32>
    %738 = math.tanh %737 : vector<8x64xf32>
    %739 = vector.extract_strided_slice %736 {offsets = [0, 64], sizes = [8, 64], strides = [1, 1]} : vector<8x192xf32> to vector<8x64xf32>
    %740 = arith.mulf %739, %715 : vector<8x64xf32>
    %741 = vector.extract_strided_slice %736 {offsets = [0, 0], sizes = [8, 64], strides = [1, 1]} : vector<8x192xf32> to vector<8x64xf32>
    %742 = arith.mulf %741, %738 : vector<8x64xf32>
    %743 = arith.addf %740, %742 : vector<8x64xf32>
    %744 = vector.extract_strided_slice %736 {offsets = [0, 128], sizes = [8, 64], strides = [1, 1]} : vector<8x192xf32> to vector<8x64xf32>
    %745 = math.tanh %743 : vector<8x64xf32>
    %746 = arith.mulf %744, %745 : vector<8x64xf32>
    %747 = vector.extract_strided_slice %746 {offsets = [0, 0], sizes = [8, 32], strides = [1, 1]} : vector<8x64xf32> to vector<8x32xf32>
    %c32_181 = arith.constant 32 : index
    %c0_182 = arith.constant 0 : index
    %748 = vector.load %arg4[%c32_181, %c0_182] : memref<72x64xf32, #tpu.memory_space<vmem>>, vector<8x32xf32>
    tpu.vector_store %arg4[%c32_181, %c0_182], %747 {strides = array<i32>} : memref<72x64xf32, #tpu.memory_space<vmem>>, vector<8x32xf32>,
    %749 = vector.extract_strided_slice %746 {offsets = [0, 32], sizes = [8, 32], strides = [1, 1]} : vector<8x64xf32> to vector<8x32xf32>
    %c32_183 = arith.constant 32 : index
    %c32_184 = arith.constant 32 : index
    %750 = vector.load %arg4[%c32_183, %c32_184] : memref<72x64xf32, #tpu.memory_space<vmem>>, vector<8x32xf32>
    tpu.vector_store %arg4[%c32_183, %c32_184], %749 {strides = array<i32>} : memref<72x64xf32, #tpu.memory_space<vmem>>, vector<8x32xf32>,
    %751 = vector.extract_strided_slice %588 {offsets = [40, 0], sizes = [8, 256], strides = [1, 1]} : vector<72x256xf32> to vector<8x256xf32>
    %752 = vector.extract_strided_slice %588 {offsets = [24, 0], sizes = [8, 256], strides = [1, 1]} : vector<72x256xf32> to vector<8x256xf32>
    %753 = vector.shape_cast %610 : vector<1x256xi1> to vector<1x256xi1>
    %754 = vector.broadcast %753 : vector<1x256xi1> to vector<8x256xi1>
    %755 = arith.select %754, %751, %752 : vector<8x256xi1>, vector<8x256xf32>
    %756 = arith.truncf %746 : vector<8x64xf32> to vector<8x64xbf16>
    %cst_185 = arith.constant dense<0.000000e+00> : vector<8x256xf32>
    %757 = tpu.matmul %756, %591, %cst_185 {dimension_numbers = #tpu.dot_dimension_numbers<[1], [0], [0], [1], [0, 0, 1, 1], [], []>} : vector<8x64xbf16>, vector<64x256xbf16>, vector<8x256xf32> -> vector<8x256xf32>
    %758 = arith.addf %755, %757 : vector<8x256xf32>
    %759 = vector.extract_strided_slice %758 {offsets = [0, 0], sizes = [8, 192], strides = [1, 1]} : vector<8x256xf32> to vector<8x192xf32>
    %760 = arith.negf %759 : vector<8x192xf32>
    %761 = math.exp %760 : vector<8x192xf32>
    %cst_186 = arith.constant 1.000000e+00 : f32
    %762 = vector.broadcast %cst_186 : f32 to vector<8x192xf32>
    %763 = arith.addf %762, %761 : vector<8x192xf32>
    %764 = arith.divf %762, %763 : vector<8x192xf32>
    %765 = vector.extract_strided_slice %758 {offsets = [0, 192], sizes = [8, 64], strides = [1, 1]} : vector<8x256xf32> to vector<8x64xf32>
    %766 = math.tanh %765 : vector<8x64xf32>
    %767 = vector.extract_strided_slice %764 {offsets = [0, 64], sizes = [8, 64], strides = [1, 1]} : vector<8x192xf32> to vector<8x64xf32>
    %768 = arith.mulf %767, %743 : vector<8x64xf32>
    %769 = vector.extract_strided_slice %764 {offsets = [0, 0], sizes = [8, 64], strides = [1, 1]} : vector<8x192xf32> to vector<8x64xf32>
    %770 = arith.mulf %769, %766 : vector<8x64xf32>
    %771 = arith.addf %768, %770 : vector<8x64xf32>
    %772 = vector.extract_strided_slice %764 {offsets = [0, 128], sizes = [8, 64], strides = [1, 1]} : vector<8x192xf32> to vector<8x64xf32>
    %773 = math.tanh %771 : vector<8x64xf32>
    %774 = arith.mulf %772, %773 : vector<8x64xf32>
    %775 = vector.extract_strided_slice %774 {offsets = [0, 0], sizes = [8, 32], strides = [1, 1]} : vector<8x64xf32> to vector<8x32xf32>
    %c40_187 = arith.constant 40 : index
    %c0_188 = arith.constant 0 : index
    %776 = vector.load %arg4[%c40_187, %c0_188] : memref<72x64xf32, #tpu.memory_space<vmem>>, vector<8x32xf32>
    tpu.vector_store %arg4[%c40_187, %c0_188], %775 {strides = array<i32>} : memref<72x64xf32, #tpu.memory_space<vmem>>, vector<8x32xf32>,
    %777 = vector.extract_strided_slice %774 {offsets = [0, 32], sizes = [8, 32], strides = [1, 1]} : vector<8x64xf32> to vector<8x32xf32>
    %c24_189 = arith.constant 24 : index
    %c32_190 = arith.constant 32 : index
    %778 = vector.load %arg4[%c24_189, %c32_190] : memref<72x64xf32, #tpu.memory_space<vmem>>, vector<8x32xf32>
    tpu.vector_store %arg4[%c24_189, %c32_190], %777 {strides = array<i32>} : memref<72x64xf32, #tpu.memory_space<vmem>>, vector<8x32xf32>,
    %779 = vector.extract_strided_slice %588 {offsets = [48, 0], sizes = [8, 256], strides = [1, 1]} : vector<72x256xf32> to vector<8x256xf32>
    %780 = vector.extract_strided_slice %588 {offsets = [16, 0], sizes = [8, 256], strides = [1, 1]} : vector<72x256xf32> to vector<8x256xf32>
    %781 = vector.shape_cast %610 : vector<1x256xi1> to vector<1x256xi1>
    %782 = vector.broadcast %781 : vector<1x256xi1> to vector<8x256xi1>
    %783 = arith.select %782, %779, %780 : vector<8x256xi1>, vector<8x256xf32>
    %784 = arith.truncf %774 : vector<8x64xf32> to vector<8x64xbf16>
    %cst_191 = arith.constant dense<0.000000e+00> : vector<8x256xf32>
    %785 = tpu.matmul %784, %591, %cst_191 {dimension_numbers = #tpu.dot_dimension_numbers<[1], [0], [0], [1], [0, 0, 1, 1], [], []>} : vector<8x64xbf16>, vector<64x256xbf16>, vector<8x256xf32> -> vector<8x256xf32>
    %786 = arith.addf %783, %785 : vector<8x256xf32>
    %787 = vector.extract_strided_slice %786 {offsets = [0, 0], sizes = [8, 192], strides = [1, 1]} : vector<8x256xf32> to vector<8x192xf32>
    %788 = arith.negf %787 : vector<8x192xf32>
    %789 = math.exp %788 : vector<8x192xf32>
    %cst_192 = arith.constant 1.000000e+00 : f32
    %790 = vector.broadcast %cst_192 : f32 to vector<8x192xf32>
    %791 = arith.addf %790, %789 : vector<8x192xf32>
    %792 = arith.divf %790, %791 : vector<8x192xf32>
    %793 = vector.extract_strided_slice %786 {offsets = [0, 192], sizes = [8, 64], strides = [1, 1]} : vector<8x256xf32> to vector<8x64xf32>
    %794 = math.tanh %793 : vector<8x64xf32>
    %795 = vector.extract_strided_slice %792 {offsets = [0, 64], sizes = [8, 64], strides = [1, 1]} : vector<8x192xf32> to vector<8x64xf32>
    %796 = arith.mulf %795, %771 : vector<8x64xf32>
    %797 = vector.extract_strided_slice %792 {offsets = [0, 0], sizes = [8, 64], strides = [1, 1]} : vector<8x192xf32> to vector<8x64xf32>
    %798 = arith.mulf %797, %794 : vector<8x64xf32>
    %799 = arith.addf %796, %798 : vector<8x64xf32>
    %800 = vector.extract_strided_slice %792 {offsets = [0, 128], sizes = [8, 64], strides = [1, 1]} : vector<8x192xf32> to vector<8x64xf32>
    %801 = math.tanh %799 : vector<8x64xf32>
    %802 = arith.mulf %800, %801 : vector<8x64xf32>
    %803 = vector.extract_strided_slice %802 {offsets = [0, 0], sizes = [8, 32], strides = [1, 1]} : vector<8x64xf32> to vector<8x32xf32>
    %c48_193 = arith.constant 48 : index
    %c0_194 = arith.constant 0 : index
    %804 = vector.load %arg4[%c48_193, %c0_194] : memref<72x64xf32, #tpu.memory_space<vmem>>, vector<8x32xf32>
    tpu.vector_store %arg4[%c48_193, %c0_194], %803 {strides = array<i32>} : memref<72x64xf32, #tpu.memory_space<vmem>>, vector<8x32xf32>,
    %805 = vector.extract_strided_slice %802 {offsets = [0, 32], sizes = [8, 32], strides = [1, 1]} : vector<8x64xf32> to vector<8x32xf32>
    %c16_195 = arith.constant 16 : index
    %c32_196 = arith.constant 32 : index
    %806 = vector.load %arg4[%c16_195, %c32_196] : memref<72x64xf32, #tpu.memory_space<vmem>>, vector<8x32xf32>
    tpu.vector_store %arg4[%c16_195, %c32_196], %805 {strides = array<i32>} : memref<72x64xf32, #tpu.memory_space<vmem>>, vector<8x32xf32>,
    %807 = vector.extract_strided_slice %588 {offsets = [56, 0], sizes = [8, 256], strides = [1, 1]} : vector<72x256xf32> to vector<8x256xf32>
    %808 = vector.extract_strided_slice %588 {offsets = [8, 0], sizes = [8, 256], strides = [1, 1]} : vector<72x256xf32> to vector<8x256xf32>
    %809 = vector.shape_cast %610 : vector<1x256xi1> to vector<1x256xi1>
    %810 = vector.broadcast %809 : vector<1x256xi1> to vector<8x256xi1>
    %811 = arith.select %810, %807, %808 : vector<8x256xi1>, vector<8x256xf32>
    %812 = arith.truncf %802 : vector<8x64xf32> to vector<8x64xbf16>
    %cst_197 = arith.constant dense<0.000000e+00> : vector<8x256xf32>
    %813 = tpu.matmul %812, %591, %cst_197 {dimension_numbers = #tpu.dot_dimension_numbers<[1], [0], [0], [1], [0, 0, 1, 1], [], []>} : vector<8x64xbf16>, vector<64x256xbf16>, vector<8x256xf32> -> vector<8x256xf32>
    %814 = arith.addf %811, %813 : vector<8x256xf32>
    %815 = vector.extract_strided_slice %814 {offsets = [0, 0], sizes = [8, 192], strides = [1, 1]} : vector<8x256xf32> to vector<8x192xf32>
    %816 = arith.negf %815 : vector<8x192xf32>
    %817 = math.exp %816 : vector<8x192xf32>
    %cst_198 = arith.constant 1.000000e+00 : f32
    %818 = vector.broadcast %cst_198 : f32 to vector<8x192xf32>
    %819 = arith.addf %818, %817 : vector<8x192xf32>
    %820 = arith.divf %818, %819 : vector<8x192xf32>
    %821 = vector.extract_strided_slice %814 {offsets = [0, 192], sizes = [8, 64], strides = [1, 1]} : vector<8x256xf32> to vector<8x64xf32>
    %822 = math.tanh %821 : vector<8x64xf32>
    %823 = vector.extract_strided_slice %820 {offsets = [0, 64], sizes = [8, 64], strides = [1, 1]} : vector<8x192xf32> to vector<8x64xf32>
    %824 = arith.mulf %823, %799 : vector<8x64xf32>
    %825 = vector.extract_strided_slice %820 {offsets = [0, 0], sizes = [8, 64], strides = [1, 1]} : vector<8x192xf32> to vector<8x64xf32>
    %826 = arith.mulf %825, %822 : vector<8x64xf32>
    %827 = arith.addf %824, %826 : vector<8x64xf32>
    %828 = vector.extract_strided_slice %820 {offsets = [0, 128], sizes = [8, 64], strides = [1, 1]} : vector<8x192xf32> to vector<8x64xf32>
    %829 = math.tanh %827 : vector<8x64xf32>
    %830 = arith.mulf %828, %829 : vector<8x64xf32>
    %831 = vector.extract_strided_slice %830 {offsets = [0, 0], sizes = [8, 32], strides = [1, 1]} : vector<8x64xf32> to vector<8x32xf32>
    %c56_199 = arith.constant 56 : index
    %c0_200 = arith.constant 0 : index
    %832 = vector.load %arg4[%c56_199, %c0_200] : memref<72x64xf32, #tpu.memory_space<vmem>>, vector<8x32xf32>
    tpu.vector_store %arg4[%c56_199, %c0_200], %831 {strides = array<i32>} : memref<72x64xf32, #tpu.memory_space<vmem>>, vector<8x32xf32>,
    %833 = vector.extract_strided_slice %830 {offsets = [0, 32], sizes = [8, 32], strides = [1, 1]} : vector<8x64xf32> to vector<8x32xf32>
    %c8_201 = arith.constant 8 : index
    %c32_202 = arith.constant 32 : index
    %834 = vector.load %arg4[%c8_201, %c32_202] : memref<72x64xf32, #tpu.memory_space<vmem>>, vector<8x32xf32>
    tpu.vector_store %arg4[%c8_201, %c32_202], %833 {strides = array<i32>} : memref<72x64xf32, #tpu.memory_space<vmem>>, vector<8x32xf32>,
    %835 = vector.extract_strided_slice %588 {offsets = [64, 0], sizes = [8, 256], strides = [1, 1]} : vector<72x256xf32> to vector<8x256xf32>
    %836 = vector.extract_strided_slice %588 {offsets = [0, 0], sizes = [8, 256], strides = [1, 1]} : vector<72x256xf32> to vector<8x256xf32>
    %837 = vector.shape_cast %610 : vector<1x256xi1> to vector<1x256xi1>
    %838 = vector.broadcast %837 : vector<1x256xi1> to vector<8x256xi1>
    %839 = arith.select %838, %835, %836 : vector<8x256xi1>, vector<8x256xf32>
    %840 = arith.truncf %830 : vector<8x64xf32> to vector<8x64xbf16>
    %cst_203 = arith.constant dense<0.000000e+00> : vector<8x256xf32>
    %841 = tpu.matmul %840, %591, %cst_203 {dimension_numbers = #tpu.dot_dimension_numbers<[1], [0], [0], [1], [0, 0, 1, 1], [], []>} : vector<8x64xbf16>, vector<64x256xbf16>, vector<8x256xf32> -> vector<8x256xf32>
    %842 = arith.addf %839, %841 : vector<8x256xf32>
    %843 = vector.extract_strided_slice %842 {offsets = [0, 0], sizes = [8, 192], strides = [1, 1]} : vector<8x256xf32> to vector<8x192xf32>
    %844 = arith.negf %843 : vector<8x192xf32>
    %845 = math.exp %844 : vector<8x192xf32>
    %cst_204 = arith.constant 1.000000e+00 : f32
    %846 = vector.broadcast %cst_204 : f32 to vector<8x192xf32>
    %847 = arith.addf %846, %845 : vector<8x192xf32>
    %848 = arith.divf %846, %847 : vector<8x192xf32>
    %849 = vector.extract_strided_slice %842 {offsets = [0, 192], sizes = [8, 64], strides = [1, 1]} : vector<8x256xf32> to vector<8x64xf32>
    %850 = math.tanh %849 : vector<8x64xf32>
    %851 = vector.extract_strided_slice %848 {offsets = [0, 64], sizes = [8, 64], strides = [1, 1]} : vector<8x192xf32> to vector<8x64xf32>
    %852 = arith.mulf %851, %827 : vector<8x64xf32>
    %853 = vector.extract_strided_slice %848 {offsets = [0, 0], sizes = [8, 64], strides = [1, 1]} : vector<8x192xf32> to vector<8x64xf32>
    %854 = arith.mulf %853, %850 : vector<8x64xf32>
    %855 = arith.addf %852, %854 : vector<8x64xf32>
    %856 = vector.extract_strided_slice %848 {offsets = [0, 128], sizes = [8, 64], strides = [1, 1]} : vector<8x192xf32> to vector<8x64xf32>
    %857 = math.tanh %855 : vector<8x64xf32>
    %858 = arith.mulf %856, %857 : vector<8x64xf32>
    %859 = vector.extract_strided_slice %858 {offsets = [0, 0], sizes = [8, 32], strides = [1, 1]} : vector<8x64xf32> to vector<8x32xf32>
    %c64_205 = arith.constant 64 : index
    %c0_206 = arith.constant 0 : index
    %860 = vector.load %arg4[%c64_205, %c0_206] : memref<72x64xf32, #tpu.memory_space<vmem>>, vector<8x32xf32>
    tpu.vector_store %arg4[%c64_205, %c0_206], %859 {strides = array<i32>} : memref<72x64xf32, #tpu.memory_space<vmem>>, vector<8x32xf32>,
    %861 = vector.extract_strided_slice %858 {offsets = [0, 32], sizes = [8, 32], strides = [1, 1]} : vector<8x64xf32> to vector<8x32xf32>
    %c0_207 = arith.constant 0 : index
    %c32_208 = arith.constant 32 : index
    %862 = vector.load %arg4[%c0_207, %c32_208] : memref<72x64xf32, #tpu.memory_space<vmem>>, vector<8x32xf32>
    tpu.vector_store %arg4[%c0_207, %c32_208], %861 {strides = array<i32>} : memref<72x64xf32, #tpu.memory_space<vmem>>, vector<8x32xf32>,
    %c0_209 = arith.constant 0 : index
    %c0_210 = arith.constant 0 : index
    %863 = vector.load %arg4[%c0_209, %c0_210] : memref<72x64xf32, #tpu.memory_space<vmem>>, vector<72x64xf32>
    %864 = arith.truncf %863 : vector<72x64xf32> to vector<72x64xbf16>
    %c336 = arith.constant 336 : index
    %c0_211 = arith.constant 0 : index
    %865 = vector.load %arg1[%c336, %c0_211] : memref<624x256xbf16, #tpu.memory_space<vmem>>, vector<64x256xbf16>
    %cst_212 = arith.constant dense<0.000000e+00> : vector<72x256xf32>
    %866 = tpu.matmul %864, %865, %cst_212 {dimension_numbers = #tpu.dot_dimension_numbers<[1], [0], [0], [1], [0, 0, 1, 1], [], []>} : vector<72x64xbf16>, vector<64x256xbf16>, vector<72x256xf32> -> vector<72x256xf32>
    %c19 = arith.constant 19 : index
    %c0_213 = arith.constant 0 : index
    %867 = vector.load %arg2[%c19, %c0_213] : memref<24x256xf32, #tpu.memory_space<vmem>>, vector<1x256xf32>
    %868 = vector.broadcast %867 : vector<1x256xf32> to vector<72x256xf32>
    %869 = arith.addf %866, %868 : vector<72x256xf32>
    %c8_214 = arith.constant 8 : index
    %c128_215 = arith.constant 128 : index
    %870 = vector.load %arg2[%c8_214, %c128_215] : memref<24x256xf32, #tpu.memory_space<vmem>>, vector<8x64xf32>
    %c8_216 = arith.constant 8 : index
    %c192_217 = arith.constant 192 : index
    %871 = vector.load %arg2[%c8_216, %c192_217] : memref<24x256xf32, #tpu.memory_space<vmem>>, vector<8x64xf32>
    %c400 = arith.constant 400 : index
    %c0_218 = arith.constant 0 : index
    %872 = vector.load %arg1[%c400, %c0_218] : memref<624x256xbf16, #tpu.memory_space<vmem>>, vector<64x256xbf16>
    %873 = tpu.iota {dimensions = array<i32: 1>} : vector<1x256xi32>
    %c64_i32_219 = arith.constant 64 : i32
    %c0_i32_220 = arith.constant 0 : i32
    %874 = arith.cmpi eq, %c64_i32_219, %c0_i32_220 : i32
    %c1_i32_221 = arith.constant 1 : i32
    %875 = arith.select %874, %c1_i32_221, %c64_i32_219 : i32
    %876 = vector.broadcast %875 : i32 to vector<1x256xi32>
    %877 = arith.remsi %873, %876 : vector<1x256xi32>
    %c0_i32_222 = arith.constant 0 : i32
    %878 = vector.broadcast %c0_i32_222 : i32 to vector<1x256xi32>
    %879 = arith.cmpi ne, %877, %878 : vector<1x256xi32>
    %c0_i32_223 = arith.constant 0 : i32
    %880 = vector.broadcast %c0_i32_223 : i32 to vector<1x256xi32>
    %881 = arith.cmpi slt, %877, %880 : vector<1x256xi32>
    %c0_i32_224 = arith.constant 0 : i32
    %882 = arith.cmpi slt, %875, %c0_i32_224 : i32
    %883 = vector.broadcast %882 : i1 to vector<1x256xi1>
    %884 = vector.broadcast %883 : vector<1x256xi1> to vector<1x256xi1>
    %885 = arith.xori %881, %884 : vector<1x256xi1>
    %886 = arith.andi %885, %879 : vector<1x256xi1>
    %887 = vector.broadcast %875 : i32 to vector<1x256xi32>
    %888 = arith.addi %877, %887 : vector<1x256xi32>
    %889 = arith.select %886, %888, %877 : vector<1x256xi1>, vector<1x256xi32>
    %c32_i32_225 = arith.constant 32 : i32
    %890 = vector.broadcast %c32_i32_225 : i32 to vector<1x256xi32>
    %891 = arith.cmpi slt, %889, %890 : vector<1x256xi32>
    %892 = vector.extract_strided_slice %869 {offsets = [0, 0], sizes = [8, 256], strides = [1, 1]} : vector<72x256xf32> to vector<8x256xf32>
    %893 = vector.extract_strided_slice %869 {offsets = [64, 0], sizes = [8, 256], strides = [1, 1]} : vector<72x256xf32> to vector<8x256xf32>
    %894 = vector.shape_cast %891 : vector<1x256xi1> to vector<1x256xi1>
    %895 = vector.broadcast %894 : vector<1x256xi1> to vector<8x256xi1>
    %896 = arith.select %895, %892, %893 : vector<8x256xi1>, vector<8x256xf32>
    %897 = arith.truncf %870 : vector<8x64xf32> to vector<8x64xbf16>
    %cst_226 = arith.constant dense<0.000000e+00> : vector<8x256xf32>
    %898 = tpu.matmul %897, %872, %cst_226 {dimension_numbers = #tpu.dot_dimension_numbers<[1], [0], [0], [1], [0, 0, 1, 1], [], []>} : vector<8x64xbf16>, vector<64x256xbf16>, vector<8x256xf32> -> vector<8x256xf32>
    %899 = arith.addf %896, %898 : vector<8x256xf32>
    %900 = vector.extract_strided_slice %899 {offsets = [0, 0], sizes = [8, 192], strides = [1, 1]} : vector<8x256xf32> to vector<8x192xf32>
    %901 = arith.negf %900 : vector<8x192xf32>
    %902 = math.exp %901 : vector<8x192xf32>
    %cst_227 = arith.constant 1.000000e+00 : f32
    %903 = vector.broadcast %cst_227 : f32 to vector<8x192xf32>
    %904 = arith.addf %903, %902 : vector<8x192xf32>
    %905 = arith.divf %903, %904 : vector<8x192xf32>
    %906 = vector.extract_strided_slice %899 {offsets = [0, 192], sizes = [8, 64], strides = [1, 1]} : vector<8x256xf32> to vector<8x64xf32>
    %907 = math.tanh %906 : vector<8x64xf32>
    %908 = vector.extract_strided_slice %905 {offsets = [0, 64], sizes = [8, 64], strides = [1, 1]} : vector<8x192xf32> to vector<8x64xf32>
    %909 = arith.mulf %908, %871 : vector<8x64xf32>
    %910 = vector.extract_strided_slice %905 {offsets = [0, 0], sizes = [8, 64], strides = [1, 1]} : vector<8x192xf32> to vector<8x64xf32>
    %911 = arith.mulf %910, %907 : vector<8x64xf32>
    %912 = arith.addf %909, %911 : vector<8x64xf32>
    %913 = vector.extract_strided_slice %905 {offsets = [0, 128], sizes = [8, 64], strides = [1, 1]} : vector<8x192xf32> to vector<8x64xf32>
    %914 = math.tanh %912 : vector<8x64xf32>
    %915 = arith.mulf %913, %914 : vector<8x64xf32>
    %916 = vector.extract_strided_slice %869 {offsets = [8, 0], sizes = [8, 256], strides = [1, 1]} : vector<72x256xf32> to vector<8x256xf32>
    %917 = vector.extract_strided_slice %869 {offsets = [56, 0], sizes = [8, 256], strides = [1, 1]} : vector<72x256xf32> to vector<8x256xf32>
    %918 = vector.shape_cast %891 : vector<1x256xi1> to vector<1x256xi1>
    %919 = vector.broadcast %918 : vector<1x256xi1> to vector<8x256xi1>
    %920 = arith.select %919, %916, %917 : vector<8x256xi1>, vector<8x256xf32>
    %921 = arith.truncf %915 : vector<8x64xf32> to vector<8x64xbf16>
    %cst_228 = arith.constant dense<0.000000e+00> : vector<8x256xf32>
    %922 = tpu.matmul %921, %872, %cst_228 {dimension_numbers = #tpu.dot_dimension_numbers<[1], [0], [0], [1], [0, 0, 1, 1], [], []>} : vector<8x64xbf16>, vector<64x256xbf16>, vector<8x256xf32> -> vector<8x256xf32>
    %923 = arith.addf %920, %922 : vector<8x256xf32>
    %924 = vector.extract_strided_slice %923 {offsets = [0, 0], sizes = [8, 192], strides = [1, 1]} : vector<8x256xf32> to vector<8x192xf32>
    %925 = arith.negf %924 : vector<8x192xf32>
    %926 = math.exp %925 : vector<8x192xf32>
    %cst_229 = arith.constant 1.000000e+00 : f32
    %927 = vector.broadcast %cst_229 : f32 to vector<8x192xf32>
    %928 = arith.addf %927, %926 : vector<8x192xf32>
    %929 = arith.divf %927, %928 : vector<8x192xf32>
    %930 = vector.extract_strided_slice %923 {offsets = [0, 192], sizes = [8, 64], strides = [1, 1]} : vector<8x256xf32> to vector<8x64xf32>
    %931 = math.tanh %930 : vector<8x64xf32>
    %932 = vector.extract_strided_slice %929 {offsets = [0, 64], sizes = [8, 64], strides = [1, 1]} : vector<8x192xf32> to vector<8x64xf32>
    %933 = arith.mulf %932, %912 : vector<8x64xf32>
    %934 = vector.extract_strided_slice %929 {offsets = [0, 0], sizes = [8, 64], strides = [1, 1]} : vector<8x192xf32> to vector<8x64xf32>
    %935 = arith.mulf %934, %931 : vector<8x64xf32>
    %936 = arith.addf %933, %935 : vector<8x64xf32>
    %937 = vector.extract_strided_slice %929 {offsets = [0, 128], sizes = [8, 64], strides = [1, 1]} : vector<8x192xf32> to vector<8x64xf32>
    %938 = math.tanh %936 : vector<8x64xf32>
    %939 = arith.mulf %937, %938 : vector<8x64xf32>
    %940 = vector.extract_strided_slice %869 {offsets = [16, 0], sizes = [8, 256], strides = [1, 1]} : vector<72x256xf32> to vector<8x256xf32>
    %941 = vector.extract_strided_slice %869 {offsets = [48, 0], sizes = [8, 256], strides = [1, 1]} : vector<72x256xf32> to vector<8x256xf32>
    %942 = vector.shape_cast %891 : vector<1x256xi1> to vector<1x256xi1>
    %943 = vector.broadcast %942 : vector<1x256xi1> to vector<8x256xi1>
    %944 = arith.select %943, %940, %941 : vector<8x256xi1>, vector<8x256xf32>
    %945 = arith.truncf %939 : vector<8x64xf32> to vector<8x64xbf16>
    %cst_230 = arith.constant dense<0.000000e+00> : vector<8x256xf32>
    %946 = tpu.matmul %945, %872, %cst_230 {dimension_numbers = #tpu.dot_dimension_numbers<[1], [0], [0], [1], [0, 0, 1, 1], [], []>} : vector<8x64xbf16>, vector<64x256xbf16>, vector<8x256xf32> -> vector<8x256xf32>
    %947 = arith.addf %944, %946 : vector<8x256xf32>
    %948 = vector.extract_strided_slice %947 {offsets = [0, 0], sizes = [8, 192], strides = [1, 1]} : vector<8x256xf32> to vector<8x192xf32>
    %949 = arith.negf %948 : vector<8x192xf32>
    %950 = math.exp %949 : vector<8x192xf32>
    %cst_231 = arith.constant 1.000000e+00 : f32
    %951 = vector.broadcast %cst_231 : f32 to vector<8x192xf32>
    %952 = arith.addf %951, %950 : vector<8x192xf32>
    %953 = arith.divf %951, %952 : vector<8x192xf32>
    %954 = vector.extract_strided_slice %947 {offsets = [0, 192], sizes = [8, 64], strides = [1, 1]} : vector<8x256xf32> to vector<8x64xf32>
    %955 = math.tanh %954 : vector<8x64xf32>
    %956 = vector.extract_strided_slice %953 {offsets = [0, 64], sizes = [8, 64], strides = [1, 1]} : vector<8x192xf32> to vector<8x64xf32>
    %957 = arith.mulf %956, %936 : vector<8x64xf32>
    %958 = vector.extract_strided_slice %953 {offsets = [0, 0], sizes = [8, 64], strides = [1, 1]} : vector<8x192xf32> to vector<8x64xf32>
    %959 = arith.mulf %958, %955 : vector<8x64xf32>
    %960 = arith.addf %957, %959 : vector<8x64xf32>
    %961 = vector.extract_strided_slice %953 {offsets = [0, 128], sizes = [8, 64], strides = [1, 1]} : vector<8x192xf32> to vector<8x64xf32>
    %962 = math.tanh %960 : vector<8x64xf32>
    %963 = arith.mulf %961, %962 : vector<8x64xf32>
    %964 = vector.extract_strided_slice %869 {offsets = [24, 0], sizes = [8, 256], strides = [1, 1]} : vector<72x256xf32> to vector<8x256xf32>
    %965 = vector.extract_strided_slice %869 {offsets = [40, 0], sizes = [8, 256], strides = [1, 1]} : vector<72x256xf32> to vector<8x256xf32>
    %966 = vector.shape_cast %891 : vector<1x256xi1> to vector<1x256xi1>
    %967 = vector.broadcast %966 : vector<1x256xi1> to vector<8x256xi1>
    %968 = arith.select %967, %964, %965 : vector<8x256xi1>, vector<8x256xf32>
    %969 = arith.truncf %963 : vector<8x64xf32> to vector<8x64xbf16>
    %cst_232 = arith.constant dense<0.000000e+00> : vector<8x256xf32>
    %970 = tpu.matmul %969, %872, %cst_232 {dimension_numbers = #tpu.dot_dimension_numbers<[1], [0], [0], [1], [0, 0, 1, 1], [], []>} : vector<8x64xbf16>, vector<64x256xbf16>, vector<8x256xf32> -> vector<8x256xf32>
    %971 = arith.addf %968, %970 : vector<8x256xf32>
    %972 = vector.extract_strided_slice %971 {offsets = [0, 0], sizes = [8, 192], strides = [1, 1]} : vector<8x256xf32> to vector<8x192xf32>
    %973 = arith.negf %972 : vector<8x192xf32>
    %974 = math.exp %973 : vector<8x192xf32>
    %cst_233 = arith.constant 1.000000e+00 : f32
    %975 = vector.broadcast %cst_233 : f32 to vector<8x192xf32>
    %976 = arith.addf %975, %974 : vector<8x192xf32>
    %977 = arith.divf %975, %976 : vector<8x192xf32>
    %978 = vector.extract_strided_slice %971 {offsets = [0, 192], sizes = [8, 64], strides = [1, 1]} : vector<8x256xf32> to vector<8x64xf32>
    %979 = math.tanh %978 : vector<8x64xf32>
    %980 = vector.extract_strided_slice %977 {offsets = [0, 64], sizes = [8, 64], strides = [1, 1]} : vector<8x192xf32> to vector<8x64xf32>
    %981 = arith.mulf %980, %960 : vector<8x64xf32>
    %982 = vector.extract_strided_slice %977 {offsets = [0, 0], sizes = [8, 64], strides = [1, 1]} : vector<8x192xf32> to vector<8x64xf32>
    %983 = arith.mulf %982, %979 : vector<8x64xf32>
    %984 = arith.addf %981, %983 : vector<8x64xf32>
    %985 = vector.extract_strided_slice %977 {offsets = [0, 128], sizes = [8, 64], strides = [1, 1]} : vector<8x192xf32> to vector<8x64xf32>
    %986 = math.tanh %984 : vector<8x64xf32>
    %987 = arith.mulf %985, %986 : vector<8x64xf32>
    %988 = vector.extract_strided_slice %869 {offsets = [32, 0], sizes = [8, 256], strides = [1, 1]} : vector<72x256xf32> to vector<8x256xf32>
    %989 = vector.extract_strided_slice %869 {offsets = [32, 0], sizes = [8, 256], strides = [1, 1]} : vector<72x256xf32> to vector<8x256xf32>
    %990 = vector.shape_cast %891 : vector<1x256xi1> to vector<1x256xi1>
    %991 = vector.broadcast %990 : vector<1x256xi1> to vector<8x256xi1>
    %992 = arith.select %991, %988, %989 : vector<8x256xi1>, vector<8x256xf32>
    %993 = arith.truncf %987 : vector<8x64xf32> to vector<8x64xbf16>
    %cst_234 = arith.constant dense<0.000000e+00> : vector<8x256xf32>
    %994 = tpu.matmul %993, %872, %cst_234 {dimension_numbers = #tpu.dot_dimension_numbers<[1], [0], [0], [1], [0, 0, 1, 1], [], []>} : vector<8x64xbf16>, vector<64x256xbf16>, vector<8x256xf32> -> vector<8x256xf32>
    %995 = arith.addf %992, %994 : vector<8x256xf32>
    %996 = vector.extract_strided_slice %995 {offsets = [0, 0], sizes = [8, 192], strides = [1, 1]} : vector<8x256xf32> to vector<8x192xf32>
    %997 = arith.negf %996 : vector<8x192xf32>
    %998 = math.exp %997 : vector<8x192xf32>
    %cst_235 = arith.constant 1.000000e+00 : f32
    %999 = vector.broadcast %cst_235 : f32 to vector<8x192xf32>
    %1000 = arith.addf %999, %998 : vector<8x192xf32>
    %1001 = arith.divf %999, %1000 : vector<8x192xf32>
    %1002 = vector.extract_strided_slice %995 {offsets = [0, 192], sizes = [8, 64], strides = [1, 1]} : vector<8x256xf32> to vector<8x64xf32>
    %1003 = math.tanh %1002 : vector<8x64xf32>
    %1004 = vector.extract_strided_slice %1001 {offsets = [0, 64], sizes = [8, 64], strides = [1, 1]} : vector<8x192xf32> to vector<8x64xf32>
    %1005 = arith.mulf %1004, %984 : vector<8x64xf32>
    %1006 = vector.extract_strided_slice %1001 {offsets = [0, 0], sizes = [8, 64], strides = [1, 1]} : vector<8x192xf32> to vector<8x64xf32>
    %1007 = arith.mulf %1006, %1003 : vector<8x64xf32>
    %1008 = arith.addf %1005, %1007 : vector<8x64xf32>
    %1009 = vector.extract_strided_slice %1001 {offsets = [0, 128], sizes = [8, 64], strides = [1, 1]} : vector<8x192xf32> to vector<8x64xf32>
    %1010 = math.tanh %1008 : vector<8x64xf32>
    %1011 = arith.mulf %1009, %1010 : vector<8x64xf32>
    %1012 = vector.extract_strided_slice %869 {offsets = [40, 0], sizes = [8, 256], strides = [1, 1]} : vector<72x256xf32> to vector<8x256xf32>
    %1013 = vector.extract_strided_slice %869 {offsets = [24, 0], sizes = [8, 256], strides = [1, 1]} : vector<72x256xf32> to vector<8x256xf32>
    %1014 = vector.shape_cast %891 : vector<1x256xi1> to vector<1x256xi1>
    %1015 = vector.broadcast %1014 : vector<1x256xi1> to vector<8x256xi1>
    %1016 = arith.select %1015, %1012, %1013 : vector<8x256xi1>, vector<8x256xf32>
    %1017 = arith.truncf %1011 : vector<8x64xf32> to vector<8x64xbf16>
    %cst_236 = arith.constant dense<0.000000e+00> : vector<8x256xf32>
    %1018 = tpu.matmul %1017, %872, %cst_236 {dimension_numbers = #tpu.dot_dimension_numbers<[1], [0], [0], [1], [0, 0, 1, 1], [], []>} : vector<8x64xbf16>, vector<64x256xbf16>, vector<8x256xf32> -> vector<8x256xf32>
    %1019 = arith.addf %1016, %1018 : vector<8x256xf32>
    %1020 = vector.extract_strided_slice %1019 {offsets = [0, 0], sizes = [8, 192], strides = [1, 1]} : vector<8x256xf32> to vector<8x192xf32>
    %1021 = arith.negf %1020 : vector<8x192xf32>
    %1022 = math.exp %1021 : vector<8x192xf32>
    %cst_237 = arith.constant 1.000000e+00 : f32
    %1023 = vector.broadcast %cst_237 : f32 to vector<8x192xf32>
    %1024 = arith.addf %1023, %1022 : vector<8x192xf32>
    %1025 = arith.divf %1023, %1024 : vector<8x192xf32>
    %1026 = vector.extract_strided_slice %1019 {offsets = [0, 192], sizes = [8, 64], strides = [1, 1]} : vector<8x256xf32> to vector<8x64xf32>
    %1027 = math.tanh %1026 : vector<8x64xf32>
    %1028 = vector.extract_strided_slice %1025 {offsets = [0, 64], sizes = [8, 64], strides = [1, 1]} : vector<8x192xf32> to vector<8x64xf32>
    %1029 = arith.mulf %1028, %1008 : vector<8x64xf32>
    %1030 = vector.extract_strided_slice %1025 {offsets = [0, 0], sizes = [8, 64], strides = [1, 1]} : vector<8x192xf32> to vector<8x64xf32>
    %1031 = arith.mulf %1030, %1027 : vector<8x64xf32>
    %1032 = arith.addf %1029, %1031 : vector<8x64xf32>
    %1033 = vector.extract_strided_slice %1025 {offsets = [0, 128], sizes = [8, 64], strides = [1, 1]} : vector<8x192xf32> to vector<8x64xf32>
    %1034 = math.tanh %1032 : vector<8x64xf32>
    %1035 = arith.mulf %1033, %1034 : vector<8x64xf32>
    %1036 = vector.extract_strided_slice %869 {offsets = [48, 0], sizes = [8, 256], strides = [1, 1]} : vector<72x256xf32> to vector<8x256xf32>
    %1037 = vector.extract_strided_slice %869 {offsets = [16, 0], sizes = [8, 256], strides = [1, 1]} : vector<72x256xf32> to vector<8x256xf32>
    %1038 = vector.shape_cast %891 : vector<1x256xi1> to vector<1x256xi1>
    %1039 = vector.broadcast %1038 : vector<1x256xi1> to vector<8x256xi1>
    %1040 = arith.select %1039, %1036, %1037 : vector<8x256xi1>, vector<8x256xf32>
    %1041 = arith.truncf %1035 : vector<8x64xf32> to vector<8x64xbf16>
    %cst_238 = arith.constant dense<0.000000e+00> : vector<8x256xf32>
    %1042 = tpu.matmul %1041, %872, %cst_238 {dimension_numbers = #tpu.dot_dimension_numbers<[1], [0], [0], [1], [0, 0, 1, 1], [], []>} : vector<8x64xbf16>, vector<64x256xbf16>, vector<8x256xf32> -> vector<8x256xf32>
    %1043 = arith.addf %1040, %1042 : vector<8x256xf32>
    %1044 = vector.extract_strided_slice %1043 {offsets = [0, 0], sizes = [8, 192], strides = [1, 1]} : vector<8x256xf32> to vector<8x192xf32>
    %1045 = arith.negf %1044 : vector<8x192xf32>
    %1046 = math.exp %1045 : vector<8x192xf32>
    %cst_239 = arith.constant 1.000000e+00 : f32
    %1047 = vector.broadcast %cst_239 : f32 to vector<8x192xf32>
    %1048 = arith.addf %1047, %1046 : vector<8x192xf32>
    %1049 = arith.divf %1047, %1048 : vector<8x192xf32>
    %1050 = vector.extract_strided_slice %1043 {offsets = [0, 192], sizes = [8, 64], strides = [1, 1]} : vector<8x256xf32> to vector<8x64xf32>
    %1051 = math.tanh %1050 : vector<8x64xf32>
    %1052 = vector.extract_strided_slice %1049 {offsets = [0, 64], sizes = [8, 64], strides = [1, 1]} : vector<8x192xf32> to vector<8x64xf32>
    %1053 = arith.mulf %1052, %1032 : vector<8x64xf32>
    %1054 = vector.extract_strided_slice %1049 {offsets = [0, 0], sizes = [8, 64], strides = [1, 1]} : vector<8x192xf32> to vector<8x64xf32>
    %1055 = arith.mulf %1054, %1051 : vector<8x64xf32>
    %1056 = arith.addf %1053, %1055 : vector<8x64xf32>
    %1057 = vector.extract_strided_slice %1049 {offsets = [0, 128], sizes = [8, 64], strides = [1, 1]} : vector<8x192xf32> to vector<8x64xf32>
    %1058 = math.tanh %1056 : vector<8x64xf32>
    %1059 = arith.mulf %1057, %1058 : vector<8x64xf32>
    %1060 = vector.extract_strided_slice %869 {offsets = [56, 0], sizes = [8, 256], strides = [1, 1]} : vector<72x256xf32> to vector<8x256xf32>
    %1061 = vector.extract_strided_slice %869 {offsets = [8, 0], sizes = [8, 256], strides = [1, 1]} : vector<72x256xf32> to vector<8x256xf32>
    %1062 = vector.shape_cast %891 : vector<1x256xi1> to vector<1x256xi1>
    %1063 = vector.broadcast %1062 : vector<1x256xi1> to vector<8x256xi1>
    %1064 = arith.select %1063, %1060, %1061 : vector<8x256xi1>, vector<8x256xf32>
    %1065 = arith.truncf %1059 : vector<8x64xf32> to vector<8x64xbf16>
    %cst_240 = arith.constant dense<0.000000e+00> : vector<8x256xf32>
    %1066 = tpu.matmul %1065, %872, %cst_240 {dimension_numbers = #tpu.dot_dimension_numbers<[1], [0], [0], [1], [0, 0, 1, 1], [], []>} : vector<8x64xbf16>, vector<64x256xbf16>, vector<8x256xf32> -> vector<8x256xf32>
    %1067 = arith.addf %1064, %1066 : vector<8x256xf32>
    %1068 = vector.extract_strided_slice %1067 {offsets = [0, 0], sizes = [8, 192], strides = [1, 1]} : vector<8x256xf32> to vector<8x192xf32>
    %1069 = arith.negf %1068 : vector<8x192xf32>
    %1070 = math.exp %1069 : vector<8x192xf32>
    %cst_241 = arith.constant 1.000000e+00 : f32
    %1071 = vector.broadcast %cst_241 : f32 to vector<8x192xf32>
    %1072 = arith.addf %1071, %1070 : vector<8x192xf32>
    %1073 = arith.divf %1071, %1072 : vector<8x192xf32>
    %1074 = vector.extract_strided_slice %1067 {offsets = [0, 192], sizes = [8, 64], strides = [1, 1]} : vector<8x256xf32> to vector<8x64xf32>
    %1075 = math.tanh %1074 : vector<8x64xf32>
    %1076 = vector.extract_strided_slice %1073 {offsets = [0, 64], sizes = [8, 64], strides = [1, 1]} : vector<8x192xf32> to vector<8x64xf32>
    %1077 = arith.mulf %1076, %1056 : vector<8x64xf32>
    %1078 = vector.extract_strided_slice %1073 {offsets = [0, 0], sizes = [8, 64], strides = [1, 1]} : vector<8x192xf32> to vector<8x64xf32>
    %1079 = arith.mulf %1078, %1075 : vector<8x64xf32>
    %1080 = arith.addf %1077, %1079 : vector<8x64xf32>
    %1081 = vector.extract_strided_slice %1073 {offsets = [0, 128], sizes = [8, 64], strides = [1, 1]} : vector<8x192xf32> to vector<8x64xf32>
    %1082 = math.tanh %1080 : vector<8x64xf32>
    %1083 = arith.mulf %1081, %1082 : vector<8x64xf32>
    %1084 = vector.extract_strided_slice %869 {offsets = [64, 0], sizes = [8, 256], strides = [1, 1]} : vector<72x256xf32> to vector<8x256xf32>
    %1085 = vector.extract_strided_slice %869 {offsets = [0, 0], sizes = [8, 256], strides = [1, 1]} : vector<72x256xf32> to vector<8x256xf32>
    %1086 = vector.shape_cast %891 : vector<1x256xi1> to vector<1x256xi1>
    %1087 = vector.broadcast %1086 : vector<1x256xi1> to vector<8x256xi1>
    %1088 = arith.select %1087, %1084, %1085 : vector<8x256xi1>, vector<8x256xf32>
    %1089 = arith.truncf %1083 : vector<8x64xf32> to vector<8x64xbf16>
    %cst_242 = arith.constant dense<0.000000e+00> : vector<8x256xf32>
    %1090 = tpu.matmul %1089, %872, %cst_242 {dimension_numbers = #tpu.dot_dimension_numbers<[1], [0], [0], [1], [0, 0, 1, 1], [], []>} : vector<8x64xbf16>, vector<64x256xbf16>, vector<8x256xf32> -> vector<8x256xf32>
    %1091 = arith.addf %1088, %1090 : vector<8x256xf32>
    %1092 = vector.extract_strided_slice %1091 {offsets = [0, 0], sizes = [8, 192], strides = [1, 1]} : vector<8x256xf32> to vector<8x192xf32>
    %1093 = arith.negf %1092 : vector<8x192xf32>
    %1094 = math.exp %1093 : vector<8x192xf32>
    %cst_243 = arith.constant 1.000000e+00 : f32
    %1095 = vector.broadcast %cst_243 : f32 to vector<8x192xf32>
    %1096 = arith.addf %1095, %1094 : vector<8x192xf32>
    %1097 = arith.divf %1095, %1096 : vector<8x192xf32>
    %1098 = vector.extract_strided_slice %1091 {offsets = [0, 192], sizes = [8, 64], strides = [1, 1]} : vector<8x256xf32> to vector<8x64xf32>
    %1099 = math.tanh %1098 : vector<8x64xf32>
    %1100 = vector.extract_strided_slice %1097 {offsets = [0, 64], sizes = [8, 64], strides = [1, 1]} : vector<8x192xf32> to vector<8x64xf32>
    %1101 = arith.mulf %1100, %1080 : vector<8x64xf32>
    %1102 = vector.extract_strided_slice %1097 {offsets = [0, 0], sizes = [8, 64], strides = [1, 1]} : vector<8x192xf32> to vector<8x64xf32>
    %1103 = arith.mulf %1102, %1099 : vector<8x64xf32>
    %1104 = arith.addf %1101, %1103 : vector<8x64xf32>
    %1105 = vector.extract_strided_slice %1097 {offsets = [0, 128], sizes = [8, 64], strides = [1, 1]} : vector<8x192xf32> to vector<8x64xf32>
    %1106 = math.tanh %1104 : vector<8x64xf32>
    %1107 = arith.mulf %1105, %1106 : vector<8x64xf32>
    %1108 = arith.truncf %1107 : vector<8x64xf32> to vector<8x64xbf16>
    %c528 = arith.constant 528 : index
    %c0_244 = arith.constant 0 : index
    %1109 = vector.load %arg1[%c528, %c0_244] : memref<624x256xbf16, #tpu.memory_space<vmem>>, vector<64x32xbf16>
    %cst_245 = arith.constant dense<0.000000e+00> : vector<8x32xf32>
    %1110 = tpu.matmul %1108, %1109, %cst_245 {dimension_numbers = #tpu.dot_dimension_numbers<[1], [0], [0], [1], [0, 0, 1, 1], [], []>} : vector<8x64xbf16>, vector<64x32xbf16>, vector<8x32xf32> -> vector<8x32xf32>
    %c20_246 = arith.constant 20 : index
    %c32_247 = arith.constant 32 : index
    %1111 = vector.load %arg2[%c20_246, %c32_247] : memref<24x256xf32, #tpu.memory_space<vmem>>, vector<1x32xf32>
    %1112 = vector.broadcast %1111 : vector<1x32xf32> to vector<8x32xf32>
    %1113 = arith.addf %1110, %1112 : vector<8x32xf32>
    %cst_248 = arith.constant 0.000000e+00 : f32
    %1114 = vector.broadcast %cst_248 : f32 to vector<8x32xf32>
    %1115 = arith.maximumf %1113, %1114 : vector<8x32xf32>
    %1116 = arith.truncf %1115 : vector<8x32xf32> to vector<8x32xbf16>
    %c592 = arith.constant 592 : index
    %c0_249 = arith.constant 0 : index
    %1117 = vector.load %arg1[%c592, %c0_249] : memref<624x256xbf16, #tpu.memory_space<vmem>>, vector<32x2xbf16>
    %cst_250 = arith.constant dense<0.000000e+00> : vector<8x2xf32>
    %1118 = tpu.matmul %1116, %1117, %cst_250 {dimension_numbers = #tpu.dot_dimension_numbers<[1], [0], [0], [1], [0, 0, 1, 1], [], []>} : vector<8x32xbf16>, vector<32x2xbf16>, vector<8x2xf32> -> vector<8x2xf32>
    %c20_251 = arith.constant 20 : index
    %c64_252 = arith.constant 64 : index
    %1119 = vector.load %arg2[%c20_251, %c64_252] : memref<24x256xf32, #tpu.memory_space<vmem>>, vector<1x2xf32>
    %1120 = vector.broadcast %1119 : vector<1x2xf32> to vector<8x2xf32>
    %1121 = arith.addf %1118, %1120 : vector<8x2xf32>
    %cst_253 = arith.constant 0.000000e+00 : f32
    %1122 = vector.broadcast %cst_253 : f32 to vector<8x2xf32>
    %1123 = arith.maximumf %1121, %1122 : vector<8x2xf32>
    %cst_254 = arith.constant dense<0xFF800000> : vector<8xf32>
    %1124 = vector.multi_reduction <maximumf>, %1123, %cst_254 [1] : vector<8x2xf32> to vector<8xf32>
    %1125 = vector.shape_cast %1124 : vector<8xf32> to vector<8x1xf32>
    %1126 = vector.broadcast %1125 : vector<8x1xf32> to vector<8x2xf32>
    %1127 = arith.subf %1123, %1126 : vector<8x2xf32>
    %1128 = math.exp %1127 : vector<8x2xf32>
    %cst_255 = arith.constant dense<0.000000e+00> : vector<8xf32>
    %1129 = vector.multi_reduction <add>, %1128, %cst_255 [1] : vector<8x2xf32> to vector<8xf32>
    %1130 = vector.shape_cast %1129 : vector<8xf32> to vector<8x1xf32>
    %1131 = vector.broadcast %1130 : vector<8x1xf32> to vector<8x2xf32>
    %1132 = arith.divf %1128, %1131 : vector<8x2xf32>
    %c0_256 = arith.constant 0 : index
    %c0_257 = arith.constant 0 : index
    %1133 = vector.load %arg3[%c0_256, %c0_257] : memref<8x2xf32, #tpu.memory_space<vmem>>, vector<8x2xf32>
    tpu.vector_store %arg3[%c0_256, %c0_257], %1132 {strides = array<i32>} : memref<8x2xf32, #tpu.memory_space<vmem>>, vector<8x2xf32>,
    return
  }
}

</mosaic_0001>

<llo_original>
// kernel: model_forward.1
$region0: #{model_forward.1}
  #allocation0 [shape = 'u32[]', space=smem, size = 0x4, offset = 0x4, fixed_abs, tag = 'smem constant byte address 0x4 - core index']
  #allocation1 [shape = 'u32[144,128]{1,0:T(1,128)}', space=vmem, size = 0x12000, scoped, tag = 'internal scratch']
  #allocation2 [shape = 'f32[72,64]{1,0:T(8,128)}', space=vmem, size = 0x9000, scoped, tag = 'scratch operand']
  #allocation3 [shape = 'f32[72,64]{1,0:T(8,128)}', space=vmem, size = 0x9000, scoped, tag = 'scratch operand']
  %s0 = inlined_call_operand.vmem [shape: f32[72,32], index: 0, kind: input, shape index: {}]
  %s1 = inlined_call_operand.vmem [shape: bf16[624,256], index: 1, kind: input, shape index: {}]
  %s2 = inlined_call_operand.vmem [shape: f32[24,256], index: 2, kind: input, shape index: {}]
  %s3 = inlined_call_operand.vmem [shape: f32[8,2], index: 3, kind: output, shape index: {}]
  %s4 = sld [smem:[#allocation0]]
  $region22: #{model_forward.1} parent=0
    _
  %s6 = ssub.s32 1, %s4
  %s7 = scalar_select 0, %s6, %s4
  // Predicated region
  $region2: #{model_forward.1} parent=0 // pred_check
    _
  $region3: #{model_forward.1} parent=0 // pred_check_branch
    %9 = sbr.rel (0) target = $region5
  $region4: #{model_forward.1} parent=0 // pred_region
    _
  $region5: #{model_forward.1} parent=0 // pred_fallthru
    _
  // Predicated region
  $region6: #{model_forward.1} parent=0 // pred_check
    _
  $region7: #{model_forward.1} parent=0 // pred_check_branch
    %11 = sbr.rel (0) target = $region9
  $region8: #{model_forward.1} parent=0 // pred_region
    _
  $region9: #{model_forward.1} parent=0 // pred_fallthru
    _
  // Predicated region
  $region10: #{model_forward.1} parent=0 // pred_check
    _
  $region11: #{model_forward.1} parent=0 // pred_check_branch
    %13 = sbr.rel (0) target = $region13
  $region12: #{model_forward.1} parent=0 // pred_region
    _
  $region13: #{model_forward.1} parent=0 // pred_fallthru
    _
  %v15 = vld [vmem:[%s0] sm:$0xff]
  %v16 = vld [vmem:[%s0 + $0x8] sm:$0xff]
  %v17 = vld [vmem:[%s0 + $0x10] sm:$0xff]
  %v18 = vld [vmem:[%s0 + $0x18] sm:$0xff]
  %v19 = vld [vmem:[%s0 + $0x20] sm:$0xff]
  %v20 = vld [vmem:[%s0 + $0x28] sm:$0xff]
  %v21 = vld [vmem:[%s0 + $0x30] sm:$0xff]
  %v22 = vld [vmem:[%s0 + $0x38] sm:$0xff]
  %v23 = vld [vmem:[%s0 + $0x40] sm:$0xff]
  %v24 = vpack.c.bf16 %v16, %v15
  %v25 = vpack.c.bf16 %v18, %v17
  %v26 = vpack.c.bf16 %v20, %v19
  %v27 = vpack.c.bf16 %v22, %v21
  %v28 = vpack.c.bf16 %v23, %v23
  %v29 = vcvt.f32.s32.to.zero.pseudo %v15
  %v30 = vcvt.f32.s32.to.zero.pseudo %v16
  %v31 = vcvt.f32.s32.to.zero.pseudo %v17
  %v32 = vcvt.f32.s32.to.zero.pseudo %v18
  %v33 = vcvt.f32.s32.to.zero.pseudo %v19
  %v34 = vcvt.f32.s32.to.zero.pseudo %v20
  %v35 = vcvt.f32.s32.to.zero.pseudo %v21
  %v36 = vcvt.f32.s32.to.zero.pseudo %v22
  %v37 = vcvt.f32.s32.to.zero.pseudo %v23
  %v38 = vlaneseq
  %v39 = vand.u32 %v38, 127
  %40 = vset.pattern.permute.xlu0 0
  %41 = vperm.xlu0 %40, %v29
  %v42 = vpop.permute.xlu0 %41
  %43 = vset.pattern.permute.xlu0 0
  %44 = vperm.xlu0 %43, %v30
  %v45 = vpop.permute.xlu0 %44
  %46 = vset.pattern.permute.xlu0 0
  %47 = vperm.xlu0 %46, %v31
  %v48 = vpop.permute.xlu0 %47
  %49 = vset.pattern.permute.xlu0 0
  %50 = vperm.xlu0 %49, %v32
  %v51 = vpop.permute.xlu0 %50
  %52 = vset.pattern.permute.xlu0 0
  %53 = vperm.xlu0 %52, %v33
  %v54 = vpop.permute.xlu0 %53
  %55 = vset.pattern.permute.xlu0 0
  %56 = vperm.xlu0 %55, %v34
  %v57 = vpop.permute.xlu0 %56
  %58 = vset.pattern.permute.xlu0 0
  %59 = vperm.xlu0 %58, %v35
  %v60 = vpop.permute.xlu0 %59
  %61 = vset.pattern.permute.xlu0 0
  %62 = vperm.xlu0 %61, %v36
  %v63 = vpop.permute.xlu0 %62
  %64 = vset.pattern.permute.xlu0 0
  %65 = vperm.xlu0 %64, %v37
  %v66 = vpop.permute.xlu0 %65
  %vm67 = vcmp.eq.s32.totalorder %v42, %v39
  %vm68 = vcmp.eq.s32.totalorder %v45, %v39
  %vm69 = vcmp.eq.s32.totalorder %v48, %v39
  %vm70 = vcmp.eq.s32.totalorder %v51, %v39
  %vm71 = vcmp.eq.s32.totalorder %v54, %v39
  %vm72 = vcmp.eq.s32.totalorder %v57, %v39
  %vm73 = vcmp.eq.s32.totalorder %v60, %v39
  %vm74 = vcmp.eq.s32.totalorder %v63, %v39
  %vm75 = vcmp.eq.s32.totalorder %v66, %v39
  %v76 = vsel %vm67, 1.0, 0.0
  %v77 = vsel %vm68, 1.0, 0.0
  %v78 = vsel %vm69, 1.0, 0.0
  %v79 = vsel %vm70, 1.0, 0.0
  %v80 = vsel %vm71, 1.0, 0.0
  %v81 = vsel %vm72, 1.0, 0.0
  %v82 = vsel %vm73, 1.0, 0.0
  %v83 = vsel %vm74, 1.0, 0.0
  %v84 = vsel %vm75, 1.0, 0.0
  %v85 = vpack.c.bf16 %v77, %v76
  %v86 = vpack.c.bf16 %v79, %v78
  %v87 = vpack.c.bf16 %v81, %v80
  %v88 = vpack.c.bf16 %v83, %v82
  %v89 = vpack.c.bf16 %v84, %v84
  %v90 = vld [vmem:[%s1] sm:$0xff]
  %v91 = vld [vmem:[%s1 + $0x8] sm:$0xff]
  %v92 = vld [vmem:[%s1 + $0x10] sm:$0xff]
  %v93 = vld [vmem:[%s1 + $0x18] sm:$0xff]
  %v94 = vld [vmem:[%s1 + $0x20] sm:$0xff]
  %v95 = vld [vmem:[%s1 + $0x28] sm:$0xff]
  %v100 = vunpack.c.l.b16 %v92
  %v101 = vunpack.c.h.b16 %v92
  %v102 = vunpack.c.l.b16 %v93
  %v103 = vunpack.c.h.b16 %v93
  %v104 = vunpack.c.l.b16 %v94
  %v105 = vunpack.c.h.b16 %v94
  %v106 = vunpack.c.l.b16 %v95
  %v107 = vunpack.c.h.b16 %v95
  %v108 = vpack.c.b16 %v102, %v100
  %v109 = vpack.c.b16 %v103, %v101
  %v110 = vpack.c.b16 %v106, %v104
  %v111 = vpack.c.b16 %v107, %v105
  %vm116 = vcmask 261120
  %v118 = vsel %vm116, %v24, 0
  %v121 = vsel %vm116, %v25, 0
  %v124 = vsel %vm116, %v26, 0
  %v127 = vsel %vm116, %v27, 0
  %v130 = vsel %vm116, %v28, 0
  %132 = vmatprep.subr.bf16.mxu0 %v109
  %133 = vmatpush1.bf16.msra.mxu0 %v108
  %134 = vmatprep.subr.bf16.mxu0 %v111
  %135 = vmatpush1.bf16.msra.mxu0 %v110
  %136 = vmatprep.subr.bf16.mxu0 0
  %137 = vmatpush1.bf16.msra.mxu0 0
  %138 = vmatprep.subr.bf16.mxu0 0
  %139 = vmatpush1.bf16.msra.mxu0 0
  %140 = vmatprep.subr.bf16.mxu0 0
  %141 = vmatpush1.bf16.msra.mxu0 0
  %142 = vmatprep.subr.bf16.mxu0 0
  %143 = vmatpush1.bf16.msra.mxu0 0
  %144 = vmatprep.subr.bf16.mxu0 0
  %145 = vmatpush1.bf16.msra.mxu0 0
  %146 = vmatprep.subr.bf16.mxu0 0
  %147 = vmatpush1.bf16.msra.mxu0 0
  %148 = vmatprep.subr.bf16.mxu0 0
  %149 = vmatpush1.bf16.msra.mxu0 0
  %150 = vmatprep.subr.bf16.mxu0 0
  %151 = vmatpush1.bf16.msra.mxu0 0
  %152 = vmatprep.subr.bf16.mxu0 0
  %153 = vmatpush1.bf16.msra.mxu0 0
  %154 = vmatprep.subr.bf16.mxu0 0
  %155 = vmatpush1.bf16.msra.mxu0 0
  %156 = vmatprep.subr.bf16.mxu0 0
  %157 = vmatpush1.bf16.msra.mxu0 0
  %158 = vmatprep.subr.bf16.mxu0 0
  %159 = vmatpush1.bf16.msra.mxu0 0
  %160 = vmatprep.subr.bf16.mxu0 0
  %161 = vmatpush1.bf16.msra.mxu0 0
  %162 = vmatprep.subr.bf16.mxu0 0
  %163 = vmatpush1.bf16.msra.mxu0 0
  %164 = vmatprep.mubr.bf16.mxu0 0
  %165 = vmatmul.mubr.bf16.gmra.mrb[0].mxu0 %v118
  %v166 = vpop.f32.mrb[0].mxu0
  %v167 = vadd.f32 0.0, %v166
  %v168 = vpop.f32.mrb[0].mxu0
  %v169 = vadd.f32 0.0, %v168
  %v170 = vpop.f32.mrb[0].mxu0
  %v171 = vadd.f32 0.0, %v170
  %v172 = vpop.f32.mrb[0].mxu0
  %v173 = vadd.f32 0.0, %v172
  %174 = vmatprep.mubr.bf16.mxu0 0
  %175 = vmatmul.mubr.bf16.gmra.mrb[0].mxu0 %v121
  %v176 = vpop.f32.mrb[0].mxu0
  %v177 = vadd.f32 0.0, %v176
  %v178 = vpop.f32.mrb[0].mxu0
  %v179 = vadd.f32 0.0, %v178
  %v180 = vpop.f32.mrb[0].mxu0
  %v181 = vadd.f32 0.0, %v180
  %v182 = vpop.f32.mrb[0].mxu0
  %v183 = vadd.f32 0.0, %v182
  %184 = vmatprep.mubr.bf16.mxu0 0
  %185 = vmatmul.mubr.bf16.gmra.mrb[0].mxu0 %v124
  %v186 = vpop.f32.mrb[0].mxu0
  %v187 = vadd.f32 0.0, %v186
  %v188 = vpop.f32.mrb[0].mxu0
  %v189 = vadd.f32 0.0, %v188
  %v190 = vpop.f32.mrb[0].mxu0
  %v191 = vadd.f32 0.0, %v190
  %v192 = vpop.f32.mrb[0].mxu0
  %v193 = vadd.f32 0.0, %v192
  %194 = vmatprep.mubr.bf16.mxu0 0
  %195 = vmatmul.mubr.bf16.gmra.mrb[0].mxu0 %v127
  %v196 = vpop.f32.mrb[0].mxu0
  %v197 = vadd.f32 0.0, %v196
  %v198 = vpop.f32.mrb[0].mxu0
  %v199 = vadd.f32 0.0, %v198
  %v200 = vpop.f32.mrb[0].mxu0
  %v201 = vadd.f32 0.0, %v200
  %v202 = vpop.f32.mrb[0].mxu0
  %v203 = vadd.f32 0.0, %v202
  %204 = vmatprep.mubr.bf16.mxu0 0
  %205 = vmatmul.mubr.bf16.gmra.mrb[0].mxu0 %v130
  %v206 = vpop.f32.mrb[0].mxu0
  %v207 = vadd.f32 0.0, %v206
  %v208 = vpop.f32.mrb[0].mxu0
  %v209 = vadd.f32 0.0, %v208
  %v210 = vpop.f32.mrb[0].mxu0
  %v211 = vpop.f32.mrb[0].mxu0
  %212 = vdwg.mxu0
  %v215 = vunpack.c.l.b16 %v90
  %v216 = vunpack.c.h.b16 %v90
  %v217 = vunpack.c.l.b16 %v91
  %v218 = vunpack.c.h.b16 %v91
  %v219 = vpack.c.b16 %v217, %v215
  %v220 = vpack.c.b16 %v218, %v216
  %vm223 = vcmask 130048
  %v225 = vsel %vm223, %v85, 0
  %v228 = vsel %vm223, %v86, 0
  %v231 = vsel %vm223, %v87, 0
  %v234 = vsel %vm223, %v88, 0
  %v237 = vsel %vm223, %v89, 0
  %239 = vmatprep.subr.bf16.mxu0 %v220
  %240 = vmatpush1.bf16.msra.mxu0 %v219
  %241 = vmatprep.subr.bf16.mxu0 0
  %242 = vmatpush1.bf16.msra.mxu0 0
  %243 = vmatprep.subr.bf16.mxu0 0
  %244 = vmatpush1.bf16.msra.mxu0 0
  %245 = vmatprep.subr.bf16.mxu0 0
  %246 = vmatpush1.bf16.msra.mxu0 0
  %247 = vmatprep.subr.bf16.mxu0 0
  %248 = vmatpush1.bf16.msra.mxu0 0
  %249 = vmatprep.subr.bf16.mxu0 0
  %250 = vmatpush1.bf16.msra.mxu0 0
  %251 = vmatprep.subr.bf16.mxu0 0
  %252 = vmatpush1.bf16.msra.mxu0 0
  %253 = vmatprep.subr.bf16.mxu0 0
  %254 = vmatpush1.bf16.msra.mxu0 0
  %255 = vmatprep.subr.bf16.mxu0 0
  %256 = vmatpush1.bf16.msra.mxu0 0
  %257 = vmatprep.subr.bf16.mxu0 0
  %258 = vmatpush1.bf16.msra.mxu0 0
  %259 = vmatprep.subr.bf16.mxu0 0
  %260 = vmatpush1.bf16.msra.mxu0 0
  %261 = vmatprep.subr.bf16.mxu0 0
  %262 = vmatpush1.bf16.msra.mxu0 0
  %263 = vmatprep.subr.bf16.mxu0 0
  %264 = vmatpush1.bf16.msra.mxu0 0
  %265 = vmatprep.subr.bf16.mxu0 0
  %266 = vmatpush1.bf16.msra.mxu0 0
  %267 = vmatprep.subr.bf16.mxu0 0
  %268 = vmatpush1.bf16.msra.mxu0 0
  %269 = vmatprep.subr.bf16.mxu0 0
  %270 = vmatpush1.bf16.msra.mxu0 0
  %271 = vmatprep.mubr.bf16.mxu0 0
  %272 = vmatmul.mubr.bf16.gmra.mrb[0].mxu0 %v225
  %v273 = vpop.f32.mrb[0].mxu0
  %v274 = vadd.f32 %v167, %v273
  %v275 = vpop.f32.mrb[0].mxu0
  %v276 = vadd.f32 %v169, %v275
  %v277 = vpop.f32.mrb[0].mxu0
  %v278 = vadd.f32 %v171, %v277
  %v279 = vpop.f32.mrb[0].mxu0
  %v280 = vadd.f32 %v173, %v279
  %281 = vmatprep.mubr.bf16.mxu0 0
  %282 = vmatmul.mubr.bf16.gmra.mrb[0].mxu0 %v228
  %v283 = vpop.f32.mrb[0].mxu0
  %v284 = vadd.f32 %v177, %v283
  %v285 = vpop.f32.mrb[0].mxu0
  %v286 = vadd.f32 %v179, %v285
  %v287 = vpop.f32.mrb[0].mxu0
  %v288 = vadd.f32 %v181, %v287
  %v289 = vpop.f32.mrb[0].mxu0
  %v290 = vadd.f32 %v183, %v289
  %291 = vmatprep.mubr.bf16.mxu0 0
  %292 = vmatmul.mubr.bf16.gmra.mrb[0].mxu0 %v231
  %v293 = vpop.f32.mrb[0].mxu0
  %v294 = vadd.f32 %v187, %v293
  %v295 = vpop.f32.mrb[0].mxu0
  %v296 = vadd.f32 %v189, %v295
  %v297 = vpop.f32.mrb[0].mxu0
  %v298 = vadd.f32 %v191, %v297
  %v299 = vpop.f32.mrb[0].mxu0
  %v300 = vadd.f32 %v193, %v299
  %301 = vmatprep.mubr.bf16.mxu0 0
  %302 = vmatmul.mubr.bf16.gmra.mrb[0].mxu0 %v234
  %v303 = vpop.f32.mrb[0].mxu0
  %v304 = vadd.f32 %v197, %v303
  %v305 = vpop.f32.mrb[0].mxu0
  %v306 = vadd.f32 %v199, %v305
  %v307 = vpop.f32.mrb[0].mxu0
  %v308 = vadd.f32 %v201, %v307
  %v309 = vpop.f32.mrb[0].mxu0
  %v310 = vadd.f32 %v203, %v309
  %311 = vmatprep.mubr.bf16.mxu0 0
  %312 = vmatmul.mubr.bf16.gmra.mrb[0].mxu0 %v237
  %v313 = vpop.f32.mrb[0].mxu0
  %v314 = vadd.f32 %v207, %v313
  %v315 = vpop.f32.mrb[0].mxu0
  %v316 = vadd.f32 %v209, %v315
  %v317 = vpop.f32.mrb[0].mxu0
  %v318 = vpop.f32.mrb[0].mxu0
  %319 = vdwg.mxu0
  %s320 = scalar_lea.vmem %s2, 32
  %v321 = vld [vmem:[%s320] ss:$8 sm:$0x3]
  %v323 = vlaneseq
  %v324 = vshrl.u32 %v323, 7
  %v325 = vsub.s32 0, %v324
  %v326 = vrot.slane %v321, %v325
  %v327 = vlaneseq
  %v328 = vshrl.u32 %v327, 7
  %v329 = vsub.s32 1, %v328
  %v330 = vrot.slane %v321, %v329
  %v333 = vadd.f32 %v274, %v326
  %v334 = vadd.f32 %v276, %v330
  %v335 = vadd.f32 %v278, %v326
  %v336 = vadd.f32 %v280, %v330
  %v337 = vadd.f32 %v284, %v326
  %v338 = vadd.f32 %v286, %v330
  %v339 = vadd.f32 %v288, %v326
  %v340 = vadd.f32 %v290, %v330
  %v341 = vadd.f32 %v294, %v326
  %v342 = vadd.f32 %v296, %v330
  %v343 = vadd.f32 %v298, %v326
  %v344 = vadd.f32 %v300, %v330
  %v345 = vadd.f32 %v304, %v326
  %v346 = vadd.f32 %v306, %v330
  %v347 = vadd.f32 %v308, %v326
  %v348 = vadd.f32 %v310, %v330
  %v349 = vadd.f32 %v314, %v326
  %v350 = vadd.f32 %v316, %v330
  %v351 = vld [vmem:[%s2] sm:$0xff]
  %v352 = vld [vmem:[%s1 + $0x30] sm:$0xff]
  %v353 = vld [vmem:[%s1 + $0x38] sm:$0xff]
  %v354 = vld [vmem:[%s1 + $0x40] sm:$0xff]
  %v355 = vld [vmem:[%s1 + $0x48] sm:$0xff]
  %v356 = vld [vmem:[%s1 + $0x50] sm:$0xff]
  %v357 = vld [vmem:[%s1 + $0x58] sm:$0xff]
  %v358 = vld [vmem:[%s1 + $0x60] sm:$0xff]
  %v359 = vld [vmem:[%s1 + $0x68] sm:$0xff]
  %v360 = vadd.s32 %v39, 128
  %vm361 = vcmp.lt.s32.totalorder %v39, 0
  %v362 = vsub.s32 0, %v39
  %v363 = vsel %vm361, %v362, %v39
  %v364 = vshrl.u32 %v363, 6
  %v365 = vand.u32 %v363, 63
  %v366 = vsub.s32 0, %v365
  %v367 = vsel %vm361, %v366, %v365
  %vm368 = vcmp.lt.s32.totalorder %v360, 0
  %v369 = vsub.s32 0, %v360
  %v370 = vsel %vm368, %v369, %v360
  %v371 = vshrl.u32 %v370, 6
  %v372 = vand.u32 %v370, 63
  %v373 = vsub.s32 0, %v372
  %v374 = vsel %vm368, %v373, %v372
  %vm375 = vcmp.ne.s32.totalorder %v367, 0
  %vm376 = vcmp.ne.s32.totalorder %v374, 0
  %vm377 = vcmp.lt.s32.totalorder %v367, 0
  %vm378 = vcmp.lt.s32.totalorder %v374, 0
  %vm379 = vmand %vm377, %vm375
  %vm380 = vmand %vm378, %vm376
  %v381 = vadd.s32 %v367, 64
  %v382 = vadd.s32 %v374, 64
  %v383 = vsel %vm379, %v381, %v367
  %v384 = vsel %vm380, %v382, %v374
  %vm385 = vcmp.lt.s32.totalorder %v383, 32
  %vm386 = vcmp.lt.s32.totalorder %v384, 32
  %v387 = vsel %vm385, 1, 0
  %v388 = vsel %vm386, 1, 0
  %vm389 = vcmp.eq.s32.totalorder %v387, 1
  %vm390 = vcmp.eq.s32.totalorder %v388, 1
  %v391 = vsel %vm389, %v333, %v349
  %v392 = vsel %vm390, %v334, %v350
  %v393 = vpack.c.bf16 %v351, %v351
  %v402 = vunpack.c.l.b16 %v352
  %v403 = vunpack.c.h.b16 %v352
  %v404 = vunpack.c.l.b16 %v353
  %v405 = vunpack.c.h.b16 %v353
  %v406 = vunpack.c.l.b16 %v354
  %v407 = vunpack.c.h.b16 %v354
  %v408 = vunpack.c.l.b16 %v355
  %v409 = vunpack.c.h.b16 %v355
  %v410 = vunpack.c.l.b16 %v356
  %v411 = vunpack.c.h.b16 %v356
  %v412 = vunpack.c.l.b16 %v357
  %v413 = vunpack.c.h.b16 %v357
  %v414 = vunpack.c.l.b16 %v358
  %v415 = vunpack.c.h.b16 %v358
  %v416 = vunpack.c.l.b16 %v359
  %v417 = vunpack.c.h.b16 %v359
  %v418 = vpack.c.b16 %v404, %v402
  %v419 = vpack.c.b16 %v405, %v403
  %v420 = vpack.c.b16 %v408, %v406
  %v421 = vpack.c.b16 %v409, %v407
  %v422 = vpack.c.b16 %v412, %v410
  %v423 = vpack.c.b16 %v413, %v411
  %v424 = vpack.c.b16 %v416, %v414
  %v425 = vpack.c.b16 %v417, %v415
  %vm434 = vcmask 523264
  %v436 = vsel %vm434, %v393, 0
  %438 = vmatprep.subr.bf16.mxu0 %v419
  %439 = vmatpush1.bf16.msra.mxu0 %v418
  %440 = vmatprep.subr.bf16.mxu0 %v421
  %441 = vmatpush1.bf16.msra.mxu0 %v420
  %442 = vmatprep.subr.bf16.mxu0 %v423
  %443 = vmatpush1.bf16.msra.mxu0 %v422
  %444 = vmatprep.subr.bf16.mxu0 %v425
  %445 = vmatpush1.bf16.msra.mxu0 %v424
  %446 = vmatprep.subr.bf16.mxu0 0
  %447 = vmatpush1.bf16.msra.mxu0 0
  %448 = vmatprep.subr.bf16.mxu0 0
  %449 = vmatpush1.bf16.msra.mxu0 0
  %450 = vmatprep.subr.bf16.mxu0 0
  %451 = vmatpush1.bf16.msra.mxu0 0
  %452 = vmatprep.subr.bf16.mxu0 0
  %453 = vmatpush1.bf16.msra.mxu0 0
  %454 = vmatprep.subr.bf16.mxu0 0
  %455 = vmatpush1.bf16.msra.mxu0 0
  %456 = vmatprep.subr.bf16.mxu0 0
  %457 = vmatpush1.bf16.msra.mxu0 0
  %458 = vmatprep.subr.bf16.mxu0 0
  %459 = vmatpush1.bf16.msra.mxu0 0
  %460 = vmatprep.subr.bf16.mxu0 0
  %461 = vmatpush1.bf16.msra.mxu0 0
  %462 = vmatprep.subr.bf16.mxu0 0
  %463 = vmatpush1.bf16.msra.mxu0 0
  %464 = vmatprep.subr.bf16.mxu0 0
  %465 = vmatpush1.bf16.msra.mxu0 0
  %466 = vmatprep.subr.bf16.mxu0 0
  %467 = vmatpush1.bf16.msra.mxu0 0
  %468 = vmatprep.subr.bf16.mxu0 0
  %469 = vmatpush1.bf16.msra.mxu0 0
  %470 = vmatprep.mubr.bf16.mxu0 0
  %471 = vmatmul.mubr.bf16.gmra.mrb[0].mxu0 %v436
  %v472 = vpop.f32.mrb[0].mxu0
  %v473 = vadd.f32 0.0, %v472
  %v474 = vpop.f32.mrb[0].mxu0
  %v475 = vadd.f32 0.0, %v474
  %v476 = vpop.f32.mrb[0].mxu0
  %v477 = vpop.f32.mrb[0].mxu0
  %478 = vdwg.mxu0
  %v479 = vadd.f32 %v391, %v473
  %v480 = vadd.f32 %v392, %v475
  %v481 = vxor.u32 %v479, 2147483648
  %v482 = vxor.u32 %v480, 2147483648
  %v483 = vmul.f32 %v481, 1.442695
  %v484 = vpow.pop %v483
  %v485 = vmul.f32 %v482, 1.442695
  %v486 = vpow.pop %v485
  %v487 = vadd.f32 %v484, 1.0
  %v488 = vadd.f32 %v486, 1.0
  %v489 = vrcp.pop %v487
  %v490 = vmul.f32 1.0, %v489
  %v491 = vrcp.pop %v488
  %v492 = vmul.f32 1.0, %v491
  %v493 = vtanh.pop %v480
  %v494 = vmul.f32 %v490, %v351
  %496 = vrot.lane.b32.xlu0 %v493, 64
  %v497 = vpop.permute.xlu0 %496
  %v499 = vmul.f32 %v490, %v497
  %501 = vrot.lane.b32.xlu0 %v499, 64
  %v502 = vpop.permute.xlu0 %501
  %v504 = vadd.f32 %v494, %v502
  %v505 = vtanh.pop %v504
  %507 = vrot.lane.b32.xlu0 %v505, 64
  %v508 = vpop.permute.xlu0 %507
  %v510 = vmul.f32 %v492, %v508
  %511 = vst.msk [vmem:[#allocation2] sm:$0xff] %vm116, %v510
  %vm512 = vcmask 523520
  %513 = vst.msk [vmem:[#allocation2 + $0x40] sm:$0xff] %vm512, %v510
  %v514 = vsel %vm389, %v335, %v347
  %v515 = vsel %vm390, %v336, %v348
  %v516 = vpack.c.bf16 %v510, %v510
  %v518 = vsel %vm434, %v516, 0
  %520 = vmatprep.subr.bf16.mxu0 %v419
  %521 = vmatpush1.bf16.msra.mxu0 %v418
  %522 = vmatprep.subr.bf16.mxu0 %v421
  %523 = vmatpush1.bf16.msra.mxu0 %v420
  %524 = vmatprep.subr.bf16.mxu0 %v423
  %525 = vmatpush1.bf16.msra.mxu0 %v422
  %526 = vmatprep.subr.bf16.mxu0 %v425
  %527 = vmatpush1.bf16.msra.mxu0 %v424
  %528 = vmatprep.subr.bf16.mxu0 0
  %529 = vmatpush1.bf16.msra.mxu0 0
  %530 = vmatprep.subr.bf16.mxu0 0
  %531 = vmatpush1.bf16.msra.mxu0 0
  %532 = vmatprep.subr.bf16.mxu0 0
  %533 = vmatpush1.bf16.msra.mxu0 0
  %534 = vmatprep.subr.bf16.mxu0 0
  %535 = vmatpush1.bf16.msra.mxu0 0
  %536 = vmatprep.subr.bf16.mxu0 0
  %537 = vmatpush1.bf16.msra.mxu0 0
  %538 = vmatprep.subr.bf16.mxu0 0
  %539 = vmatpush1.bf16.msra.mxu0 0
  %540 = vmatprep.subr.bf16.mxu0 0
  %541 = vmatpush1.bf16.msra.mxu0 0
  %542 = vmatprep.subr.bf16.mxu0 0
  %543 = vmatpush1.bf16.msra.mxu0 0
  %544 = vmatprep.subr.bf16.mxu0 0
  %545 = vmatpush1.bf16.msra.mxu0 0
  %546 = vmatprep.subr.bf16.mxu0 0
  %547 = vmatpush1.bf16.msra.mxu0 0
  %548 = vmatprep.subr.bf16.mxu0 0
  %549 = vmatpush1.bf16.msra.mxu0 0
  %550 = vmatprep.subr.bf16.mxu0 0
  %551 = vmatpush1.bf16.msra.mxu0 0
  %552 = vmatprep.mubr.bf16.mxu0 0
  %553 = vmatmul.mubr.bf16.gmra.mrb[0].mxu0 %v518
  %v554 = vpop.f32.mrb[0].mxu0
  %v555 = vadd.f32 0.0, %v554
  %v556 = vpop.f32.mrb[0].mxu0
  %v557 = vadd.f32 0.0, %v556
  %v558 = vpop.f32.mrb[0].mxu0
  %v559 = vpop.f32.mrb[0].mxu0
  %560 = vdwg.mxu0
  %v561 = vadd.f32 %v514, %v555
  %v562 = vadd.f32 %v515, %v557
  %v563 = vxor.u32 %v561, 2147483648
  %v564 = vxor.u32 %v562, 2147483648
  %v565 = vmul.f32 %v563, 1.442695
  %v566 = vpow.pop %v565
  %v567 = vmul.f32 %v564, 1.442695
  %v568 = vpow.pop %v567
  %v569 = vadd.f32 %v566, 1.0
  %v570 = vadd.f32 %v568, 1.0
  %v571 = vrcp.pop %v569
  %v572 = vmul.f32 1.0, %v571
  %v573 = vrcp.pop %v570
  %v574 = vmul.f32 1.0, %v573
  %v575 = vtanh.pop %v562
  %v576 = vmul.f32 %v572, %v504
  %578 = vrot.lane.b32.xlu0 %v575, 64
  %v579 = vpop.permute.xlu0 %578
  %v581 = vmul.f32 %v572, %v579
  %583 = vrot.lane.b32.xlu0 %v581, 64
  %v584 = vpop.permute.xlu0 %583
  %v586 = vadd.f32 %v576, %v584
  %v587 = vtanh.pop %v586
  %589 = vrot.lane.b32.xlu0 %v587, 64
  %v590 = vpop.permute.xlu0 %589
  %v592 = vmul.f32 %v574, %v590
  %593 = vst.msk [vmem:[#allocation2 + $0x8] sm:$0xff] %vm116, %v592
  %594 = vst.msk [vmem:[#allocation2 + $0x38] sm:$0xff] %vm512, %v592
  %v595 = vsel %vm389, %v337, %v345
  %v596 = vsel %vm390, %v338, %v346
  %v597 = vpack.c.bf16 %v592, %v592
  %v599 = vsel %vm434, %v597, 0
  %601 = vmatprep.subr.bf16.mxu0 %v419
  %602 = vmatpush1.bf16.msra.mxu0 %v418
  %603 = vmatprep.subr.bf16.mxu0 %v421
  %604 = vmatpush1.bf16.msra.mxu0 %v420
  %605 = vmatprep.subr.bf16.mxu0 %v423
  %606 = vmatpush1.bf16.msra.mxu0 %v422
  %607 = vmatprep.subr.bf16.mxu0 %v425
  %608 = vmatpush1.bf16.msra.mxu0 %v424
  %609 = vmatprep.subr.bf16.mxu0 0
  %610 = vmatpush1.bf16.msra.mxu0 0
  %611 = vmatprep.subr.bf16.mxu0 0
  %612 = vmatpush1.bf16.msra.mxu0 0
  %613 = vmatprep.subr.bf16.mxu0 0
  %614 = vmatpush1.bf16.msra.mxu0 0
  %615 = vmatprep.subr.bf16.mxu0 0
  %616 = vmatpush1.bf16.msra.mxu0 0
  %617 = vmatprep.subr.bf16.mxu0 0
  %618 = vmatpush1.bf16.msra.mxu0 0
  %619 = vmatprep.subr.bf16.mxu0 0
  %620 = vmatpush1.bf16.msra.mxu0 0
  %621 = vmatprep.subr.bf16.mxu0 0
  %622 = vmatpush1.bf16.msra.mxu0 0
  %623 = vmatprep.subr.bf16.mxu0 0
  %624 = vmatpush1.bf16.msra.mxu0 0
  %625 = vmatprep.subr.bf16.mxu0 0
  %626 = vmatpush1.bf16.msra.mxu0 0
  %627 = vmatprep.subr.bf16.mxu0 0
  %628 = vmatpush1.bf16.msra.mxu0 0
  %629 = vmatprep.subr.bf16.mxu0 0
  %630 = vmatpush1.bf16.msra.mxu0 0
  %631 = vmatprep.subr.bf16.mxu0 0
  %632 = vmatpush1.bf16.msra.mxu0 0
  %633 = vmatprep.mubr.bf16.mxu0 0
  %634 = vmatmul.mubr.bf16.gmra.mrb[0].mxu0 %v599
  %v635 = vpop.f32.mrb[0].mxu0
  %v636 = vadd.f32 0.0, %v635
  %v637 = vpop.f32.mrb[0].mxu0
  %v638 = vadd.f32 0.0, %v637
  %v639 = vpop.f32.mrb[0].mxu0
  %v640 = vpop.f32.mrb[0].mxu0
  %641 = vdwg.mxu0
  %v642 = vadd.f32 %v595, %v636
  %v643 = vadd.f32 %v596, %v638
  %v644 = vxor.u32 %v642, 2147483648
  %v645 = vxor.u32 %v643, 2147483648
  %v646 = vmul.f32 %v644, 1.442695
  %v647 = vpow.pop %v646
  %v648 = vmul.f32 %v645, 1.442695
  %v649 = vpow.pop %v648
  %v650 = vadd.f32 %v647, 1.0
  %v651 = vadd.f32 %v649, 1.0
  %v652 = vrcp.pop %v650
  %v653 = vmul.f32 1.0, %v652
  %v654 = vrcp.pop %v651
  %v655 = vmul.f32 1.0, %v654
  %v656 = vtanh.pop %v643
  %v657 = vmul.f32 %v653, %v586
  %659 = vrot.lane.b32.xlu0 %v656, 64
  %v660 = vpop.permute.xlu0 %659
  %v662 = vmul.f32 %v653, %v660
  %664 = vrot.lane.b32.xlu0 %v662, 64
  %v665 = vpop.permute.xlu0 %664
  %v667 = vadd.f32 %v657, %v665
  %v668 = vtanh.pop %v667
  %670 = vrot.lane.b32.xlu0 %v668, 64
  %v671 = vpop.permute.xlu0 %670
  %v673 = vmul.f32 %v655, %v671
  %674 = vst.msk [vmem:[#allocation2 + $0x10] sm:$0xff] %vm116, %v673
  %675 = vst.msk [vmem:[#allocation2 + $0x30] sm:$0xff] %vm512, %v673
  %v676 = vsel %vm389, %v339, %v343
  %v677 = vsel %vm390, %v340, %v344
  %v678 = vpack.c.bf16 %v673, %v673
  %v680 = vsel %vm434, %v678, 0
  %682 = vmatprep.subr.bf16.mxu0 %v419
  %683 = vmatpush1.bf16.msra.mxu0 %v418
  %684 = vmatprep.subr.bf16.mxu0 %v421
  %685 = vmatpush1.bf16.msra.mxu0 %v420
  %686 = vmatprep.subr.bf16.mxu0 %v423
  %687 = vmatpush1.bf16.msra.mxu0 %v422
  %688 = vmatprep.subr.bf16.mxu0 %v425
  %689 = vmatpush1.bf16.msra.mxu0 %v424
  %690 = vmatprep.subr.bf16.mxu0 0
  %691 = vmatpush1.bf16.msra.mxu0 0
  %692 = vmatprep.subr.bf16.mxu0 0
  %693 = vmatpush1.bf16.msra.mxu0 0
  %694 = vmatprep.subr.bf16.mxu0 0
  %695 = vmatpush1.bf16.msra.mxu0 0
  %696 = vmatprep.subr.bf16.mxu0 0
  %697 = vmatpush1.bf16.msra.mxu0 0
  %698 = vmatprep.subr.bf16.mxu0 0
  %699 = vmatpush1.bf16.msra.mxu0 0
  %700 = vmatprep.subr.bf16.mxu0 0
  %701 = vmatpush1.bf16.msra.mxu0 0
  %702 = vmatprep.subr.bf16.mxu0 0
  %703 = vmatpush1.bf16.msra.mxu0 0
  %704 = vmatprep.subr.bf16.mxu0 0
  %705 = vmatpush1.bf16.msra.mxu0 0
  %706 = vmatprep.subr.bf16.mxu0 0
  %707 = vmatpush1.bf16.msra.mxu0 0
  %708 = vmatprep.subr.bf16.mxu0 0
  %709 = vmatpush1.bf16.msra.mxu0 0
  %710 = vmatprep.subr.bf16.mxu0 0
  %711 = vmatpush1.bf16.msra.mxu0 0
  %712 = vmatprep.subr.bf16.mxu0 0
  %713 = vmatpush1.bf16.msra.mxu0 0
  %714 = vmatprep.mubr.bf16.mxu0 0
  %715 = vmatmul.mubr.bf16.gmra.mrb[0].mxu0 %v680
  %v716 = vpop.f32.mrb[0].mxu0
  %v717 = vadd.f32 0.0, %v716
  %v718 = vpop.f32.mrb[0].mxu0
  %v719 = vadd.f32 0.0, %v718
  %v720 = vpop.f32.mrb[0].mxu0
  %v721 = vpop.f32.mrb[0].mxu0
  %722 = vdwg.mxu0
  %v723 = vadd.f32 %v676, %v717
  %v724 = vadd.f32 %v677, %v719
  %v725 = vxor.u32 %v723, 2147483648
  %v726 = vxor.u32 %v724, 2147483648
  %v727 = vmul.f32 %v725, 1.442695
  %v728 = vpow.pop %v727
  %v729 = vmul.f32 %v726, 1.442695
  %v730 = vpow.pop %v729
  %v731 = vadd.f32 %v728, 1.0
  %v732 = vadd.f32 %v730, 1.0
  %v733 = vrcp.pop %v731
  %v734 = vmul.f32 1.0, %v733
  %v735 = vrcp.pop %v732
  %v736 = vmul.f32 1.0, %v735
  %v737 = vtanh.pop %v724
  %v738 = vmul.f32 %v734, %v667
  %740 = vrot.lane.b32.xlu0 %v737, 64
  %v741 = vpop.permute.xlu0 %740
  %v743 = vmul.f32 %v734, %v741
  %745 = vrot.lane.b32.xlu0 %v743, 64
  %v746 = vpop.permute.xlu0 %745
  %v748 = vadd.f32 %v738, %v746
  %v749 = vtanh.pop %v748
  %751 = vrot.lane.b32.xlu0 %v749, 64
  %v752 = vpop.permute.xlu0 %751
  %v754 = vmul.f32 %v736, %v752
  %755 = vst.msk [vmem:[#allocation2 + $0x18] sm:$0xff] %vm116, %v754
  %756 = vst.msk [vmem:[#allocation2 + $0x28] sm:$0xff] %vm512, %v754
  %v757 = vpack.c.bf16 %v754, %v754
  %v759 = vsel %vm434, %v757, 0
  %761 = vmatprep.subr.bf16.mxu0 %v419
  %762 = vmatpush1.bf16.msra.mxu0 %v418
  %763 = vmatprep.subr.bf16.mxu0 %v421
  %764 = vmatpush1.bf16.msra.mxu0 %v420
  %765 = vmatprep.subr.bf16.mxu0 %v423
  %766 = vmatpush1.bf16.msra.mxu0 %v422
  %767 = vmatprep.subr.bf16.mxu0 %v425
  %768 = vmatpush1.bf16.msra.mxu0 %v424
  %769 = vmatprep.subr.bf16.mxu0 0
  %770 = vmatpush1.bf16.msra.mxu0 0
  %771 = vmatprep.subr.bf16.mxu0 0
  %772 = vmatpush1.bf16.msra.mxu0 0
  %773 = vmatprep.subr.bf16.mxu0 0
  %774 = vmatpush1.bf16.msra.mxu0 0
  %775 = vmatprep.subr.bf16.mxu0 0
  %776 = vmatpush1.bf16.msra.mxu0 0
  %777 = vmatprep.subr.bf16.mxu0 0
  %778 = vmatpush1.bf16.msra.mxu0 0
  %779 = vmatprep.subr.bf16.mxu0 0
  %780 = vmatpush1.bf16.msra.mxu0 0
  %781 = vmatprep.subr.bf16.mxu0 0
  %782 = vmatpush1.bf16.msra.mxu0 0
  %783 = vmatprep.subr.bf16.mxu0 0
  %784 = vmatpush1.bf16.msra.mxu0 0
  %785 = vmatprep.subr.bf16.mxu0 0
  %786 = vmatpush1.bf16.msra.mxu0 0
  %787 = vmatprep.subr.bf16.mxu0 0
  %788 = vmatpush1.bf16.msra.mxu0 0
  %789 = vmatprep.subr.bf16.mxu0 0
  %790 = vmatpush1.bf16.msra.mxu0 0
  %791 = vmatprep.subr.bf16.mxu0 0
  %792 = vmatpush1.bf16.msra.mxu0 0
  %793 = vmatprep.mubr.bf16.mxu0 0
  %794 = vmatmul.mubr.bf16.gmra.mrb[0].mxu0 %v759
  %v795 = vpop.f32.mrb[0].mxu0
  %v796 = vadd.f32 0.0, %v795
  %v797 = vpop.f32.mrb[0].mxu0
  %v798 = vadd.f32 0.0, %v797
  %v799 = vpop.f32.mrb[0].mxu0
  %v800 = vpop.f32.mrb[0].mxu0
  %801 = vdwg.mxu0
  %v802 = vadd.f32 %v341, %v796
  %v803 = vadd.f32 %v342, %v798
  %v804 = vxor.u32 %v802, 2147483648
  %v805 = vxor.u32 %v803, 2147483648
  %v806 = vmul.f32 %v804, 1.442695
  %v807 = vpow.pop %v806
  %v808 = vmul.f32 %v805, 1.442695
  %v809 = vpow.pop %v808
  %v810 = vadd.f32 %v807, 1.0
  %v811 = vadd.f32 %v809, 1.0
  %v812 = vrcp.pop %v810
  %v813 = vmul.f32 1.0, %v812
  %v814 = vrcp.pop %v811
  %v815 = vmul.f32 1.0, %v814
  %v816 = vtanh.pop %v803
  %v817 = vmul.f32 %v813, %v748
  %819 = vrot.lane.b32.xlu0 %v816, 64
  %v820 = vpop.permute.xlu0 %819
  %v822 = vmul.f32 %v813, %v820
  %824 = vrot.lane.b32.xlu0 %v822, 64
  %v825 = vpop.permute.xlu0 %824
  %v827 = vadd.f32 %v817, %v825
  %v828 = vtanh.pop %v827
  %830 = vrot.lane.b32.xlu0 %v828, 64
  %v831 = vpop.permute.xlu0 %830
  %v833 = vmul.f32 %v815, %v831
  %834 = vst.msk [vmem:[#allocation2 + $0x20] sm:$0xff] %vm116, %v833
  %835 = vst.msk [vmem:[#allocation2 + $0x20] sm:$0xff] %vm512, %v833
  %v836 = vsel %vm389, %v343, %v339
  %v837 = vsel %vm390, %v344, %v340
  %v838 = vpack.c.bf16 %v833, %v833
  %v840 = vsel %vm434, %v838, 0
  %842 = vmatprep.subr.bf16.mxu0 %v419
  %843 = vmatpush1.bf16.msra.mxu0 %v418
  %844 = vmatprep.subr.bf16.mxu0 %v421
  %845 = vmatpush1.bf16.msra.mxu0 %v420
  %846 = vmatprep.subr.bf16.mxu0 %v423
  %847 = vmatpush1.bf16.msra.mxu0 %v422
  %848 = vmatprep.subr.bf16.mxu0 %v425
  %849 = vmatpush1.bf16.msra.mxu0 %v424
  %850 = vmatprep.subr.bf16.mxu0 0
  %851 = vmatpush1.bf16.msra.mxu0 0
  %852 = vmatprep.subr.bf16.mxu0 0
  %853 = vmatpush1.bf16.msra.mxu0 0
  %854 = vmatprep.subr.bf16.mxu0 0
  %855 = vmatpush1.bf16.msra.mxu0 0
  %856 = vmatprep.subr.bf16.mxu0 0
  %857 = vmatpush1.bf16.msra.mxu0 0
  %858 = vmatprep.subr.bf16.mxu0 0
  %859 = vmatpush1.bf16.msra.mxu0 0
  %860 = vmatprep.subr.bf16.mxu0 0
  %861 = vmatpush1.bf16.msra.mxu0 0
  %862 = vmatprep.subr.bf16.mxu0 0
  %863 = vmatpush1.bf16.msra.mxu0 0
  %864 = vmatprep.subr.bf16.mxu0 0
  %865 = vmatpush1.bf16.msra.mxu0 0
  %866 = vmatprep.subr.bf16.mxu0 0
  %867 = vmatpush1.bf16.msra.mxu0 0
  %868 = vmatprep.subr.bf16.mxu0 0
  %869 = vmatpush1.bf16.msra.mxu0 0
  %870 = vmatprep.subr.bf16.mxu0 0
  %871 = vmatpush1.bf16.msra.mxu0 0
  %872 = vmatprep.subr.bf16.mxu0 0
  %873 = vmatpush1.bf16.msra.mxu0 0
  %874 = vmatprep.mubr.bf16.mxu0 0
  %875 = vmatmul.mubr.bf16.gmra.mrb[0].mxu0 %v840
  %v876 = vpop.f32.mrb[0].mxu0
  %v877 = vadd.f32 0.0, %v876
  %v878 = vpop.f32.mrb[0].mxu0
  %v879 = vadd.f32 0.0, %v878
  %v880 = vpop.f32.mrb[0].mxu0
  %v881 = vpop.f32.mrb[0].mxu0
  %882 = vdwg.mxu0
  %v883 = vadd.f32 %v836, %v877
  %v884 = vadd.f32 %v837, %v879
  %v885 = vxor.u32 %v883, 2147483648
  %v886 = vxor.u32 %v884, 2147483648
  %v887 = vmul.f32 %v885, 1.442695
  %v888 = vpow.pop %v887
  %v889 = vmul.f32 %v886, 1.442695
  %v890 = vpow.pop %v889
  %v891 = vadd.f32 %v888, 1.0
  %v892 = vadd.f32 %v890, 1.0
  %v893 = vrcp.pop %v891
  %v894 = vmul.f32 1.0, %v893
  %v895 = vrcp.pop %v892
  %v896 = vmul.f32 1.0, %v895
  %v897 = vtanh.pop %v884
  %v898 = vmul.f32 %v894, %v827
  %900 = vrot.lane.b32.xlu0 %v897, 64
  %v901 = vpop.permute.xlu0 %900
  %v903 = vmul.f32 %v894, %v901
  %905 = vrot.lane.b32.xlu0 %v903, 64
  %v906 = vpop.permute.xlu0 %905
  %v908 = vadd.f32 %v898, %v906
  %v909 = vtanh.pop %v908
  %911 = vrot.lane.b32.xlu0 %v909, 64
  %v912 = vpop.permute.xlu0 %911
  %v914 = vmul.f32 %v896, %v912
  %915 = vst.msk [vmem:[#allocation2 + $0x28] sm:$0xff] %vm116, %v914
  %916 = vst.msk [vmem:[#allocation2 + $0x18] sm:$0xff] %vm512, %v914
  %v917 = vsel %vm389, %v345, %v337
  %v918 = vsel %vm390, %v346, %v338
  %v919 = vpack.c.bf16 %v914, %v914
  %v921 = vsel %vm434, %v919, 0
  %923 = vmatprep.subr.bf16.mxu0 %v419
  %924 = vmatpush1.bf16.msra.mxu0 %v418
  %925 = vmatprep.subr.bf16.mxu0 %v421
  %926 = vmatpush1.bf16.msra.mxu0 %v420
  %927 = vmatprep.subr.bf16.mxu0 %v423
  %928 = vmatpush1.bf16.msra.mxu0 %v422
  %929 = vmatprep.subr.bf16.mxu0 %v425
  %930 = vmatpush1.bf16.msra.mxu0 %v424
  %931 = vmatprep.subr.bf16.mxu0 0
  %932 = vmatpush1.bf16.msra.mxu0 0
  %933 = vmatprep.subr.bf16.mxu0 0
  %934 = vmatpush1.bf16.msra.mxu0 0
  %935 = vmatprep.subr.bf16.mxu0 0
  %936 = vmatpush1.bf16.msra.mxu0 0
  %937 = vmatprep.subr.bf16.mxu0 0
  %938 = vmatpush1.bf16.msra.mxu0 0
  %939 = vmatprep.subr.bf16.mxu0 0
  %940 = vmatpush1.bf16.msra.mxu0 0
  %941 = vmatprep.subr.bf16.mxu0 0
  %942 = vmatpush1.bf16.msra.mxu0 0
  %943 = vmatprep.subr.bf16.mxu0 0
  %944 = vmatpush1.bf16.msra.mxu0 0
  %945 = vmatprep.subr.bf16.mxu0 0
  %946 = vmatpush1.bf16.msra.mxu0 0
  %947 = vmatprep.subr.bf16.mxu0 0
  %948 = vmatpush1.bf16.msra.mxu0 0
  %949 = vmatprep.subr.bf16.mxu0 0
  %950 = vmatpush1.bf16.msra.mxu0 0
  %951 = vmatprep.subr.bf16.mxu0 0
  %952 = vmatpush1.bf16.msra.mxu0 0
  %953 = vmatprep.subr.bf16.mxu0 0
  %954 = vmatpush1.bf16.msra.mxu0 0
  %955 = vmatprep.mubr.bf16.mxu0 0
  %956 = vmatmul.mubr.bf16.gmra.mrb[0].mxu0 %v921
  %v957 = vpop.f32.mrb[0].mxu0
  %v958 = vadd.f32 0.0, %v957
  %v959 = vpop.f32.mrb[0].mxu0
  %v960 = vadd.f32 0.0, %v959
  %v961 = vpop.f32.mrb[0].mxu0
  %v962 = vpop.f32.mrb[0].mxu0
  %963 = vdwg.mxu0
  %v964 = vadd.f32 %v917, %v958
  %v965 = vadd.f32 %v918, %v960
  %v966 = vxor.u32 %v964, 2147483648
  %v967 = vxor.u32 %v965, 2147483648
  %v968 = vmul.f32 %v966, 1.442695
  %v969 = vpow.pop %v968
  %v970 = vmul.f32 %v967, 1.442695
  %v971 = vpow.pop %v970
  %v972 = vadd.f32 %v969, 1.0
  %v973 = vadd.f32 %v971, 1.0
  %v974 = vrcp.pop %v972
  %v975 = vmul.f32 1.0, %v974
  %v976 = vrcp.pop %v973
  %v977 = vmul.f32 1.0, %v976
  %v978 = vtanh.pop %v965
  %v979 = vmul.f32 %v975, %v908
  %981 = vrot.lane.b32.xlu0 %v978, 64
  %v982 = vpop.permute.xlu0 %981
  %v984 = vmul.f32 %v975, %v982
  %986 = vrot.lane.b32.xlu0 %v984, 64
  %v987 = vpop.permute.xlu0 %986
  %v989 = vadd.f32 %v979, %v987
  %v990 = vtanh.pop %v989
  %992 = vrot.lane.b32.xlu0 %v990, 64
  %v993 = vpop.permute.xlu0 %992
  %v995 = vmul.f32 %v977, %v993
  %996 = vst.msk [vmem:[#allocation2 + $0x30] sm:$0xff] %vm116, %v995
  %997 = vst.msk [vmem:[#allocation2 + $0x10] sm:$0xff] %vm512, %v995
  %v998 = vsel %vm389, %v347, %v335
  %v999 = vsel %vm390, %v348, %v336
  %v1000 = vpack.c.bf16 %v995, %v995
  %v1002 = vsel %vm434, %v1000, 0
  %1004 = vmatprep.subr.bf16.mxu0 %v419
  %1005 = vmatpush1.bf16.msra.mxu0 %v418
  %1006 = vmatprep.subr.bf16.mxu0 %v421
  %1007 = vmatpush1.bf16.msra.mxu0 %v420
  %1008 = vmatprep.subr.bf16.mxu0 %v423
  %1009 = vmatpush1.bf16.msra.mxu0 %v422
  %1010 = vmatprep.subr.bf16.mxu0 %v425
  %1011 = vmatpush1.bf16.msra.mxu0 %v424
  %1012 = vmatprep.subr.bf16.mxu0 0
  %1013 = vmatpush1.bf16.msra.mxu0 0
  %1014 = vmatprep.subr.bf16.mxu0 0
  %1015 = vmatpush1.bf16.msra.mxu0 0
  %1016 = vmatprep.subr.bf16.mxu0 0
  %1017 = vmatpush1.bf16.msra.mxu0 0
  %1018 = vmatprep.subr.bf16.mxu0 0
  %1019 = vmatpush1.bf16.msra.mxu0 0
  %1020 = vmatprep.subr.bf16.mxu0 0
  %1021 = vmatpush1.bf16.msra.mxu0 0
  %1022 = vmatprep.subr.bf16.mxu0 0
  %1023 = vmatpush1.bf16.msra.mxu0 0
  %1024 = vmatprep.subr.bf16.mxu0 0
  %1025 = vmatpush1.bf16.msra.mxu0 0
  %1026 = vmatprep.subr.bf16.mxu0 0
  %1027 = vmatpush1.bf16.msra.mxu0 0
  %1028 = vmatprep.subr.bf16.mxu0 0
  %1029 = vmatpush1.bf16.msra.mxu0 0
  %1030 = vmatprep.subr.bf16.mxu0 0
  %1031 = vmatpush1.bf16.msra.mxu0 0
  %1032 = vmatprep.subr.bf16.mxu0 0
  %1033 = vmatpush1.bf16.msra.mxu0 0
  %1034 = vmatprep.subr.bf16.mxu0 0
  %1035 = vmatpush1.bf16.msra.mxu0 0
  %1036 = vmatprep.mubr.bf16.mxu0 0
  %1037 = vmatmul.mubr.bf16.gmra.mrb[0].mxu0 %v1002
  %v1038 = vpop.f32.mrb[0].mxu0
  %v1039 = vadd.f32 0.0, %v1038
  %v1040 = vpop.f32.mrb[0].mxu0
  %v1041 = vadd.f32 0.0, %v1040
  %v1042 = vpop.f32.mrb[0].mxu0
  %v1043 = vpop.f32.mrb[0].mxu0
  %1044 = vdwg.mxu0
  %v1045 = vadd.f32 %v998, %v1039
  %v1046 = vadd.f32 %v999, %v1041
  %v1047 = vxor.u32 %v1045, 2147483648
  %v1048 = vxor.u32 %v1046, 2147483648
  %v1049 = vmul.f32 %v1047, 1.442695
  %v1050 = vpow.pop %v1049
  %v1051 = vmul.f32 %v1048, 1.442695
  %v1052 = vpow.pop %v1051
  %v1053 = vadd.f32 %v1050, 1.0
  %v1054 = vadd.f32 %v1052, 1.0
  %v1055 = vrcp.pop %v1053
  %v1056 = vmul.f32 1.0, %v1055
  %v1057 = vrcp.pop %v1054
  %v1058 = vmul.f32 1.0, %v1057
  %v1059 = vtanh.pop %v1046
  %v1060 = vmul.f32 %v1056, %v989
  %1062 = vrot.lane.b32.xlu0 %v1059, 64
  %v1063 = vpop.permute.xlu0 %1062
  %v1065 = vmul.f32 %v1056, %v1063
  %1067 = vrot.lane.b32.xlu0 %v1065, 64
  %v1068 = vpop.permute.xlu0 %1067
  %v1070 = vadd.f32 %v1060, %v1068
  %v1071 = vtanh.pop %v1070
  %1073 = vrot.lane.b32.xlu0 %v1071, 64
  %v1074 = vpop.permute.xlu0 %1073
  %v1076 = vmul.f32 %v1058, %v1074
  %1077 = vst.msk [vmem:[#allocation2 + $0x38] sm:$0xff] %vm116, %v1076
  %1078 = vst.msk [vmem:[#allocation2 + $0x8] sm:$0xff] %vm512, %v1076
  %v1079 = vsel %vm389, %v349, %v333
  %v1080 = vsel %vm390, %v350, %v334
  %v1081 = vpack.c.bf16 %v1076, %v1076
  %v1083 = vsel %vm434, %v1081, 0
  %1085 = vmatprep.subr.bf16.mxu0 %v419
  %1086 = vmatpush1.bf16.msra.mxu0 %v418
  %1087 = vmatprep.subr.bf16.mxu0 %v421
  %1088 = vmatpush1.bf16.msra.mxu0 %v420
  %1089 = vmatprep.subr.bf16.mxu0 %v423
  %1090 = vmatpush1.bf16.msra.mxu0 %v422
  %1091 = vmatprep.subr.bf16.mxu0 %v425
  %1092 = vmatpush1.bf16.msra.mxu0 %v424
  %1093 = vmatprep.subr.bf16.mxu0 0
  %1094 = vmatpush1.bf16.msra.mxu0 0
  %1095 = vmatprep.subr.bf16.mxu0 0
  %1096 = vmatpush1.bf16.msra.mxu0 0
  %1097 = vmatprep.subr.bf16.mxu0 0
  %1098 = vmatpush1.bf16.msra.mxu0 0
  %1099 = vmatprep.subr.bf16.mxu0 0
  %1100 = vmatpush1.bf16.msra.mxu0 0
  %1101 = vmatprep.subr.bf16.mxu0 0
  %1102 = vmatpush1.bf16.msra.mxu0 0
  %1103 = vmatprep.subr.bf16.mxu0 0
  %1104 = vmatpush1.bf16.msra.mxu0 0
  %1105 = vmatprep.subr.bf16.mxu0 0
  %1106 = vmatpush1.bf16.msra.mxu0 0
  %1107 = vmatprep.subr.bf16.mxu0 0
  %1108 = vmatpush1.bf16.msra.mxu0 0
  %1109 = vmatprep.subr.bf16.mxu0 0
  %1110 = vmatpush1.bf16.msra.mxu0 0
  %1111 = vmatprep.subr.bf16.mxu0 0
  %1112 = vmatpush1.bf16.msra.mxu0 0
  %1113 = vmatprep.subr.bf16.mxu0 0
  %1114 = vmatpush1.bf16.msra.mxu0 0
  %1115 = vmatprep.subr.bf16.mxu0 0
  %1116 = vmatpush1.bf16.msra.mxu0 0
  %1117 = vmatprep.mubr.bf16.mxu0 0
  %1118 = vmatmul.mubr.bf16.gmra.mrb[0].mxu0 %v1083
  %v1119 = vpop.f32.mrb[0].mxu0
  %v1120 = vadd.f32 0.0, %v1119
  %v1121 = vpop.f32.mrb[0].mxu0
  %v1122 = vadd.f32 0.0, %v1121
  %v1123 = vpop.f32.mrb[0].mxu0
  %v1124 = vpop.f32.mrb[0].mxu0
  %1125 = vdwg.mxu0
  %v1126 = vadd.f32 %v1079, %v1120
  %v1127 = vadd.f32 %v1080, %v1122
  %v1128 = vxor.u32 %v1126, 2147483648
  %v1129 = vxor.u32 %v1127, 2147483648
  %v1130 = vmul.f32 %v1128, 1.442695
  %v1131 = vpow.pop %v1130
  %v1132 = vmul.f32 %v1129, 1.442695
  %v1133 = vpow.pop %v1132
  %v1134 = vadd.f32 %v1131, 1.0
  %v1135 = vadd.f32 %v1133, 1.0
  %v1136 = vrcp.pop %v1134
  %v1137 = vmul.f32 1.0, %v1136
  %v1138 = vrcp.pop %v1135
  %v1139 = vmul.f32 1.0, %v1138
  %v1140 = vtanh.pop %v1127
  %v1141 = vmul.f32 %v1137, %v1070
  %1143 = vrot.lane.b32.xlu0 %v1140, 64
  %v1144 = vpop.permute.xlu0 %1143
  %v1146 = vmul.f32 %v1137, %v1144
  %1148 = vrot.lane.b32.xlu0 %v1146, 64
  %v1149 = vpop.permute.xlu0 %1148
  %v1151 = vadd.f32 %v1141, %v1149
  %v1152 = vtanh.pop %v1151
  %1154 = vrot.lane.b32.xlu0 %v1152, 64
  %v1155 = vpop.permute.xlu0 %1154
  %v1157 = vmul.f32 %v1139, %v1155
  %1158 = vst.msk [vmem:[#allocation2 + $0x40] sm:$0xff] %vm116, %v1157
  %1159 = vst.msk [vmem:[#allocation2] sm:$0xff] %vm512, %v1157
  %v1160 = vld [vmem:[#allocation2] sm:$0xff]
  %v1161 = vld [vmem:[#allocation2 + $0x8] sm:$0xff]
  %v1162 = vld [vmem:[#allocation2 + $0x10] sm:$0xff]
  %v1163 = vld [vmem:[#allocation2 + $0x18] sm:$0xff]
  %v1164 = vld [vmem:[#allocation2 + $0x20] sm:$0xff]
  %v1165 = vld [vmem:[#allocation2 + $0x28] sm:$0xff]
  %v1166 = vld [vmem:[#allocation2 + $0x30] sm:$0xff]
  %v1167 = vld [vmem:[#allocation2 + $0x38] sm:$0xff]
  %v1168 = vld [vmem:[#allocation2 + $0x40] sm:$0xff]
  %v1169 = vpack.c.bf16 %v1161, %v1160
  %v1170 = vpack.c.bf16 %v1163, %v1162
  %v1171 = vpack.c.bf16 %v1165, %v1164
  %v1172 = vpack.c.bf16 %v1167, %v1166
  %v1173 = vpack.c.bf16 %v1168, %v1168
  %v1174 = vld [vmem:[%s1 + $0x70] sm:$0xff]
  %v1175 = vld [vmem:[%s1 + $0x78] sm:$0xff]
  %v1176 = vld [vmem:[%s1 + $0x80] sm:$0xff]
  %v1177 = vld [vmem:[%s1 + $0x88] sm:$0xff]
  %v1178 = vld [vmem:[%s1 + $0x90] sm:$0xff]
  %v1179 = vld [vmem:[%s1 + $0x98] sm:$0xff]
  %v1180 = vld [vmem:[%s1 + $0xa0] sm:$0xff]
  %v1181 = vld [vmem:[%s1 + $0xa8] sm:$0xff]
  %s1182 = scalar_lea.vmem %s2, 33
  %v1183 = vld [vmem:[%s1182] ss:$8 sm:$0x3]
  %v1185 = vlaneseq
  %v1186 = vshrl.u32 %v1185, 7
  %v1187 = vsub.s32 0, %v1186
  %v1188 = vrot.slane %v1183, %v1187
  %v1189 = vlaneseq
  %v1190 = vshrl.u32 %v1189, 7
  %v1191 = vsub.s32 1, %v1190
  %v1192 = vrot.slane %v1183, %v1191
  %v1203 = vunpack.c.l.b16 %v1174
  %v1204 = vunpack.c.h.b16 %v1174
  %v1205 = vunpack.c.l.b16 %v1175
  %v1206 = vunpack.c.h.b16 %v1175
  %v1207 = vunpack.c.l.b16 %v1176
  %v1208 = vunpack.c.h.b16 %v1176
  %v1209 = vunpack.c.l.b16 %v1177
  %v1210 = vunpack.c.h.b16 %v1177
  %v1211 = vunpack.c.l.b16 %v1178
  %v1212 = vunpack.c.h.b16 %v1178
  %v1213 = vunpack.c.l.b16 %v1179
  %v1214 = vunpack.c.h.b16 %v1179
  %v1215 = vunpack.c.l.b16 %v1180
  %v1216 = vunpack.c.h.b16 %v1180
  %v1217 = vunpack.c.l.b16 %v1181
  %v1218 = vunpack.c.h.b16 %v1181
  %v1219 = vpack.c.b16 %v1205, %v1203
  %v1220 = vpack.c.b16 %v1206, %v1204
  %v1221 = vpack.c.b16 %v1209, %v1207
  %v1222 = vpack.c.b16 %v1210, %v1208
  %v1223 = vpack.c.b16 %v1213, %v1211
  %v1224 = vpack.c.b16 %v1214, %v1212
  %v1225 = vpack.c.b16 %v1217, %v1215
  %v1226 = vpack.c.b16 %v1218, %v1216
  %v1236 = vsel %vm434, %v1169, 0
  %v1239 = vsel %vm434, %v1170, 0
  %v1242 = vsel %vm434, %v1171, 0
  %v1245 = vsel %vm434, %v1172, 0
  %v1248 = vsel %vm434, %v1173, 0
  %1250 = vmatprep.subr.bf16.mxu0 %v1220
  %1251 = vmatpush1.bf16.msra.mxu0 %v1219
  %1252 = vmatprep.subr.bf16.mxu0 %v1222
  %1253 = vmatpush1.bf16.msra.mxu0 %v1221
  %1254 = vmatprep.subr.bf16.mxu0 %v1224
  %1255 = vmatpush1.bf16.msra.mxu0 %v1223
  %1256 = vmatprep.subr.bf16.mxu0 %v1226
  %1257 = vmatpush1.bf16.msra.mxu0 %v1225
  %1258 = vmatprep.subr.bf16.mxu0 0
  %1259 = vmatpush1.bf16.msra.mxu0 0
  %1260 = vmatprep.subr.bf16.mxu0 0
  %1261 = vmatpush1.bf16.msra.mxu0 0
  %1262 = vmatprep.subr.bf16.mxu0 0
  %1263 = vmatpush1.bf16.msra.mxu0 0
  %1264 = vmatprep.subr.bf16.mxu0 0
  %1265 = vmatpush1.bf16.msra.mxu0 0
  %1266 = vmatprep.subr.bf16.mxu0 0
  %1267 = vmatpush1.bf16.msra.mxu0 0
  %1268 = vmatprep.subr.bf16.mxu0 0
  %1269 = vmatpush1.bf16.msra.mxu0 0
  %1270 = vmatprep.subr.bf16.mxu0 0
  %1271 = vmatpush1.bf16.msra.mxu0 0
  %1272 = vmatprep.subr.bf16.mxu0 0
  %1273 = vmatpush1.bf16.msra.mxu0 0
  %1274 = vmatprep.subr.bf16.mxu0 0
  %1275 = vmatpush1.bf16.msra.mxu0 0
  %1276 = vmatprep.subr.bf16.mxu0 0
  %1277 = vmatpush1.bf16.msra.mxu0 0
  %1278 = vmatprep.subr.bf16.mxu0 0
  %1279 = vmatpush1.bf16.msra.mxu0 0
  %1280 = vmatprep.subr.bf16.mxu0 0
  %1281 = vmatpush1.bf16.msra.mxu0 0
  %1282 = vmatprep.mubr.bf16.mxu0 0
  %1283 = vmatmul.mubr.bf16.gmra.mrb[0].mxu0 %v1236
  %v1284 = vpop.f32.mrb[0].mxu0
  %v1285 = vadd.f32 %v1188, %v1284
  %v1286 = vpop.f32.mrb[0].mxu0
  %v1287 = vadd.f32 %v1192, %v1286
  %v1288 = vpop.f32.mrb[0].mxu0
  %v1289 = vadd.f32 %v1188, %v1288
  %v1290 = vpop.f32.mrb[0].mxu0
  %v1291 = vadd.f32 %v1192, %v1290
  %1292 = vmatprep.mubr.bf16.mxu0 0
  %1293 = vmatmul.mubr.bf16.gmra.mrb[0].mxu0 %v1239
  %v1294 = vpop.f32.mrb[0].mxu0
  %v1295 = vadd.f32 %v1188, %v1294
  %v1296 = vpop.f32.mrb[0].mxu0
  %v1297 = vadd.f32 %v1192, %v1296
  %v1298 = vpop.f32.mrb[0].mxu0
  %v1299 = vadd.f32 %v1188, %v1298
  %v1300 = vpop.f32.mrb[0].mxu0
  %v1301 = vadd.f32 %v1192, %v1300
  %1302 = vmatprep.mubr.bf16.mxu0 0
  %1303 = vmatmul.mubr.bf16.gmra.mrb[0].mxu0 %v1242
  %v1304 = vpop.f32.mrb[0].mxu0
  %v1305 = vadd.f32 %v1188, %v1304
  %v1306 = vpop.f32.mrb[0].mxu0
  %v1307 = vadd.f32 %v1192, %v1306
  %v1308 = vpop.f32.mrb[0].mxu0
  %v1309 = vadd.f32 %v1188, %v1308
  %v1310 = vpop.f32.mrb[0].mxu0
  %v1311 = vadd.f32 %v1192, %v1310
  %1312 = vmatprep.mubr.bf16.mxu0 0
  %1313 = vmatmul.mubr.bf16.gmra.mrb[0].mxu0 %v1245
  %v1314 = vpop.f32.mrb[0].mxu0
  %v1315 = vadd.f32 %v1188, %v1314
  %v1316 = vpop.f32.mrb[0].mxu0
  %v1317 = vadd.f32 %v1192, %v1316
  %v1318 = vpop.f32.mrb[0].mxu0
  %v1319 = vadd.f32 %v1188, %v1318
  %v1320 = vpop.f32.mrb[0].mxu0
  %v1321 = vadd.f32 %v1192, %v1320
  %1322 = vmatprep.mubr.bf16.mxu0 0
  %1323 = vmatmul.mubr.bf16.gmra.mrb[0].mxu0 %v1248
  %v1324 = vpop.f32.mrb[0].mxu0
  %v1325 = vadd.f32 %v1188, %v1324
  %v1326 = vpop.f32.mrb[0].mxu0
  %v1327 = vadd.f32 %v1192, %v1326
  %v1328 = vpop.f32.mrb[0].mxu0
  %v1329 = vpop.f32.mrb[0].mxu0
  %1330 = vdwg.mxu0
  %v1331 = vld [vmem:[%s2 + $0x8] sm:$0xff]
  %v1332 = vld [vmem:[%s1 + $0xb0] sm:$0xff]
  %v1333 = vld [vmem:[%s1 + $0xb8] sm:$0xff]
  %v1334 = vld [vmem:[%s1 + $0xc0] sm:$0xff]
  %v1335 = vld [vmem:[%s1 + $0xc8] sm:$0xff]
  %v1336 = vld [vmem:[%s1 + $0xd0] sm:$0xff]
  %v1337 = vld [vmem:[%s1 + $0xd8] sm:$0xff]
  %v1338 = vld [vmem:[%s1 + $0xe0] sm:$0xff]
  %v1339 = vld [vmem:[%s1 + $0xe8] sm:$0xff]
  %v1340 = vsel %vm389, %v1285, %v1325
  %v1341 = vsel %vm390, %v1287, %v1327
  %v1342 = vpack.c.bf16 %v1331, %v1331
  %v1351 = vunpack.c.l.b16 %v1332
  %v1352 = vunpack.c.h.b16 %v1332
  %v1353 = vunpack.c.l.b16 %v1333
  %v1354 = vunpack.c.h.b16 %v1333
  %v1355 = vunpack.c.l.b16 %v1334
  %v1356 = vunpack.c.h.b16 %v1334
  %v1357 = vunpack.c.l.b16 %v1335
  %v1358 = vunpack.c.h.b16 %v1335
  %v1359 = vunpack.c.l.b16 %v1336
  %v1360 = vunpack.c.h.b16 %v1336
  %v1361 = vunpack.c.l.b16 %v1337
  %v1362 = vunpack.c.h.b16 %v1337
  %v1363 = vunpack.c.l.b16 %v1338
  %v1364 = vunpack.c.h.b16 %v1338
  %v1365 = vunpack.c.l.b16 %v1339
  %v1366 = vunpack.c.h.b16 %v1339
  %v1367 = vpack.c.b16 %v1353, %v1351
  %v1368 = vpack.c.b16 %v1354, %v1352
  %v1369 = vpack.c.b16 %v1357, %v1355
  %v1370 = vpack.c.b16 %v1358, %v1356
  %v1371 = vpack.c.b16 %v1361, %v1359
  %v1372 = vpack.c.b16 %v1362, %v1360
  %v1373 = vpack.c.b16 %v1365, %v1363
  %v1374 = vpack.c.b16 %v1366, %v1364
  %v1384 = vsel %vm434, %v1342, 0
  %1386 = vmatprep.subr.bf16.mxu0 %v1368
  %1387 = vmatpush1.bf16.msra.mxu0 %v1367
  %1388 = vmatprep.subr.bf16.mxu0 %v1370
  %1389 = vmatpush1.bf16.msra.mxu0 %v1369
  %1390 = vmatprep.subr.bf16.mxu0 %v1372
  %1391 = vmatpush1.bf16.msra.mxu0 %v1371
  %1392 = vmatprep.subr.bf16.mxu0 %v1374
  %1393 = vmatpush1.bf16.msra.mxu0 %v1373
  %1394 = vmatprep.subr.bf16.mxu0 0
  %1395 = vmatpush1.bf16.msra.mxu0 0
  %1396 = vmatprep.subr.bf16.mxu0 0
  %1397 = vmatpush1.bf16.msra.mxu0 0
  %1398 = vmatprep.subr.bf16.mxu0 0
  %1399 = vmatpush1.bf16.msra.mxu0 0
  %1400 = vmatprep.subr.bf16.mxu0 0
  %1401 = vmatpush1.bf16.msra.mxu0 0
  %1402 = vmatprep.subr.bf16.mxu0 0
  %1403 = vmatpush1.bf16.msra.mxu0 0
  %1404 = vmatprep.subr.bf16.mxu0 0
  %1405 = vmatpush1.bf16.msra.mxu0 0
  %1406 = vmatprep.subr.bf16.mxu0 0
  %1407 = vmatpush1.bf16.msra.mxu0 0
  %1408 = vmatprep.subr.bf16.mxu0 0
  %1409 = vmatpush1.bf16.msra.mxu0 0
  %1410 = vmatprep.subr.bf16.mxu0 0
  %1411 = vmatpush1.bf16.msra.mxu0 0
  %1412 = vmatprep.subr.bf16.mxu0 0
  %1413 = vmatpush1.bf16.msra.mxu0 0
  %1414 = vmatprep.subr.bf16.mxu0 0
  %1415 = vmatpush1.bf16.msra.mxu0 0
  %1416 = vmatprep.subr.bf16.mxu0 0
  %1417 = vmatpush1.bf16.msra.mxu0 0
  %1418 = vmatprep.mubr.bf16.mxu0 0
  %1419 = vmatmul.mubr.bf16.gmra.mrb[0].mxu0 %v1384
  %v1420 = vpop.f32.mrb[0].mxu0
  %v1421 = vadd.f32 0.0, %v1420
  %v1422 = vpop.f32.mrb[0].mxu0
  %v1423 = vadd.f32 0.0, %v1422
  %v1424 = vpop.f32.mrb[0].mxu0
  %v1425 = vpop.f32.mrb[0].mxu0
  %1426 = vdwg.mxu0
  %v1427 = vadd.f32 %v1340, %v1421
  %v1428 = vadd.f32 %v1341, %v1423
  %v1429 = vxor.u32 %v1427, 2147483648
  %v1430 = vxor.u32 %v1428, 2147483648
  %v1431 = vmul.f32 %v1429, 1.442695
  %v1432 = vpow.pop %v1431
  %v1433 = vmul.f32 %v1430, 1.442695
  %v1434 = vpow.pop %v1433
  %v1435 = vadd.f32 %v1432, 1.0
  %v1436 = vadd.f32 %v1434, 1.0
  %v1437 = vrcp.pop %v1435
  %v1438 = vmul.f32 1.0, %v1437
  %v1439 = vrcp.pop %v1436
  %v1440 = vmul.f32 1.0, %v1439
  %v1441 = vtanh.pop %v1428
  %v1442 = vmul.f32 %v1438, %v1331
  %1444 = vrot.lane.b32.xlu0 %v1441, 64
  %v1445 = vpop.permute.xlu0 %1444
  %v1447 = vmul.f32 %v1438, %v1445
  %1449 = vrot.lane.b32.xlu0 %v1447, 64
  %v1450 = vpop.permute.xlu0 %1449
  %v1452 = vadd.f32 %v1442, %v1450
  %v1453 = vtanh.pop %v1452
  %1455 = vrot.lane.b32.xlu0 %v1453, 64
  %v1456 = vpop.permute.xlu0 %1455
  %v1458 = vmul.f32 %v1440, %v1456
  %1459 = vst.msk [vmem:[#allocation3] sm:$0xff] %vm116, %v1458
  %1460 = vst.msk [vmem:[#allocation3 + $0x40] sm:$0xff] %vm512, %v1458
  %v1461 = vsel %vm389, %v1289, %v1319
  %v1462 = vsel %vm390, %v1291, %v1321
  %v1463 = vpack.c.bf16 %v1458, %v1458
  %v1465 = vsel %vm434, %v1463, 0
  %1467 = vmatprep.subr.bf16.mxu0 %v1368
  %1468 = vmatpush1.bf16.msra.mxu0 %v1367
  %1469 = vmatprep.subr.bf16.mxu0 %v1370
  %1470 = vmatpush1.bf16.msra.mxu0 %v1369
  %1471 = vmatprep.subr.bf16.mxu0 %v1372
  %1472 = vmatpush1.bf16.msra.mxu0 %v1371
  %1473 = vmatprep.subr.bf16.mxu0 %v1374
  %1474 = vmatpush1.bf16.msra.mxu0 %v1373
  %1475 = vmatprep.subr.bf16.mxu0 0
  %1476 = vmatpush1.bf16.msra.mxu0 0
  %1477 = vmatprep.subr.bf16.mxu0 0
  %1478 = vmatpush1.bf16.msra.mxu0 0
  %1479 = vmatprep.subr.bf16.mxu0 0
  %1480 = vmatpush1.bf16.msra.mxu0 0
  %1481 = vmatprep.subr.bf16.mxu0 0
  %1482 = vmatpush1.bf16.msra.mxu0 0
  %1483 = vmatprep.subr.bf16.mxu0 0
  %1484 = vmatpush1.bf16.msra.mxu0 0
  %1485 = vmatprep.subr.bf16.mxu0 0
  %1486 = vmatpush1.bf16.msra.mxu0 0
  %1487 = vmatprep.subr.bf16.mxu0 0
  %1488 = vmatpush1.bf16.msra.mxu0 0
  %1489 = vmatprep.subr.bf16.mxu0 0
  %1490 = vmatpush1.bf16.msra.mxu0 0
  %1491 = vmatprep.subr.bf16.mxu0 0
  %1492 = vmatpush1.bf16.msra.mxu0 0
  %1493 = vmatprep.subr.bf16.mxu0 0
  %1494 = vmatpush1.bf16.msra.mxu0 0
  %1495 = vmatprep.subr.bf16.mxu0 0
  %1496 = vmatpush1.bf16.msra.mxu0 0
  %1497 = vmatprep.subr.bf16.mxu0 0
  %1498 = vmatpush1.bf16.msra.mxu0 0
  %1499 = vmatprep.mubr.bf16.mxu0 0
  %1500 = vmatmul.mubr.bf16.gmra.mrb[0].mxu0 %v1465
  %v1501 = vpop.f32.mrb[0].mxu0
  %v1502 = vadd.f32 0.0, %v1501
  %v1503 = vpop.f32.mrb[0].mxu0
  %v1504 = vadd.f32 0.0, %v1503
  %v1505 = vpop.f32.mrb[0].mxu0
  %v1506 = vpop.f32.mrb[0].mxu0
  %1507 = vdwg.mxu0
  %v1508 = vadd.f32 %v1461, %v1502
  %v1509 = vadd.f32 %v1462, %v1504
  %v1510 = vxor.u32 %v1508, 2147483648
  %v1511 = vxor.u32 %v1509, 2147483648
  %v1512 = vmul.f32 %v1510, 1.442695
  %v1513 = vpow.pop %v1512
  %v1514 = vmul.f32 %v1511, 1.442695
  %v1515 = vpow.pop %v1514
  %v1516 = vadd.f32 %v1513, 1.0
  %v1517 = vadd.f32 %v1515, 1.0
  %v1518 = vrcp.pop %v1516
  %v1519 = vmul.f32 1.0, %v1518
  %v1520 = vrcp.pop %v1517
  %v1521 = vmul.f32 1.0, %v1520
  %v1522 = vtanh.pop %v1509
  %v1523 = vmul.f32 %v1519, %v1452
  %1525 = vrot.lane.b32.xlu0 %v1522, 64
  %v1526 = vpop.permute.xlu0 %1525
  %v1528 = vmul.f32 %v1519, %v1526
  %1530 = vrot.lane.b32.xlu0 %v1528, 64
  %v1531 = vpop.permute.xlu0 %1530
  %v1533 = vadd.f32 %v1523, %v1531
  %v1534 = vtanh.pop %v1533
  %1536 = vrot.lane.b32.xlu0 %v1534, 64
  %v1537 = vpop.permute.xlu0 %1536
  %v1539 = vmul.f32 %v1521, %v1537
  %1540 = vst.msk [vmem:[#allocation3 + $0x8] sm:$0xff] %vm116, %v1539
  %1541 = vst.msk [vmem:[#allocation3 + $0x38] sm:$0xff] %vm512, %v1539
  %v1542 = vsel %vm389, %v1295, %v1315
  %v1543 = vsel %vm390, %v1297, %v1317
  %v1544 = vpack.c.bf16 %v1539, %v1539
  %v1546 = vsel %vm434, %v1544, 0
  %1548 = vmatprep.subr.bf16.mxu0 %v1368
  %1549 = vmatpush1.bf16.msra.mxu0 %v1367
  %1550 = vmatprep.subr.bf16.mxu0 %v1370
  %1551 = vmatpush1.bf16.msra.mxu0 %v1369
  %1552 = vmatprep.subr.bf16.mxu0 %v1372
  %1553 = vmatpush1.bf16.msra.mxu0 %v1371
  %1554 = vmatprep.subr.bf16.mxu0 %v1374
  %1555 = vmatpush1.bf16.msra.mxu0 %v1373
  %1556 = vmatprep.subr.bf16.mxu0 0
  %1557 = vmatpush1.bf16.msra.mxu0 0
  %1558 = vmatprep.subr.bf16.mxu0 0
  %1559 = vmatpush1.bf16.msra.mxu0 0
  %1560 = vmatprep.subr.bf16.mxu0 0
  %1561 = vmatpush1.bf16.msra.mxu0 0
  %1562 = vmatprep.subr.bf16.mxu0 0
  %1563 = vmatpush1.bf16.msra.mxu0 0
  %1564 = vmatprep.subr.bf16.mxu0 0
  %1565 = vmatpush1.bf16.msra.mxu0 0
  %1566 = vmatprep.subr.bf16.mxu0 0
  %1567 = vmatpush1.bf16.msra.mxu0 0
  %1568 = vmatprep.subr.bf16.mxu0 0
  %1569 = vmatpush1.bf16.msra.mxu0 0
  %1570 = vmatprep.subr.bf16.mxu0 0
  %1571 = vmatpush1.bf16.msra.mxu0 0
  %1572 = vmatprep.subr.bf16.mxu0 0
  %1573 = vmatpush1.bf16.msra.mxu0 0
  %1574 = vmatprep.subr.bf16.mxu0 0
  %1575 = vmatpush1.bf16.msra.mxu0 0
  %1576 = vmatprep.subr.bf16.mxu0 0
  %1577 = vmatpush1.bf16.msra.mxu0 0
  %1578 = vmatprep.subr.bf16.mxu0 0
  %1579 = vmatpush1.bf16.msra.mxu0 0
  %1580 = vmatprep.mubr.bf16.mxu0 0
  %1581 = vmatmul.mubr.bf16.gmra.mrb[0].mxu0 %v1546
  %v1582 = vpop.f32.mrb[0].mxu0
  %v1583 = vadd.f32 0.0, %v1582
  %v1584 = vpop.f32.mrb[0].mxu0
  %v1585 = vadd.f32 0.0, %v1584
  %v1586 = vpop.f32.mrb[0].mxu0
  %v1587 = vpop.f32.mrb[0].mxu0
  %1588 = vdwg.mxu0
  %v1589 = vadd.f32 %v1542, %v1583
  %v1590 = vadd.f32 %v1543, %v1585
  %v1591 = vxor.u32 %v1589, 2147483648
  %v1592 = vxor.u32 %v1590, 2147483648
  %v1593 = vmul.f32 %v1591, 1.442695
  %v1594 = vpow.pop %v1593
  %v1595 = vmul.f32 %v1592, 1.442695
  %v1596 = vpow.pop %v1595
  %v1597 = vadd.f32 %v1594, 1.0
  %v1598 = vadd.f32 %v1596, 1.0
  %v1599 = vrcp.pop %v1597
  %v1600 = vmul.f32 1.0, %v1599
  %v1601 = vrcp.pop %v1598
  %v1602 = vmul.f32 1.0, %v1601
  %v1603 = vtanh.pop %v1590
  %v1604 = vmul.f32 %v1600, %v1533
  %1606 = vrot.lane.b32.xlu0 %v1603, 64
  %v1607 = vpop.permute.xlu0 %1606
  %v1609 = vmul.f32 %v1600, %v1607
  %1611 = vrot.lane.b32.xlu0 %v1609, 64
  %v1612 = vpop.permute.xlu0 %1611
  %v1614 = vadd.f32 %v1604, %v1612
  %v1615 = vtanh.pop %v1614
  %1617 = vrot.lane.b32.xlu0 %v1615, 64
  %v1618 = vpop.permute.xlu0 %1617
  %v1620 = vmul.f32 %v1602, %v1618
  %1621 = vst.msk [vmem:[#allocation3 + $0x10] sm:$0xff] %vm116, %v1620
  %1622 = vst.msk [vmem:[#allocation3 + $0x30] sm:$0xff] %vm512, %v1620
  %v1623 = vsel %vm389, %v1299, %v1309
  %v1624 = vsel %vm390, %v1301, %v1311
  %v1625 = vpack.c.bf16 %v1620, %v1620
  %v1627 = vsel %vm434, %v1625, 0
  %1629 = vmatprep.subr.bf16.mxu0 %v1368
  %1630 = vmatpush1.bf16.msra.mxu0 %v1367
  %1631 = vmatprep.subr.bf16.mxu0 %v1370
  %1632 = vmatpush1.bf16.msra.mxu0 %v1369
  %1633 = vmatprep.subr.bf16.mxu0 %v1372
  %1634 = vmatpush1.bf16.msra.mxu0 %v1371
  %1635 = vmatprep.subr.bf16.mxu0 %v1374
  %1636 = vmatpush1.bf16.msra.mxu0 %v1373
  %1637 = vmatprep.subr.bf16.mxu0 0
  %1638 = vmatpush1.bf16.msra.mxu0 0
  %1639 = vmatprep.subr.bf16.mxu0 0
  %1640 = vmatpush1.bf16.msra.mxu0 0
  %1641 = vmatprep.subr.bf16.mxu0 0
  %1642 = vmatpush1.bf16.msra.mxu0 0
  %1643 = vmatprep.subr.bf16.mxu0 0
  %1644 = vmatpush1.bf16.msra.mxu0 0
  %1645 = vmatprep.subr.bf16.mxu0 0
  %1646 = vmatpush1.bf16.msra.mxu0 0
  %1647 = vmatprep.subr.bf16.mxu0 0
  %1648 = vmatpush1.bf16.msra.mxu0 0
  %1649 = vmatprep.subr.bf16.mxu0 0
  %1650 = vmatpush1.bf16.msra.mxu0 0
  %1651 = vmatprep.subr.bf16.mxu0 0
  %1652 = vmatpush1.bf16.msra.mxu0 0
  %1653 = vmatprep.subr.bf16.mxu0 0
  %1654 = vmatpush1.bf16.msra.mxu0 0
  %1655 = vmatprep.subr.bf16.mxu0 0
  %1656 = vmatpush1.bf16.msra.mxu0 0
  %1657 = vmatprep.subr.bf16.mxu0 0
  %1658 = vmatpush1.bf16.msra.mxu0 0
  %1659 = vmatprep.subr.bf16.mxu0 0
  %1660 = vmatpush1.bf16.msra.mxu0 0
  %1661 = vmatprep.mubr.bf16.mxu0 0
  %1662 = vmatmul.mubr.bf16.gmra.mrb[0].mxu0 %v1627
  %v1663 = vpop.f32.mrb[0].mxu0
  %v1664 = vadd.f32 0.0, %v1663
  %v1665 = vpop.f32.mrb[0].mxu0
  %v1666 = vadd.f32 0.0, %v1665
  %v1667 = vpop.f32.mrb[0].mxu0
  %v1668 = vpop.f32.mrb[0].mxu0
  %1669 = vdwg.mxu0
  %v1670 = vadd.f32 %v1623, %v1664
  %v1671 = vadd.f32 %v1624, %v1666
  %v1672 = vxor.u32 %v1670, 2147483648
  %v1673 = vxor.u32 %v1671, 2147483648
  %v1674 = vmul.f32 %v1672, 1.442695
  %v1675 = vpow.pop %v1674
  %v1676 = vmul.f32 %v1673, 1.442695
  %v1677 = vpow.pop %v1676
  %v1678 = vadd.f32 %v1675, 1.0
  %v1679 = vadd.f32 %v1677, 1.0
  %v1680 = vrcp.pop %v1678
  %v1681 = vmul.f32 1.0, %v1680
  %v1682 = vrcp.pop %v1679
  %v1683 = vmul.f32 1.0, %v1682
  %v1684 = vtanh.pop %v1671
  %v1685 = vmul.f32 %v1681, %v1614
  %1687 = vrot.lane.b32.xlu0 %v1684, 64
  %v1688 = vpop.permute.xlu0 %1687
  %v1690 = vmul.f32 %v1681, %v1688
  %1692 = vrot.lane.b32.xlu0 %v1690, 64
  %v1693 = vpop.permute.xlu0 %1692
  %v1695 = vadd.f32 %v1685, %v1693
  %v1696 = vtanh.pop %v1695
  %1698 = vrot.lane.b32.xlu0 %v1696, 64
  %v1699 = vpop.permute.xlu0 %1698
  %v1701 = vmul.f32 %v1683, %v1699
  %1702 = vst.msk [vmem:[#allocation3 + $0x18] sm:$0xff] %vm116, %v1701
  %1703 = vst.msk [vmem:[#allocation3 + $0x28] sm:$0xff] %vm512, %v1701
  %v1704 = vpack.c.bf16 %v1701, %v1701
  %v1706 = vsel %vm434, %v1704, 0
  %1708 = vmatprep.subr.bf16.mxu0 %v1368
  %1709 = vmatpush1.bf16.msra.mxu0 %v1367
  %1710 = vmatprep.subr.bf16.mxu0 %v1370
  %1711 = vmatpush1.bf16.msra.mxu0 %v1369
  %1712 = vmatprep.subr.bf16.mxu0 %v1372
  %1713 = vmatpush1.bf16.msra.mxu0 %v1371
  %1714 = vmatprep.subr.bf16.mxu0 %v1374
  %1715 = vmatpush1.bf16.msra.mxu0 %v1373
  %1716 = vmatprep.subr.bf16.mxu0 0
  %1717 = vmatpush1.bf16.msra.mxu0 0
  %1718 = vmatprep.subr.bf16.mxu0 0
  %1719 = vmatpush1.bf16.msra.mxu0 0
  %1720 = vmatprep.subr.bf16.mxu0 0
  %1721 = vmatpush1.bf16.msra.mxu0 0
  %1722 = vmatprep.subr.bf16.mxu0 0
  %1723 = vmatpush1.bf16.msra.mxu0 0
  %1724 = vmatprep.subr.bf16.mxu0 0
  %1725 = vmatpush1.bf16.msra.mxu0 0
  %1726 = vmatprep.subr.bf16.mxu0 0
  %1727 = vmatpush1.bf16.msra.mxu0 0
  %1728 = vmatprep.subr.bf16.mxu0 0
  %1729 = vmatpush1.bf16.msra.mxu0 0
  %1730 = vmatprep.subr.bf16.mxu0 0
  %1731 = vmatpush1.bf16.msra.mxu0 0
  %1732 = vmatprep.subr.bf16.mxu0 0
  %1733 = vmatpush1.bf16.msra.mxu0 0
  %1734 = vmatprep.subr.bf16.mxu0 0
  %1735 = vmatpush1.bf16.msra.mxu0 0
  %1736 = vmatprep.subr.bf16.mxu0 0
  %1737 = vmatpush1.bf16.msra.mxu0 0
  %1738 = vmatprep.subr.bf16.mxu0 0
  %1739 = vmatpush1.bf16.msra.mxu0 0
  %1740 = vmatprep.mubr.bf16.mxu0 0
  %1741 = vmatmul.mubr.bf16.gmra.mrb[0].mxu0 %v1706
  %v1742 = vpop.f32.mrb[0].mxu0
  %v1743 = vadd.f32 0.0, %v1742
  %v1744 = vpop.f32.mrb[0].mxu0
  %v1745 = vadd.f32 0.0, %v1744
  %v1746 = vpop.f32.mrb[0].mxu0
  %v1747 = vpop.f32.mrb[0].mxu0
  %1748 = vdwg.mxu0
  %v1749 = vadd.f32 %v1305, %v1743
  %v1750 = vadd.f32 %v1307, %v1745
  %v1751 = vxor.u32 %v1749, 2147483648
  %v1752 = vxor.u32 %v1750, 2147483648
  %v1753 = vmul.f32 %v1751, 1.442695
  %v1754 = vpow.pop %v1753
  %v1755 = vmul.f32 %v1752, 1.442695
  %v1756 = vpow.pop %v1755
  %v1757 = vadd.f32 %v1754, 1.0
  %v1758 = vadd.f32 %v1756, 1.0
  %v1759 = vrcp.pop %v1757
  %v1760 = vmul.f32 1.0, %v1759
  %v1761 = vrcp.pop %v1758
  %v1762 = vmul.f32 1.0, %v1761
  %v1763 = vtanh.pop %v1750
  %v1764 = vmul.f32 %v1760, %v1695
  %1766 = vrot.lane.b32.xlu0 %v1763, 64
  %v1767 = vpop.permute.xlu0 %1766
  %v1769 = vmul.f32 %v1760, %v1767
  %1771 = vrot.lane.b32.xlu0 %v1769, 64
  %v1772 = vpop.permute.xlu0 %1771
  %v1774 = vadd.f32 %v1764, %v1772
  %v1775 = vtanh.pop %v1774
  %1777 = vrot.lane.b32.xlu0 %v1775, 64
  %v1778 = vpop.permute.xlu0 %1777
  %v1780 = vmul.f32 %v1762, %v1778
  %1781 = vst.msk [vmem:[#allocation3 + $0x20] sm:$0xff] %vm116, %v1780
  %1782 = vst.msk [vmem:[#allocation3 + $0x20] sm:$0xff] %vm512, %v1780
  %v1783 = vsel %vm389, %v1309, %v1299
  %v1784 = vsel %vm390, %v1311, %v1301
  %v1785 = vpack.c.bf16 %v1780, %v1780
  %v1787 = vsel %vm434, %v1785, 0
  %1789 = vmatprep.subr.bf16.mxu0 %v1368
  %1790 = vmatpush1.bf16.msra.mxu0 %v1367
  %1791 = vmatprep.subr.bf16.mxu0 %v1370
  %1792 = vmatpush1.bf16.msra.mxu0 %v1369
  %1793 = vmatprep.subr.bf16.mxu0 %v1372
  %1794 = vmatpush1.bf16.msra.mxu0 %v1371
  %1795 = vmatprep.subr.bf16.mxu0 %v1374
  %1796 = vmatpush1.bf16.msra.mxu0 %v1373
  %1797 = vmatprep.subr.bf16.mxu0 0
  %1798 = vmatpush1.bf16.msra.mxu0 0
  %1799 = vmatprep.subr.bf16.mxu0 0
  %1800 = vmatpush1.bf16.msra.mxu0 0
  %1801 = vmatprep.subr.bf16.mxu0 0
  %1802 = vmatpush1.bf16.msra.mxu0 0
  %1803 = vmatprep.subr.bf16.mxu0 0
  %1804 = vmatpush1.bf16.msra.mxu0 0
  %1805 = vmatprep.subr.bf16.mxu0 0
  %1806 = vmatpush1.bf16.msra.mxu0 0
  %1807 = vmatprep.subr.bf16.mxu0 0
  %1808 = vmatpush1.bf16.msra.mxu0 0
  %1809 = vmatprep.subr.bf16.mxu0 0
  %1810 = vmatpush1.bf16.msra.mxu0 0
  %1811 = vmatprep.subr.bf16.mxu0 0
  %1812 = vmatpush1.bf16.msra.mxu0 0
  %1813 = vmatprep.subr.bf16.mxu0 0
  %1814 = vmatpush1.bf16.msra.mxu0 0
  %1815 = vmatprep.subr.bf16.mxu0 0
  %1816 = vmatpush1.bf16.msra.mxu0 0
  %1817 = vmatprep.subr.bf16.mxu0 0
  %1818 = vmatpush1.bf16.msra.mxu0 0
  %1819 = vmatprep.subr.bf16.mxu0 0
  %1820 = vmatpush1.bf16.msra.mxu0 0
  %1821 = vmatprep.mubr.bf16.mxu0 0
  %1822 = vmatmul.mubr.bf16.gmra.mrb[0].mxu0 %v1787
  %v1823 = vpop.f32.mrb[0].mxu0
  %v1824 = vadd.f32 0.0, %v1823
  %v1825 = vpop.f32.mrb[0].mxu0
  %v1826 = vadd.f32 0.0, %v1825
  %v1827 = vpop.f32.mrb[0].mxu0
  %v1828 = vpop.f32.mrb[0].mxu0
  %1829 = vdwg.mxu0
  %v1830 = vadd.f32 %v1783, %v1824
  %v1831 = vadd.f32 %v1784, %v1826
  %v1832 = vxor.u32 %v1830, 2147483648
  %v1833 = vxor.u32 %v1831, 2147483648
  %v1834 = vmul.f32 %v1832, 1.442695
  %v1835 = vpow.pop %v1834
  %v1836 = vmul.f32 %v1833, 1.442695
  %v1837 = vpow.pop %v1836
  %v1838 = vadd.f32 %v1835, 1.0
  %v1839 = vadd.f32 %v1837, 1.0
  %v1840 = vrcp.pop %v1838
  %v1841 = vmul.f32 1.0, %v1840
  %v1842 = vrcp.pop %v1839
  %v1843 = vmul.f32 1.0, %v1842
  %v1844 = vtanh.pop %v1831
  %v1845 = vmul.f32 %v1841, %v1774
  %1847 = vrot.lane.b32.xlu0 %v1844, 64
  %v1848 = vpop.permute.xlu0 %1847
  %v1850 = vmul.f32 %v1841, %v1848
  %1852 = vrot.lane.b32.xlu0 %v1850, 64
  %v1853 = vpop.permute.xlu0 %1852
  %v1855 = vadd.f32 %v1845, %v1853
  %v1856 = vtanh.pop %v1855
  %1858 = vrot.lane.b32.xlu0 %v1856, 64
  %v1859 = vpop.permute.xlu0 %1858
  %v1861 = vmul.f32 %v1843, %v1859
  %1862 = vst.msk [vmem:[#allocation3 + $0x28] sm:$0xff] %vm116, %v1861
  %1863 = vst.msk [vmem:[#allocation3 + $0x18] sm:$0xff] %vm512, %v1861
  %v1864 = vsel %vm389, %v1315, %v1295
  %v1865 = vsel %vm390, %v1317, %v1297
  %v1866 = vpack.c.bf16 %v1861, %v1861
  %v1868 = vsel %vm434, %v1866, 0
  %1870 = vmatprep.subr.bf16.mxu0 %v1368
  %1871 = vmatpush1.bf16.msra.mxu0 %v1367
  %1872 = vmatprep.subr.bf16.mxu0 %v1370
  %1873 = vmatpush1.bf16.msra.mxu0 %v1369
  %1874 = vmatprep.subr.bf16.mxu0 %v1372
  %1875 = vmatpush1.bf16.msra.mxu0 %v1371
  %1876 = vmatprep.subr.bf16.mxu0 %v1374
  %1877 = vmatpush1.bf16.msra.mxu0 %v1373
  %1878 = vmatprep.subr.bf16.mxu0 0
  %1879 = vmatpush1.bf16.msra.mxu0 0
  %1880 = vmatprep.subr.bf16.mxu0 0
  %1881 = vmatpush1.bf16.msra.mxu0 0
  %1882 = vmatprep.subr.bf16.mxu0 0
  %1883 = vmatpush1.bf16.msra.mxu0 0
  %1884 = vmatprep.subr.bf16.mxu0 0
  %1885 = vmatpush1.bf16.msra.mxu0 0
  %1886 = vmatprep.subr.bf16.mxu0 0
  %1887 = vmatpush1.bf16.msra.mxu0 0
  %1888 = vmatprep.subr.bf16.mxu0 0
  %1889 = vmatpush1.bf16.msra.mxu0 0
  %1890 = vmatprep.subr.bf16.mxu0 0
  %1891 = vmatpush1.bf16.msra.mxu0 0
  %1892 = vmatprep.subr.bf16.mxu0 0
  %1893 = vmatpush1.bf16.msra.mxu0 0
  %1894 = vmatprep.subr.bf16.mxu0 0
  %1895 = vmatpush1.bf16.msra.mxu0 0
  %1896 = vmatprep.subr.bf16.mxu0 0
  %1897 = vmatpush1.bf16.msra.mxu0 0
  %1898 = vmatprep.subr.bf16.mxu0 0
  %1899 = vmatpush1.bf16.msra.mxu0 0
  %1900 = vmatprep.subr.bf16.mxu0 0
  %1901 = vmatpush1.bf16.msra.mxu0 0
  %1902 = vmatprep.mubr.bf16.mxu0 0
  %1903 = vmatmul.mubr.bf16.gmra.mrb[0].mxu0 %v1868
  %v1904 = vpop.f32.mrb[0].mxu0
  %v1905 = vadd.f32 0.0, %v1904
  %v1906 = vpop.f32.mrb[0].mxu0
  %v1907 = vadd.f32 0.0, %v1906
  %v1908 = vpop.f32.mrb[0].mxu0
  %v1909 = vpop.f32.mrb[0].mxu0
  %1910 = vdwg.mxu0
  %v1911 = vadd.f32 %v1864, %v1905
  %v1912 = vadd.f32 %v1865, %v1907
  %v1913 = vxor.u32 %v1911, 2147483648
  %v1914 = vxor.u32 %v1912, 2147483648
  %v1915 = vmul.f32 %v1913, 1.442695
  %v1916 = vpow.pop %v1915
  %v1917 = vmul.f32 %v1914, 1.442695
  %v1918 = vpow.pop %v1917
  %v1919 = vadd.f32 %v1916, 1.0
  %v1920 = vadd.f32 %v1918, 1.0
  %v1921 = vrcp.pop %v1919
  %v1922 = vmul.f32 1.0, %v1921
  %v1923 = vrcp.pop %v1920
  %v1924 = vmul.f32 1.0, %v1923
  %v1925 = vtanh.pop %v1912
  %v1926 = vmul.f32 %v1922, %v1855
  %1928 = vrot.lane.b32.xlu0 %v1925, 64
  %v1929 = vpop.permute.xlu0 %1928
  %v1931 = vmul.f32 %v1922, %v1929
  %1933 = vrot.lane.b32.xlu0 %v1931, 64
  %v1934 = vpop.permute.xlu0 %1933
  %v1936 = vadd.f32 %v1926, %v1934
  %v1937 = vtanh.pop %v1936
  %1939 = vrot.lane.b32.xlu0 %v1937, 64
  %v1940 = vpop.permute.xlu0 %1939
  %v1942 = vmul.f32 %v1924, %v1940
  %1943 = vst.msk [vmem:[#allocation3 + $0x30] sm:$0xff] %vm116, %v1942
  %1944 = vst.msk [vmem:[#allocation3 + $0x10] sm:$0xff] %vm512, %v1942
  %v1945 = vsel %vm389, %v1319, %v1289
  %v1946 = vsel %vm390, %v1321, %v1291
  %v1947 = vpack.c.bf16 %v1942, %v1942
  %v1949 = vsel %vm434, %v1947, 0
  %1951 = vmatprep.subr.bf16.mxu0 %v1368
  %1952 = vmatpush1.bf16.msra.mxu0 %v1367
  %1953 = vmatprep.subr.bf16.mxu0 %v1370
  %1954 = vmatpush1.bf16.msra.mxu0 %v1369
  %1955 = vmatprep.subr.bf16.mxu0 %v1372
  %1956 = vmatpush1.bf16.msra.mxu0 %v1371
  %1957 = vmatprep.subr.bf16.mxu0 %v1374
  %1958 = vmatpush1.bf16.msra.mxu0 %v1373
  %1959 = vmatprep.subr.bf16.mxu0 0
  %1960 = vmatpush1.bf16.msra.mxu0 0
  %1961 = vmatprep.subr.bf16.mxu0 0
  %1962 = vmatpush1.bf16.msra.mxu0 0
  %1963 = vmatprep.subr.bf16.mxu0 0
  %1964 = vmatpush1.bf16.msra.mxu0 0
  %1965 = vmatprep.subr.bf16.mxu0 0
  %1966 = vmatpush1.bf16.msra.mxu0 0
  %1967 = vmatprep.subr.bf16.mxu0 0
  %1968 = vmatpush1.bf16.msra.mxu0 0
  %1969 = vmatprep.subr.bf16.mxu0 0
  %1970 = vmatpush1.bf16.msra.mxu0 0
  %1971 = vmatprep.subr.bf16.mxu0 0
  %1972 = vmatpush1.bf16.msra.mxu0 0
  %1973 = vmatprep.subr.bf16.mxu0 0
  %1974 = vmatpush1.bf16.msra.mxu0 0
  %1975 = vmatprep.subr.bf16.mxu0 0
  %1976 = vmatpush1.bf16.msra.mxu0 0
  %1977 = vmatprep.subr.bf16.mxu0 0
  %1978 = vmatpush1.bf16.msra.mxu0 0
  %1979 = vmatprep.subr.bf16.mxu0 0
  %1980 = vmatpush1.bf16.msra.mxu0 0
  %1981 = vmatprep.subr.bf16.mxu0 0
  %1982 = vmatpush1.bf16.msra.mxu0 0
  %1983 = vmatprep.mubr.bf16.mxu0 0
  %1984 = vmatmul.mubr.bf16.gmra.mrb[0].mxu0 %v1949
  %v1985 = vpop.f32.mrb[0].mxu0
  %v1986 = vadd.f32 0.0, %v1985
  %v1987 = vpop.f32.mrb[0].mxu0
  %v1988 = vadd.f32 0.0, %v1987
  %v1989 = vpop.f32.mrb[0].mxu0
  %v1990 = vpop.f32.mrb[0].mxu0
  %1991 = vdwg.mxu0
  %v1992 = vadd.f32 %v1945, %v1986
  %v1993 = vadd.f32 %v1946, %v1988
  %v1994 = vxor.u32 %v1992, 2147483648
  %v1995 = vxor.u32 %v1993, 2147483648
  %v1996 = vmul.f32 %v1994, 1.442695
  %v1997 = vpow.pop %v1996
  %v1998 = vmul.f32 %v1995, 1.442695
  %v1999 = vpow.pop %v1998
  %v2000 = vadd.f32 %v1997, 1.0
  %v2001 = vadd.f32 %v1999, 1.0
  %v2002 = vrcp.pop %v2000
  %v2003 = vmul.f32 1.0, %v2002
  %v2004 = vrcp.pop %v2001
  %v2005 = vmul.f32 1.0, %v2004
  %v2006 = vtanh.pop %v1993
  %v2007 = vmul.f32 %v2003, %v1936
  %2009 = vrot.lane.b32.xlu0 %v2006, 64
  %v2010 = vpop.permute.xlu0 %2009
  %v2012 = vmul.f32 %v2003, %v2010
  %2014 = vrot.lane.b32.xlu0 %v2012, 64
  %v2015 = vpop.permute.xlu0 %2014
  %v2017 = vadd.f32 %v2007, %v2015
  %v2018 = vtanh.pop %v2017
  %2020 = vrot.lane.b32.xlu0 %v2018, 64
  %v2021 = vpop.permute.xlu0 %2020
  %v2023 = vmul.f32 %v2005, %v2021
  %2024 = vst.msk [vmem:[#allocation3 + $0x38] sm:$0xff] %vm116, %v2023
  %2025 = vst.msk [vmem:[#allocation3 + $0x8] sm:$0xff] %vm512, %v2023
  %v2026 = vsel %vm389, %v1325, %v1285
  %v2027 = vsel %vm390, %v1327, %v1287
  %v2028 = vpack.c.bf16 %v2023, %v2023
  %v2030 = vsel %vm434, %v2028, 0
  %2032 = vmatprep.subr.bf16.mxu0 %v1368
  %2033 = vmatpush1.bf16.msra.mxu0 %v1367
  %2034 = vmatprep.subr.bf16.mxu0 %v1370
  %2035 = vmatpush1.bf16.msra.mxu0 %v1369
  %2036 = vmatprep.subr.bf16.mxu0 %v1372
  %2037 = vmatpush1.bf16.msra.mxu0 %v1371
  %2038 = vmatprep.subr.bf16.mxu0 %v1374
  %2039 = vmatpush1.bf16.msra.mxu0 %v1373
  %2040 = vmatprep.subr.bf16.mxu0 0
  %2041 = vmatpush1.bf16.msra.mxu0 0
  %2042 = vmatprep.subr.bf16.mxu0 0
  %2043 = vmatpush1.bf16.msra.mxu0 0
  %2044 = vmatprep.subr.bf16.mxu0 0
  %2045 = vmatpush1.bf16.msra.mxu0 0
  %2046 = vmatprep.subr.bf16.mxu0 0
  %2047 = vmatpush1.bf16.msra.mxu0 0
  %2048 = vmatprep.subr.bf16.mxu0 0
  %2049 = vmatpush1.bf16.msra.mxu0 0
  %2050 = vmatprep.subr.bf16.mxu0 0
  %2051 = vmatpush1.bf16.msra.mxu0 0
  %2052 = vmatprep.subr.bf16.mxu0 0
  %2053 = vmatpush1.bf16.msra.mxu0 0
  %2054 = vmatprep.subr.bf16.mxu0 0
  %2055 = vmatpush1.bf16.msra.mxu0 0
  %2056 = vmatprep.subr.bf16.mxu0 0
  %2057 = vmatpush1.bf16.msra.mxu0 0
  %2058 = vmatprep.subr.bf16.mxu0 0
  %2059 = vmatpush1.bf16.msra.mxu0 0
  %2060 = vmatprep.subr.bf16.mxu0 0
  %2061 = vmatpush1.bf16.msra.mxu0 0
  %2062 = vmatprep.subr.bf16.mxu0 0
  %2063 = vmatpush1.bf16.msra.mxu0 0
  %2064 = vmatprep.mubr.bf16.mxu0 0
  %2065 = vmatmul.mubr.bf16.gmra.mrb[0].mxu0 %v2030
  %v2066 = vpop.f32.mrb[0].mxu0
  %v2067 = vadd.f32 0.0, %v2066
  %v2068 = vpop.f32.mrb[0].mxu0
  %v2069 = vadd.f32 0.0, %v2068
  %v2070 = vpop.f32.mrb[0].mxu0
  %v2071 = vpop.f32.mrb[0].mxu0
  %2072 = vdwg.mxu0
  %v2073 = vadd.f32 %v2026, %v2067
  %v2074 = vadd.f32 %v2027, %v2069
  %v2075 = vxor.u32 %v2073, 2147483648
  %v2076 = vxor.u32 %v2074, 2147483648
  %v2077 = vmul.f32 %v2075, 1.442695
  %v2078 = vpow.pop %v2077
  %v2079 = vmul.f32 %v2076, 1.442695
  %v2080 = vpow.pop %v2079
  %v2081 = vadd.f32 %v2078, 1.0
  %v2082 = vadd.f32 %v2080, 1.0
  %v2083 = vrcp.pop %v2081
  %v2084 = vmul.f32 1.0, %v2083
  %v2085 = vrcp.pop %v2082
  %v2086 = vmul.f32 1.0, %v2085
  %v2087 = vtanh.pop %v2074
  %v2088 = vmul.f32 %v2084, %v2017
  %2090 = vrot.lane.b32.xlu0 %v2087, 64
  %v2091 = vpop.permute.xlu0 %2090
  %v2093 = vmul.f32 %v2084, %v2091
  %2095 = vrot.lane.b32.xlu0 %v2093, 64
  %v2096 = vpop.permute.xlu0 %2095
  %v2098 = vadd.f32 %v2088, %v2096
  %v2099 = vtanh.pop %v2098
  %2101 = vrot.lane.b32.xlu0 %v2099, 64
  %v2102 = vpop.permute.xlu0 %2101
  %v2104 = vmul.f32 %v2086, %v2102
  %2105 = vst.msk [vmem:[#allocation3 + $0x40] sm:$0xff] %vm116, %v2104
  %2106 = vst.msk [vmem:[#allocation3] sm:$0xff] %vm512, %v2104
  %v2107 = vld [vmem:[#allocation3] sm:$0xff]
  %v2108 = vld [vmem:[#allocation3 + $0x8] sm:$0xff]
  %v2109 = vld [vmem:[#allocation3 + $0x10] sm:$0xff]
  %v2110 = vld [vmem:[#allocation3 + $0x18] sm:$0xff]
  %v2111 = vld [vmem:[#allocation3 + $0x20] sm:$0xff]
  %v2112 = vld [vmem:[#allocation3 + $0x28] sm:$0xff]
  %v2113 = vld [vmem:[#allocation3 + $0x30] sm:$0xff]
  %v2114 = vld [vmem:[#allocation3 + $0x38] sm:$0xff]
  %v2115 = vld [vmem:[#allocation3 + $0x40] sm:$0xff]
  %v2116 = vpack.c.bf16 %v2108, %v2107
  %v2117 = vpack.c.bf16 %v2110, %v2109
  %v2118 = vpack.c.bf16 %v2112, %v2111
  %v2119 = vpack.c.bf16 %v2114, %v2113
  %v2120 = vpack.c.bf16 %v2115, %v2115
  %v2121 = vld [vmem:[%s1 + $0x1d0] sm:$0xf]
  %v2122 = vld [vmem:[%s1 + $0x1d8] sm:$0xf]
  %v2123 = vld [vmem:[%s1 + $0x1e0] sm:$0xf]
  %v2124 = vld [vmem:[%s1 + $0x1e8] sm:$0xf]
  %v2125 = vld [vmem:[%s1 + $0x1f0] sm:$0xf]
  %v2126 = vld [vmem:[%s1 + $0x1f8] sm:$0xf]
  %v2127 = vld [vmem:[%s1 + $0x200] sm:$0xf]
  %v2128 = vld [vmem:[%s1 + $0x208] sm:$0xf]
  %v2129 = vld [vmem:[%s2 + $0x24] ss:$0 sm:$0xff]
  %v2138 = vunpack.c.l.b16 %v2121
  %v2139 = vunpack.c.l.b16 %v2122
  %v2140 = vunpack.c.l.b16 %v2123
  %v2141 = vunpack.c.l.b16 %v2124
  %v2142 = vunpack.c.l.b16 %v2125
  %v2143 = vunpack.c.l.b16 %v2126
  %v2144 = vunpack.c.l.b16 %v2127
  %v2145 = vunpack.c.l.b16 %v2128
  %v2146 = vpack.c.b16 %v2139, %v2138
  %v2147 = vpack.c.b16 %v2141, %v2140
  %v2148 = vpack.c.b16 %v2143, %v2142
  %v2149 = vpack.c.b16 %v2145, %v2144
  %v2155 = vsel %vm434, %v2116, 0
  %v2158 = vsel %vm434, %v2117, 0
  %v2161 = vsel %vm434, %v2118, 0
  %v2164 = vsel %vm434, %v2119, 0
  %v2167 = vsel %vm434, %v2120, 0
  %2169 = vmatprep.subr.bf16.mxu0 0
  %2170 = vmatpush1.bf16.msra.mxu0 %v2146
  %2171 = vmatprep.subr.bf16.mxu0 0
  %2172 = vmatpush1.bf16.msra.mxu0 %v2147
  %2173 = vmatprep.subr.bf16.mxu0 0
  %2174 = vmatpush1.bf16.msra.mxu0 %v2148
  %2175 = vmatprep.subr.bf16.mxu0 0
  %2176 = vmatpush1.bf16.msra.mxu0 %v2149
  %2177 = vmatprep.subr.bf16.mxu0 0
  %2178 = vmatpush1.bf16.msra.mxu0 0
  %2179 = vmatprep.subr.bf16.mxu0 0
  %2180 = vmatpush1.bf16.msra.mxu0 0
  %2181 = vmatprep.subr.bf16.mxu0 0
  %2182 = vmatpush1.bf16.msra.mxu0 0
  %2183 = vmatprep.subr.bf16.mxu0 0
  %2184 = vmatpush1.bf16.msra.mxu0 0
  %2185 = vmatprep.subr.bf16.mxu0 0
  %2186 = vmatpush1.bf16.msra.mxu0 0
  %2187 = vmatprep.subr.bf16.mxu0 0
  %2188 = vmatpush1.bf16.msra.mxu0 0
  %2189 = vmatprep.subr.bf16.mxu0 0
  %2190 = vmatpush1.bf16.msra.mxu0 0
  %2191 = vmatprep.subr.bf16.mxu0 0
  %2192 = vmatpush1.bf16.msra.mxu0 0
  %2193 = vmatprep.subr.bf16.mxu0 0
  %2194 = vmatpush1.bf16.msra.mxu0 0
  %2195 = vmatprep.subr.bf16.mxu0 0
  %2196 = vmatpush1.bf16.msra.mxu0 0
  %2197 = vmatprep.subr.bf16.mxu0 0
  %2198 = vmatpush1.bf16.msra.mxu0 0
  %2199 = vmatprep.subr.bf16.mxu0 0
  %2200 = vmatpush1.bf16.msra.mxu0 0
  %2201 = vmatprep.mubr.bf16.mxu0 0
  %2202 = vmatmul.mubr.bf16.gmra.mrb[0].mxu0 %v2155
  %v2203 = vpop.f32.mrb[0].mxu0
  %v2204 = vadd.f32 %v2129, %v2203
  %v2205 = vpop.f32.mrb[0].mxu0
  %v2206 = vpop.f32.mrb[0].mxu0
  %v2207 = vadd.f32 %v2129, %v2206
  %v2208 = vpop.f32.mrb[0].mxu0
  %2209 = vmatprep.mubr.bf16.mxu0 0
  %2210 = vmatmul.mubr.bf16.gmra.mrb[0].mxu0 %v2158
  %v2211 = vpop.f32.mrb[0].mxu0
  %v2212 = vadd.f32 %v2129, %v2211
  %v2213 = vpop.f32.mrb[0].mxu0
  %v2214 = vpop.f32.mrb[0].mxu0
  %v2215 = vadd.f32 %v2129, %v2214
  %v2216 = vpop.f32.mrb[0].mxu0
  %2217 = vmatprep.mubr.bf16.mxu0 0
  %2218 = vmatmul.mubr.bf16.gmra.mrb[0].mxu0 %v2161
  %v2219 = vpop.f32.mrb[0].mxu0
  %v2220 = vadd.f32 %v2129, %v2219
  %v2221 = vpop.f32.mrb[0].mxu0
  %v2222 = vpop.f32.mrb[0].mxu0
  %v2223 = vadd.f32 %v2129, %v2222
  %v2224 = vpop.f32.mrb[0].mxu0
  %2225 = vmatprep.mubr.bf16.mxu0 0
  %2226 = vmatmul.mubr.bf16.gmra.mrb[0].mxu0 %v2164
  %v2227 = vpop.f32.mrb[0].mxu0
  %v2228 = vadd.f32 %v2129, %v2227
  %v2229 = vpop.f32.mrb[0].mxu0
  %v2230 = vpop.f32.mrb[0].mxu0
  %v2231 = vadd.f32 %v2129, %v2230
  %v2232 = vpop.f32.mrb[0].mxu0
  %2233 = vmatprep.mubr.bf16.mxu0 0
  %2234 = vmatmul.mubr.bf16.gmra.mrb[0].mxu0 %v2167
  %v2235 = vpop.f32.mrb[0].mxu0
  %v2236 = vadd.f32 %v2129, %v2235
  %v2237 = vpop.f32.mrb[0].mxu0
  %v2238 = vpop.f32.mrb[0].mxu0
  %v2239 = vpop.f32.mrb[0].mxu0
  %2240 = vdwg.mxu0
  %v2241 = vmax.f32 %v2204, 0.0
  %v2242 = vmax.f32 %v2207, 0.0
  %v2243 = vmax.f32 %v2212, 0.0
  %v2244 = vmax.f32 %v2215, 0.0
  %v2245 = vmax.f32 %v2220, 0.0
  %v2246 = vmax.f32 %v2223, 0.0
  %v2247 = vmax.f32 %v2228, 0.0
  %v2248 = vmax.f32 %v2231, 0.0
  %v2249 = vmax.f32 %v2236, 0.0
  %v2250 = vpack.c.bf16 %v2242, %v2241
  %v2251 = vpack.c.bf16 %v2244, %v2243
  %v2252 = vpack.c.bf16 %v2246, %v2245
  %v2253 = vpack.c.bf16 %v2248, %v2247
  %v2254 = vpack.c.bf16 %v2249, %v2249
  %v2255 = vld [vmem:[%s1 + $0xf0] sm:$0xff]
  %v2256 = vld [vmem:[%s1 + $0xf8] sm:$0xff]
  %v2257 = vld [vmem:[%s1 + $0x100] sm:$0xff]
  %v2258 = vld [vmem:[%s1 + $0x108] sm:$0xff]
  %s2259 = scalar_lea.vmem %s2, 34
  %v2260 = vld [vmem:[%s2259] ss:$8 sm:$0x3]
  %v2262 = vlaneseq
  %v2263 = vshrl.u32 %v2262, 7
  %v2264 = vsub.s32 0, %v2263
  %v2265 = vrot.slane %v2260, %v2264
  %v2266 = vlaneseq
  %v2267 = vshrl.u32 %v2266, 7
  %v2268 = vsub.s32 1, %v2267
  %v2269 = vrot.slane %v2260, %v2268
  %v2276 = vunpack.c.l.b16 %v2255
  %v2277 = vunpack.c.h.b16 %v2255
  %v2278 = vunpack.c.l.b16 %v2256
  %v2279 = vunpack.c.h.b16 %v2256
  %v2280 = vunpack.c.l.b16 %v2257
  %v2281 = vunpack.c.h.b16 %v2257
  %v2282 = vunpack.c.l.b16 %v2258
  %v2283 = vunpack.c.h.b16 %v2258
  %v2284 = vpack.c.b16 %v2278, %v2276
  %v2285 = vpack.c.b16 %v2279, %v2277
  %v2286 = vpack.c.b16 %v2282, %v2280
  %v2287 = vpack.c.b16 %v2283, %v2281
  %v2293 = vsel %vm116, %v2250, 0
  %v2296 = vsel %vm116, %v2251, 0
  %v2299 = vsel %vm116, %v2252, 0
  %v2302 = vsel %vm116, %v2253, 0
  %v2305 = vsel %vm116, %v2254, 0
  %2307 = vmatprep.subr.bf16.mxu0 %v2285
  %2308 = vmatpush1.bf16.msra.mxu0 %v2284
  %2309 = vmatprep.subr.bf16.mxu0 %v2287
  %2310 = vmatpush1.bf16.msra.mxu0 %v2286
  %2311 = vmatprep.subr.bf16.mxu0 0
  %2312 = vmatpush1.bf16.msra.mxu0 0
  %2313 = vmatprep.subr.bf16.mxu0 0
  %2314 = vmatpush1.bf16.msra.mxu0 0
  %2315 = vmatprep.subr.bf16.mxu0 0
  %2316 = vmatpush1.bf16.msra.mxu0 0
  %2317 = vmatprep.subr.bf16.mxu0 0
  %2318 = vmatpush1.bf16.msra.mxu0 0
  %2319 = vmatprep.subr.bf16.mxu0 0
  %2320 = vmatpush1.bf16.msra.mxu0 0
  %2321 = vmatprep.subr.bf16.mxu0 0
  %2322 = vmatpush1.bf16.msra.mxu0 0
  %2323 = vmatprep.subr.bf16.mxu0 0
  %2324 = vmatpush1.bf16.msra.mxu0 0
  %2325 = vmatprep.subr.bf16.mxu0 0
  %2326 = vmatpush1.bf16.msra.mxu0 0
  %2327 = vmatprep.subr.bf16.mxu0 0
  %2328 = vmatpush1.bf16.msra.mxu0 0
  %2329 = vmatprep.subr.bf16.mxu0 0
  %2330 = vmatpush1.bf16.msra.mxu0 0
  %2331 = vmatprep.subr.bf16.mxu0 0
  %2332 = vmatpush1.bf16.msra.mxu0 0
  %2333 = vmatprep.subr.bf16.mxu0 0
  %2334 = vmatpush1.bf16.msra.mxu0 0
  %2335 = vmatprep.subr.bf16.mxu0 0
  %2336 = vmatpush1.bf16.msra.mxu0 0
  %2337 = vmatprep.subr.bf16.mxu0 0
  %2338 = vmatpush1.bf16.msra.mxu0 0
  %2339 = vmatprep.mubr.bf16.mxu0 0
  %2340 = vmatmul.mubr.bf16.gmra.mrb[0].mxu0 %v2293
  %v2341 = vpop.f32.mrb[0].mxu0
  %v2342 = vadd.f32 %v2265, %v2341
  %v2343 = vpop.f32.mrb[0].mxu0
  %v2344 = vadd.f32 %v2269, %v2343
  %v2345 = vpop.f32.mrb[0].mxu0
  %v2346 = vadd.f32 %v2265, %v2345
  %v2347 = vpop.f32.mrb[0].mxu0
  %v2348 = vadd.f32 %v2269, %v2347
  %2349 = vmatprep.mubr.bf16.mxu0 0
  %2350 = vmatmul.mubr.bf16.gmra.mrb[0].mxu0 %v2296
  %v2351 = vpop.f32.mrb[0].mxu0
  %v2352 = vadd.f32 %v2265, %v2351
  %v2353 = vpop.f32.mrb[0].mxu0
  %v2354 = vadd.f32 %v2269, %v2353
  %v2355 = vpop.f32.mrb[0].mxu0
  %v2356 = vadd.f32 %v2265, %v2355
  %v2357 = vpop.f32.mrb[0].mxu0
  %v2358 = vadd.f32 %v2269, %v2357
  %2359 = vmatprep.mubr.bf16.mxu0 0
  %2360 = vmatmul.mubr.bf16.gmra.mrb[0].mxu0 %v2299
  %v2361 = vpop.f32.mrb[0].mxu0
  %v2362 = vadd.f32 %v2265, %v2361
  %v2363 = vpop.f32.mrb[0].mxu0
  %v2364 = vadd.f32 %v2269, %v2363
  %v2365 = vpop.f32.mrb[0].mxu0
  %v2366 = vadd.f32 %v2265, %v2365
  %v2367 = vpop.f32.mrb[0].mxu0
  %v2368 = vadd.f32 %v2269, %v2367
  %2369 = vmatprep.mubr.bf16.mxu0 0
  %2370 = vmatmul.mubr.bf16.gmra.mrb[0].mxu0 %v2302
  %v2371 = vpop.f32.mrb[0].mxu0
  %v2372 = vadd.f32 %v2265, %v2371
  %v2373 = vpop.f32.mrb[0].mxu0
  %v2374 = vadd.f32 %v2269, %v2373
  %v2375 = vpop.f32.mrb[0].mxu0
  %v2376 = vadd.f32 %v2265, %v2375
  %v2377 = vpop.f32.mrb[0].mxu0
  %v2378 = vadd.f32 %v2269, %v2377
  %2379 = vmatprep.mubr.bf16.mxu0 0
  %2380 = vmatmul.mubr.bf16.gmra.mrb[0].mxu0 %v2305
  %v2381 = vpop.f32.mrb[0].mxu0
  %v2382 = vadd.f32 %v2265, %v2381
  %v2383 = vpop.f32.mrb[0].mxu0
  %v2384 = vadd.f32 %v2269, %v2383
  %v2385 = vpop.f32.mrb[0].mxu0
  %v2386 = vpop.f32.mrb[0].mxu0
  %2387 = vdwg.mxu0
  %v2388 = vld [vmem:[%s2 + $0x10] sm:$0xff]
  %v2389 = vld [vmem:[%s1 + $0x110] sm:$0xff]
  %v2390 = vld [vmem:[%s1 + $0x118] sm:$0xff]
  %v2391 = vld [vmem:[%s1 + $0x120] sm:$0xff]
  %v2392 = vld [vmem:[%s1 + $0x128] sm:$0xff]
  %v2393 = vld [vmem:[%s1 + $0x130] sm:$0xff]
  %v2394 = vld [vmem:[%s1 + $0x138] sm:$0xff]
  %v2395 = vld [vmem:[%s1 + $0x140] sm:$0xff]
  %v2396 = vld [vmem:[%s1 + $0x148] sm:$0xff]
  %v2397 = vsel %vm389, %v2342, %v2382
  %v2398 = vsel %vm390, %v2344, %v2384
  %v2399 = vpack.c.bf16 %v2388, %v2388
  %v2408 = vunpack.c.l.b16 %v2389
  %v2409 = vunpack.c.h.b16 %v2389
  %v2410 = vunpack.c.l.b16 %v2390
  %v2411 = vunpack.c.h.b16 %v2390
  %v2412 = vunpack.c.l.b16 %v2391
  %v2413 = vunpack.c.h.b16 %v2391
  %v2414 = vunpack.c.l.b16 %v2392
  %v2415 = vunpack.c.h.b16 %v2392
  %v2416 = vunpack.c.l.b16 %v2393
  %v2417 = vunpack.c.h.b16 %v2393
  %v2418 = vunpack.c.l.b16 %v2394
  %v2419 = vunpack.c.h.b16 %v2394
  %v2420 = vunpack.c.l.b16 %v2395
  %v2421 = vunpack.c.h.b16 %v2395
  %v2422 = vunpack.c.l.b16 %v2396
  %v2423 = vunpack.c.h.b16 %v2396
  %v2424 = vpack.c.b16 %v2410, %v2408
  %v2425 = vpack.c.b16 %v2411, %v2409
  %v2426 = vpack.c.b16 %v2414, %v2412
  %v2427 = vpack.c.b16 %v2415, %v2413
  %v2428 = vpack.c.b16 %v2418, %v2416
  %v2429 = vpack.c.b16 %v2419, %v2417
  %v2430 = vpack.c.b16 %v2422, %v2420
  %v2431 = vpack.c.b16 %v2423, %v2421
  %v2441 = vsel %vm434, %v2399, 0
  %2443 = vmatprep.subr.bf16.mxu0 %v2425
  %2444 = vmatpush1.bf16.msra.mxu0 %v2424
  %2445 = vmatprep.subr.bf16.mxu0 %v2427
  %2446 = vmatpush1.bf16.msra.mxu0 %v2426
  %2447 = vmatprep.subr.bf16.mxu0 %v2429
  %2448 = vmatpush1.bf16.msra.mxu0 %v2428
  %2449 = vmatprep.subr.bf16.mxu0 %v2431
  %2450 = vmatpush1.bf16.msra.mxu0 %v2430
  %2451 = vmatprep.subr.bf16.mxu0 0
  %2452 = vmatpush1.bf16.msra.mxu0 0
  %2453 = vmatprep.subr.bf16.mxu0 0
  %2454 = vmatpush1.bf16.msra.mxu0 0
  %2455 = vmatprep.subr.bf16.mxu0 0
  %2456 = vmatpush1.bf16.msra.mxu0 0
  %2457 = vmatprep.subr.bf16.mxu0 0
  %2458 = vmatpush1.bf16.msra.mxu0 0
  %2459 = vmatprep.subr.bf16.mxu0 0
  %2460 = vmatpush1.bf16.msra.mxu0 0
  %2461 = vmatprep.subr.bf16.mxu0 0
  %2462 = vmatpush1.bf16.msra.mxu0 0
  %2463 = vmatprep.subr.bf16.mxu0 0
  %2464 = vmatpush1.bf16.msra.mxu0 0
  %2465 = vmatprep.subr.bf16.mxu0 0
  %2466 = vmatpush1.bf16.msra.mxu0 0
  %2467 = vmatprep.subr.bf16.mxu0 0
  %2468 = vmatpush1.bf16.msra.mxu0 0
  %2469 = vmatprep.subr.bf16.mxu0 0
  %2470 = vmatpush1.bf16.msra.mxu0 0
  %2471 = vmatprep.subr.bf16.mxu0 0
  %2472 = vmatpush1.bf16.msra.mxu0 0
  %2473 = vmatprep.subr.bf16.mxu0 0
  %2474 = vmatpush1.bf16.msra.mxu0 0
  %2475 = vmatprep.mubr.bf16.mxu0 0
  %2476 = vmatmul.mubr.bf16.gmra.mrb[0].mxu0 %v2441
  %v2477 = vpop.f32.mrb[0].mxu0
  %v2478 = vadd.f32 0.0, %v2477
  %v2479 = vpop.f32.mrb[0].mxu0
  %v2480 = vadd.f32 0.0, %v2479
  %v2481 = vpop.f32.mrb[0].mxu0
  %v2482 = vpop.f32.mrb[0].mxu0
  %2483 = vdwg.mxu0
  %v2484 = vadd.f32 %v2397, %v2478
  %v2485 = vadd.f32 %v2398, %v2480
  %v2486 = vxor.u32 %v2484, 2147483648
  %v2487 = vxor.u32 %v2485, 2147483648
  %v2488 = vmul.f32 %v2486, 1.442695
  %v2489 = vpow.pop %v2488
  %v2490 = vmul.f32 %v2487, 1.442695
  %v2491 = vpow.pop %v2490
  %v2492 = vadd.f32 %v2489, 1.0
  %v2493 = vadd.f32 %v2491, 1.0
  %v2494 = vrcp.pop %v2492
  %v2495 = vmul.f32 1.0, %v2494
  %v2496 = vrcp.pop %v2493
  %v2497 = vmul.f32 1.0, %v2496
  %v2498 = vtanh.pop %v2485
  %v2499 = vmul.f32 %v2495, %v2388
  %2501 = vrot.lane.b32.xlu0 %v2498, 64
  %v2502 = vpop.permute.xlu0 %2501
  %v2504 = vmul.f32 %v2495, %v2502
  %2506 = vrot.lane.b32.xlu0 %v2504, 64
  %v2507 = vpop.permute.xlu0 %2506
  %v2509 = vadd.f32 %v2499, %v2507
  %v2510 = vtanh.pop %v2509
  %2512 = vrot.lane.b32.xlu0 %v2510, 64
  %v2513 = vpop.permute.xlu0 %2512
  %v2515 = vmul.f32 %v2497, %v2513
  %2516 = vst.msk [vmem:[#allocation2] sm:$0xff] %vm116, %v2515
  %2517 = vst.msk [vmem:[#allocation2 + $0x40] sm:$0xff] %vm512, %v2515
  %v2518 = vsel %vm389, %v2346, %v2376
  %v2519 = vsel %vm390, %v2348, %v2378
  %v2520 = vpack.c.bf16 %v2515, %v2515
  %v2522 = vsel %vm434, %v2520, 0
  %2524 = vmatprep.subr.bf16.mxu0 %v2425
  %2525 = vmatpush1.bf16.msra.mxu0 %v2424
  %2526 = vmatprep.subr.bf16.mxu0 %v2427
  %2527 = vmatpush1.bf16.msra.mxu0 %v2426
  %2528 = vmatprep.subr.bf16.mxu0 %v2429
  %2529 = vmatpush1.bf16.msra.mxu0 %v2428
  %2530 = vmatprep.subr.bf16.mxu0 %v2431
  %2531 = vmatpush1.bf16.msra.mxu0 %v2430
  %2532 = vmatprep.subr.bf16.mxu0 0
  %2533 = vmatpush1.bf16.msra.mxu0 0
  %2534 = vmatprep.subr.bf16.mxu0 0
  %2535 = vmatpush1.bf16.msra.mxu0 0
  %2536 = vmatprep.subr.bf16.mxu0 0
  %2537 = vmatpush1.bf16.msra.mxu0 0
  %2538 = vmatprep.subr.bf16.mxu0 0
  %2539 = vmatpush1.bf16.msra.mxu0 0
  %2540 = vmatprep.subr.bf16.mxu0 0
  %2541 = vmatpush1.bf16.msra.mxu0 0
  %2542 = vmatprep.subr.bf16.mxu0 0
  %2543 = vmatpush1.bf16.msra.mxu0 0
  %2544 = vmatprep.subr.bf16.mxu0 0
  %2545 = vmatpush1.bf16.msra.mxu0 0
  %2546 = vmatprep.subr.bf16.mxu0 0
  %2547 = vmatpush1.bf16.msra.mxu0 0
  %2548 = vmatprep.subr.bf16.mxu0 0
  %2549 = vmatpush1.bf16.msra.mxu0 0
  %2550 = vmatprep.subr.bf16.mxu0 0
  %2551 = vmatpush1.bf16.msra.mxu0 0
  %2552 = vmatprep.subr.bf16.mxu0 0
  %2553 = vmatpush1.bf16.msra.mxu0 0
  %2554 = vmatprep.subr.bf16.mxu0 0
  %2555 = vmatpush1.bf16.msra.mxu0 0
  %2556 = vmatprep.mubr.bf16.mxu0 0
  %2557 = vmatmul.mubr.bf16.gmra.mrb[0].mxu0 %v2522
  %v2558 = vpop.f32.mrb[0].mxu0
  %v2559 = vadd.f32 0.0, %v2558
  %v2560 = vpop.f32.mrb[0].mxu0
  %v2561 = vadd.f32 0.0, %v2560
  %v2562 = vpop.f32.mrb[0].mxu0
  %v2563 = vpop.f32.mrb[0].mxu0
  %2564 = vdwg.mxu0
  %v2565 = vadd.f32 %v2518, %v2559
  %v2566 = vadd.f32 %v2519, %v2561
  %v2567 = vxor.u32 %v2565, 2147483648
  %v2568 = vxor.u32 %v2566, 2147483648
  %v2569 = vmul.f32 %v2567, 1.442695
  %v2570 = vpow.pop %v2569
  %v2571 = vmul.f32 %v2568, 1.442695
  %v2572 = vpow.pop %v2571
  %v2573 = vadd.f32 %v2570, 1.0
  %v2574 = vadd.f32 %v2572, 1.0
  %v2575 = vrcp.pop %v2573
  %v2576 = vmul.f32 1.0, %v2575
  %v2577 = vrcp.pop %v2574
  %v2578 = vmul.f32 1.0, %v2577
  %v2579 = vtanh.pop %v2566
  %v2580 = vmul.f32 %v2576, %v2509
  %2582 = vrot.lane.b32.xlu0 %v2579, 64
  %v2583 = vpop.permute.xlu0 %2582
  %v2585 = vmul.f32 %v2576, %v2583
  %2587 = vrot.lane.b32.xlu0 %v2585, 64
  %v2588 = vpop.permute.xlu0 %2587
  %v2590 = vadd.f32 %v2580, %v2588
  %v2591 = vtanh.pop %v2590
  %2593 = vrot.lane.b32.xlu0 %v2591, 64
  %v2594 = vpop.permute.xlu0 %2593
  %v2596 = vmul.f32 %v2578, %v2594
  %2597 = vst.msk [vmem:[#allocation2 + $0x8] sm:$0xff] %vm116, %v2596
  %2598 = vst.msk [vmem:[#allocation2 + $0x38] sm:$0xff] %vm512, %v2596
  %v2599 = vsel %vm389, %v2352, %v2372
  %v2600 = vsel %vm390, %v2354, %v2374
  %v2601 = vpack.c.bf16 %v2596, %v2596
  %v2603 = vsel %vm434, %v2601, 0
  %2605 = vmatprep.subr.bf16.mxu0 %v2425
  %2606 = vmatpush1.bf16.msra.mxu0 %v2424
  %2607 = vmatprep.subr.bf16.mxu0 %v2427
  %2608 = vmatpush1.bf16.msra.mxu0 %v2426
  %2609 = vmatprep.subr.bf16.mxu0 %v2429
  %2610 = vmatpush1.bf16.msra.mxu0 %v2428
  %2611 = vmatprep.subr.bf16.mxu0 %v2431
  %2612 = vmatpush1.bf16.msra.mxu0 %v2430
  %2613 = vmatprep.subr.bf16.mxu0 0
  %2614 = vmatpush1.bf16.msra.mxu0 0
  %2615 = vmatprep.subr.bf16.mxu0 0
  %2616 = vmatpush1.bf16.msra.mxu0 0
  %2617 = vmatprep.subr.bf16.mxu0 0
  %2618 = vmatpush1.bf16.msra.mxu0 0
  %2619 = vmatprep.subr.bf16.mxu0 0
  %2620 = vmatpush1.bf16.msra.mxu0 0
  %2621 = vmatprep.subr.bf16.mxu0 0
  %2622 = vmatpush1.bf16.msra.mxu0 0
  %2623 = vmatprep.subr.bf16.mxu0 0
  %2624 = vmatpush1.bf16.msra.mxu0 0
  %2625 = vmatprep.subr.bf16.mxu0 0
  %2626 = vmatpush1.bf16.msra.mxu0 0
  %2627 = vmatprep.subr.bf16.mxu0 0
  %2628 = vmatpush1.bf16.msra.mxu0 0
  %2629 = vmatprep.subr.bf16.mxu0 0
  %2630 = vmatpush1.bf16.msra.mxu0 0
  %2631 = vmatprep.subr.bf16.mxu0 0
  %2632 = vmatpush1.bf16.msra.mxu0 0
  %2633 = vmatprep.subr.bf16.mxu0 0
  %2634 = vmatpush1.bf16.msra.mxu0 0
  %2635 = vmatprep.subr.bf16.mxu0 0
  %2636 = vmatpush1.bf16.msra.mxu0 0
  %2637 = vmatprep.mubr.bf16.mxu0 0
  %2638 = vmatmul.mubr.bf16.gmra.mrb[0].mxu0 %v2603
  %v2639 = vpop.f32.mrb[0].mxu0
  %v2640 = vadd.f32 0.0, %v2639
  %v2641 = vpop.f32.mrb[0].mxu0
  %v2642 = vadd.f32 0.0, %v2641
  %v2643 = vpop.f32.mrb[0].mxu0
  %v2644 = vpop.f32.mrb[0].mxu0
  %2645 = vdwg.mxu0
  %v2646 = vadd.f32 %v2599, %v2640
  %v2647 = vadd.f32 %v2600, %v2642
  %v2648 = vxor.u32 %v2646, 2147483648
  %v2649 = vxor.u32 %v2647, 2147483648
  %v2650 = vmul.f32 %v2648, 1.442695
  %v2651 = vpow.pop %v2650
  %v2652 = vmul.f32 %v2649, 1.442695
  %v2653 = vpow.pop %v2652
  %v2654 = vadd.f32 %v2651, 1.0
  %v2655 = vadd.f32 %v2653, 1.0
  %v2656 = vrcp.pop %v2654
  %v2657 = vmul.f32 1.0, %v2656
  %v2658 = vrcp.pop %v2655
  %v2659 = vmul.f32 1.0, %v2658
  %v2660 = vtanh.pop %v2647
  %v2661 = vmul.f32 %v2657, %v2590
  %2663 = vrot.lane.b32.xlu0 %v2660, 64
  %v2664 = vpop.permute.xlu0 %2663
  %v2666 = vmul.f32 %v2657, %v2664
  %2668 = vrot.lane.b32.xlu0 %v2666, 64
  %v2669 = vpop.permute.xlu0 %2668
  %v2671 = vadd.f32 %v2661, %v2669
  %v2672 = vtanh.pop %v2671
  %2674 = vrot.lane.b32.xlu0 %v2672, 64
  %v2675 = vpop.permute.xlu0 %2674
  %v2677 = vmul.f32 %v2659, %v2675
  %2678 = vst.msk [vmem:[#allocation2 + $0x10] sm:$0xff] %vm116, %v2677
  %2679 = vst.msk [vmem:[#allocation2 + $0x30] sm:$0xff] %vm512, %v2677
  %v2680 = vsel %vm389, %v2356, %v2366
  %v2681 = vsel %vm390, %v2358, %v2368
  %v2682 = vpack.c.bf16 %v2677, %v2677
  %v2684 = vsel %vm434, %v2682, 0
  %2686 = vmatprep.subr.bf16.mxu0 %v2425
  %2687 = vmatpush1.bf16.msra.mxu0 %v2424
  %2688 = vmatprep.subr.bf16.mxu0 %v2427
  %2689 = vmatpush1.bf16.msra.mxu0 %v2426
  %2690 = vmatprep.subr.bf16.mxu0 %v2429
  %2691 = vmatpush1.bf16.msra.mxu0 %v2428
  %2692 = vmatprep.subr.bf16.mxu0 %v2431
  %2693 = vmatpush1.bf16.msra.mxu0 %v2430
  %2694 = vmatprep.subr.bf16.mxu0 0
  %2695 = vmatpush1.bf16.msra.mxu0 0
  %2696 = vmatprep.subr.bf16.mxu0 0
  %2697 = vmatpush1.bf16.msra.mxu0 0
  %2698 = vmatprep.subr.bf16.mxu0 0
  %2699 = vmatpush1.bf16.msra.mxu0 0
  %2700 = vmatprep.subr.bf16.mxu0 0
  %2701 = vmatpush1.bf16.msra.mxu0 0
  %2702 = vmatprep.subr.bf16.mxu0 0
  %2703 = vmatpush1.bf16.msra.mxu0 0
  %2704 = vmatprep.subr.bf16.mxu0 0
  %2705 = vmatpush1.bf16.msra.mxu0 0
  %2706 = vmatprep.subr.bf16.mxu0 0
  %2707 = vmatpush1.bf16.msra.mxu0 0
  %2708 = vmatprep.subr.bf16.mxu0 0
  %2709 = vmatpush1.bf16.msra.mxu0 0
  %2710 = vmatprep.subr.bf16.mxu0 0
  %2711 = vmatpush1.bf16.msra.mxu0 0
  %2712 = vmatprep.subr.bf16.mxu0 0
  %2713 = vmatpush1.bf16.msra.mxu0 0
  %2714 = vmatprep.subr.bf16.mxu0 0
  %2715 = vmatpush1.bf16.msra.mxu0 0
  %2716 = vmatprep.subr.bf16.mxu0 0
  %2717 = vmatpush1.bf16.msra.mxu0 0
  %2718 = vmatprep.mubr.bf16.mxu0 0
  %2719 = vmatmul.mubr.bf16.gmra.mrb[0].mxu0 %v2684
  %v2720 = vpop.f32.mrb[0].mxu0
  %v2721 = vadd.f32 0.0, %v2720
  %v2722 = vpop.f32.mrb[0].mxu0
  %v2723 = vadd.f32 0.0, %v2722
  %v2724 = vpop.f32.mrb[0].mxu0
  %v2725 = vpop.f32.mrb[0].mxu0
  %2726 = vdwg.mxu0
  %v2727 = vadd.f32 %v2680, %v2721
  %v2728 = vadd.f32 %v2681, %v2723
  %v2729 = vxor.u32 %v2727, 2147483648
  %v2730 = vxor.u32 %v2728, 2147483648
  %v2731 = vmul.f32 %v2729, 1.442695
  %v2732 = vpow.pop %v2731
  %v2733 = vmul.f32 %v2730, 1.442695
  %v2734 = vpow.pop %v2733
  %v2735 = vadd.f32 %v2732, 1.0
  %v2736 = vadd.f32 %v2734, 1.0
  %v2737 = vrcp.pop %v2735
  %v2738 = vmul.f32 1.0, %v2737
  %v2739 = vrcp.pop %v2736
  %v2740 = vmul.f32 1.0, %v2739
  %v2741 = vtanh.pop %v2728
  %v2742 = vmul.f32 %v2738, %v2671
  %2744 = vrot.lane.b32.xlu0 %v2741, 64
  %v2745 = vpop.permute.xlu0 %2744
  %v2747 = vmul.f32 %v2738, %v2745
  %2749 = vrot.lane.b32.xlu0 %v2747, 64
  %v2750 = vpop.permute.xlu0 %2749
  %v2752 = vadd.f32 %v2742, %v2750
  %v2753 = vtanh.pop %v2752
  %2755 = vrot.lane.b32.xlu0 %v2753, 64
  %v2756 = vpop.permute.xlu0 %2755
  %v2758 = vmul.f32 %v2740, %v2756
  %2759 = vst.msk [vmem:[#allocation2 + $0x18] sm:$0xff] %vm116, %v2758
  %2760 = vst.msk [vmem:[#allocation2 + $0x28] sm:$0xff] %vm512, %v2758
  %v2761 = vpack.c.bf16 %v2758, %v2758
  %v2763 = vsel %vm434, %v2761, 0
  %2765 = vmatprep.subr.bf16.mxu0 %v2425
  %2766 = vmatpush1.bf16.msra.mxu0 %v2424
  %2767 = vmatprep.subr.bf16.mxu0 %v2427
  %2768 = vmatpush1.bf16.msra.mxu0 %v2426
  %2769 = vmatprep.subr.bf16.mxu0 %v2429
  %2770 = vmatpush1.bf16.msra.mxu0 %v2428
  %2771 = vmatprep.subr.bf16.mxu0 %v2431
  %2772 = vmatpush1.bf16.msra.mxu0 %v2430
  %2773 = vmatprep.subr.bf16.mxu0 0
  %2774 = vmatpush1.bf16.msra.mxu0 0
  %2775 = vmatprep.subr.bf16.mxu0 0
  %2776 = vmatpush1.bf16.msra.mxu0 0
  %2777 = vmatprep.subr.bf16.mxu0 0
  %2778 = vmatpush1.bf16.msra.mxu0 0
  %2779 = vmatprep.subr.bf16.mxu0 0
  %2780 = vmatpush1.bf16.msra.mxu0 0
  %2781 = vmatprep.subr.bf16.mxu0 0
  %2782 = vmatpush1.bf16.msra.mxu0 0
  %2783 = vmatprep.subr.bf16.mxu0 0
  %2784 = vmatpush1.bf16.msra.mxu0 0
  %2785 = vmatprep.subr.bf16.mxu0 0
  %2786 = vmatpush1.bf16.msra.mxu0 0
  %2787 = vmatprep.subr.bf16.mxu0 0
  %2788 = vmatpush1.bf16.msra.mxu0 0
  %2789 = vmatprep.subr.bf16.mxu0 0
  %2790 = vmatpush1.bf16.msra.mxu0 0
  %2791 = vmatprep.subr.bf16.mxu0 0
  %2792 = vmatpush1.bf16.msra.mxu0 0
  %2793 = vmatprep.subr.bf16.mxu0 0
  %2794 = vmatpush1.bf16.msra.mxu0 0
  %2795 = vmatprep.subr.bf16.mxu0 0
  %2796 = vmatpush1.bf16.msra.mxu0 0
  %2797 = vmatprep.mubr.bf16.mxu0 0
  %2798 = vmatmul.mubr.bf16.gmra.mrb[0].mxu0 %v2763
  %v2799 = vpop.f32.mrb[0].mxu0
  %v2800 = vadd.f32 0.0, %v2799
  %v2801 = vpop.f32.mrb[0].mxu0
  %v2802 = vadd.f32 0.0, %v2801
  %v2803 = vpop.f32.mrb[0].mxu0
  %v2804 = vpop.f32.mrb[0].mxu0
  %2805 = vdwg.mxu0
  %v2806 = vadd.f32 %v2362, %v2800
  %v2807 = vadd.f32 %v2364, %v2802
  %v2808 = vxor.u32 %v2806, 2147483648
  %v2809 = vxor.u32 %v2807, 2147483648
  %v2810 = vmul.f32 %v2808, 1.442695
  %v2811 = vpow.pop %v2810
  %v2812 = vmul.f32 %v2809, 1.442695
  %v2813 = vpow.pop %v2812
  %v2814 = vadd.f32 %v2811, 1.0
  %v2815 = vadd.f32 %v2813, 1.0
  %v2816 = vrcp.pop %v2814
  %v2817 = vmul.f32 1.0, %v2816
  %v2818 = vrcp.pop %v2815
  %v2819 = vmul.f32 1.0, %v2818
  %v2820 = vtanh.pop %v2807
  %v2821 = vmul.f32 %v2817, %v2752
  %2823 = vrot.lane.b32.xlu0 %v2820, 64
  %v2824 = vpop.permute.xlu0 %2823
  %v2826 = vmul.f32 %v2817, %v2824
  %2828 = vrot.lane.b32.xlu0 %v2826, 64
  %v2829 = vpop.permute.xlu0 %2828
  %v2831 = vadd.f32 %v2821, %v2829
  %v2832 = vtanh.pop %v2831
  %2834 = vrot.lane.b32.xlu0 %v2832, 64
  %v2835 = vpop.permute.xlu0 %2834
  %v2837 = vmul.f32 %v2819, %v2835
  %2838 = vst.msk [vmem:[#allocation2 + $0x20] sm:$0xff] %vm116, %v2837
  %2839 = vst.msk [vmem:[#allocation2 + $0x20] sm:$0xff] %vm512, %v2837
  %v2840 = vsel %vm389, %v2366, %v2356
  %v2841 = vsel %vm390, %v2368, %v2358
  %v2842 = vpack.c.bf16 %v2837, %v2837
  %v2844 = vsel %vm434, %v2842, 0
  %2846 = vmatprep.subr.bf16.mxu0 %v2425
  %2847 = vmatpush1.bf16.msra.mxu0 %v2424
  %2848 = vmatprep.subr.bf16.mxu0 %v2427
  %2849 = vmatpush1.bf16.msra.mxu0 %v2426
  %2850 = vmatprep.subr.bf16.mxu0 %v2429
  %2851 = vmatpush1.bf16.msra.mxu0 %v2428
  %2852 = vmatprep.subr.bf16.mxu0 %v2431
  %2853 = vmatpush1.bf16.msra.mxu0 %v2430
  %2854 = vmatprep.subr.bf16.mxu0 0
  %2855 = vmatpush1.bf16.msra.mxu0 0
  %2856 = vmatprep.subr.bf16.mxu0 0
  %2857 = vmatpush1.bf16.msra.mxu0 0
  %2858 = vmatprep.subr.bf16.mxu0 0
  %2859 = vmatpush1.bf16.msra.mxu0 0
  %2860 = vmatprep.subr.bf16.mxu0 0
  %2861 = vmatpush1.bf16.msra.mxu0 0
  %2862 = vmatprep.subr.bf16.mxu0 0
  %2863 = vmatpush1.bf16.msra.mxu0 0
  %2864 = vmatprep.subr.bf16.mxu0 0
  %2865 = vmatpush1.bf16.msra.mxu0 0
  %2866 = vmatprep.subr.bf16.mxu0 0
  %2867 = vmatpush1.bf16.msra.mxu0 0
  %2868 = vmatprep.subr.bf16.mxu0 0
  %2869 = vmatpush1.bf16.msra.mxu0 0
  %2870 = vmatprep.subr.bf16.mxu0 0
  %2871 = vmatpush1.bf16.msra.mxu0 0
  %2872 = vmatprep.subr.bf16.mxu0 0
  %2873 = vmatpush1.bf16.msra.mxu0 0
  %2874 = vmatprep.subr.bf16.mxu0 0
  %2875 = vmatpush1.bf16.msra.mxu0 0
  %2876 = vmatprep.subr.bf16.mxu0 0
  %2877 = vmatpush1.bf16.msra.mxu0 0
  %2878 = vmatprep.mubr.bf16.mxu0 0
  %2879 = vmatmul.mubr.bf16.gmra.mrb[0].mxu0 %v2844
  %v2880 = vpop.f32.mrb[0].mxu0
  %v2881 = vadd.f32 0.0, %v2880
  %v2882 = vpop.f32.mrb[0].mxu0
  %v2883 = vadd.f32 0.0, %v2882
  %v2884 = vpop.f32.mrb[0].mxu0
  %v2885 = vpop.f32.mrb[0].mxu0
  %2886 = vdwg.mxu0
  %v2887 = vadd.f32 %v2840, %v2881
  %v2888 = vadd.f32 %v2841, %v2883
  %v2889 = vxor.u32 %v2887, 2147483648
  %v2890 = vxor.u32 %v2888, 2147483648
  %v2891 = vmul.f32 %v2889, 1.442695
  %v2892 = vpow.pop %v2891
  %v2893 = vmul.f32 %v2890, 1.442695
  %v2894 = vpow.pop %v2893
  %v2895 = vadd.f32 %v2892, 1.0
  %v2896 = vadd.f32 %v2894, 1.0
  %v2897 = vrcp.pop %v2895
  %v2898 = vmul.f32 1.0, %v2897
  %v2899 = vrcp.pop %v2896
  %v2900 = vmul.f32 1.0, %v2899
  %v2901 = vtanh.pop %v2888
  %v2902 = vmul.f32 %v2898, %v2831
  %2904 = vrot.lane.b32.xlu0 %v2901, 64
  %v2905 = vpop.permute.xlu0 %2904
  %v2907 = vmul.f32 %v2898, %v2905
  %2909 = vrot.lane.b32.xlu0 %v2907, 64
  %v2910 = vpop.permute.xlu0 %2909
  %v2912 = vadd.f32 %v2902, %v2910
  %v2913 = vtanh.pop %v2912
  %2915 = vrot.lane.b32.xlu0 %v2913, 64
  %v2916 = vpop.permute.xlu0 %2915
  %v2918 = vmul.f32 %v2900, %v2916
  %2919 = vst.msk [vmem:[#allocation2 + $0x28] sm:$0xff] %vm116, %v2918
  %2920 = vst.msk [vmem:[#allocation2 + $0x18] sm:$0xff] %vm512, %v2918
  %v2921 = vsel %vm389, %v2372, %v2352
  %v2922 = vsel %vm390, %v2374, %v2354
  %v2923 = vpack.c.bf16 %v2918, %v2918
  %v2925 = vsel %vm434, %v2923, 0
  %2927 = vmatprep.subr.bf16.mxu0 %v2425
  %2928 = vmatpush1.bf16.msra.mxu0 %v2424
  %2929 = vmatprep.subr.bf16.mxu0 %v2427
  %2930 = vmatpush1.bf16.msra.mxu0 %v2426
  %2931 = vmatprep.subr.bf16.mxu0 %v2429
  %2932 = vmatpush1.bf16.msra.mxu0 %v2428
  %2933 = vmatprep.subr.bf16.mxu0 %v2431
  %2934 = vmatpush1.bf16.msra.mxu0 %v2430
  %2935 = vmatprep.subr.bf16.mxu0 0
  %2936 = vmatpush1.bf16.msra.mxu0 0
  %2937 = vmatprep.subr.bf16.mxu0 0
  %2938 = vmatpush1.bf16.msra.mxu0 0
  %2939 = vmatprep.subr.bf16.mxu0 0
  %2940 = vmatpush1.bf16.msra.mxu0 0
  %2941 = vmatprep.subr.bf16.mxu0 0
  %2942 = vmatpush1.bf16.msra.mxu0 0
  %2943 = vmatprep.subr.bf16.mxu0 0
  %2944 = vmatpush1.bf16.msra.mxu0 0
  %2945 = vmatprep.subr.bf16.mxu0 0
  %2946 = vmatpush1.bf16.msra.mxu0 0
  %2947 = vmatprep.subr.bf16.mxu0 0
  %2948 = vmatpush1.bf16.msra.mxu0 0
  %2949 = vmatprep.subr.bf16.mxu0 0
  %2950 = vmatpush1.bf16.msra.mxu0 0
  %2951 = vmatprep.subr.bf16.mxu0 0
  %2952 = vmatpush1.bf16.msra.mxu0 0
  %2953 = vmatprep.subr.bf16.mxu0 0
  %2954 = vmatpush1.bf16.msra.mxu0 0
  %2955 = vmatprep.subr.bf16.mxu0 0
  %2956 = vmatpush1.bf16.msra.mxu0 0
  %2957 = vmatprep.subr.bf16.mxu0 0
  %2958 = vmatpush1.bf16.msra.mxu0 0
  %2959 = vmatprep.mubr.bf16.mxu0 0
  %2960 = vmatmul.mubr.bf16.gmra.mrb[0].mxu0 %v2925
  %v2961 = vpop.f32.mrb[0].mxu0
  %v2962 = vadd.f32 0.0, %v2961
  %v2963 = vpop.f32.mrb[0].mxu0
  %v2964 = vadd.f32 0.0, %v2963
  %v2965 = vpop.f32.mrb[0].mxu0
  %v2966 = vpop.f32.mrb[0].mxu0
  %2967 = vdwg.mxu0
  %v2968 = vadd.f32 %v2921, %v2962
  %v2969 = vadd.f32 %v2922, %v2964
  %v2970 = vxor.u32 %v2968, 2147483648
  %v2971 = vxor.u32 %v2969, 2147483648
  %v2972 = vmul.f32 %v2970, 1.442695
  %v2973 = vpow.pop %v2972
  %v2974 = vmul.f32 %v2971, 1.442695
  %v2975 = vpow.pop %v2974
  %v2976 = vadd.f32 %v2973, 1.0
  %v2977 = vadd.f32 %v2975, 1.0
  %v2978 = vrcp.pop %v2976
  %v2979 = vmul.f32 1.0, %v2978
  %v2980 = vrcp.pop %v2977
  %v2981 = vmul.f32 1.0, %v2980
  %v2982 = vtanh.pop %v2969
  %v2983 = vmul.f32 %v2979, %v2912
  %2985 = vrot.lane.b32.xlu0 %v2982, 64
  %v2986 = vpop.permute.xlu0 %2985
  %v2988 = vmul.f32 %v2979, %v2986
  %2990 = vrot.lane.b32.xlu0 %v2988, 64
  %v2991 = vpop.permute.xlu0 %2990
  %v2993 = vadd.f32 %v2983, %v2991
  %v2994 = vtanh.pop %v2993
  %2996 = vrot.lane.b32.xlu0 %v2994, 64
  %v2997 = vpop.permute.xlu0 %2996
  %v2999 = vmul.f32 %v2981, %v2997
  %3000 = vst.msk [vmem:[#allocation2 + $0x30] sm:$0xff] %vm116, %v2999
  %3001 = vst.msk [vmem:[#allocation2 + $0x10] sm:$0xff] %vm512, %v2999
  %v3002 = vsel %vm389, %v2376, %v2346
  %v3003 = vsel %vm390, %v2378, %v2348
  %v3004 = vpack.c.bf16 %v2999, %v2999
  %v3006 = vsel %vm434, %v3004, 0
  %3008 = vmatprep.subr.bf16.mxu0 %v2425
  %3009 = vmatpush1.bf16.msra.mxu0 %v2424
  %3010 = vmatprep.subr.bf16.mxu0 %v2427
  %3011 = vmatpush1.bf16.msra.mxu0 %v2426
  %3012 = vmatprep.subr.bf16.mxu0 %v2429
  %3013 = vmatpush1.bf16.msra.mxu0 %v2428
  %3014 = vmatprep.subr.bf16.mxu0 %v2431
  %3015 = vmatpush1.bf16.msra.mxu0 %v2430
  %3016 = vmatprep.subr.bf16.mxu0 0
  %3017 = vmatpush1.bf16.msra.mxu0 0
  %3018 = vmatprep.subr.bf16.mxu0 0
  %3019 = vmatpush1.bf16.msra.mxu0 0
  %3020 = vmatprep.subr.bf16.mxu0 0
  %3021 = vmatpush1.bf16.msra.mxu0 0
  %3022 = vmatprep.subr.bf16.mxu0 0
  %3023 = vmatpush1.bf16.msra.mxu0 0
  %3024 = vmatprep.subr.bf16.mxu0 0
  %3025 = vmatpush1.bf16.msra.mxu0 0
  %3026 = vmatprep.subr.bf16.mxu0 0
  %3027 = vmatpush1.bf16.msra.mxu0 0
  %3028 = vmatprep.subr.bf16.mxu0 0
  %3029 = vmatpush1.bf16.msra.mxu0 0
  %3030 = vmatprep.subr.bf16.mxu0 0
  %3031 = vmatpush1.bf16.msra.mxu0 0
  %3032 = vmatprep.subr.bf16.mxu0 0
  %3033 = vmatpush1.bf16.msra.mxu0 0
  %3034 = vmatprep.subr.bf16.mxu0 0
  %3035 = vmatpush1.bf16.msra.mxu0 0
  %3036 = vmatprep.subr.bf16.mxu0 0
  %3037 = vmatpush1.bf16.msra.mxu0 0
  %3038 = vmatprep.subr.bf16.mxu0 0
  %3039 = vmatpush1.bf16.msra.mxu0 0
  %3040 = vmatprep.mubr.bf16.mxu0 0
  %3041 = vmatmul.mubr.bf16.gmra.mrb[0].mxu0 %v3006
  %v3042 = vpop.f32.mrb[0].mxu0
  %v3043 = vadd.f32 0.0, %v3042
  %v3044 = vpop.f32.mrb[0].mxu0
  %v3045 = vadd.f32 0.0, %v3044
  %v3046 = vpop.f32.mrb[0].mxu0
  %v3047 = vpop.f32.mrb[0].mxu0
  %3048 = vdwg.mxu0
  %v3049 = vadd.f32 %v3002, %v3043
  %v3050 = vadd.f32 %v3003, %v3045
  %v3051 = vxor.u32 %v3049, 2147483648
  %v3052 = vxor.u32 %v3050, 2147483648
  %v3053 = vmul.f32 %v3051, 1.442695
  %v3054 = vpow.pop %v3053
  %v3055 = vmul.f32 %v3052, 1.442695
  %v3056 = vpow.pop %v3055
  %v3057 = vadd.f32 %v3054, 1.0
  %v3058 = vadd.f32 %v3056, 1.0
  %v3059 = vrcp.pop %v3057
  %v3060 = vmul.f32 1.0, %v3059
  %v3061 = vrcp.pop %v3058
  %v3062 = vmul.f32 1.0, %v3061
  %v3063 = vtanh.pop %v3050
  %v3064 = vmul.f32 %v3060, %v2993
  %3066 = vrot.lane.b32.xlu0 %v3063, 64
  %v3067 = vpop.permute.xlu0 %3066
  %v3069 = vmul.f32 %v3060, %v3067
  %3071 = vrot.lane.b32.xlu0 %v3069, 64
  %v3072 = vpop.permute.xlu0 %3071
  %v3074 = vadd.f32 %v3064, %v3072
  %v3075 = vtanh.pop %v3074
  %3077 = vrot.lane.b32.xlu0 %v3075, 64
  %v3078 = vpop.permute.xlu0 %3077
  %v3080 = vmul.f32 %v3062, %v3078
  %3081 = vst.msk [vmem:[#allocation2 + $0x38] sm:$0xff] %vm116, %v3080
  %3082 = vst.msk [vmem:[#allocation2 + $0x8] sm:$0xff] %vm512, %v3080
  %v3083 = vsel %vm389, %v2382, %v2342
  %v3084 = vsel %vm390, %v2384, %v2344
  %v3085 = vpack.c.bf16 %v3080, %v3080
  %v3087 = vsel %vm434, %v3085, 0
  %3089 = vmatprep.subr.bf16.mxu0 %v2425
  %3090 = vmatpush1.bf16.msra.mxu0 %v2424
  %3091 = vmatprep.subr.bf16.mxu0 %v2427
  %3092 = vmatpush1.bf16.msra.mxu0 %v2426
  %3093 = vmatprep.subr.bf16.mxu0 %v2429
  %3094 = vmatpush1.bf16.msra.mxu0 %v2428
  %3095 = vmatprep.subr.bf16.mxu0 %v2431
  %3096 = vmatpush1.bf16.msra.mxu0 %v2430
  %3097 = vmatprep.subr.bf16.mxu0 0
  %3098 = vmatpush1.bf16.msra.mxu0 0
  %3099 = vmatprep.subr.bf16.mxu0 0
  %3100 = vmatpush1.bf16.msra.mxu0 0
  %3101 = vmatprep.subr.bf16.mxu0 0
  %3102 = vmatpush1.bf16.msra.mxu0 0
  %3103 = vmatprep.subr.bf16.mxu0 0
  %3104 = vmatpush1.bf16.msra.mxu0 0
  %3105 = vmatprep.subr.bf16.mxu0 0
  %3106 = vmatpush1.bf16.msra.mxu0 0
  %3107 = vmatprep.subr.bf16.mxu0 0
  %3108 = vmatpush1.bf16.msra.mxu0 0
  %3109 = vmatprep.subr.bf16.mxu0 0
  %3110 = vmatpush1.bf16.msra.mxu0 0
  %3111 = vmatprep.subr.bf16.mxu0 0
  %3112 = vmatpush1.bf16.msra.mxu0 0
  %3113 = vmatprep.subr.bf16.mxu0 0
  %3114 = vmatpush1.bf16.msra.mxu0 0
  %3115 = vmatprep.subr.bf16.mxu0 0
  %3116 = vmatpush1.bf16.msra.mxu0 0
  %3117 = vmatprep.subr.bf16.mxu0 0
  %3118 = vmatpush1.bf16.msra.mxu0 0
  %3119 = vmatprep.subr.bf16.mxu0 0
  %3120 = vmatpush1.bf16.msra.mxu0 0
  %3121 = vmatprep.mubr.bf16.mxu0 0
  %3122 = vmatmul.mubr.bf16.gmra.mrb[0].mxu0 %v3087
  %v3123 = vpop.f32.mrb[0].mxu0
  %v3124 = vadd.f32 0.0, %v3123
  %v3125 = vpop.f32.mrb[0].mxu0
  %v3126 = vadd.f32 0.0, %v3125
  %v3127 = vpop.f32.mrb[0].mxu0
  %v3128 = vpop.f32.mrb[0].mxu0
  %3129 = vdwg.mxu0
  %v3130 = vadd.f32 %v3083, %v3124
  %v3131 = vadd.f32 %v3084, %v3126
  %v3132 = vxor.u32 %v3130, 2147483648
  %v3133 = vxor.u32 %v3131, 2147483648
  %v3134 = vmul.f32 %v3132, 1.442695
  %v3135 = vpow.pop %v3134
  %v3136 = vmul.f32 %v3133, 1.442695
  %v3137 = vpow.pop %v3136
  %v3138 = vadd.f32 %v3135, 1.0
  %v3139 = vadd.f32 %v3137, 1.0
  %v3140 = vrcp.pop %v3138
  %v3141 = vmul.f32 1.0, %v3140
  %v3142 = vrcp.pop %v3139
  %v3143 = vmul.f32 1.0, %v3142
  %v3144 = vtanh.pop %v3131
  %v3145 = vmul.f32 %v3141, %v3074
  %3147 = vrot.lane.b32.xlu0 %v3144, 64
  %v3148 = vpop.permute.xlu0 %3147
  %v3150 = vmul.f32 %v3141, %v3148
  %3152 = vrot.lane.b32.xlu0 %v3150, 64
  %v3153 = vpop.permute.xlu0 %3152
  %v3155 = vadd.f32 %v3145, %v3153
  %v3156 = vtanh.pop %v3155
  %3158 = vrot.lane.b32.xlu0 %v3156, 64
  %v3159 = vpop.permute.xlu0 %3158
  %v3161 = vmul.f32 %v3143, %v3159
  %3162 = vst.msk [vmem:[#allocation2 + $0x40] sm:$0xff] %vm116, %v3161
  %3163 = vst.msk [vmem:[#allocation2] sm:$0xff] %vm512, %v3161
  %v3164 = vld [vmem:[#allocation2] sm:$0xff]
  %v3165 = vld [vmem:[#allocation2 + $0x8] sm:$0xff]
  %v3166 = vld [vmem:[#allocation2 + $0x10] sm:$0xff]
  %v3167 = vld [vmem:[#allocation2 + $0x18] sm:$0xff]
  %v3168 = vld [vmem:[#allocation2 + $0x20] sm:$0xff]
  %v3169 = vld [vmem:[#allocation2 + $0x28] sm:$0xff]
  %v3170 = vld [vmem:[#allocation2 + $0x30] sm:$0xff]
  %v3171 = vld [vmem:[#allocation2 + $0x38] sm:$0xff]
  %v3172 = vld [vmem:[#allocation2 + $0x40] sm:$0xff]
  %v3173 = vpack.c.bf16 %v3165, %v3164
  %v3174 = vpack.c.bf16 %v3167, %v3166
  %v3175 = vpack.c.bf16 %v3169, %v3168
  %v3176 = vpack.c.bf16 %v3171, %v3170
  %v3177 = vpack.c.bf16 %v3172, %v3172
  %v3178 = vld [vmem:[%s1 + $0x150] sm:$0xff]
  %v3179 = vld [vmem:[%s1 + $0x158] sm:$0xff]
  %v3180 = vld [vmem:[%s1 + $0x160] sm:$0xff]
  %v3181 = vld [vmem:[%s1 + $0x168] sm:$0xff]
  %v3182 = vld [vmem:[%s1 + $0x170] sm:$0xff]
  %v3183 = vld [vmem:[%s1 + $0x178] sm:$0xff]
  %v3184 = vld [vmem:[%s1 + $0x180] sm:$0xff]
  %v3185 = vld [vmem:[%s1 + $0x188] sm:$0xff]
  %s3186 = scalar_lea.vmem %s2, 35
  %v3187 = vld [vmem:[%s3186] ss:$8 sm:$0x3]
  %v3189 = vlaneseq
  %v3190 = vshrl.u32 %v3189, 7
  %v3191 = vsub.s32 0, %v3190
  %v3192 = vrot.slane %v3187, %v3191
  %v3193 = vlaneseq
  %v3194 = vshrl.u32 %v3193, 7
  %v3195 = vsub.s32 1, %v3194
  %v3196 = vrot.slane %v3187, %v3195
  %v3207 = vunpack.c.l.b16 %v3178
  %v3208 = vunpack.c.h.b16 %v3178
  %v3209 = vunpack.c.l.b16 %v3179
  %v3210 = vunpack.c.h.b16 %v3179
  %v3211 = vunpack.c.l.b16 %v3180
  %v3212 = vunpack.c.h.b16 %v3180
  %v3213 = vunpack.c.l.b16 %v3181
  %v3214 = vunpack.c.h.b16 %v3181
  %v3215 = vunpack.c.l.b16 %v3182
  %v3216 = vunpack.c.h.b16 %v3182
  %v3217 = vunpack.c.l.b16 %v3183
  %v3218 = vunpack.c.h.b16 %v3183
  %v3219 = vunpack.c.l.b16 %v3184
  %v3220 = vunpack.c.h.b16 %v3184
  %v3221 = vunpack.c.l.b16 %v3185
  %v3222 = vunpack.c.h.b16 %v3185
  %v3223 = vpack.c.b16 %v3209, %v3207
  %v3224 = vpack.c.b16 %v3210, %v3208
  %v3225 = vpack.c.b16 %v3213, %v3211
  %v3226 = vpack.c.b16 %v3214, %v3212
  %v3227 = vpack.c.b16 %v3217, %v3215
  %v3228 = vpack.c.b16 %v3218, %v3216
  %v3229 = vpack.c.b16 %v3221, %v3219
  %v3230 = vpack.c.b16 %v3222, %v3220
  %v3240 = vsel %vm434, %v3173, 0
  %v3243 = vsel %vm434, %v3174, 0
  %v3246 = vsel %vm434, %v3175, 0
  %v3249 = vsel %vm434, %v3176, 0
  %v3252 = vsel %vm434, %v3177, 0
  %3254 = vmatprep.subr.bf16.mxu0 %v3224
  %3255 = vmatpush1.bf16.msra.mxu0 %v3223
  %3256 = vmatprep.subr.bf16.mxu0 %v3226
  %3257 = vmatpush1.bf16.msra.mxu0 %v3225
  %3258 = vmatprep.subr.bf16.mxu0 %v3228
  %3259 = vmatpush1.bf16.msra.mxu0 %v3227
  %3260 = vmatprep.subr.bf16.mxu0 %v3230
  %3261 = vmatpush1.bf16.msra.mxu0 %v3229
  %3262 = vmatprep.subr.bf16.mxu0 0
  %3263 = vmatpush1.bf16.msra.mxu0 0
  %3264 = vmatprep.subr.bf16.mxu0 0
  %3265 = vmatpush1.bf16.msra.mxu0 0
  %3266 = vmatprep.subr.bf16.mxu0 0
  %3267 = vmatpush1.bf16.msra.mxu0 0
  %3268 = vmatprep.subr.bf16.mxu0 0
  %3269 = vmatpush1.bf16.msra.mxu0 0
  %3270 = vmatprep.subr.bf16.mxu0 0
  %3271 = vmatpush1.bf16.msra.mxu0 0
  %3272 = vmatprep.subr.bf16.mxu0 0
  %3273 = vmatpush1.bf16.msra.mxu0 0
  %3274 = vmatprep.subr.bf16.mxu0 0
  %3275 = vmatpush1.bf16.msra.mxu0 0
  %3276 = vmatprep.subr.bf16.mxu0 0
  %3277 = vmatpush1.bf16.msra.mxu0 0
  %3278 = vmatprep.subr.bf16.mxu0 0
  %3279 = vmatpush1.bf16.msra.mxu0 0
  %3280 = vmatprep.subr.bf16.mxu0 0
  %3281 = vmatpush1.bf16.msra.mxu0 0
  %3282 = vmatprep.subr.bf16.mxu0 0
  %3283 = vmatpush1.bf16.msra.mxu0 0
  %3284 = vmatprep.subr.bf16.mxu0 0
  %3285 = vmatpush1.bf16.msra.mxu0 0
  %3286 = vmatprep.mubr.bf16.mxu0 0
  %3287 = vmatmul.mubr.bf16.gmra.mrb[0].mxu0 %v3240
  %v3288 = vpop.f32.mrb[0].mxu0
  %v3289 = vadd.f32 %v3192, %v3288
  %v3290 = vpop.f32.mrb[0].mxu0
  %v3291 = vadd.f32 %v3196, %v3290
  %v3292 = vpop.f32.mrb[0].mxu0
  %v3293 = vadd.f32 %v3192, %v3292
  %v3294 = vpop.f32.mrb[0].mxu0
  %v3295 = vadd.f32 %v3196, %v3294
  %3296 = vmatprep.mubr.bf16.mxu0 0
  %3297 = vmatmul.mubr.bf16.gmra.mrb[0].mxu0 %v3243
  %v3298 = vpop.f32.mrb[0].mxu0
  %v3299 = vadd.f32 %v3192, %v3298
  %v3300 = vpop.f32.mrb[0].mxu0
  %v3301 = vadd.f32 %v3196, %v3300
  %v3302 = vpop.f32.mrb[0].mxu0
  %v3303 = vadd.f32 %v3192, %v3302
  %v3304 = vpop.f32.mrb[0].mxu0
  %v3305 = vadd.f32 %v3196, %v3304
  %3306 = vmatprep.mubr.bf16.mxu0 0
  %3307 = vmatmul.mubr.bf16.gmra.mrb[0].mxu0 %v3246
  %v3308 = vpop.f32.mrb[0].mxu0
  %v3309 = vadd.f32 %v3192, %v3308
  %v3310 = vpop.f32.mrb[0].mxu0
  %v3311 = vadd.f32 %v3196, %v3310
  %v3312 = vpop.f32.mrb[0].mxu0
  %v3313 = vadd.f32 %v3192, %v3312
  %v3314 = vpop.f32.mrb[0].mxu0
  %v3315 = vadd.f32 %v3196, %v3314
  %3316 = vmatprep.mubr.bf16.mxu0 0
  %3317 = vmatmul.mubr.bf16.gmra.mrb[0].mxu0 %v3249
  %v3318 = vpop.f32.mrb[0].mxu0
  %v3319 = vadd.f32 %v3192, %v3318
  %v3320 = vpop.f32.mrb[0].mxu0
  %v3321 = vadd.f32 %v3196, %v3320
  %v3322 = vpop.f32.mrb[0].mxu0
  %v3323 = vadd.f32 %v3192, %v3322
  %v3324 = vpop.f32.mrb[0].mxu0
  %v3325 = vadd.f32 %v3196, %v3324
  %3326 = vmatprep.mubr.bf16.mxu0 0
  %3327 = vmatmul.mubr.bf16.gmra.mrb[0].mxu0 %v3252
  %v3328 = vpop.f32.mrb[0].mxu0
  %v3329 = vadd.f32 %v3192, %v3328
  %v3330 = vpop.f32.mrb[0].mxu0
  %v3331 = vadd.f32 %v3196, %v3330
  %v3332 = vpop.f32.mrb[0].mxu0
  %v3333 = vpop.f32.mrb[0].mxu0
  %3334 = vdwg.mxu0
  %v3335 = vld [vmem:[%s2 + $0x18] sm:$0xff]
  %v3336 = vld [vmem:[%s1 + $0x190] sm:$0xff]
  %v3337 = vld [vmem:[%s1 + $0x198] sm:$0xff]
  %v3338 = vld [vmem:[%s1 + $0x1a0] sm:$0xff]
  %v3339 = vld [vmem:[%s1 + $0x1a8] sm:$0xff]
  %v3340 = vld [vmem:[%s1 + $0x1b0] sm:$0xff]
  %v3341 = vld [vmem:[%s1 + $0x1b8] sm:$0xff]
  %v3342 = vld [vmem:[%s1 + $0x1c0] sm:$0xff]
  %v3343 = vld [vmem:[%s1 + $0x1c8] sm:$0xff]
  %v3344 = vsel %vm389, %v3289, %v3329
  %v3345 = vsel %vm390, %v3291, %v3331
  %v3346 = vpack.c.bf16 %v3335, %v3335
  %v3355 = vunpack.c.l.b16 %v3336
  %v3356 = vunpack.c.h.b16 %v3336
  %v3357 = vunpack.c.l.b16 %v3337
  %v3358 = vunpack.c.h.b16 %v3337
  %v3359 = vunpack.c.l.b16 %v3338
  %v3360 = vunpack.c.h.b16 %v3338
  %v3361 = vunpack.c.l.b16 %v3339
  %v3362 = vunpack.c.h.b16 %v3339
  %v3363 = vunpack.c.l.b16 %v3340
  %v3364 = vunpack.c.h.b16 %v3340
  %v3365 = vunpack.c.l.b16 %v3341
  %v3366 = vunpack.c.h.b16 %v3341
  %v3367 = vunpack.c.l.b16 %v3342
  %v3368 = vunpack.c.h.b16 %v3342
  %v3369 = vunpack.c.l.b16 %v3343
  %v3370 = vunpack.c.h.b16 %v3343
  %v3371 = vpack.c.b16 %v3357, %v3355
  %v3372 = vpack.c.b16 %v3358, %v3356
  %v3373 = vpack.c.b16 %v3361, %v3359
  %v3374 = vpack.c.b16 %v3362, %v3360
  %v3375 = vpack.c.b16 %v3365, %v3363
  %v3376 = vpack.c.b16 %v3366, %v3364
  %v3377 = vpack.c.b16 %v3369, %v3367
  %v3378 = vpack.c.b16 %v3370, %v3368
  %v3388 = vsel %vm434, %v3346, 0
  %3390 = vmatprep.subr.bf16.mxu0 %v3372
  %3391 = vmatpush1.bf16.msra.mxu0 %v3371
  %3392 = vmatprep.subr.bf16.mxu0 %v3374
  %3393 = vmatpush1.bf16.msra.mxu0 %v3373
  %3394 = vmatprep.subr.bf16.mxu0 %v3376
  %3395 = vmatpush1.bf16.msra.mxu0 %v3375
  %3396 = vmatprep.subr.bf16.mxu0 %v3378
  %3397 = vmatpush1.bf16.msra.mxu0 %v3377
  %3398 = vmatprep.subr.bf16.mxu0 0
  %3399 = vmatpush1.bf16.msra.mxu0 0
  %3400 = vmatprep.subr.bf16.mxu0 0
  %3401 = vmatpush1.bf16.msra.mxu0 0
  %3402 = vmatprep.subr.bf16.mxu0 0
  %3403 = vmatpush1.bf16.msra.mxu0 0
  %3404 = vmatprep.subr.bf16.mxu0 0
  %3405 = vmatpush1.bf16.msra.mxu0 0
  %3406 = vmatprep.subr.bf16.mxu0 0
  %3407 = vmatpush1.bf16.msra.mxu0 0
  %3408 = vmatprep.subr.bf16.mxu0 0
  %3409 = vmatpush1.bf16.msra.mxu0 0
  %3410 = vmatprep.subr.bf16.mxu0 0
  %3411 = vmatpush1.bf16.msra.mxu0 0
  %3412 = vmatprep.subr.bf16.mxu0 0
  %3413 = vmatpush1.bf16.msra.mxu0 0
  %3414 = vmatprep.subr.bf16.mxu0 0
  %3415 = vmatpush1.bf16.msra.mxu0 0
  %3416 = vmatprep.subr.bf16.mxu0 0
  %3417 = vmatpush1.bf16.msra.mxu0 0
  %3418 = vmatprep.subr.bf16.mxu0 0
  %3419 = vmatpush1.bf16.msra.mxu0 0
  %3420 = vmatprep.subr.bf16.mxu0 0
  %3421 = vmatpush1.bf16.msra.mxu0 0
  %3422 = vmatprep.mubr.bf16.mxu0 0
  %3423 = vmatmul.mubr.bf16.gmra.mrb[0].mxu0 %v3388
  %v3424 = vpop.f32.mrb[0].mxu0
  %v3425 = vadd.f32 0.0, %v3424
  %v3426 = vpop.f32.mrb[0].mxu0
  %v3427 = vadd.f32 0.0, %v3426
  %v3428 = vpop.f32.mrb[0].mxu0
  %v3429 = vpop.f32.mrb[0].mxu0
  %3430 = vdwg.mxu0
  %v3431 = vadd.f32 %v3344, %v3425
  %v3432 = vadd.f32 %v3345, %v3427
  %v3433 = vxor.u32 %v3431, 2147483648
  %v3434 = vxor.u32 %v3432, 2147483648
  %v3435 = vmul.f32 %v3433, 1.442695
  %v3436 = vpow.pop %v3435
  %v3437 = vmul.f32 %v3434, 1.442695
  %v3438 = vpow.pop %v3437
  %v3439 = vadd.f32 %v3436, 1.0
  %v3440 = vadd.f32 %v3438, 1.0
  %v3441 = vrcp.pop %v3439
  %v3442 = vmul.f32 1.0, %v3441
  %v3443 = vrcp.pop %v3440
  %v3444 = vmul.f32 1.0, %v3443
  %v3445 = vtanh.pop %v3432
  %v3446 = vmul.f32 %v3442, %v3335
  %3448 = vrot.lane.b32.xlu0 %v3445, 64
  %v3449 = vpop.permute.xlu0 %3448
  %v3451 = vmul.f32 %v3442, %v3449
  %3453 = vrot.lane.b32.xlu0 %v3451, 64
  %v3454 = vpop.permute.xlu0 %3453
  %v3456 = vadd.f32 %v3446, %v3454
  %v3457 = vtanh.pop %v3456
  %3459 = vrot.lane.b32.xlu0 %v3457, 64
  %v3460 = vpop.permute.xlu0 %3459
  %v3462 = vmul.f32 %v3444, %v3460
  %v3463 = vsel %vm389, %v3293, %v3323
  %v3464 = vsel %vm390, %v3295, %v3325
  %v3465 = vpack.c.bf16 %v3462, %v3462
  %v3467 = vsel %vm434, %v3465, 0
  %3469 = vmatprep.subr.bf16.mxu0 %v3372
  %3470 = vmatpush1.bf16.msra.mxu0 %v3371
  %3471 = vmatprep.subr.bf16.mxu0 %v3374
  %3472 = vmatpush1.bf16.msra.mxu0 %v3373
  %3473 = vmatprep.subr.bf16.mxu0 %v3376
  %3474 = vmatpush1.bf16.msra.mxu0 %v3375
  %3475 = vmatprep.subr.bf16.mxu0 %v3378
  %3476 = vmatpush1.bf16.msra.mxu0 %v3377
  %3477 = vmatprep.subr.bf16.mxu0 0
  %3478 = vmatpush1.bf16.msra.mxu0 0
  %3479 = vmatprep.subr.bf16.mxu0 0
  %3480 = vmatpush1.bf16.msra.mxu0 0
  %3481 = vmatprep.subr.bf16.mxu0 0
  %3482 = vmatpush1.bf16.msra.mxu0 0
  %3483 = vmatprep.subr.bf16.mxu0 0
  %3484 = vmatpush1.bf16.msra.mxu0 0
  %3485 = vmatprep.subr.bf16.mxu0 0
  %3486 = vmatpush1.bf16.msra.mxu0 0
  %3487 = vmatprep.subr.bf16.mxu0 0
  %3488 = vmatpush1.bf16.msra.mxu0 0
  %3489 = vmatprep.subr.bf16.mxu0 0
  %3490 = vmatpush1.bf16.msra.mxu0 0
  %3491 = vmatprep.subr.bf16.mxu0 0
  %3492 = vmatpush1.bf16.msra.mxu0 0
  %3493 = vmatprep.subr.bf16.mxu0 0
  %3494 = vmatpush1.bf16.msra.mxu0 0
  %3495 = vmatprep.subr.bf16.mxu0 0
  %3496 = vmatpush1.bf16.msra.mxu0 0
  %3497 = vmatprep.subr.bf16.mxu0 0
  %3498 = vmatpush1.bf16.msra.mxu0 0
  %3499 = vmatprep.subr.bf16.mxu0 0
  %3500 = vmatpush1.bf16.msra.mxu0 0
  %3501 = vmatprep.mubr.bf16.mxu0 0
  %3502 = vmatmul.mubr.bf16.gmra.mrb[0].mxu0 %v3467
  %v3503 = vpop.f32.mrb[0].mxu0
  %v3504 = vadd.f32 0.0, %v3503
  %v3505 = vpop.f32.mrb[0].mxu0
  %v3506 = vadd.f32 0.0, %v3505
  %v3507 = vpop.f32.mrb[0].mxu0
  %v3508 = vpop.f32.mrb[0].mxu0
  %3509 = vdwg.mxu0
  %v3510 = vadd.f32 %v3463, %v3504
  %v3511 = vadd.f32 %v3464, %v3506
  %v3512 = vxor.u32 %v3510, 2147483648
  %v3513 = vxor.u32 %v3511, 2147483648
  %v3514 = vmul.f32 %v3512, 1.442695
  %v3515 = vpow.pop %v3514
  %v3516 = vmul.f32 %v3513, 1.442695
  %v3517 = vpow.pop %v3516
  %v3518 = vadd.f32 %v3515, 1.0
  %v3519 = vadd.f32 %v3517, 1.0
  %v3520 = vrcp.pop %v3518
  %v3521 = vmul.f32 1.0, %v3520
  %v3522 = vrcp.pop %v3519
  %v3523 = vmul.f32 1.0, %v3522
  %v3524 = vtanh.pop %v3511
  %v3525 = vmul.f32 %v3521, %v3456
  %3527 = vrot.lane.b32.xlu0 %v3524, 64
  %v3528 = vpop.permute.xlu0 %3527
  %v3530 = vmul.f32 %v3521, %v3528
  %3532 = vrot.lane.b32.xlu0 %v3530, 64
  %v3533 = vpop.permute.xlu0 %3532
  %v3535 = vadd.f32 %v3525, %v3533
  %v3536 = vtanh.pop %v3535
  %3538 = vrot.lane.b32.xlu0 %v3536, 64
  %v3539 = vpop.permute.xlu0 %3538
  %v3541 = vmul.f32 %v3523, %v3539
  %v3542 = vsel %vm389, %v3299, %v3319
  %v3543 = vsel %vm390, %v3301, %v3321
  %v3544 = vpack.c.bf16 %v3541, %v3541
  %v3546 = vsel %vm434, %v3544, 0
  %3548 = vmatprep.subr.bf16.mxu0 %v3372
  %3549 = vmatpush1.bf16.msra.mxu0 %v3371
  %3550 = vmatprep.subr.bf16.mxu0 %v3374
  %3551 = vmatpush1.bf16.msra.mxu0 %v3373
  %3552 = vmatprep.subr.bf16.mxu0 %v3376
  %3553 = vmatpush1.bf16.msra.mxu0 %v3375
  %3554 = vmatprep.subr.bf16.mxu0 %v3378
  %3555 = vmatpush1.bf16.msra.mxu0 %v3377
  %3556 = vmatprep.subr.bf16.mxu0 0
  %3557 = vmatpush1.bf16.msra.mxu0 0
  %3558 = vmatprep.subr.bf16.mxu0 0
  %3559 = vmatpush1.bf16.msra.mxu0 0
  %3560 = vmatprep.subr.bf16.mxu0 0
  %3561 = vmatpush1.bf16.msra.mxu0 0
  %3562 = vmatprep.subr.bf16.mxu0 0
  %3563 = vmatpush1.bf16.msra.mxu0 0
  %3564 = vmatprep.subr.bf16.mxu0 0
  %3565 = vmatpush1.bf16.msra.mxu0 0
  %3566 = vmatprep.subr.bf16.mxu0 0
  %3567 = vmatpush1.bf16.msra.mxu0 0
  %3568 = vmatprep.subr.bf16.mxu0 0
  %3569 = vmatpush1.bf16.msra.mxu0 0
  %3570 = vmatprep.subr.bf16.mxu0 0
  %3571 = vmatpush1.bf16.msra.mxu0 0
  %3572 = vmatprep.subr.bf16.mxu0 0
  %3573 = vmatpush1.bf16.msra.mxu0 0
  %3574 = vmatprep.subr.bf16.mxu0 0
  %3575 = vmatpush1.bf16.msra.mxu0 0
  %3576 = vmatprep.subr.bf16.mxu0 0
  %3577 = vmatpush1.bf16.msra.mxu0 0
  %3578 = vmatprep.subr.bf16.mxu0 0
  %3579 = vmatpush1.bf16.msra.mxu0 0
  %3580 = vmatprep.mubr.bf16.mxu0 0
  %3581 = vmatmul.mubr.bf16.gmra.mrb[0].mxu0 %v3546
  %v3582 = vpop.f32.mrb[0].mxu0
  %v3583 = vadd.f32 0.0, %v3582
  %v3584 = vpop.f32.mrb[0].mxu0
  %v3585 = vadd.f32 0.0, %v3584
  %v3586 = vpop.f32.mrb[0].mxu0
  %v3587 = vpop.f32.mrb[0].mxu0
  %3588 = vdwg.mxu0
  %v3589 = vadd.f32 %v3542, %v3583
  %v3590 = vadd.f32 %v3543, %v3585
  %v3591 = vxor.u32 %v3589, 2147483648
  %v3592 = vxor.u32 %v3590, 2147483648
  %v3593 = vmul.f32 %v3591, 1.442695
  %v3594 = vpow.pop %v3593
  %v3595 = vmul.f32 %v3592, 1.442695
  %v3596 = vpow.pop %v3595
  %v3597 = vadd.f32 %v3594, 1.0
  %v3598 = vadd.f32 %v3596, 1.0
  %v3599 = vrcp.pop %v3597
  %v3600 = vmul.f32 1.0, %v3599
  %v3601 = vrcp.pop %v3598
  %v3602 = vmul.f32 1.0, %v3601
  %v3603 = vtanh.pop %v3590
  %v3604 = vmul.f32 %v3600, %v3535
  %3606 = vrot.lane.b32.xlu0 %v3603, 64
  %v3607 = vpop.permute.xlu0 %3606
  %v3609 = vmul.f32 %v3600, %v3607
  %3611 = vrot.lane.b32.xlu0 %v3609, 64
  %v3612 = vpop.permute.xlu0 %3611
  %v3614 = vadd.f32 %v3604, %v3612
  %v3615 = vtanh.pop %v3614
  %3617 = vrot.lane.b32.xlu0 %v3615, 64
  %v3618 = vpop.permute.xlu0 %3617
  %v3620 = vmul.f32 %v3602, %v3618
  %v3621 = vsel %vm389, %v3303, %v3313
  %v3622 = vsel %vm390, %v3305, %v3315
  %v3623 = vpack.c.bf16 %v3620, %v3620
  %v3625 = vsel %vm434, %v3623, 0
  %3627 = vmatprep.subr.bf16.mxu0 %v3372
  %3628 = vmatpush1.bf16.msra.mxu0 %v3371
  %3629 = vmatprep.subr.bf16.mxu0 %v3374
  %3630 = vmatpush1.bf16.msra.mxu0 %v3373
  %3631 = vmatprep.subr.bf16.mxu0 %v3376
  %3632 = vmatpush1.bf16.msra.mxu0 %v3375
  %3633 = vmatprep.subr.bf16.mxu0 %v3378
  %3634 = vmatpush1.bf16.msra.mxu0 %v3377
  %3635 = vmatprep.subr.bf16.mxu0 0
  %3636 = vmatpush1.bf16.msra.mxu0 0
  %3637 = vmatprep.subr.bf16.mxu0 0
  %3638 = vmatpush1.bf16.msra.mxu0 0
  %3639 = vmatprep.subr.bf16.mxu0 0
  %3640 = vmatpush1.bf16.msra.mxu0 0
  %3641 = vmatprep.subr.bf16.mxu0 0
  %3642 = vmatpush1.bf16.msra.mxu0 0
  %3643 = vmatprep.subr.bf16.mxu0 0
  %3644 = vmatpush1.bf16.msra.mxu0 0
  %3645 = vmatprep.subr.bf16.mxu0 0
  %3646 = vmatpush1.bf16.msra.mxu0 0
  %3647 = vmatprep.subr.bf16.mxu0 0
  %3648 = vmatpush1.bf16.msra.mxu0 0
  %3649 = vmatprep.subr.bf16.mxu0 0
  %3650 = vmatpush1.bf16.msra.mxu0 0
  %3651 = vmatprep.subr.bf16.mxu0 0
  %3652 = vmatpush1.bf16.msra.mxu0 0
  %3653 = vmatprep.subr.bf16.mxu0 0
  %3654 = vmatpush1.bf16.msra.mxu0 0
  %3655 = vmatprep.subr.bf16.mxu0 0
  %3656 = vmatpush1.bf16.msra.mxu0 0
  %3657 = vmatprep.subr.bf16.mxu0 0
  %3658 = vmatpush1.bf16.msra.mxu0 0
  %3659 = vmatprep.mubr.bf16.mxu0 0
  %3660 = vmatmul.mubr.bf16.gmra.mrb[0].mxu0 %v3625
  %v3661 = vpop.f32.mrb[0].mxu0
  %v3662 = vadd.f32 0.0, %v3661
  %v3663 = vpop.f32.mrb[0].mxu0
  %v3664 = vadd.f32 0.0, %v3663
  %v3665 = vpop.f32.mrb[0].mxu0
  %v3666 = vpop.f32.mrb[0].mxu0
  %3667 = vdwg.mxu0
  %v3668 = vadd.f32 %v3621, %v3662
  %v3669 = vadd.f32 %v3622, %v3664
  %v3670 = vxor.u32 %v3668, 2147483648
  %v3671 = vxor.u32 %v3669, 2147483648
  %v3672 = vmul.f32 %v3670, 1.442695
  %v3673 = vpow.pop %v3672
  %v3674 = vmul.f32 %v3671, 1.442695
  %v3675 = vpow.pop %v3674
  %v3676 = vadd.f32 %v3673, 1.0
  %v3677 = vadd.f32 %v3675, 1.0
  %v3678 = vrcp.pop %v3676
  %v3679 = vmul.f32 1.0, %v3678
  %v3680 = vrcp.pop %v3677
  %v3681 = vmul.f32 1.0, %v3680
  %v3682 = vtanh.pop %v3669
  %v3683 = vmul.f32 %v3679, %v3614
  %3685 = vrot.lane.b32.xlu0 %v3682, 64
  %v3686 = vpop.permute.xlu0 %3685
  %v3688 = vmul.f32 %v3679, %v3686
  %3690 = vrot.lane.b32.xlu0 %v3688, 64
  %v3691 = vpop.permute.xlu0 %3690
  %v3693 = vadd.f32 %v3683, %v3691
  %v3694 = vtanh.pop %v3693
  %3696 = vrot.lane.b32.xlu0 %v3694, 64
  %v3697 = vpop.permute.xlu0 %3696
  %v3699 = vmul.f32 %v3681, %v3697
  %v3700 = vpack.c.bf16 %v3699, %v3699
  %v3702 = vsel %vm434, %v3700, 0
  %3704 = vmatprep.subr.bf16.mxu0 %v3372
  %3705 = vmatpush1.bf16.msra.mxu0 %v3371
  %3706 = vmatprep.subr.bf16.mxu0 %v3374
  %3707 = vmatpush1.bf16.msra.mxu0 %v3373
  %3708 = vmatprep.subr.bf16.mxu0 %v3376
  %3709 = vmatpush1.bf16.msra.mxu0 %v3375
  %3710 = vmatprep.subr.bf16.mxu0 %v3378
  %3711 = vmatpush1.bf16.msra.mxu0 %v3377
  %3712 = vmatprep.subr.bf16.mxu0 0
  %3713 = vmatpush1.bf16.msra.mxu0 0
  %3714 = vmatprep.subr.bf16.mxu0 0
  %3715 = vmatpush1.bf16.msra.mxu0 0
  %3716 = vmatprep.subr.bf16.mxu0 0
  %3717 = vmatpush1.bf16.msra.mxu0 0
  %3718 = vmatprep.subr.bf16.mxu0 0
  %3719 = vmatpush1.bf16.msra.mxu0 0
  %3720 = vmatprep.subr.bf16.mxu0 0
  %3721 = vmatpush1.bf16.msra.mxu0 0
  %3722 = vmatprep.subr.bf16.mxu0 0
  %3723 = vmatpush1.bf16.msra.mxu0 0
  %3724 = vmatprep.subr.bf16.mxu0 0
  %3725 = vmatpush1.bf16.msra.mxu0 0
  %3726 = vmatprep.subr.bf16.mxu0 0
  %3727 = vmatpush1.bf16.msra.mxu0 0
  %3728 = vmatprep.subr.bf16.mxu0 0
  %3729 = vmatpush1.bf16.msra.mxu0 0
  %3730 = vmatprep.subr.bf16.mxu0 0
  %3731 = vmatpush1.bf16.msra.mxu0 0
  %3732 = vmatprep.subr.bf16.mxu0 0
  %3733 = vmatpush1.bf16.msra.mxu0 0
  %3734 = vmatprep.subr.bf16.mxu0 0
  %3735 = vmatpush1.bf16.msra.mxu0 0
  %3736 = vmatprep.mubr.bf16.mxu0 0
  %3737 = vmatmul.mubr.bf16.gmra.mrb[0].mxu0 %v3702
  %v3738 = vpop.f32.mrb[0].mxu0
  %v3739 = vadd.f32 0.0, %v3738
  %v3740 = vpop.f32.mrb[0].mxu0
  %v3741 = vadd.f32 0.0, %v3740
  %v3742 = vpop.f32.mrb[0].mxu0
  %v3743 = vpop.f32.mrb[0].mxu0
  %3744 = vdwg.mxu0
  %v3745 = vadd.f32 %v3309, %v3739
  %v3746 = vadd.f32 %v3311, %v3741
  %v3747 = vxor.u32 %v3745, 2147483648
  %v3748 = vxor.u32 %v3746, 2147483648
  %v3749 = vmul.f32 %v3747, 1.442695
  %v3750 = vpow.pop %v3749
  %v3751 = vmul.f32 %v3748, 1.442695
  %v3752 = vpow.pop %v3751
  %v3753 = vadd.f32 %v3750, 1.0
  %v3754 = vadd.f32 %v3752, 1.0
  %v3755 = vrcp.pop %v3753
  %v3756 = vmul.f32 1.0, %v3755
  %v3757 = vrcp.pop %v3754
  %v3758 = vmul.f32 1.0, %v3757
  %v3759 = vtanh.pop %v3746
  %v3760 = vmul.f32 %v3756, %v3693
  %3762 = vrot.lane.b32.xlu0 %v3759, 64
  %v3763 = vpop.permute.xlu0 %3762
  %v3765 = vmul.f32 %v3756, %v3763
  %3767 = vrot.lane.b32.xlu0 %v3765, 64
  %v3768 = vpop.permute.xlu0 %3767
  %v3770 = vadd.f32 %v3760, %v3768
  %v3771 = vtanh.pop %v3770
  %3773 = vrot.lane.b32.xlu0 %v3771, 64
  %v3774 = vpop.permute.xlu0 %3773
  %v3776 = vmul.f32 %v3758, %v3774
  %v3777 = vsel %vm389, %v3313, %v3303
  %v3778 = vsel %vm390, %v3315, %v3305
  %v3779 = vpack.c.bf16 %v3776, %v3776
  %v3781 = vsel %vm434, %v3779, 0
  %3783 = vmatprep.subr.bf16.mxu0 %v3372
  %3784 = vmatpush1.bf16.msra.mxu0 %v3371
  %3785 = vmatprep.subr.bf16.mxu0 %v3374
  %3786 = vmatpush1.bf16.msra.mxu0 %v3373
  %3787 = vmatprep.subr.bf16.mxu0 %v3376
  %3788 = vmatpush1.bf16.msra.mxu0 %v3375
  %3789 = vmatprep.subr.bf16.mxu0 %v3378
  %3790 = vmatpush1.bf16.msra.mxu0 %v3377
  %3791 = vmatprep.subr.bf16.mxu0 0
  %3792 = vmatpush1.bf16.msra.mxu0 0
  %3793 = vmatprep.subr.bf16.mxu0 0
  %3794 = vmatpush1.bf16.msra.mxu0 0
  %3795 = vmatprep.subr.bf16.mxu0 0
  %3796 = vmatpush1.bf16.msra.mxu0 0
  %3797 = vmatprep.subr.bf16.mxu0 0
  %3798 = vmatpush1.bf16.msra.mxu0 0
  %3799 = vmatprep.subr.bf16.mxu0 0
  %3800 = vmatpush1.bf16.msra.mxu0 0
  %3801 = vmatprep.subr.bf16.mxu0 0
  %3802 = vmatpush1.bf16.msra.mxu0 0
  %3803 = vmatprep.subr.bf16.mxu0 0
  %3804 = vmatpush1.bf16.msra.mxu0 0
  %3805 = vmatprep.subr.bf16.mxu0 0
  %3806 = vmatpush1.bf16.msra.mxu0 0
  %3807 = vmatprep.subr.bf16.mxu0 0
  %3808 = vmatpush1.bf16.msra.mxu0 0
  %3809 = vmatprep.subr.bf16.mxu0 0
  %3810 = vmatpush1.bf16.msra.mxu0 0
  %3811 = vmatprep.subr.bf16.mxu0 0
  %3812 = vmatpush1.bf16.msra.mxu0 0
  %3813 = vmatprep.subr.bf16.mxu0 0
  %3814 = vmatpush1.bf16.msra.mxu0 0
  %3815 = vmatprep.mubr.bf16.mxu0 0
  %3816 = vmatmul.mubr.bf16.gmra.mrb[0].mxu0 %v3781
  %v3817 = vpop.f32.mrb[0].mxu0
  %v3818 = vadd.f32 0.0, %v3817
  %v3819 = vpop.f32.mrb[0].mxu0
  %v3820 = vadd.f32 0.0, %v3819
  %v3821 = vpop.f32.mrb[0].mxu0
  %v3822 = vpop.f32.mrb[0].mxu0
  %3823 = vdwg.mxu0
  %v3824 = vadd.f32 %v3777, %v3818
  %v3825 = vadd.f32 %v3778, %v3820
  %v3826 = vxor.u32 %v3824, 2147483648
  %v3827 = vxor.u32 %v3825, 2147483648
  %v3828 = vmul.f32 %v3826, 1.442695
  %v3829 = vpow.pop %v3828
  %v3830 = vmul.f32 %v3827, 1.442695
  %v3831 = vpow.pop %v3830
  %v3832 = vadd.f32 %v3829, 1.0
  %v3833 = vadd.f32 %v3831, 1.0
  %v3834 = vrcp.pop %v3832
  %v3835 = vmul.f32 1.0, %v3834
  %v3836 = vrcp.pop %v3833
  %v3837 = vmul.f32 1.0, %v3836
  %v3838 = vtanh.pop %v3825
  %v3839 = vmul.f32 %v3835, %v3770
  %3841 = vrot.lane.b32.xlu0 %v3838, 64
  %v3842 = vpop.permute.xlu0 %3841
  %v3844 = vmul.f32 %v3835, %v3842
  %3846 = vrot.lane.b32.xlu0 %v3844, 64
  %v3847 = vpop.permute.xlu0 %3846
  %v3849 = vadd.f32 %v3839, %v3847
  %v3850 = vtanh.pop %v3849
  %3852 = vrot.lane.b32.xlu0 %v3850, 64
  %v3853 = vpop.permute.xlu0 %3852
  %v3855 = vmul.f32 %v3837, %v3853
  %v3856 = vsel %vm389, %v3319, %v3299
  %v3857 = vsel %vm390, %v3321, %v3301
  %v3858 = vpack.c.bf16 %v3855, %v3855
  %v3860 = vsel %vm434, %v3858, 0
  %3862 = vmatprep.subr.bf16.mxu0 %v3372
  %3863 = vmatpush1.bf16.msra.mxu0 %v3371
  %3864 = vmatprep.subr.bf16.mxu0 %v3374
  %3865 = vmatpush1.bf16.msra.mxu0 %v3373
  %3866 = vmatprep.subr.bf16.mxu0 %v3376
  %3867 = vmatpush1.bf16.msra.mxu0 %v3375
  %3868 = vmatprep.subr.bf16.mxu0 %v3378
  %3869 = vmatpush1.bf16.msra.mxu0 %v3377
  %3870 = vmatprep.subr.bf16.mxu0 0
  %3871 = vmatpush1.bf16.msra.mxu0 0
  %3872 = vmatprep.subr.bf16.mxu0 0
  %3873 = vmatpush1.bf16.msra.mxu0 0
  %3874 = vmatprep.subr.bf16.mxu0 0
  %3875 = vmatpush1.bf16.msra.mxu0 0
  %3876 = vmatprep.subr.bf16.mxu0 0
  %3877 = vmatpush1.bf16.msra.mxu0 0
  %3878 = vmatprep.subr.bf16.mxu0 0
  %3879 = vmatpush1.bf16.msra.mxu0 0
  %3880 = vmatprep.subr.bf16.mxu0 0
  %3881 = vmatpush1.bf16.msra.mxu0 0
  %3882 = vmatprep.subr.bf16.mxu0 0
  %3883 = vmatpush1.bf16.msra.mxu0 0
  %3884 = vmatprep.subr.bf16.mxu0 0
  %3885 = vmatpush1.bf16.msra.mxu0 0
  %3886 = vmatprep.subr.bf16.mxu0 0
  %3887 = vmatpush1.bf16.msra.mxu0 0
  %3888 = vmatprep.subr.bf16.mxu0 0
  %3889 = vmatpush1.bf16.msra.mxu0 0
  %3890 = vmatprep.subr.bf16.mxu0 0
  %3891 = vmatpush1.bf16.msra.mxu0 0
  %3892 = vmatprep.subr.bf16.mxu0 0
  %3893 = vmatpush1.bf16.msra.mxu0 0
  %3894 = vmatprep.mubr.bf16.mxu0 0
  %3895 = vmatmul.mubr.bf16.gmra.mrb[0].mxu0 %v3860
  %v3896 = vpop.f32.mrb[0].mxu0
  %v3897 = vadd.f32 0.0, %v3896
  %v3898 = vpop.f32.mrb[0].mxu0
  %v3899 = vadd.f32 0.0, %v3898
  %v3900 = vpop.f32.mrb[0].mxu0
  %v3901 = vpop.f32.mrb[0].mxu0
  %3902 = vdwg.mxu0
  %v3903 = vadd.f32 %v3856, %v3897
  %v3904 = vadd.f32 %v3857, %v3899
  %v3905 = vxor.u32 %v3903, 2147483648
  %v3906 = vxor.u32 %v3904, 2147483648
  %v3907 = vmul.f32 %v3905, 1.442695
  %v3908 = vpow.pop %v3907
  %v3909 = vmul.f32 %v3906, 1.442695
  %v3910 = vpow.pop %v3909
  %v3911 = vadd.f32 %v3908, 1.0
  %v3912 = vadd.f32 %v3910, 1.0
  %v3913 = vrcp.pop %v3911
  %v3914 = vmul.f32 1.0, %v3913
  %v3915 = vrcp.pop %v3912
  %v3916 = vmul.f32 1.0, %v3915
  %v3917 = vtanh.pop %v3904
  %v3918 = vmul.f32 %v3914, %v3849
  %3920 = vrot.lane.b32.xlu0 %v3917, 64
  %v3921 = vpop.permute.xlu0 %3920
  %v3923 = vmul.f32 %v3914, %v3921
  %3925 = vrot.lane.b32.xlu0 %v3923, 64
  %v3926 = vpop.permute.xlu0 %3925
  %v3928 = vadd.f32 %v3918, %v3926
  %v3929 = vtanh.pop %v3928
  %3931 = vrot.lane.b32.xlu0 %v3929, 64
  %v3932 = vpop.permute.xlu0 %3931
  %v3934 = vmul.f32 %v3916, %v3932
  %v3935 = vsel %vm389, %v3323, %v3293
  %v3936 = vsel %vm390, %v3325, %v3295
  %v3937 = vpack.c.bf16 %v3934, %v3934
  %v3939 = vsel %vm434, %v3937, 0
  %3941 = vmatprep.subr.bf16.mxu0 %v3372
  %3942 = vmatpush1.bf16.msra.mxu0 %v3371
  %3943 = vmatprep.subr.bf16.mxu0 %v3374
  %3944 = vmatpush1.bf16.msra.mxu0 %v3373
  %3945 = vmatprep.subr.bf16.mxu0 %v3376
  %3946 = vmatpush1.bf16.msra.mxu0 %v3375
  %3947 = vmatprep.subr.bf16.mxu0 %v3378
  %3948 = vmatpush1.bf16.msra.mxu0 %v3377
  %3949 = vmatprep.subr.bf16.mxu0 0
  %3950 = vmatpush1.bf16.msra.mxu0 0
  %3951 = vmatprep.subr.bf16.mxu0 0
  %3952 = vmatpush1.bf16.msra.mxu0 0
  %3953 = vmatprep.subr.bf16.mxu0 0
  %3954 = vmatpush1.bf16.msra.mxu0 0
  %3955 = vmatprep.subr.bf16.mxu0 0
  %3956 = vmatpush1.bf16.msra.mxu0 0
  %3957 = vmatprep.subr.bf16.mxu0 0
  %3958 = vmatpush1.bf16.msra.mxu0 0
  %3959 = vmatprep.subr.bf16.mxu0 0
  %3960 = vmatpush1.bf16.msra.mxu0 0
  %3961 = vmatprep.subr.bf16.mxu0 0
  %3962 = vmatpush1.bf16.msra.mxu0 0
  %3963 = vmatprep.subr.bf16.mxu0 0
  %3964 = vmatpush1.bf16.msra.mxu0 0
  %3965 = vmatprep.subr.bf16.mxu0 0
  %3966 = vmatpush1.bf16.msra.mxu0 0
  %3967 = vmatprep.subr.bf16.mxu0 0
  %3968 = vmatpush1.bf16.msra.mxu0 0
  %3969 = vmatprep.subr.bf16.mxu0 0
  %3970 = vmatpush1.bf16.msra.mxu0 0
  %3971 = vmatprep.subr.bf16.mxu0 0
  %3972 = vmatpush1.bf16.msra.mxu0 0
  %3973 = vmatprep.mubr.bf16.mxu0 0
  %3974 = vmatmul.mubr.bf16.gmra.mrb[0].mxu0 %v3939
  %v3975 = vpop.f32.mrb[0].mxu0
  %v3976 = vadd.f32 0.0, %v3975
  %v3977 = vpop.f32.mrb[0].mxu0
  %v3978 = vadd.f32 0.0, %v3977
  %v3979 = vpop.f32.mrb[0].mxu0
  %v3980 = vpop.f32.mrb[0].mxu0
  %3981 = vdwg.mxu0
  %v3982 = vadd.f32 %v3935, %v3976
  %v3983 = vadd.f32 %v3936, %v3978
  %v3984 = vxor.u32 %v3982, 2147483648
  %v3985 = vxor.u32 %v3983, 2147483648
  %v3986 = vmul.f32 %v3984, 1.442695
  %v3987 = vpow.pop %v3986
  %v3988 = vmul.f32 %v3985, 1.442695
  %v3989 = vpow.pop %v3988
  %v3990 = vadd.f32 %v3987, 1.0
  %v3991 = vadd.f32 %v3989, 1.0
  %v3992 = vrcp.pop %v3990
  %v3993 = vmul.f32 1.0, %v3992
  %v3994 = vrcp.pop %v3991
  %v3995 = vmul.f32 1.0, %v3994
  %v3996 = vtanh.pop %v3983
  %v3997 = vmul.f32 %v3993, %v3928
  %3999 = vrot.lane.b32.xlu0 %v3996, 64
  %v4000 = vpop.permute.xlu0 %3999
  %v4002 = vmul.f32 %v3993, %v4000
  %4004 = vrot.lane.b32.xlu0 %v4002, 64
  %v4005 = vpop.permute.xlu0 %4004
  %v4007 = vadd.f32 %v3997, %v4005
  %v4008 = vtanh.pop %v4007
  %4010 = vrot.lane.b32.xlu0 %v4008, 64
  %v4011 = vpop.permute.xlu0 %4010
  %v4013 = vmul.f32 %v3995, %v4011
  %v4014 = vsel %vm389, %v3329, %v3289
  %v4015 = vsel %vm390, %v3331, %v3291
  %v4016 = vpack.c.bf16 %v4013, %v4013
  %v4018 = vsel %vm434, %v4016, 0
  %4020 = vmatprep.subr.bf16.mxu0 %v3372
  %4021 = vmatpush1.bf16.msra.mxu0 %v3371
  %4022 = vmatprep.subr.bf16.mxu0 %v3374
  %4023 = vmatpush1.bf16.msra.mxu0 %v3373
  %4024 = vmatprep.subr.bf16.mxu0 %v3376
  %4025 = vmatpush1.bf16.msra.mxu0 %v3375
  %4026 = vmatprep.subr.bf16.mxu0 %v3378
  %4027 = vmatpush1.bf16.msra.mxu0 %v3377
  %4028 = vmatprep.subr.bf16.mxu0 0
  %4029 = vmatpush1.bf16.msra.mxu0 0
  %4030 = vmatprep.subr.bf16.mxu0 0
  %4031 = vmatpush1.bf16.msra.mxu0 0
  %4032 = vmatprep.subr.bf16.mxu0 0
  %4033 = vmatpush1.bf16.msra.mxu0 0
  %4034 = vmatprep.subr.bf16.mxu0 0
  %4035 = vmatpush1.bf16.msra.mxu0 0
  %4036 = vmatprep.subr.bf16.mxu0 0
  %4037 = vmatpush1.bf16.msra.mxu0 0
  %4038 = vmatprep.subr.bf16.mxu0 0
  %4039 = vmatpush1.bf16.msra.mxu0 0
  %4040 = vmatprep.subr.bf16.mxu0 0
  %4041 = vmatpush1.bf16.msra.mxu0 0
  %4042 = vmatprep.subr.bf16.mxu0 0
  %4043 = vmatpush1.bf16.msra.mxu0 0
  %4044 = vmatprep.subr.bf16.mxu0 0
  %4045 = vmatpush1.bf16.msra.mxu0 0
  %4046 = vmatprep.subr.bf16.mxu0 0
  %4047 = vmatpush1.bf16.msra.mxu0 0
  %4048 = vmatprep.subr.bf16.mxu0 0
  %4049 = vmatpush1.bf16.msra.mxu0 0
  %4050 = vmatprep.subr.bf16.mxu0 0
  %4051 = vmatpush1.bf16.msra.mxu0 0
  %4052 = vmatprep.mubr.bf16.mxu0 0
  %4053 = vmatmul.mubr.bf16.gmra.mrb[0].mxu0 %v4018
  %v4054 = vpop.f32.mrb[0].mxu0
  %v4055 = vadd.f32 0.0, %v4054
  %v4056 = vpop.f32.mrb[0].mxu0
  %v4057 = vadd.f32 0.0, %v4056
  %v4058 = vpop.f32.mrb[0].mxu0
  %v4059 = vpop.f32.mrb[0].mxu0
  %4060 = vdwg.mxu0
  %v4061 = vadd.f32 %v4014, %v4055
  %v4062 = vadd.f32 %v4015, %v4057
  %v4063 = vxor.u32 %v4061, 2147483648
  %v4064 = vxor.u32 %v4062, 2147483648
  %v4065 = vmul.f32 %v4063, 1.442695
  %v4066 = vpow.pop %v4065
  %v4067 = vmul.f32 %v4064, 1.442695
  %v4068 = vpow.pop %v4067
  %v4069 = vadd.f32 %v4066, 1.0
  %v4070 = vadd.f32 %v4068, 1.0
  %v4071 = vrcp.pop %v4069
  %v4072 = vmul.f32 1.0, %v4071
  %v4073 = vrcp.pop %v4070
  %v4074 = vmul.f32 1.0, %v4073
  %v4075 = vtanh.pop %v4062
  %v4076 = vmul.f32 %v4072, %v4007
  %4078 = vrot.lane.b32.xlu0 %v4075, 64
  %v4079 = vpop.permute.xlu0 %4078
  %v4081 = vmul.f32 %v4072, %v4079
  %4083 = vrot.lane.b32.xlu0 %v4081, 64
  %v4084 = vpop.permute.xlu0 %4083
  %v4086 = vadd.f32 %v4076, %v4084
  %v4087 = vtanh.pop %v4086
  %4089 = vrot.lane.b32.xlu0 %v4087, 64
  %v4090 = vpop.permute.xlu0 %4089
  %v4092 = vmul.f32 %v4074, %v4090
  %v4093 = vpack.c.bf16 %v4092, %v4092
  %v4094 = vld [vmem:[%s1 + $0x210] sm:$0xf]
  %v4095 = vld [vmem:[%s1 + $0x218] sm:$0xf]
  %v4096 = vld [vmem:[%s1 + $0x220] sm:$0xf]
  %v4097 = vld [vmem:[%s1 + $0x228] sm:$0xf]
  %v4098 = vld [vmem:[%s1 + $0x230] sm:$0xf]
  %v4099 = vld [vmem:[%s1 + $0x238] sm:$0xf]
  %v4100 = vld [vmem:[%s1 + $0x240] sm:$0xf]
  %v4101 = vld [vmem:[%s1 + $0x248] sm:$0xf]
  %v4102 = vld [vmem:[%s2 + $0x24] ss:$0 sm:$0xff]
  %v4111 = vunpack.c.l.b16 %v4094
  %v4112 = vunpack.c.l.b16 %v4095
  %v4113 = vunpack.c.l.b16 %v4096
  %v4114 = vunpack.c.l.b16 %v4097
  %v4115 = vunpack.c.l.b16 %v4098
  %v4116 = vunpack.c.l.b16 %v4099
  %v4117 = vunpack.c.l.b16 %v4100
  %v4118 = vunpack.c.l.b16 %v4101
  %v4119 = vpack.c.b16 %v4112, %v4111
  %v4120 = vpack.c.b16 %v4114, %v4113
  %v4121 = vpack.c.b16 %v4116, %v4115
  %v4122 = vpack.c.b16 %v4118, %v4117
  %4128 = vrot.lane.b32.xlu0 %v4102, 96
  %v4129 = vpop.permute.xlu0 %4128
  %v4132 = vsel %vm434, %v4093, 0
  %4134 = vmatprep.subr.bf16.mxu0 0
  %4135 = vmatpush1.bf16.msra.mxu0 %v4119
  %4136 = vmatprep.subr.bf16.mxu0 0
  %4137 = vmatpush1.bf16.msra.mxu0 %v4120
  %4138 = vmatprep.subr.bf16.mxu0 0
  %4139 = vmatpush1.bf16.msra.mxu0 %v4121
  %4140 = vmatprep.subr.bf16.mxu0 0
  %4141 = vmatpush1.bf16.msra.mxu0 %v4122
  %4142 = vmatprep.subr.bf16.mxu0 0
  %4143 = vmatpush1.bf16.msra.mxu0 0
  %4144 = vmatprep.subr.bf16.mxu0 0
  %4145 = vmatpush1.bf16.msra.mxu0 0
  %4146 = vmatprep.subr.bf16.mxu0 0
  %4147 = vmatpush1.bf16.msra.mxu0 0
  %4148 = vmatprep.subr.bf16.mxu0 0
  %4149 = vmatpush1.bf16.msra.mxu0 0
  %4150 = vmatprep.subr.bf16.mxu0 0
  %4151 = vmatpush1.bf16.msra.mxu0 0
  %4152 = vmatprep.subr.bf16.mxu0 0
  %4153 = vmatpush1.bf16.msra.mxu0 0
  %4154 = vmatprep.subr.bf16.mxu0 0
  %4155 = vmatpush1.bf16.msra.mxu0 0
  %4156 = vmatprep.subr.bf16.mxu0 0
  %4157 = vmatpush1.bf16.msra.mxu0 0
  %4158 = vmatprep.subr.bf16.mxu0 0
  %4159 = vmatpush1.bf16.msra.mxu0 0
  %4160 = vmatprep.subr.bf16.mxu0 0
  %4161 = vmatpush1.bf16.msra.mxu0 0
  %4162 = vmatprep.subr.bf16.mxu0 0
  %4163 = vmatpush1.bf16.msra.mxu0 0
  %4164 = vmatprep.subr.bf16.mxu0 0
  %4165 = vmatpush1.bf16.msra.mxu0 0
  %4166 = vmatprep.mubr.bf16.mxu0 0
  %4167 = vmatmul.mubr.bf16.gmra.mrb[0].mxu0 %v4132
  %v4168 = vpop.f32.mrb[0].mxu0
  %v4169 = vadd.f32 %v4129, %v4168
  %v4170 = vpop.f32.mrb[0].mxu0
  %v4171 = vpop.f32.mrb[0].mxu0
  %v4172 = vpop.f32.mrb[0].mxu0
  %4173 = vdwg.mxu0
  %v4174 = vmax.f32 %v4169, 0.0
  %v4175 = vpack.c.bf16 %v4174, %v4174
  %v4176 = vld [vmem:[%s1 + $0x250] sm:$0xf]
  %v4177 = vld [vmem:[%s1 + $0x258] sm:$0xf]
  %v4178 = vld [vmem:[%s1 + $0x260] sm:$0xf]
  %v4179 = vld [vmem:[%s1 + $0x268] sm:$0xf]
  %v4184 = vunpack.c.l.b16 %v4176
  %v4185 = vunpack.c.l.b16 %v4177
  %v4186 = vunpack.c.l.b16 %v4178
  %v4187 = vunpack.c.l.b16 %v4179
  %v4188 = vpack.c.b16 %v4185, %v4184
  %v4189 = vpack.c.b16 %v4187, %v4186
  %4192 = vrot.lane.b32.xlu0 %v4102, 64
  %v4193 = vpop.permute.xlu0 %4192
  %v4196 = vsel %vm116, %v4175, 0
  %4198 = vmatprep.subr.bf16.mxu0 0
  %4199 = vmatpush1.bf16.msra.mxu0 %v4188
  %4200 = vmatprep.subr.bf16.mxu0 0
  %4201 = vmatpush1.bf16.msra.mxu0 %v4189
  %4202 = vmatprep.subr.bf16.mxu0 0
  %4203 = vmatpush1.bf16.msra.mxu0 0
  %4204 = vmatprep.subr.bf16.mxu0 0
  %4205 = vmatpush1.bf16.msra.mxu0 0
  %4206 = vmatprep.subr.bf16.mxu0 0
  %4207 = vmatpush1.bf16.msra.mxu0 0
  %4208 = vmatprep.subr.bf16.mxu0 0
  %4209 = vmatpush1.bf16.msra.mxu0 0
  %4210 = vmatprep.subr.bf16.mxu0 0
  %4211 = vmatpush1.bf16.msra.mxu0 0
  %4212 = vmatprep.subr.bf16.mxu0 0
  %4213 = vmatpush1.bf16.msra.mxu0 0
  %4214 = vmatprep.subr.bf16.mxu0 0
  %4215 = vmatpush1.bf16.msra.mxu0 0
  %4216 = vmatprep.subr.bf16.mxu0 0
  %4217 = vmatpush1.bf16.msra.mxu0 0
  %4218 = vmatprep.subr.bf16.mxu0 0
  %4219 = vmatpush1.bf16.msra.mxu0 0
  %4220 = vmatprep.subr.bf16.mxu0 0
  %4221 = vmatpush1.bf16.msra.mxu0 0
  %4222 = vmatprep.subr.bf16.mxu0 0
  %4223 = vmatpush1.bf16.msra.mxu0 0
  %4224 = vmatprep.subr.bf16.mxu0 0
  %4225 = vmatpush1.bf16.msra.mxu0 0
  %4226 = vmatprep.subr.bf16.mxu0 0
  %4227 = vmatpush1.bf16.msra.mxu0 0
  %4228 = vmatprep.subr.bf16.mxu0 0
  %4229 = vmatpush1.bf16.msra.mxu0 0
  %4230 = vmatprep.mubr.bf16.mxu0 0
  %4231 = vmatmul.mubr.bf16.gmra.mrb[0].mxu0 %v4196
  %v4232 = vpop.f32.mrb[0].mxu0
  %v4233 = vadd.f32 %v4193, %v4232
  %v4234 = vpop.f32.mrb[0].mxu0
  %v4235 = vpop.f32.mrb[0].mxu0
  %v4236 = vpop.f32.mrb[0].mxu0
  %4237 = vdwg.mxu0
  %v4238 = vmax.f32 %v4233, 0.0
  %vm4239 = vcmask 15360
  %v4240 = vsel %vm4239, %v4238, -inf
  %4241 = vmax.xlane.f32.xlu0 %v4240
  %v4242 = vpop.xlane.xlu0 %4241
  %v4243 = vsub.f32 %v4238, %v4242
  %v4244 = vmul.f32 %v4243, 1.442695
  %v4245 = vpow.pop %v4244
  %v4246 = vsel %vm4239, %v4245, 0.0
  %4247 = vadd.xlane.f32.xlu0 %v4246
  %v4248 = vpop.xlane.xlu0 %4247
  %v4249 = vrcp.pop %v4248
  %v4250 = vmul.f32 %v4245, %v4249
  %4251 = vst.msk [vmem:[%s3] sm:$0xff] %vm4239, %v4250
  // Predicated region
  $region14: #{model_forward.1} parent=0 // pred_check
    _
  $region15: #{model_forward.1} parent=0 // pred_check_branch
    %4253 = sbr.rel (0) target = $region17
  $region16: #{model_forward.1} parent=0 // pred_region
    _
  $region17: #{model_forward.1} parent=0 // pred_fallthru
    _
  // Predicated region
  $region18: #{model_forward.1} parent=0 // pred_check
    _
  $region19: #{model_forward.1} parent=0 // pred_check_branch
    %4255 = sbr.rel (0) target = $region21
  $region20: #{model_forward.1} parent=0 // pred_region
    _
  $region21: #{model_forward.1} parent=0 // pred_fallthru
    _

</llo_original>
